<compile_context>
chip_gen: v7x
topology: tpu7x:2x2x1
jax: 0.10.0
libtpu: 0.0.40
codegen_flags: <defaults>
</compile_context>

<pallas_src>
import functools
import math

import jax
import jax.numpy as jnp
from jax.experimental import pallas as pl
from jax.experimental.pallas import tpu as pltpu


def _round_up(x, m):
    return ((x + m - 1) // m) * m


# --------------------------------------------------------------------------
# Kernel 1: two-layer LSTM recurrence -> last hidden state of layer 1
# --------------------------------------------------------------------------
def lstm_recurrence_kernel(emb_ref,                     # (Tc*Bp, Ep) bf16 time-major rows
                           wih0_ref, whh0_ref, b0_ref,  # (Ep,4Hp) bf16, (Hp,4Hp) bf16, (1,4Hp) f32
                           wih1_ref, whh1_ref, b1_ref,  # (Hp,4Hp) bf16, (Hp,4Hp) bf16, (1,4Hp) f32
                           hlast_ref,                   # (Bp, Hp) f32 output (last-step h, layer 1)
                           h0_ref, c0_ref, h1_ref, c1_ref):  # (Bp, Hp) f32 VMEM scratch
    Bp, Hp = h0_ref.shape
    Tc = emb_ref.shape[0] // Bp

    @pl.when(pl.program_id(0) == 0)
    def _init():
        z = jnp.zeros((Bp, Hp), jnp.float32)
        h0_ref[...] = z
        c0_ref[...] = z
        h1_ref[...] = z
        c1_ref[...] = z

    # Hoisted, time-invariant layer-0 input projection for this chunk:
    # one tall (Tc*Bp, Ep) @ (Ep, 4Hp) bf16 MXU matmul with f32 accumulation;
    # layer-0 bias (b_ih + b_hh) folded in with a single broadcast.
    xproj0 = (jnp.dot(emb_ref[...], wih0_ref[...],
                      preferred_element_type=jnp.float32) + b0_ref[...])

    whh0 = whh0_ref[...]
    wih1 = wih1_ref[...]
    whh1 = whh1_ref[...]
    # Hoisted bias broadcast (JAX does not CSE broadcast_in_dim in the loop).
    b1b = jnp.broadcast_to(b1_ref[...], (Bp, 4 * Hp))

    def apply_gates(gates, c_prev):
        # Repacked gate lane order: [i, f, o, g] -> one wide sigmoid + one tanh.
        sig = jax.nn.sigmoid(gates[:, :3 * Hp])
        g = jnp.tanh(gates[:, 3 * Hp:])
        i = sig[:, 0 * Hp:1 * Hp]
        f = sig[:, 1 * Hp:2 * Hp]
        o = sig[:, 2 * Hp:3 * Hp]
        c_new = f * c_prev + i * g
        h_new = o * jnp.tanh(c_new)
        return h_new, c_new

    h0, c0 = h0_ref[...], c0_ref[...]
    h1, c1 = h1_ref[...], c1_ref[...]

    # Fully unrolled recurrence over the (static) chunk length; all slice
    # starts are static and sublane-aligned (Bp is a multiple of 8).
    # TODO(synk): pin whh0/wih1/whh1 in MXU staging registers across the chunk
    # via pltpu.matmul_push_rhs/matmul_acc_lhs/matmul_pop (v7x: accumulate in MRB).
    for t in range(Tc):
        gates0 = xproj0[t * Bp:(t + 1) * Bp, :] + jnp.dot(
            h0.astype(jnp.bfloat16), whh0, preferred_element_type=jnp.float32)
        h0, c0 = apply_gates(gates0, c0)
        # TODO(synk): inter-layer LSTM dropout (p=0.3) is training-only; identity here.
        gates1 = (jnp.dot(h0.astype(jnp.bfloat16), wih1,
                          preferred_element_type=jnp.float32)
                  + jnp.dot(h1.astype(jnp.bfloat16), whh1,
                            preferred_element_type=jnp.float32)
                  + b1b)
        h1, c1 = apply_gates(gates1, c1)

    h0_ref[...] = h0
    c0_ref[...] = c0
    h1_ref[...] = h1
    c1_ref[...] = c1

    @pl.when(pl.program_id(0) == pl.num_programs(0) - 1)
    def _finalize():
        hlast_ref[...] = h1


# --------------------------------------------------------------------------
# Kernel 2: fc1 -> ReLU -> fc2 vocab head, tiled over the padded vocab dim
# --------------------------------------------------------------------------
def vocab_head_kernel(h_ref, fc1w_ref, fc1b_ref, fc2w_ref, fc2b_ref, out_ref):
    # TODO(synk): self.dropout(last_hidden) is training-only; identity at inference.
    fc1 = (jnp.dot(h_ref[...].astype(jnp.bfloat16), fc1w_ref[...],
                   preferred_element_type=jnp.float32) + fc1b_ref[...])
    fc1 = jnp.maximum(fc1, 0.0).astype(jnp.bfloat16)
    out_ref[...] = (jnp.dot(fc1, fc2w_ref[...], preferred_element_type=jnp.float32)
                    + fc2b_ref[...]).astype(out_ref.dtype)


# --------------------------------------------------------------------------
# Parameter init (PyTorch-layout) and packing into the padded kernel layout
# --------------------------------------------------------------------------
def init_params(key, vocab_size, embedding_dim, hidden_dim):
    """Deterministic params mirroring the PyTorch module's layout/shapes."""
    ks = jax.random.split(key, 16)
    k_lstm = 1.0 / math.sqrt(hidden_dim)
    k_fc = 1.0 / math.sqrt(hidden_dim)

    def u(k, shape, bound):
        return jax.random.uniform(k, shape, jnp.float32, -bound, bound)

    return {
        "embedding": jax.random.normal(ks[0], (vocab_size, embedding_dim), jnp.float32),
        "w_ih_l0": u(ks[1], (4 * hidden_dim, embedding_dim), k_lstm),
        "w_hh_l0": u(ks[2], (4 * hidden_dim, hidden_dim), k_lstm),
        "b_ih_l0": u(ks[3], (4 * hidden_dim,), k_lstm),
        "b_hh_l0": u(ks[4], (4 * hidden_dim,), k_lstm),
        "w_ih_l1": u(ks[5], (4 * hidden_dim, hidden_dim), k_lstm),
        "w_hh_l1": u(ks[6], (4 * hidden_dim, hidden_dim), k_lstm),
        "b_ih_l1": u(ks[7], (4 * hidden_dim,), k_lstm),
        "b_hh_l1": u(ks[8], (4 * hidden_dim,), k_lstm),
        "fc1_w": u(ks[9], (hidden_dim, hidden_dim), k_fc),
        "fc1_b": u(ks[10], (hidden_dim,), k_fc),
        "fc2_w": u(ks[11], (vocab_size, hidden_dim), k_fc),
        "fc2_b": u(ks[12], (vocab_size,), k_fc),
    }


# PyTorch LSTM gate order is (i, f, g, o); kernel lanes are packed (i, f, o, g)
# so the three sigmoid gates are lane-contiguous.
_GATE_PERM = (0, 1, 3, 2)


def _pack_lstm_weight(w, in_dim_p, hp):
    """(4H, in) PyTorch LSTM weight -> (in_p, 4*Hp) bf16, gate k at lanes [k*Hp, k*Hp+H)."""
    four_h, in_dim = w.shape
    h = four_h // 4
    w4 = w.reshape(4, h, in_dim)[jnp.array(_GATE_PERM)]          # reorder gates
    w4 = jnp.transpose(w4, (2, 0, 1))                            # (in, 4, H)
    out = jnp.zeros((in_dim_p, 4, hp), jnp.float32).at[:in_dim, :, :h].set(w4)
    return out.reshape(in_dim_p, 4 * hp).astype(jnp.bfloat16)


def _pack_lstm_bias(b_ih, b_hh, hp):
    h = b_ih.shape[0] // 4
    b = (b_ih + b_hh).reshape(4, h)[jnp.array(_GATE_PERM)]
    out = jnp.zeros((4, hp), jnp.float32).at[:, :h].set(b)
    return out.reshape(1, 4 * hp)                                # bias stays f32


def _pad2(x, rp, cp, dtype):
    r, c = x.shape
    return jnp.zeros((rp, cp), jnp.float32).at[:r, :c].set(x).astype(dtype)


def pack_params(raw, embedding_dim, hidden_dim, vocab_size):
    E, H, V = embedding_dim, hidden_dim, vocab_size
    Ep, Hp, Vp = _round_up(E, 128), _round_up(H, 128), _round_up(V, 128)
    # TODO(synk): for production configs with H < 128 consider packing gates at
    # natural H offsets instead of per-gate Hp padding.
    return {
        "embedding": raw["embedding"],                                   # f32 gather table
        "w_ih_l0": _pack_lstm_weight(raw["w_ih_l0"], Ep, Hp),            # (Ep, 4Hp) bf16
        "w_hh_l0": _pack_lstm_weight(raw["w_hh_l0"], Hp, Hp),            # (Hp, 4Hp) bf16
        "b_l0": _pack_lstm_bias(raw["b_ih_l0"], raw["b_hh_l0"], Hp),     # (1, 4Hp) f32
        "w_ih_l1": _pack_lstm_weight(raw["w_ih_l1"], Hp, Hp),            # (Hp, 4Hp) bf16
        "w_hh_l1": _pack_lstm_weight(raw["w_hh_l1"], Hp, Hp),            # (Hp, 4Hp) bf16
        "b_l1": _pack_lstm_bias(raw["b_ih_l1"], raw["b_hh_l1"], Hp),     # (1, 4Hp) f32
        "fc1_w": _pad2(raw["fc1_w"].T, Hp, Hp, jnp.bfloat16),            # (Hp, Hp) bf16
        "fc1_b": _pad2(raw["fc1_b"][None, :], 1, Hp, jnp.float32),       # (1, Hp) f32
        "fc2_w": _pad2(raw["fc2_w"].T, Hp, Vp, jnp.bfloat16),            # (Hp, Vp) bf16
        "fc2_b": _pad2(raw["fc2_b"][None, :], 1, Vp, jnp.float32),       # (1, Vp) f32
    }


# --------------------------------------------------------------------------
# Forward wrapper
# --------------------------------------------------------------------------
@functools.partial(jax.jit,
                   static_argnames=("vocab_size", "time_chunk", "single_buffer_weights"))
def culinary_lm_forward(x_tokens, packed, vocab_size, time_chunk=32,
                        single_buffer_weights=True):
    B, T = x_tokens.shape
    E = packed["embedding"].shape[1]
    Ep = packed["w_ih_l0"].shape[0]
    Hp = packed["w_hh_l0"].shape[0]
    Vp = packed["fc2_w"].shape[1]
    Bp = _round_up(B, 8)

    # Largest divisor of T that is <= time_chunk: never a silent full-T unroll.
    # TODO(synk): a non-trivial tail could instead be handled by a second,
    # shorter pallas_call rather than shrinking Tc.
    Tc = 1
    for d in range(1, min(time_chunk, T) + 1):
        if T % d == 0:
            Tc = d
    n_chunks = T // Tc

    # Embedding gather (glue), time-major, bf16, lane/sublane-dense padding,
    # flattened to a 2-D slab so the kernel never reshapes.
    emb = jnp.take(packed["embedding"], x_tokens, axis=0)          # (B, T, E) f32
    emb = jnp.transpose(emb, (1, 0, 2)).astype(jnp.bfloat16)       # (T, B, E)
    emb_p = jnp.zeros((T, Bp, Ep), jnp.bfloat16).at[:, :B, :E].set(emb)
    emb2 = emb_p.reshape(T * Bp, Ep)                               # (T*Bp, Ep)

    def _w_spec(arr):
        nd = arr.ndim
        if single_buffer_weights:
            # Time-invariant inputs: one DMA, single VMEM buffer.
            return pl.BlockSpec(arr.shape, lambda i, _nd=nd: (0,) * _nd,
                                pipeline_mode=pl.Buffered(1))
        return pl.BlockSpec(arr.shape, lambda i, _nd=nd: (0,) * _nd)

    vmem_limit = 48 * 1024 * 1024

    # ---- Kernel 1: recurrence (streams embedding chunks, state persists in VMEM).
    # TODO(synk): for v7x add a leading "parallel" batch-tile grid axis to use
    # the second TensorCore once Bp spans >= 2 batch tiles.
    h_last = pl.pallas_call(
        lstm_recurrence_kernel,
        out_shape=jax.ShapeDtypeStruct((Bp, Hp), jnp.float32),
        grid=(n_chunks,),
        in_specs=[
            pl.BlockSpec((Tc * Bp, Ep), lambda i: (i, 0)),   # streamed, double-buffered
            _w_spec(packed["w_ih_l0"]),
            _w_spec(packed["w_hh_l0"]),
            _w_spec(packed["b_l0"]),
            _w_spec(packed["w_ih_l1"]),
            _w_spec(packed["w_hh_l1"]),
            _w_spec(packed["b_l1"]),
        ],
        out_specs=pl.BlockSpec((Bp, Hp), lambda i: (0, 0)),
        scratch_shapes=[pltpu.VMEM((Bp, Hp), jnp.float32) for _ in range(4)],
        compiler_params=pltpu.CompilerParams(
            dimension_semantics=("arbitrary",),              # sequential recurrence
            vmem_limit_bytes=vmem_limit),
    )(emb2,
      packed["w_ih_l0"], packed["w_hh_l0"], packed["b_l0"],
      packed["w_ih_l1"], packed["w_hh_l1"], packed["b_l1"])

    # ---- Kernel 2: fc1/ReLU/fc2 vocab head, tiled over the padded vocab dim.
    tv = next(t for t in (512, 256, 128) if Vp % t == 0)
    logits_p = pl.pallas_call(
        vocab_head_kernel,
        out_shape=jax.ShapeDtypeStruct((Bp, Vp), jnp.float32),
        grid=(Vp // tv,),
        in_specs=[
            _w_spec(h_last),
            _w_spec(packed["fc1_w"]),
            _w_spec(packed["fc1_b"]),
            pl.BlockSpec((Hp, tv), lambda j: (0, j)),
            pl.BlockSpec((1, tv), lambda j: (0, j)),
        ],
        out_specs=pl.BlockSpec((Bp, tv), lambda j: (0, j)),
        compiler_params=pltpu.CompilerParams(
            dimension_semantics=("parallel",),
            vmem_limit_bytes=vmem_limit),
    )(h_last, packed["fc1_w"], packed["fc1_b"], packed["fc2_w"], packed["fc2_b"])

    return logits_p[:B, :vocab_size]


# --------------------------------------------------------------------------
# Pure-JAX reference (matches the PyTorch module at inference, f32)
# --------------------------------------------------------------------------
def reference_forward(x_tokens, raw):
    emb = jnp.take(raw["embedding"], x_tokens, axis=0)  # (B, T, E)
    B, T, _ = emb.shape
    H = raw["w_hh_l0"].shape[1]

    def cell(x, h, c, w_ih, w_hh, b_ih, b_hh):
        gates = x @ w_ih.T + h @ w_hh.T + b_ih + b_hh
        i = jax.nn.sigmoid(gates[:, 0 * H:1 * H])
        f = jax.nn.sigmoid(gates[:, 1 * H:2 * H])
        g = jnp.tanh(gates[:, 2 * H:3 * H])
        o = jax.nn.sigmoid(gates[:, 3 * H:4 * H])
        c = f * c + i * g
        return o * jnp.tanh(c), c

    h0 = c0 = h1 = c1 = jnp.zeros((B, H), jnp.float32)
    for t in range(T):
        h0, c0 = cell(emb[:, t], h0, c0, raw["w_ih_l0"], raw["w_hh_l0"],
                      raw["b_ih_l0"], raw["b_hh_l0"])
        h1, c1 = cell(h0, h1, c1, raw["w_ih_l1"], raw["w_hh_l1"],
                      raw["b_ih_l1"], raw["b_hh_l1"])
    fc1_out = jnp.maximum(h1 @ raw["fc1_w"].T + raw["fc1_b"], 0.0)
    return fc1_out @ raw["fc2_w"].T + raw["fc2_b"]


if __name__ == "__main__":
    VOCAB = 64
    EMBED = 32
    HIDDEN = 32
    B, T = 2, 16

    key = jax.random.PRNGKey(0)
    k_params, k_tokens = jax.random.split(key)
    raw = init_params(k_params, VOCAB, EMBED, HIDDEN)
    packed = pack_params(raw, EMBED, HIDDEN, VOCAB)
    x = jax.random.randint(k_tokens, (B, T), 0, VOCAB, dtype=jnp.int32)

    try:
        logits = culinary_lm_forward(x, packed, vocab_size=VOCAB, time_chunk=8,
                                     single_buffer_weights=True)
        logits = jax.block_until_ready(logits)
    except Exception:
        # Fallback for jax versions where pipeline_mode=pl.Buffered(1) is not
        # accepted by pallas_call: identical kernels with default buffering.
        logits = culinary_lm_forward(x, packed, vocab_size=VOCAB, time_chunk=8,
                                     single_buffer_weights=False)
        logits = jax.block_until_ready(logits)

    assert logits.shape == (B, VOCAB) and logits.dtype == jnp.float32
    ref = reference_forward(x, raw)
    max_err = float(jnp.max(jnp.abs(logits - ref)))
    # bf16 MXU operands (f32 accumulation / f32 LSTM state): relaxed tolerance
    # vs the f32 reference.
    assert bool(jnp.allclose(logits, ref, rtol=3e-2, atol=3e-2)), \
        f"mismatch vs reference (max abs err {max_err})"
    print("KERNEL_OK")
</pallas_src>

<mosaic_0001>
module attributes {stable_mosaic.version = 11 : i64} {
  func.func @vocab_head_kernel(%arg0: i32, %arg1: memref<8x128xf32, #tpu.memory_space<vmem>>, %arg2: memref<128x128xbf16, #tpu.memory_space<vmem>>, %arg3: memref<1x128xf32, #tpu.memory_space<vmem>>, %arg4: memref<128x128xbf16, #tpu.memory_space<vmem>>, %arg5: memref<1x128xf32, #tpu.memory_space<vmem>>, %arg6: memref<8x128xf32, #tpu.memory_space<vmem>>) attributes {dimension_semantics = [#tpu.dimension_semantics<parallel>], iteration_bounds = array<i64: 1>, scalar_prefetch = 0 : i64, scratch_operands = 0 : i64, tpu.core_type = #tpu.core_type<tc>, window_params = [{pipeline_mode = #tpu.pipeline_mode<synchronous>, transform_indices = @transform_0, window_bounds = array<i64: 8, 128>}, {pipeline_mode = #tpu.pipeline_mode<synchronous>, transform_indices = @transform_1, window_bounds = array<i64: 128, 128>}, {pipeline_mode = #tpu.pipeline_mode<synchronous>, transform_indices = @transform_2, window_bounds = array<i64: 1, 128>}, {transform_indices = @transform_3, window_bounds = array<i64: 128, 128>}, {transform_indices = @transform_4, window_bounds = array<i64: 1, 128>}, {transform_indices = @transform_5, window_bounds = array<i64: 8, 128>}]} {
    %c0 = arith.constant 0 : index
    %c0_0 = arith.constant 0 : index
    %0 = vector.load %arg1[%c0, %c0_0] : memref<8x128xf32, #tpu.memory_space<vmem>>, vector<8x128xf32>
    %1 = arith.truncf %0 : vector<8x128xf32> to vector<8x128xbf16>
    %c0_1 = arith.constant 0 : index
    %c0_2 = arith.constant 0 : index
    %2 = vector.load %arg2[%c0_1, %c0_2] : memref<128x128xbf16, #tpu.memory_space<vmem>>, vector<128x128xbf16>
    %cst = arith.constant dense<0.000000e+00> : vector<8x128xf32>
    %3 = tpu.matmul %1, %2, %cst {dimension_numbers = #tpu.dot_dimension_numbers<[1], [0], [0], [1], [0, 0, 1, 1], [], []>} : vector<8x128xbf16>, vector<128x128xbf16>, vector<8x128xf32> -> vector<8x128xf32>
    %c0_3 = arith.constant 0 : index
    %c0_4 = arith.constant 0 : index
    %4 = vector.load %arg3[%c0_3, %c0_4] : memref<1x128xf32, #tpu.memory_space<vmem>>, vector<1x128xf32>
    %5 = vector.broadcast %4 : vector<1x128xf32> to vector<8x128xf32>
    %6 = arith.addf %3, %5 : vector<8x128xf32>
    %cst_5 = arith.constant 0.000000e+00 : f32
    %7 = vector.broadcast %cst_5 : f32 to vector<8x128xf32>
    %8 = arith.maximumf %6, %7 : vector<8x128xf32>
    %9 = arith.truncf %8 : vector<8x128xf32> to vector<8x128xbf16>
    %c0_6 = arith.constant 0 : index
    %c0_7 = arith.constant 0 : index
    %10 = vector.load %arg4[%c0_6, %c0_7] : memref<128x128xbf16, #tpu.memory_space<vmem>>, vector<128x128xbf16>
    %cst_8 = arith.constant dense<0.000000e+00> : vector<8x128xf32>
    %11 = tpu.matmul %9, %10, %cst_8 {dimension_numbers = #tpu.dot_dimension_numbers<[1], [0], [0], [1], [0, 0, 1, 1], [], []>} : vector<8x128xbf16>, vector<128x128xbf16>, vector<8x128xf32> -> vector<8x128xf32>
    %c0_9 = arith.constant 0 : index
    %c0_10 = arith.constant 0 : index
    %12 = vector.load %arg5[%c0_9, %c0_10] : memref<1x128xf32, #tpu.memory_space<vmem>>, vector<1x128xf32>
    %13 = vector.broadcast %12 : vector<1x128xf32> to vector<8x128xf32>
    %14 = arith.addf %11, %13 : vector<8x128xf32>
    %c0_11 = arith.constant 0 : index
    %c0_12 = arith.constant 0 : index
    %15 = vector.load %arg6[%c0_11, %c0_12] : memref<8x128xf32, #tpu.memory_space<vmem>>, vector<8x128xf32>
    tpu.vector_store %arg6[%c0_11, %c0_12], %14 {strides = array<i32>} : memref<8x128xf32, #tpu.memory_space<vmem>>, vector<8x128xf32>,
    return
  }
  func.func @transform_0(%arg0: i32) -> (i32, i32) {
    %c0_i32 = arith.constant 0 : i32
    %c0_i32_0 = arith.constant 0 : i32
    %c0_i32_1 = arith.constant 0 : i32
    return %c0_i32, %c0_i32_0 : i32, i32
  }
  func.func @transform_1(%arg0: i32) -> (i32, i32) {
    %c0_i32 = arith.constant 0 : i32
    %c0_i32_0 = arith.constant 0 : i32
    %c0_i32_1 = arith.constant 0 : i32
    return %c0_i32, %c0_i32_0 : i32, i32
  }
  func.func @transform_2(%arg0: i32) -> (i32, i32) {
    %c0_i32 = arith.constant 0 : i32
    %c0_i32_0 = arith.constant 0 : i32
    %c0_i32_1 = arith.constant 0 : i32
    return %c0_i32, %c0_i32_0 : i32, i32
  }
  func.func @transform_3(%arg0: i32) -> (i32, i32) {
    %c0_i32 = arith.constant 0 : i32
    %c0_i32_0 = arith.constant 0 : i32
    return %c0_i32, %arg0 : i32, i32
  }
  func.func @transform_4(%arg0: i32) -> (i32, i32) {
    %c0_i32 = arith.constant 0 : i32
    %c0_i32_0 = arith.constant 0 : i32
    return %c0_i32, %arg0 : i32, i32
  }
  func.func @transform_5(%arg0: i32) -> (i32, i32) {
    %c0_i32 = arith.constant 0 : i32
    %c0_i32_0 = arith.constant 0 : i32
    return %c0_i32, %arg0 : i32, i32
  }
}

module attributes {stable_mosaic.version = 11 : i64} {
  func.func @lstm_recurrence_kernel(%arg0: i32, %arg1: memref<64x128xbf16, #tpu.memory_space<vmem>>, %arg2: memref<128x512xbf16, #tpu.memory_space<vmem>>, %arg3: memref<128x512xbf16, #tpu.memory_space<vmem>>, %arg4: memref<1x512xf32, #tpu.memory_space<vmem>>, %arg5: memref<128x512xbf16, #tpu.memory_space<vmem>>, %arg6: memref<128x512xbf16, #tpu.memory_space<vmem>>, %arg7: memref<1x512xf32, #tpu.memory_space<vmem>>, %arg8: memref<8x128xf32, #tpu.memory_space<vmem>>, %arg9: memref<8x128xf32, #tpu.memory_space<vmem>>, %arg10: memref<8x128xf32, #tpu.memory_space<vmem>>, %arg11: memref<8x128xf32, #tpu.memory_space<vmem>>, %arg12: memref<8x128xf32, #tpu.memory_space<vmem>>) attributes {dimension_semantics = [#tpu.dimension_semantics<arbitrary>], iteration_bounds = array<i64: 2>, scalar_prefetch = 0 : i64, scratch_operands = 4 : i64, tpu.core_type = #tpu.core_type<tc>, window_params = [{transform_indices = @transform_0, window_bounds = array<i64: 64, 128>}, {pipeline_mode = #tpu.pipeline_mode<synchronous>, transform_indices = @transform_1, window_bounds = array<i64: 128, 512>}, {pipeline_mode = #tpu.pipeline_mode<synchronous>, transform_indices = @transform_2, window_bounds = array<i64: 128, 512>}, {pipeline_mode = #tpu.pipeline_mode<synchronous>, transform_indices = @transform_3, window_bounds = array<i64: 1, 512>}, {pipeline_mode = #tpu.pipeline_mode<synchronous>, transform_indices = @transform_4, window_bounds = array<i64: 128, 512>}, {pipeline_mode = #tpu.pipeline_mode<synchronous>, transform_indices = @transform_5, window_bounds = array<i64: 128, 512>}, {pipeline_mode = #tpu.pipeline_mode<synchronous>, transform_indices = @transform_6, window_bounds = array<i64: 1, 512>}, {pipeline_mode = #tpu.pipeline_mode<synchronous>, transform_indices = @transform_7, window_bounds = array<i64: 8, 128>}]} {
    %c0_i32 = arith.constant 0 : i32
    %0 = arith.cmpi eq, %arg0, %c0_i32 : i32
    %1 = arith.extui %0 : i1 to i32
    %c0_i32_0 = arith.constant 0 : i32
    %2 = arith.cmpi ne, %1, %c0_i32_0 : i32
    scf.if %2 {
      %cst_71 = arith.constant 0.000000e+00 : f32
      %362 = vector.broadcast %cst_71 : f32 to vector<8x128xf32>
      %c0_72 = arith.constant 0 : index
      %c0_73 = arith.constant 0 : index
      %363 = vector.load %arg9[%c0_72, %c0_73] : memref<8x128xf32, #tpu.memory_space<vmem>>, vector<8x128xf32>
      tpu.vector_store %arg9[%c0_72, %c0_73], %362 {strides = array<i32>} : memref<8x128xf32, #tpu.memory_space<vmem>>, vector<8x128xf32>,
      %c0_74 = arith.constant 0 : index
      %c0_75 = arith.constant 0 : index
      %364 = vector.load %arg10[%c0_74, %c0_75] : memref<8x128xf32, #tpu.memory_space<vmem>>, vector<8x128xf32>
      tpu.vector_store %arg10[%c0_74, %c0_75], %362 {strides = array<i32>} : memref<8x128xf32, #tpu.memory_space<vmem>>, vector<8x128xf32>,
      %c0_76 = arith.constant 0 : index
      %c0_77 = arith.constant 0 : index
      %365 = vector.load %arg11[%c0_76, %c0_77] : memref<8x128xf32, #tpu.memory_space<vmem>>, vector<8x128xf32>
      tpu.vector_store %arg11[%c0_76, %c0_77], %362 {strides = array<i32>} : memref<8x128xf32, #tpu.memory_space<vmem>>, vector<8x128xf32>,
      %c0_78 = arith.constant 0 : index
      %c0_79 = arith.constant 0 : index
      %366 = vector.load %arg12[%c0_78, %c0_79] : memref<8x128xf32, #tpu.memory_space<vmem>>, vector<8x128xf32>
      tpu.vector_store %arg12[%c0_78, %c0_79], %362 {strides = array<i32>} : memref<8x128xf32, #tpu.memory_space<vmem>>, vector<8x128xf32>,
    } else {
    }
    %c0 = arith.constant 0 : index
    %c0_1 = arith.constant 0 : index
    %3 = vector.load %arg1[%c0, %c0_1] : memref<64x128xbf16, #tpu.memory_space<vmem>>, vector<64x128xbf16>
    %c0_2 = arith.constant 0 : index
    %c0_3 = arith.constant 0 : index
    %4 = vector.load %arg2[%c0_2, %c0_3] : memref<128x512xbf16, #tpu.memory_space<vmem>>, vector<128x512xbf16>
    %cst = arith.constant dense<0.000000e+00> : vector<64x512xf32>
    %5 = tpu.matmul %3, %4, %cst {dimension_numbers = #tpu.dot_dimension_numbers<[1], [0], [0], [1], [0, 0, 1, 1], [], []>} : vector<64x128xbf16>, vector<128x512xbf16>, vector<64x512xf32> -> vector<64x512xf32>
    %c0_4 = arith.constant 0 : index
    %c0_5 = arith.constant 0 : index
    %6 = vector.load %arg4[%c0_4, %c0_5] : memref<1x512xf32, #tpu.memory_space<vmem>>, vector<1x512xf32>
    %7 = vector.broadcast %6 : vector<1x512xf32> to vector<64x512xf32>
    %8 = arith.addf %5, %7 : vector<64x512xf32>
    %c0_6 = arith.constant 0 : index
    %c0_7 = arith.constant 0 : index
    %9 = vector.load %arg3[%c0_6, %c0_7] : memref<128x512xbf16, #tpu.memory_space<vmem>>, vector<128x512xbf16>
    %c0_8 = arith.constant 0 : index
    %c0_9 = arith.constant 0 : index
    %10 = vector.load %arg5[%c0_8, %c0_9] : memref<128x512xbf16, #tpu.memory_space<vmem>>, vector<128x512xbf16>
    %c0_10 = arith.constant 0 : index
    %c0_11 = arith.constant 0 : index
    %11 = vector.load %arg6[%c0_10, %c0_11] : memref<128x512xbf16, #tpu.memory_space<vmem>>, vector<128x512xbf16>
    %c0_12 = arith.constant 0 : index
    %c0_13 = arith.constant 0 : index
    %12 = vector.load %arg7[%c0_12, %c0_13] : memref<1x512xf32, #tpu.memory_space<vmem>>, vector<1x512xf32>
    %13 = vector.shape_cast %12 : vector<1x512xf32> to vector<1x512xf32>
    %14 = vector.broadcast %13 : vector<1x512xf32> to vector<8x512xf32>
    %c0_14 = arith.constant 0 : index
    %c0_15 = arith.constant 0 : index
    %15 = vector.load %arg9[%c0_14, %c0_15] : memref<8x128xf32, #tpu.memory_space<vmem>>, vector<8x128xf32>
    %c0_16 = arith.constant 0 : index
    %c0_17 = arith.constant 0 : index
    %16 = vector.load %arg10[%c0_16, %c0_17] : memref<8x128xf32, #tpu.memory_space<vmem>>, vector<8x128xf32>
    %c0_18 = arith.constant 0 : index
    %c0_19 = arith.constant 0 : index
    %17 = vector.load %arg11[%c0_18, %c0_19] : memref<8x128xf32, #tpu.memory_space<vmem>>, vector<8x128xf32>
    %c0_20 = arith.constant 0 : index
    %c0_21 = arith.constant 0 : index
    %18 = vector.load %arg12[%c0_20, %c0_21] : memref<8x128xf32, #tpu.memory_space<vmem>>, vector<8x128xf32>
    %19 = vector.extract_strided_slice %8 {offsets = [0, 0], sizes = [8, 512], strides = [1, 1]} : vector<64x512xf32> to vector<8x512xf32>
    %20 = arith.truncf %15 : vector<8x128xf32> to vector<8x128xbf16>
    %cst_22 = arith.constant dense<0.000000e+00> : vector<8x512xf32>
    %21 = tpu.matmul %20, %9, %cst_22 {dimension_numbers = #tpu.dot_dimension_numbers<[1], [0], [0], [1], [0, 0, 1, 1], [], []>} : vector<8x128xbf16>, vector<128x512xbf16>, vector<8x512xf32> -> vector<8x512xf32>
    %22 = arith.addf %19, %21 : vector<8x512xf32>
    %23 = vector.extract_strided_slice %22 {offsets = [0, 0], sizes = [8, 384], strides = [1, 1]} : vector<8x512xf32> to vector<8x384xf32>
    %24 = arith.negf %23 : vector<8x384xf32>
    %25 = math.exp %24 : vector<8x384xf32>
    %cst_23 = arith.constant 1.000000e+00 : f32
    %26 = vector.broadcast %cst_23 : f32 to vector<8x384xf32>
    %27 = arith.addf %26, %25 : vector<8x384xf32>
    %28 = arith.divf %26, %27 : vector<8x384xf32>
    %29 = vector.extract_strided_slice %22 {offsets = [0, 384], sizes = [8, 128], strides = [1, 1]} : vector<8x512xf32> to vector<8x128xf32>
    %30 = math.tanh %29 : vector<8x128xf32>
    %31 = vector.extract_strided_slice %28 {offsets = [0, 0], sizes = [8, 128], strides = [1, 1]} : vector<8x384xf32> to vector<8x128xf32>
    %32 = vector.extract_strided_slice %28 {offsets = [0, 128], sizes = [8, 128], strides = [1, 1]} : vector<8x384xf32> to vector<8x128xf32>
    %33 = vector.extract_strided_slice %28 {offsets = [0, 256], sizes = [8, 128], strides = [1, 1]} : vector<8x384xf32> to vector<8x128xf32>
    %34 = arith.mulf %32, %16 : vector<8x128xf32>
    %35 = arith.mulf %31, %30 : vector<8x128xf32>
    %36 = arith.addf %34, %35 : vector<8x128xf32>
    %37 = math.tanh %36 : vector<8x128xf32>
    %38 = arith.mulf %33, %37 : vector<8x128xf32>
    %39 = arith.truncf %38 : vector<8x128xf32> to vector<8x128xbf16>
    %cst_24 = arith.constant dense<0.000000e+00> : vector<8x512xf32>
    %40 = tpu.matmul %39, %10, %cst_24 {dimension_numbers = #tpu.dot_dimension_numbers<[1], [0], [0], [1], [0, 0, 1, 1], [], []>} : vector<8x128xbf16>, vector<128x512xbf16>, vector<8x512xf32> -> vector<8x512xf32>
    %41 = arith.truncf %17 : vector<8x128xf32> to vector<8x128xbf16>
    %cst_25 = arith.constant dense<0.000000e+00> : vector<8x512xf32>
    %42 = tpu.matmul %41, %11, %cst_25 {dimension_numbers = #tpu.dot_dimension_numbers<[1], [0], [0], [1], [0, 0, 1, 1], [], []>} : vector<8x128xbf16>, vector<128x512xbf16>, vector<8x512xf32> -> vector<8x512xf32>
    %43 = arith.addf %40, %42 : vector<8x512xf32>
    %44 = arith.addf %43, %14 : vector<8x512xf32>
    %45 = vector.extract_strided_slice %44 {offsets = [0, 0], sizes = [8, 384], strides = [1, 1]} : vector<8x512xf32> to vector<8x384xf32>
    %46 = arith.negf %45 : vector<8x384xf32>
    %47 = math.exp %46 : vector<8x384xf32>
    %cst_26 = arith.constant 1.000000e+00 : f32
    %48 = vector.broadcast %cst_26 : f32 to vector<8x384xf32>
    %49 = arith.addf %48, %47 : vector<8x384xf32>
    %50 = arith.divf %48, %49 : vector<8x384xf32>
    %51 = vector.extract_strided_slice %44 {offsets = [0, 384], sizes = [8, 128], strides = [1, 1]} : vector<8x512xf32> to vector<8x128xf32>
    %52 = math.tanh %51 : vector<8x128xf32>
    %53 = vector.extract_strided_slice %50 {offsets = [0, 0], sizes = [8, 128], strides = [1, 1]} : vector<8x384xf32> to vector<8x128xf32>
    %54 = vector.extract_strided_slice %50 {offsets = [0, 128], sizes = [8, 128], strides = [1, 1]} : vector<8x384xf32> to vector<8x128xf32>
    %55 = vector.extract_strided_slice %50 {offsets = [0, 256], sizes = [8, 128], strides = [1, 1]} : vector<8x384xf32> to vector<8x128xf32>
    %56 = arith.mulf %54, %18 : vector<8x128xf32>
    %57 = arith.mulf %53, %52 : vector<8x128xf32>
    %58 = arith.addf %56, %57 : vector<8x128xf32>
    %59 = math.tanh %58 : vector<8x128xf32>
    %60 = arith.mulf %55, %59 : vector<8x128xf32>
    %61 = vector.extract_strided_slice %8 {offsets = [8, 0], sizes = [8, 512], strides = [1, 1]} : vector<64x512xf32> to vector<8x512xf32>
    %62 = arith.truncf %38 : vector<8x128xf32> to vector<8x128xbf16>
    %cst_27 = arith.constant dense<0.000000e+00> : vector<8x512xf32>
    %63 = tpu.matmul %62, %9, %cst_27 {dimension_numbers = #tpu.dot_dimension_numbers<[1], [0], [0], [1], [0, 0, 1, 1], [], []>} : vector<8x128xbf16>, vector<128x512xbf16>, vector<8x512xf32> -> vector<8x512xf32>
    %64 = arith.addf %61, %63 : vector<8x512xf32>
    %65 = vector.extract_strided_slice %64 {offsets = [0, 0], sizes = [8, 384], strides = [1, 1]} : vector<8x512xf32> to vector<8x384xf32>
    %66 = arith.negf %65 : vector<8x384xf32>
    %67 = math.exp %66 : vector<8x384xf32>
    %cst_28 = arith.constant 1.000000e+00 : f32
    %68 = vector.broadcast %cst_28 : f32 to vector<8x384xf32>
    %69 = arith.addf %68, %67 : vector<8x384xf32>
    %70 = arith.divf %68, %69 : vector<8x384xf32>
    %71 = vector.extract_strided_slice %64 {offsets = [0, 384], sizes = [8, 128], strides = [1, 1]} : vector<8x512xf32> to vector<8x128xf32>
    %72 = math.tanh %71 : vector<8x128xf32>
    %73 = vector.extract_strided_slice %70 {offsets = [0, 0], sizes = [8, 128], strides = [1, 1]} : vector<8x384xf32> to vector<8x128xf32>
    %74 = vector.extract_strided_slice %70 {offsets = [0, 128], sizes = [8, 128], strides = [1, 1]} : vector<8x384xf32> to vector<8x128xf32>
    %75 = vector.extract_strided_slice %70 {offsets = [0, 256], sizes = [8, 128], strides = [1, 1]} : vector<8x384xf32> to vector<8x128xf32>
    %76 = arith.mulf %74, %36 : vector<8x128xf32>
    %77 = arith.mulf %73, %72 : vector<8x128xf32>
    %78 = arith.addf %76, %77 : vector<8x128xf32>
    %79 = math.tanh %78 : vector<8x128xf32>
    %80 = arith.mulf %75, %79 : vector<8x128xf32>
    %81 = arith.truncf %80 : vector<8x128xf32> to vector<8x128xbf16>
    %cst_29 = arith.constant dense<0.000000e+00> : vector<8x512xf32>
    %82 = tpu.matmul %81, %10, %cst_29 {dimension_numbers = #tpu.dot_dimension_numbers<[1], [0], [0], [1], [0, 0, 1, 1], [], []>} : vector<8x128xbf16>, vector<128x512xbf16>, vector<8x512xf32> -> vector<8x512xf32>
    %83 = arith.truncf %60 : vector<8x128xf32> to vector<8x128xbf16>
    %cst_30 = arith.constant dense<0.000000e+00> : vector<8x512xf32>
    %84 = tpu.matmul %83, %11, %cst_30 {dimension_numbers = #tpu.dot_dimension_numbers<[1], [0], [0], [1], [0, 0, 1, 1], [], []>} : vector<8x128xbf16>, vector<128x512xbf16>, vector<8x512xf32> -> vector<8x512xf32>
    %85 = arith.addf %82, %84 : vector<8x512xf32>
    %86 = arith.addf %85, %14 : vector<8x512xf32>
    %87 = vector.extract_strided_slice %86 {offsets = [0, 0], sizes = [8, 384], strides = [1, 1]} : vector<8x512xf32> to vector<8x384xf32>
    %88 = arith.negf %87 : vector<8x384xf32>
    %89 = math.exp %88 : vector<8x384xf32>
    %cst_31 = arith.constant 1.000000e+00 : f32
    %90 = vector.broadcast %cst_31 : f32 to vector<8x384xf32>
    %91 = arith.addf %90, %89 : vector<8x384xf32>
    %92 = arith.divf %90, %91 : vector<8x384xf32>
    %93 = vector.extract_strided_slice %86 {offsets = [0, 384], sizes = [8, 128], strides = [1, 1]} : vector<8x512xf32> to vector<8x128xf32>
    %94 = math.tanh %93 : vector<8x128xf32>
    %95 = vector.extract_strided_slice %92 {offsets = [0, 0], sizes = [8, 128], strides = [1, 1]} : vector<8x384xf32> to vector<8x128xf32>
    %96 = vector.extract_strided_slice %92 {offsets = [0, 128], sizes = [8, 128], strides = [1, 1]} : vector<8x384xf32> to vector<8x128xf32>
    %97 = vector.extract_strided_slice %92 {offsets = [0, 256], sizes = [8, 128], strides = [1, 1]} : vector<8x384xf32> to vector<8x128xf32>
    %98 = arith.mulf %96, %58 : vector<8x128xf32>
    %99 = arith.mulf %95, %94 : vector<8x128xf32>
    %100 = arith.addf %98, %99 : vector<8x128xf32>
    %101 = math.tanh %100 : vector<8x128xf32>
    %102 = arith.mulf %97, %101 : vector<8x128xf32>
    %103 = vector.extract_strided_slice %8 {offsets = [16, 0], sizes = [8, 512], strides = [1, 1]} : vector<64x512xf32> to vector<8x512xf32>
    %104 = arith.truncf %80 : vector<8x128xf32> to vector<8x128xbf16>
    %cst_32 = arith.constant dense<0.000000e+00> : vector<8x512xf32>
    %105 = tpu.matmul %104, %9, %cst_32 {dimension_numbers = #tpu.dot_dimension_numbers<[1], [0], [0], [1], [0, 0, 1, 1], [], []>} : vector<8x128xbf16>, vector<128x512xbf16>, vector<8x512xf32> -> vector<8x512xf32>
    %106 = arith.addf %103, %105 : vector<8x512xf32>
    %107 = vector.extract_strided_slice %106 {offsets = [0, 0], sizes = [8, 384], strides = [1, 1]} : vector<8x512xf32> to vector<8x384xf32>
    %108 = arith.negf %107 : vector<8x384xf32>
    %109 = math.exp %108 : vector<8x384xf32>
    %cst_33 = arith.constant 1.000000e+00 : f32
    %110 = vector.broadcast %cst_33 : f32 to vector<8x384xf32>
    %111 = arith.addf %110, %109 : vector<8x384xf32>
    %112 = arith.divf %110, %111 : vector<8x384xf32>
    %113 = vector.extract_strided_slice %106 {offsets = [0, 384], sizes = [8, 128], strides = [1, 1]} : vector<8x512xf32> to vector<8x128xf32>
    %114 = math.tanh %113 : vector<8x128xf32>
    %115 = vector.extract_strided_slice %112 {offsets = [0, 0], sizes = [8, 128], strides = [1, 1]} : vector<8x384xf32> to vector<8x128xf32>
    %116 = vector.extract_strided_slice %112 {offsets = [0, 128], sizes = [8, 128], strides = [1, 1]} : vector<8x384xf32> to vector<8x128xf32>
    %117 = vector.extract_strided_slice %112 {offsets = [0, 256], sizes = [8, 128], strides = [1, 1]} : vector<8x384xf32> to vector<8x128xf32>
    %118 = arith.mulf %116, %78 : vector<8x128xf32>
    %119 = arith.mulf %115, %114 : vector<8x128xf32>
    %120 = arith.addf %118, %119 : vector<8x128xf32>
    %121 = math.tanh %120 : vector<8x128xf32>
    %122 = arith.mulf %117, %121 : vector<8x128xf32>
    %123 = arith.truncf %122 : vector<8x128xf32> to vector<8x128xbf16>
    %cst_34 = arith.constant dense<0.000000e+00> : vector<8x512xf32>
    %124 = tpu.matmul %123, %10, %cst_34 {dimension_numbers = #tpu.dot_dimension_numbers<[1], [0], [0], [1], [0, 0, 1, 1], [], []>} : vector<8x128xbf16>, vector<128x512xbf16>, vector<8x512xf32> -> vector<8x512xf32>
    %125 = arith.truncf %102 : vector<8x128xf32> to vector<8x128xbf16>
    %cst_35 = arith.constant dense<0.000000e+00> : vector<8x512xf32>
    %126 = tpu.matmul %125, %11, %cst_35 {dimension_numbers = #tpu.dot_dimension_numbers<[1], [0], [0], [1], [0, 0, 1, 1], [], []>} : vector<8x128xbf16>, vector<128x512xbf16>, vector<8x512xf32> -> vector<8x512xf32>
    %127 = arith.addf %124, %126 : vector<8x512xf32>
    %128 = arith.addf %127, %14 : vector<8x512xf32>
    %129 = vector.extract_strided_slice %128 {offsets = [0, 0], sizes = [8, 384], strides = [1, 1]} : vector<8x512xf32> to vector<8x384xf32>
    %130 = arith.negf %129 : vector<8x384xf32>
    %131 = math.exp %130 : vector<8x384xf32>
    %cst_36 = arith.constant 1.000000e+00 : f32
    %132 = vector.broadcast %cst_36 : f32 to vector<8x384xf32>
    %133 = arith.addf %132, %131 : vector<8x384xf32>
    %134 = arith.divf %132, %133 : vector<8x384xf32>
    %135 = vector.extract_strided_slice %128 {offsets = [0, 384], sizes = [8, 128], strides = [1, 1]} : vector<8x512xf32> to vector<8x128xf32>
    %136 = math.tanh %135 : vector<8x128xf32>
    %137 = vector.extract_strided_slice %134 {offsets = [0, 0], sizes = [8, 128], strides = [1, 1]} : vector<8x384xf32> to vector<8x128xf32>
    %138 = vector.extract_strided_slice %134 {offsets = [0, 128], sizes = [8, 128], strides = [1, 1]} : vector<8x384xf32> to vector<8x128xf32>
    %139 = vector.extract_strided_slice %134 {offsets = [0, 256], sizes = [8, 128], strides = [1, 1]} : vector<8x384xf32> to vector<8x128xf32>
    %140 = arith.mulf %138, %100 : vector<8x128xf32>
    %141 = arith.mulf %137, %136 : vector<8x128xf32>
    %142 = arith.addf %140, %141 : vector<8x128xf32>
    %143 = math.tanh %142 : vector<8x128xf32>
    %144 = arith.mulf %139, %143 : vector<8x128xf32>
    %145 = vector.extract_strided_slice %8 {offsets = [24, 0], sizes = [8, 512], strides = [1, 1]} : vector<64x512xf32> to vector<8x512xf32>
    %146 = arith.truncf %122 : vector<8x128xf32> to vector<8x128xbf16>
    %cst_37 = arith.constant dense<0.000000e+00> : vector<8x512xf32>
    %147 = tpu.matmul %146, %9, %cst_37 {dimension_numbers = #tpu.dot_dimension_numbers<[1], [0], [0], [1], [0, 0, 1, 1], [], []>} : vector<8x128xbf16>, vector<128x512xbf16>, vector<8x512xf32> -> vector<8x512xf32>
    %148 = arith.addf %145, %147 : vector<8x512xf32>
    %149 = vector.extract_strided_slice %148 {offsets = [0, 0], sizes = [8, 384], strides = [1, 1]} : vector<8x512xf32> to vector<8x384xf32>
    %150 = arith.negf %149 : vector<8x384xf32>
    %151 = math.exp %150 : vector<8x384xf32>
    %cst_38 = arith.constant 1.000000e+00 : f32
    %152 = vector.broadcast %cst_38 : f32 to vector<8x384xf32>
    %153 = arith.addf %152, %151 : vector<8x384xf32>
    %154 = arith.divf %152, %153 : vector<8x384xf32>
    %155 = vector.extract_strided_slice %148 {offsets = [0, 384], sizes = [8, 128], strides = [1, 1]} : vector<8x512xf32> to vector<8x128xf32>
    %156 = math.tanh %155 : vector<8x128xf32>
    %157 = vector.extract_strided_slice %154 {offsets = [0, 0], sizes = [8, 128], strides = [1, 1]} : vector<8x384xf32> to vector<8x128xf32>
    %158 = vector.extract_strided_slice %154 {offsets = [0, 128], sizes = [8, 128], strides = [1, 1]} : vector<8x384xf32> to vector<8x128xf32>
    %159 = vector.extract_strided_slice %154 {offsets = [0, 256], sizes = [8, 128], strides = [1, 1]} : vector<8x384xf32> to vector<8x128xf32>
    %160 = arith.mulf %158, %120 : vector<8x128xf32>
    %161 = arith.mulf %157, %156 : vector<8x128xf32>
    %162 = arith.addf %160, %161 : vector<8x128xf32>
    %163 = math.tanh %162 : vector<8x128xf32>
    %164 = arith.mulf %159, %163 : vector<8x128xf32>
    %165 = arith.truncf %164 : vector<8x128xf32> to vector<8x128xbf16>
    %cst_39 = arith.constant dense<0.000000e+00> : vector<8x512xf32>
    %166 = tpu.matmul %165, %10, %cst_39 {dimension_numbers = #tpu.dot_dimension_numbers<[1], [0], [0], [1], [0, 0, 1, 1], [], []>} : vector<8x128xbf16>, vector<128x512xbf16>, vector<8x512xf32> -> vector<8x512xf32>
    %167 = arith.truncf %144 : vector<8x128xf32> to vector<8x128xbf16>
    %cst_40 = arith.constant dense<0.000000e+00> : vector<8x512xf32>
    %168 = tpu.matmul %167, %11, %cst_40 {dimension_numbers = #tpu.dot_dimension_numbers<[1], [0], [0], [1], [0, 0, 1, 1], [], []>} : vector<8x128xbf16>, vector<128x512xbf16>, vector<8x512xf32> -> vector<8x512xf32>
    %169 = arith.addf %166, %168 : vector<8x512xf32>
    %170 = arith.addf %169, %14 : vector<8x512xf32>
    %171 = vector.extract_strided_slice %170 {offsets = [0, 0], sizes = [8, 384], strides = [1, 1]} : vector<8x512xf32> to vector<8x384xf32>
    %172 = arith.negf %171 : vector<8x384xf32>
    %173 = math.exp %172 : vector<8x384xf32>
    %cst_41 = arith.constant 1.000000e+00 : f32
    %174 = vector.broadcast %cst_41 : f32 to vector<8x384xf32>
    %175 = arith.addf %174, %173 : vector<8x384xf32>
    %176 = arith.divf %174, %175 : vector<8x384xf32>
    %177 = vector.extract_strided_slice %170 {offsets = [0, 384], sizes = [8, 128], strides = [1, 1]} : vector<8x512xf32> to vector<8x128xf32>
    %178 = math.tanh %177 : vector<8x128xf32>
    %179 = vector.extract_strided_slice %176 {offsets = [0, 0], sizes = [8, 128], strides = [1, 1]} : vector<8x384xf32> to vector<8x128xf32>
    %180 = vector.extract_strided_slice %176 {offsets = [0, 128], sizes = [8, 128], strides = [1, 1]} : vector<8x384xf32> to vector<8x128xf32>
    %181 = vector.extract_strided_slice %176 {offsets = [0, 256], sizes = [8, 128], strides = [1, 1]} : vector<8x384xf32> to vector<8x128xf32>
    %182 = arith.mulf %180, %142 : vector<8x128xf32>
    %183 = arith.mulf %179, %178 : vector<8x128xf32>
    %184 = arith.addf %182, %183 : vector<8x128xf32>
    %185 = math.tanh %184 : vector<8x128xf32>
    %186 = arith.mulf %181, %185 : vector<8x128xf32>
    %187 = vector.extract_strided_slice %8 {offsets = [32, 0], sizes = [8, 512], strides = [1, 1]} : vector<64x512xf32> to vector<8x512xf32>
    %188 = arith.truncf %164 : vector<8x128xf32> to vector<8x128xbf16>
    %cst_42 = arith.constant dense<0.000000e+00> : vector<8x512xf32>
    %189 = tpu.matmul %188, %9, %cst_42 {dimension_numbers = #tpu.dot_dimension_numbers<[1], [0], [0], [1], [0, 0, 1, 1], [], []>} : vector<8x128xbf16>, vector<128x512xbf16>, vector<8x512xf32> -> vector<8x512xf32>
    %190 = arith.addf %187, %189 : vector<8x512xf32>
    %191 = vector.extract_strided_slice %190 {offsets = [0, 0], sizes = [8, 384], strides = [1, 1]} : vector<8x512xf32> to vector<8x384xf32>
    %192 = arith.negf %191 : vector<8x384xf32>
    %193 = math.exp %192 : vector<8x384xf32>
    %cst_43 = arith.constant 1.000000e+00 : f32
    %194 = vector.broadcast %cst_43 : f32 to vector<8x384xf32>
    %195 = arith.addf %194, %193 : vector<8x384xf32>
    %196 = arith.divf %194, %195 : vector<8x384xf32>
    %197 = vector.extract_strided_slice %190 {offsets = [0, 384], sizes = [8, 128], strides = [1, 1]} : vector<8x512xf32> to vector<8x128xf32>
    %198 = math.tanh %197 : vector<8x128xf32>
    %199 = vector.extract_strided_slice %196 {offsets = [0, 0], sizes = [8, 128], strides = [1, 1]} : vector<8x384xf32> to vector<8x128xf32>
    %200 = vector.extract_strided_slice %196 {offsets = [0, 128], sizes = [8, 128], strides = [1, 1]} : vector<8x384xf32> to vector<8x128xf32>
    %201 = vector.extract_strided_slice %196 {offsets = [0, 256], sizes = [8, 128], strides = [1, 1]} : vector<8x384xf32> to vector<8x128xf32>
    %202 = arith.mulf %200, %162 : vector<8x128xf32>
    %203 = arith.mulf %199, %198 : vector<8x128xf32>
    %204 = arith.addf %202, %203 : vector<8x128xf32>
    %205 = math.tanh %204 : vector<8x128xf32>
    %206 = arith.mulf %201, %205 : vector<8x128xf32>
    %207 = arith.truncf %206 : vector<8x128xf32> to vector<8x128xbf16>
    %cst_44 = arith.constant dense<0.000000e+00> : vector<8x512xf32>
    %208 = tpu.matmul %207, %10, %cst_44 {dimension_numbers = #tpu.dot_dimension_numbers<[1], [0], [0], [1], [0, 0, 1, 1], [], []>} : vector<8x128xbf16>, vector<128x512xbf16>, vector<8x512xf32> -> vector<8x512xf32>
    %209 = arith.truncf %186 : vector<8x128xf32> to vector<8x128xbf16>
    %cst_45 = arith.constant dense<0.000000e+00> : vector<8x512xf32>
    %210 = tpu.matmul %209, %11, %cst_45 {dimension_numbers = #tpu.dot_dimension_numbers<[1], [0], [0], [1], [0, 0, 1, 1], [], []>} : vector<8x128xbf16>, vector<128x512xbf16>, vector<8x512xf32> -> vector<8x512xf32>
    %211 = arith.addf %208, %210 : vector<8x512xf32>
    %212 = arith.addf %211, %14 : vector<8x512xf32>
    %213 = vector.extract_strided_slice %212 {offsets = [0, 0], sizes = [8, 384], strides = [1, 1]} : vector<8x512xf32> to vector<8x384xf32>
    %214 = arith.negf %213 : vector<8x384xf32>
    %215 = math.exp %214 : vector<8x384xf32>
    %cst_46 = arith.constant 1.000000e+00 : f32
    %216 = vector.broadcast %cst_46 : f32 to vector<8x384xf32>
    %217 = arith.addf %216, %215 : vector<8x384xf32>
    %218 = arith.divf %216, %217 : vector<8x384xf32>
    %219 = vector.extract_strided_slice %212 {offsets = [0, 384], sizes = [8, 128], strides = [1, 1]} : vector<8x512xf32> to vector<8x128xf32>
    %220 = math.tanh %219 : vector<8x128xf32>
    %221 = vector.extract_strided_slice %218 {offsets = [0, 0], sizes = [8, 128], strides = [1, 1]} : vector<8x384xf32> to vector<8x128xf32>
    %222 = vector.extract_strided_slice %218 {offsets = [0, 128], sizes = [8, 128], strides = [1, 1]} : vector<8x384xf32> to vector<8x128xf32>
    %223 = vector.extract_strided_slice %218 {offsets = [0, 256], sizes = [8, 128], strides = [1, 1]} : vector<8x384xf32> to vector<8x128xf32>
    %224 = arith.mulf %222, %184 : vector<8x128xf32>
    %225 = arith.mulf %221, %220 : vector<8x128xf32>
    %226 = arith.addf %224, %225 : vector<8x128xf32>
    %227 = math.tanh %226 : vector<8x128xf32>
    %228 = arith.mulf %223, %227 : vector<8x128xf32>
    %229 = vector.extract_strided_slice %8 {offsets = [40, 0], sizes = [8, 512], strides = [1, 1]} : vector<64x512xf32> to vector<8x512xf32>
    %230 = arith.truncf %206 : vector<8x128xf32> to vector<8x128xbf16>
    %cst_47 = arith.constant dense<0.000000e+00> : vector<8x512xf32>
    %231 = tpu.matmul %230, %9, %cst_47 {dimension_numbers = #tpu.dot_dimension_numbers<[1], [0], [0], [1], [0, 0, 1, 1], [], []>} : vector<8x128xbf16>, vector<128x512xbf16>, vector<8x512xf32> -> vector<8x512xf32>
    %232 = arith.addf %229, %231 : vector<8x512xf32>
    %233 = vector.extract_strided_slice %232 {offsets = [0, 0], sizes = [8, 384], strides = [1, 1]} : vector<8x512xf32> to vector<8x384xf32>
    %234 = arith.negf %233 : vector<8x384xf32>
    %235 = math.exp %234 : vector<8x384xf32>
    %cst_48 = arith.constant 1.000000e+00 : f32
    %236 = vector.broadcast %cst_48 : f32 to vector<8x384xf32>
    %237 = arith.addf %236, %235 : vector<8x384xf32>
    %238 = arith.divf %236, %237 : vector<8x384xf32>
    %239 = vector.extract_strided_slice %232 {offsets = [0, 384], sizes = [8, 128], strides = [1, 1]} : vector<8x512xf32> to vector<8x128xf32>
    %240 = math.tanh %239 : vector<8x128xf32>
    %241 = vector.extract_strided_slice %238 {offsets = [0, 0], sizes = [8, 128], strides = [1, 1]} : vector<8x384xf32> to vector<8x128xf32>
    %242 = vector.extract_strided_slice %238 {offsets = [0, 128], sizes = [8, 128], strides = [1, 1]} : vector<8x384xf32> to vector<8x128xf32>
    %243 = vector.extract_strided_slice %238 {offsets = [0, 256], sizes = [8, 128], strides = [1, 1]} : vector<8x384xf32> to vector<8x128xf32>
    %244 = arith.mulf %242, %204 : vector<8x128xf32>
    %245 = arith.mulf %241, %240 : vector<8x128xf32>
    %246 = arith.addf %244, %245 : vector<8x128xf32>
    %247 = math.tanh %246 : vector<8x128xf32>
    %248 = arith.mulf %243, %247 : vector<8x128xf32>
    %249 = arith.truncf %248 : vector<8x128xf32> to vector<8x128xbf16>
    %cst_49 = arith.constant dense<0.000000e+00> : vector<8x512xf32>
    %250 = tpu.matmul %249, %10, %cst_49 {dimension_numbers = #tpu.dot_dimension_numbers<[1], [0], [0], [1], [0, 0, 1, 1], [], []>} : vector<8x128xbf16>, vector<128x512xbf16>, vector<8x512xf32> -> vector<8x512xf32>
    %251 = arith.truncf %228 : vector<8x128xf32> to vector<8x128xbf16>
    %cst_50 = arith.constant dense<0.000000e+00> : vector<8x512xf32>
    %252 = tpu.matmul %251, %11, %cst_50 {dimension_numbers = #tpu.dot_dimension_numbers<[1], [0], [0], [1], [0, 0, 1, 1], [], []>} : vector<8x128xbf16>, vector<128x512xbf16>, vector<8x512xf32> -> vector<8x512xf32>
    %253 = arith.addf %250, %252 : vector<8x512xf32>
    %254 = arith.addf %253, %14 : vector<8x512xf32>
    %255 = vector.extract_strided_slice %254 {offsets = [0, 0], sizes = [8, 384], strides = [1, 1]} : vector<8x512xf32> to vector<8x384xf32>
    %256 = arith.negf %255 : vector<8x384xf32>
    %257 = math.exp %256 : vector<8x384xf32>
    %cst_51 = arith.constant 1.000000e+00 : f32
    %258 = vector.broadcast %cst_51 : f32 to vector<8x384xf32>
    %259 = arith.addf %258, %257 : vector<8x384xf32>
    %260 = arith.divf %258, %259 : vector<8x384xf32>
    %261 = vector.extract_strided_slice %254 {offsets = [0, 384], sizes = [8, 128], strides = [1, 1]} : vector<8x512xf32> to vector<8x128xf32>
    %262 = math.tanh %261 : vector<8x128xf32>
    %263 = vector.extract_strided_slice %260 {offsets = [0, 0], sizes = [8, 128], strides = [1, 1]} : vector<8x384xf32> to vector<8x128xf32>
    %264 = vector.extract_strided_slice %260 {offsets = [0, 128], sizes = [8, 128], strides = [1, 1]} : vector<8x384xf32> to vector<8x128xf32>
    %265 = vector.extract_strided_slice %260 {offsets = [0, 256], sizes = [8, 128], strides = [1, 1]} : vector<8x384xf32> to vector<8x128xf32>
    %266 = arith.mulf %264, %226 : vector<8x128xf32>
    %267 = arith.mulf %263, %262 : vector<8x128xf32>
    %268 = arith.addf %266, %267 : vector<8x128xf32>
    %269 = math.tanh %268 : vector<8x128xf32>
    %270 = arith.mulf %265, %269 : vector<8x128xf32>
    %271 = vector.extract_strided_slice %8 {offsets = [48, 0], sizes = [8, 512], strides = [1, 1]} : vector<64x512xf32> to vector<8x512xf32>
    %272 = arith.truncf %248 : vector<8x128xf32> to vector<8x128xbf16>
    %cst_52 = arith.constant dense<0.000000e+00> : vector<8x512xf32>
    %273 = tpu.matmul %272, %9, %cst_52 {dimension_numbers = #tpu.dot_dimension_numbers<[1], [0], [0], [1], [0, 0, 1, 1], [], []>} : vector<8x128xbf16>, vector<128x512xbf16>, vector<8x512xf32> -> vector<8x512xf32>
    %274 = arith.addf %271, %273 : vector<8x512xf32>
    %275 = vector.extract_strided_slice %274 {offsets = [0, 0], sizes = [8, 384], strides = [1, 1]} : vector<8x512xf32> to vector<8x384xf32>
    %276 = arith.negf %275 : vector<8x384xf32>
    %277 = math.exp %276 : vector<8x384xf32>
    %cst_53 = arith.constant 1.000000e+00 : f32
    %278 = vector.broadcast %cst_53 : f32 to vector<8x384xf32>
    %279 = arith.addf %278, %277 : vector<8x384xf32>
    %280 = arith.divf %278, %279 : vector<8x384xf32>
    %281 = vector.extract_strided_slice %274 {offsets = [0, 384], sizes = [8, 128], strides = [1, 1]} : vector<8x512xf32> to vector<8x128xf32>
    %282 = math.tanh %281 : vector<8x128xf32>
    %283 = vector.extract_strided_slice %280 {offsets = [0, 0], sizes = [8, 128], strides = [1, 1]} : vector<8x384xf32> to vector<8x128xf32>
    %284 = vector.extract_strided_slice %280 {offsets = [0, 128], sizes = [8, 128], strides = [1, 1]} : vector<8x384xf32> to vector<8x128xf32>
    %285 = vector.extract_strided_slice %280 {offsets = [0, 256], sizes = [8, 128], strides = [1, 1]} : vector<8x384xf32> to vector<8x128xf32>
    %286 = arith.mulf %284, %246 : vector<8x128xf32>
    %287 = arith.mulf %283, %282 : vector<8x128xf32>
    %288 = arith.addf %286, %287 : vector<8x128xf32>
    %289 = math.tanh %288 : vector<8x128xf32>
    %290 = arith.mulf %285, %289 : vector<8x128xf32>
    %291 = arith.truncf %290 : vector<8x128xf32> to vector<8x128xbf16>
    %cst_54 = arith.constant dense<0.000000e+00> : vector<8x512xf32>
    %292 = tpu.matmul %291, %10, %cst_54 {dimension_numbers = #tpu.dot_dimension_numbers<[1], [0], [0], [1], [0, 0, 1, 1], [], []>} : vector<8x128xbf16>, vector<128x512xbf16>, vector<8x512xf32> -> vector<8x512xf32>
    %293 = arith.truncf %270 : vector<8x128xf32> to vector<8x128xbf16>
    %cst_55 = arith.constant dense<0.000000e+00> : vector<8x512xf32>
    %294 = tpu.matmul %293, %11, %cst_55 {dimension_numbers = #tpu.dot_dimension_numbers<[1], [0], [0], [1], [0, 0, 1, 1], [], []>} : vector<8x128xbf16>, vector<128x512xbf16>, vector<8x512xf32> -> vector<8x512xf32>
    %295 = arith.addf %292, %294 : vector<8x512xf32>
    %296 = arith.addf %295, %14 : vector<8x512xf32>
    %297 = vector.extract_strided_slice %296 {offsets = [0, 0], sizes = [8, 384], strides = [1, 1]} : vector<8x512xf32> to vector<8x384xf32>
    %298 = arith.negf %297 : vector<8x384xf32>
    %299 = math.exp %298 : vector<8x384xf32>
    %cst_56 = arith.constant 1.000000e+00 : f32
    %300 = vector.broadcast %cst_56 : f32 to vector<8x384xf32>
    %301 = arith.addf %300, %299 : vector<8x384xf32>
    %302 = arith.divf %300, %301 : vector<8x384xf32>
    %303 = vector.extract_strided_slice %296 {offsets = [0, 384], sizes = [8, 128], strides = [1, 1]} : vector<8x512xf32> to vector<8x128xf32>
    %304 = math.tanh %303 : vector<8x128xf32>
    %305 = vector.extract_strided_slice %302 {offsets = [0, 0], sizes = [8, 128], strides = [1, 1]} : vector<8x384xf32> to vector<8x128xf32>
    %306 = vector.extract_strided_slice %302 {offsets = [0, 128], sizes = [8, 128], strides = [1, 1]} : vector<8x384xf32> to vector<8x128xf32>
    %307 = vector.extract_strided_slice %302 {offsets = [0, 256], sizes = [8, 128], strides = [1, 1]} : vector<8x384xf32> to vector<8x128xf32>
    %308 = arith.mulf %306, %268 : vector<8x128xf32>
    %309 = arith.mulf %305, %304 : vector<8x128xf32>
    %310 = arith.addf %308, %309 : vector<8x128xf32>
    %311 = math.tanh %310 : vector<8x128xf32>
    %312 = arith.mulf %307, %311 : vector<8x128xf32>
    %313 = vector.extract_strided_slice %8 {offsets = [56, 0], sizes = [8, 512], strides = [1, 1]} : vector<64x512xf32> to vector<8x512xf32>
    %314 = arith.truncf %290 : vector<8x128xf32> to vector<8x128xbf16>
    %cst_57 = arith.constant dense<0.000000e+00> : vector<8x512xf32>
    %315 = tpu.matmul %314, %9, %cst_57 {dimension_numbers = #tpu.dot_dimension_numbers<[1], [0], [0], [1], [0, 0, 1, 1], [], []>} : vector<8x128xbf16>, vector<128x512xbf16>, vector<8x512xf32> -> vector<8x512xf32>
    %316 = arith.addf %313, %315 : vector<8x512xf32>
    %317 = vector.extract_strided_slice %316 {offsets = [0, 0], sizes = [8, 384], strides = [1, 1]} : vector<8x512xf32> to vector<8x384xf32>
    %318 = arith.negf %317 : vector<8x384xf32>
    %319 = math.exp %318 : vector<8x384xf32>
    %cst_58 = arith.constant 1.000000e+00 : f32
    %320 = vector.broadcast %cst_58 : f32 to vector<8x384xf32>
    %321 = arith.addf %320, %319 : vector<8x384xf32>
    %322 = arith.divf %320, %321 : vector<8x384xf32>
    %323 = vector.extract_strided_slice %316 {offsets = [0, 384], sizes = [8, 128], strides = [1, 1]} : vector<8x512xf32> to vector<8x128xf32>
    %324 = math.tanh %323 : vector<8x128xf32>
    %325 = vector.extract_strided_slice %322 {offsets = [0, 0], sizes = [8, 128], strides = [1, 1]} : vector<8x384xf32> to vector<8x128xf32>
    %326 = vector.extract_strided_slice %322 {offsets = [0, 128], sizes = [8, 128], strides = [1, 1]} : vector<8x384xf32> to vector<8x128xf32>
    %327 = vector.extract_strided_slice %322 {offsets = [0, 256], sizes = [8, 128], strides = [1, 1]} : vector<8x384xf32> to vector<8x128xf32>
    %328 = arith.mulf %326, %288 : vector<8x128xf32>
    %329 = arith.mulf %325, %324 : vector<8x128xf32>
    %330 = arith.addf %328, %329 : vector<8x128xf32>
    %331 = math.tanh %330 : vector<8x128xf32>
    %332 = arith.mulf %327, %331 : vector<8x128xf32>
    %333 = arith.truncf %332 : vector<8x128xf32> to vector<8x128xbf16>
    %cst_59 = arith.constant dense<0.000000e+00> : vector<8x512xf32>
    %334 = tpu.matmul %333, %10, %cst_59 {dimension_numbers = #tpu.dot_dimension_numbers<[1], [0], [0], [1], [0, 0, 1, 1], [], []>} : vector<8x128xbf16>, vector<128x512xbf16>, vector<8x512xf32> -> vector<8x512xf32>
    %335 = arith.truncf %312 : vector<8x128xf32> to vector<8x128xbf16>
    %cst_60 = arith.constant dense<0.000000e+00> : vector<8x512xf32>
    %336 = tpu.matmul %335, %11, %cst_60 {dimension_numbers = #tpu.dot_dimension_numbers<[1], [0], [0], [1], [0, 0, 1, 1], [], []>} : vector<8x128xbf16>, vector<128x512xbf16>, vector<8x512xf32> -> vector<8x512xf32>
    %337 = arith.addf %334, %336 : vector<8x512xf32>
    %338 = arith.addf %337, %14 : vector<8x512xf32>
    %339 = vector.extract_strided_slice %338 {offsets = [0, 0], sizes = [8, 384], strides = [1, 1]} : vector<8x512xf32> to vector<8x384xf32>
    %340 = arith.negf %339 : vector<8x384xf32>
    %341 = math.exp %340 : vector<8x384xf32>
    %cst_61 = arith.constant 1.000000e+00 : f32
    %342 = vector.broadcast %cst_61 : f32 to vector<8x384xf32>
    %343 = arith.addf %342, %341 : vector<8x384xf32>
    %344 = arith.divf %342, %343 : vector<8x384xf32>
    %345 = vector.extract_strided_slice %338 {offsets = [0, 384], sizes = [8, 128], strides = [1, 1]} : vector<8x512xf32> to vector<8x128xf32>
    %346 = math.tanh %345 : vector<8x128xf32>
    %347 = vector.extract_strided_slice %344 {offsets = [0, 0], sizes = [8, 128], strides = [1, 1]} : vector<8x384xf32> to vector<8x128xf32>
    %348 = vector.extract_strided_slice %344 {offsets = [0, 128], sizes = [8, 128], strides = [1, 1]} : vector<8x384xf32> to vector<8x128xf32>
    %349 = vector.extract_strided_slice %344 {offsets = [0, 256], sizes = [8, 128], strides = [1, 1]} : vector<8x384xf32> to vector<8x128xf32>
    %350 = arith.mulf %348, %310 : vector<8x128xf32>
    %351 = arith.mulf %347, %346 : vector<8x128xf32>
    %352 = arith.addf %350, %351 : vector<8x128xf32>
    %353 = math.tanh %352 : vector<8x128xf32>
    %354 = arith.mulf %349, %353 : vector<8x128xf32>
    %c0_62 = arith.constant 0 : index
    %c0_63 = arith.constant 0 : index
    %355 = vector.load %arg9[%c0_62, %c0_63] : memref<8x128xf32, #tpu.memory_space<vmem>>, vector<8x128xf32>
    tpu.vector_store %arg9[%c0_62, %c0_63], %332 {strides = array<i32>} : memref<8x128xf32, #tpu.memory_space<vmem>>, vector<8x128xf32>,
    %c0_64 = arith.constant 0 : index
    %c0_65 = arith.constant 0 : index
    %356 = vector.load %arg10[%c0_64, %c0_65] : memref<8x128xf32, #tpu.memory_space<vmem>>, vector<8x128xf32>
    tpu.vector_store %arg10[%c0_64, %c0_65], %330 {strides = array<i32>} : memref<8x128xf32, #tpu.memory_space<vmem>>, vector<8x128xf32>,
    %c0_66 = arith.constant 0 : index
    %c0_67 = arith.constant 0 : index
    %357 = vector.load %arg11[%c0_66, %c0_67] : memref<8x128xf32, #tpu.memory_space<vmem>>, vector<8x128xf32>
    tpu.vector_store %arg11[%c0_66, %c0_67], %354 {strides = array<i32>} : memref<8x128xf32, #tpu.memory_space<vmem>>, vector<8x128xf32>,
    %c0_68 = arith.constant 0 : index
    %c0_69 = arith.constant 0 : index
    %358 = vector.load %arg12[%c0_68, %c0_69] : memref<8x128xf32, #tpu.memory_space<vmem>>, vector<8x128xf32>
    tpu.vector_store %arg12[%c0_68, %c0_69], %352 {strides = array<i32>} : memref<8x128xf32, #tpu.memory_space<vmem>>, vector<8x128xf32>,
    %c1_i32 = arith.constant 1 : i32
    %359 = arith.cmpi eq, %arg0, %c1_i32 : i32
    %360 = arith.extui %359 : i1 to i32
    %c0_i32_70 = arith.constant 0 : i32
    %361 = arith.cmpi ne, %360, %c0_i32_70 : i32
    scf.if %361 {
      %c0_71 = arith.constant 0 : index
      %c0_72 = arith.constant 0 : index
      %362 = vector.load %arg8[%c0_71, %c0_72] : memref<8x128xf32, #tpu.memory_space<vmem>>, vector<8x128xf32>
      tpu.vector_store %arg8[%c0_71, %c0_72], %354 {strides = array<i32>} : memref<8x128xf32, #tpu.memory_space<vmem>>, vector<8x128xf32>,
    } else {
    }
    return
  }
  func.func @transform_0(%arg0: i32) -> (i32, i32) {
    %c0_i32 = arith.constant 0 : i32
    %c0_i32_0 = arith.constant 0 : i32
    return %arg0, %c0_i32 : i32, i32
  }
  func.func @transform_1(%arg0: i32) -> (i32, i32) {
    %c0_i32 = arith.constant 0 : i32
    %c0_i32_0 = arith.constant 0 : i32
    %c0_i32_1 = arith.constant 0 : i32
    return %c0_i32, %c0_i32_0 : i32, i32
  }
  func.func @transform_2(%arg0: i32) -> (i32, i32) {
    %c0_i32 = arith.constant 0 : i32
    %c0_i32_0 = arith.constant 0 : i32
    %c0_i32_1 = arith.constant 0 : i32
    return %c0_i32, %c0_i32_0 : i32, i32
  }
  func.func @transform_3(%arg0: i32) -> (i32, i32) {
    %c0_i32 = arith.constant 0 : i32
    %c0_i32_0 = arith.constant 0 : i32
    %c0_i32_1 = arith.constant 0 : i32
    return %c0_i32, %c0_i32_0 : i32, i32
  }
  func.func @transform_4(%arg0: i32) -> (i32, i32) {
    %c0_i32 = arith.constant 0 : i32
    %c0_i32_0 = arith.constant 0 : i32
    %c0_i32_1 = arith.constant 0 : i32
    return %c0_i32, %c0_i32_0 : i32, i32
  }
  func.func @transform_5(%arg0: i32) -> (i32, i32) {
    %c0_i32 = arith.constant 0 : i32
    %c0_i32_0 = arith.constant 0 : i32
    %c0_i32_1 = arith.constant 0 : i32
    return %c0_i32, %c0_i32_0 : i32, i32
  }
  func.func @transform_6(%arg0: i32) -> (i32, i32) {
    %c0_i32 = arith.constant 0 : i32
    %c0_i32_0 = arith.constant 0 : i32
    %c0_i32_1 = arith.constant 0 : i32
    return %c0_i32, %c0_i32_0 : i32, i32
  }
  func.func @transform_7(%arg0: i32) -> (i32, i32) {
    %c0_i32 = arith.constant 0 : i32
    %c0_i32_0 = arith.constant 0 : i32
    %c0_i32_1 = arith.constant 0 : i32
    return %c0_i32, %c0_i32_0 : i32, i32
  }
}

module attributes {stable_mosaic.version = 11 : i64} {
  func.func @vocab_head_kernel(%arg0: i32, %arg1: memref<8x128xf32, #tpu.memory_space<vmem>>, %arg2: memref<128x128xbf16, #tpu.memory_space<vmem>>, %arg3: memref<1x128xf32, #tpu.memory_space<vmem>>, %arg4: memref<128x128xbf16, #tpu.memory_space<vmem>>, %arg5: memref<1x128xf32, #tpu.memory_space<vmem>>, %arg6: memref<8x128xf32, #tpu.memory_space<vmem>>) attributes {dimension_semantics = [#tpu.dimension_semantics<parallel>], iteration_bounds = array<i64: 1>, scalar_prefetch = 0 : i64, scratch_operands = 0 : i64, tpu.core_type = #tpu.core_type<tc>, window_params = [{pipeline_mode = #tpu.pipeline_mode<synchronous>, transform_indices = @transform_0, window_bounds = array<i64: 8, 128>}, {pipeline_mode = #tpu.pipeline_mode<synchronous>, transform_indices = @transform_1, window_bounds = array<i64: 128, 128>}, {pipeline_mode = #tpu.pipeline_mode<synchronous>, transform_indices = @transform_2, window_bounds = array<i64: 1, 128>}, {transform_indices = @transform_3, window_bounds = array<i64: 128, 128>}, {transform_indices = @transform_4, window_bounds = array<i64: 1, 128>}, {transform_indices = @transform_5, window_bounds = array<i64: 8, 128>}]} {
    %c0 = arith.constant 0 : index
    %c0_0 = arith.constant 0 : index
    %0 = vector.load %arg1[%c0, %c0_0] : memref<8x128xf32, #tpu.memory_space<vmem>>, vector<8x128xf32>
    %1 = arith.truncf %0 : vector<8x128xf32> to vector<8x128xbf16>
    %c0_1 = arith.constant 0 : index
    %c0_2 = arith.constant 0 : index
    %2 = vector.load %arg2[%c0_1, %c0_2] : memref<128x128xbf16, #tpu.memory_space<vmem>>, vector<128x128xbf16>
    %cst = arith.constant dense<0.000000e+00> : vector<8x128xf32>
    %3 = tpu.matmul %1, %2, %cst {dimension_numbers = #tpu.dot_dimension_numbers<[1], [0], [0], [1], [0, 0, 1, 1], [], []>} : vector<8x128xbf16>, vector<128x128xbf16>, vector<8x128xf32> -> vector<8x128xf32>
    %c0_3 = arith.constant 0 : index
    %c0_4 = arith.constant 0 : index
    %4 = vector.load %arg3[%c0_3, %c0_4] : memref<1x128xf32, #tpu.memory_space<vmem>>, vector<1x128xf32>
    %5 = vector.broadcast %4 : vector<1x128xf32> to vector<8x128xf32>
    %6 = arith.addf %3, %5 : vector<8x128xf32>
    %cst_5 = arith.constant 0.000000e+00 : f32
    %7 = vector.broadcast %cst_5 : f32 to vector<8x128xf32>
    %8 = arith.maximumf %6, %7 : vector<8x128xf32>
    %9 = arith.truncf %8 : vector<8x128xf32> to vector<8x128xbf16>
    %c0_6 = arith.constant 0 : index
    %c0_7 = arith.constant 0 : index
    %10 = vector.load %arg4[%c0_6, %c0_7] : memref<128x128xbf16, #tpu.memory_space<vmem>>, vector<128x128xbf16>
    %cst_8 = arith.constant dense<0.000000e+00> : vector<8x128xf32>
    %11 = tpu.matmul %9, %10, %cst_8 {dimension_numbers = #tpu.dot_dimension_numbers<[1], [0], [0], [1], [0, 0, 1, 1], [], []>} : vector<8x128xbf16>, vector<128x128xbf16>, vector<8x128xf32> -> vector<8x128xf32>
    %c0_9 = arith.constant 0 : index
    %c0_10 = arith.constant 0 : index
    %12 = vector.load %arg5[%c0_9, %c0_10] : memref<1x128xf32, #tpu.memory_space<vmem>>, vector<1x128xf32>
    %13 = vector.broadcast %12 : vector<1x128xf32> to vector<8x128xf32>
    %14 = arith.addf %11, %13 : vector<8x128xf32>
    %c0_11 = arith.constant 0 : index
    %c0_12 = arith.constant 0 : index
    %15 = vector.load %arg6[%c0_11, %c0_12] : memref<8x128xf32, #tpu.memory_space<vmem>>, vector<8x128xf32>
    tpu.vector_store %arg6[%c0_11, %c0_12], %14 {strides = array<i32>} : memref<8x128xf32, #tpu.memory_space<vmem>>, vector<8x128xf32>,
    return
  }
  func.func @transform_0(%arg0: i32) -> (i32, i32) {
    %c0_i32 = arith.constant 0 : i32
    %c0_i32_0 = arith.constant 0 : i32
    %c0_i32_1 = arith.constant 0 : i32
    return %c0_i32, %c0_i32_0 : i32, i32
  }
  func.func @transform_1(%arg0: i32) -> (i32, i32) {
    %c0_i32 = arith.constant 0 : i32
    %c0_i32_0 = arith.constant 0 : i32
    %c0_i32_1 = arith.constant 0 : i32
    return %c0_i32, %c0_i32_0 : i32, i32
  }
  func.func @transform_2(%arg0: i32) -> (i32, i32) {
    %c0_i32 = arith.constant 0 : i32
    %c0_i32_0 = arith.constant 0 : i32
    %c0_i32_1 = arith.constant 0 : i32
    return %c0_i32, %c0_i32_0 : i32, i32
  }
  func.func @transform_3(%arg0: i32) -> (i32, i32) {
    %c0_i32 = arith.constant 0 : i32
    %c0_i32_0 = arith.constant 0 : i32
    return %c0_i32, %arg0 : i32, i32
  }
  func.func @transform_4(%arg0: i32) -> (i32, i32) {
    %c0_i32 = arith.constant 0 : i32
    %c0_i32_0 = arith.constant 0 : i32
    return %c0_i32, %arg0 : i32, i32
  }
  func.func @transform_5(%arg0: i32) -> (i32, i32) {
    %c0_i32 = arith.constant 0 : i32
    %c0_i32_0 = arith.constant 0 : i32
    return %c0_i32, %arg0 : i32, i32
  }
}

module attributes {stable_mosaic.version = 11 : i64} {
  func.func @lstm_recurrence_kernel(%arg0: i32, %arg1: memref<64x128xbf16, #tpu.memory_space<vmem>>, %arg2: memref<128x512xbf16, #tpu.memory_space<vmem>>, %arg3: memref<128x512xbf16, #tpu.memory_space<vmem>>, %arg4: memref<1x512xf32, #tpu.memory_space<vmem>>, %arg5: memref<128x512xbf16, #tpu.memory_space<vmem>>, %arg6: memref<128x512xbf16, #tpu.memory_space<vmem>>, %arg7: memref<1x512xf32, #tpu.memory_space<vmem>>, %arg8: memref<8x128xf32, #tpu.memory_space<vmem>>, %arg9: memref<8x128xf32, #tpu.memory_space<vmem>>, %arg10: memref<8x128xf32, #tpu.memory_space<vmem>>, %arg11: memref<8x128xf32, #tpu.memory_space<vmem>>, %arg12: memref<8x128xf32, #tpu.memory_space<vmem>>) attributes {dimension_semantics = [#tpu.dimension_semantics<arbitrary>], iteration_bounds = array<i64: 2>, scalar_prefetch = 0 : i64, scratch_operands = 4 : i64, tpu.core_type = #tpu.core_type<tc>, window_params = [{transform_indices = @transform_0, window_bounds = array<i64: 64, 128>}, {pipeline_mode = #tpu.pipeline_mode<synchronous>, transform_indices = @transform_1, window_bounds = array<i64: 128, 512>}, {pipeline_mode = #tpu.pipeline_mode<synchronous>, transform_indices = @transform_2, window_bounds = array<i64: 128, 512>}, {pipeline_mode = #tpu.pipeline_mode<synchronous>, transform_indices = @transform_3, window_bounds = array<i64: 1, 512>}, {pipeline_mode = #tpu.pipeline_mode<synchronous>, transform_indices = @transform_4, window_bounds = array<i64: 128, 512>}, {pipeline_mode = #tpu.pipeline_mode<synchronous>, transform_indices = @transform_5, window_bounds = array<i64: 128, 512>}, {pipeline_mode = #tpu.pipeline_mode<synchronous>, transform_indices = @transform_6, window_bounds = array<i64: 1, 512>}, {pipeline_mode = #tpu.pipeline_mode<synchronous>, transform_indices = @transform_7, window_bounds = array<i64: 8, 128>}]} {
    %c0_i32 = arith.constant 0 : i32
    %0 = arith.cmpi eq, %arg0, %c0_i32 : i32
    %1 = arith.extui %0 : i1 to i32
    %c0_i32_0 = arith.constant 0 : i32
    %2 = arith.cmpi ne, %1, %c0_i32_0 : i32
    scf.if %2 {
      %cst_71 = arith.constant 0.000000e+00 : f32
      %362 = vector.broadcast %cst_71 : f32 to vector<8x128xf32>
      %c0_72 = arith.constant 0 : index
      %c0_73 = arith.constant 0 : index
      %363 = vector.load %arg9[%c0_72, %c0_73] : memref<8x128xf32, #tpu.memory_space<vmem>>, vector<8x128xf32>
      tpu.vector_store %arg9[%c0_72, %c0_73], %362 {strides = array<i32>} : memref<8x128xf32, #tpu.memory_space<vmem>>, vector<8x128xf32>,
      %c0_74 = arith.constant 0 : index
      %c0_75 = arith.constant 0 : index
      %364 = vector.load %arg10[%c0_74, %c0_75] : memref<8x128xf32, #tpu.memory_space<vmem>>, vector<8x128xf32>
      tpu.vector_store %arg10[%c0_74, %c0_75], %362 {strides = array<i32>} : memref<8x128xf32, #tpu.memory_space<vmem>>, vector<8x128xf32>,
      %c0_76 = arith.constant 0 : index
      %c0_77 = arith.constant 0 : index
      %365 = vector.load %arg11[%c0_76, %c0_77] : memref<8x128xf32, #tpu.memory_space<vmem>>, vector<8x128xf32>
      tpu.vector_store %arg11[%c0_76, %c0_77], %362 {strides = array<i32>} : memref<8x128xf32, #tpu.memory_space<vmem>>, vector<8x128xf32>,
      %c0_78 = arith.constant 0 : index
      %c0_79 = arith.constant 0 : index
      %366 = vector.load %arg12[%c0_78, %c0_79] : memref<8x128xf32, #tpu.memory_space<vmem>>, vector<8x128xf32>
      tpu.vector_store %arg12[%c0_78, %c0_79], %362 {strides = array<i32>} : memref<8x128xf32, #tpu.memory_space<vmem>>, vector<8x128xf32>,
    } else {
    }
    %c0 = arith.constant 0 : index
    %c0_1 = arith.constant 0 : index
    %3 = vector.load %arg1[%c0, %c0_1] : memref<64x128xbf16, #tpu.memory_space<vmem>>, vector<64x128xbf16>
    %c0_2 = arith.constant 0 : index
    %c0_3 = arith.constant 0 : index
    %4 = vector.load %arg2[%c0_2, %c0_3] : memref<128x512xbf16, #tpu.memory_space<vmem>>, vector<128x512xbf16>
    %cst = arith.constant dense<0.000000e+00> : vector<64x512xf32>
    %5 = tpu.matmul %3, %4, %cst {dimension_numbers = #tpu.dot_dimension_numbers<[1], [0], [0], [1], [0, 0, 1, 1], [], []>} : vector<64x128xbf16>, vector<128x512xbf16>, vector<64x512xf32> -> vector<64x512xf32>
    %c0_4 = arith.constant 0 : index
    %c0_5 = arith.constant 0 : index
    %6 = vector.load %arg4[%c0_4, %c0_5] : memref<1x512xf32, #tpu.memory_space<vmem>>, vector<1x512xf32>
    %7 = vector.broadcast %6 : vector<1x512xf32> to vector<64x512xf32>
    %8 = arith.addf %5, %7 : vector<64x512xf32>
    %c0_6 = arith.constant 0 : index
    %c0_7 = arith.constant 0 : index
    %9 = vector.load %arg3[%c0_6, %c0_7] : memref<128x512xbf16, #tpu.memory_space<vmem>>, vector<128x512xbf16>
    %c0_8 = arith.constant 0 : index
    %c0_9 = arith.constant 0 : index
    %10 = vector.load %arg5[%c0_8, %c0_9] : memref<128x512xbf16, #tpu.memory_space<vmem>>, vector<128x512xbf16>
    %c0_10 = arith.constant 0 : index
    %c0_11 = arith.constant 0 : index
    %11 = vector.load %arg6[%c0_10, %c0_11] : memref<128x512xbf16, #tpu.memory_space<vmem>>, vector<128x512xbf16>
    %c0_12 = arith.constant 0 : index
    %c0_13 = arith.constant 0 : index
    %12 = vector.load %arg7[%c0_12, %c0_13] : memref<1x512xf32, #tpu.memory_space<vmem>>, vector<1x512xf32>
    %13 = vector.shape_cast %12 : vector<1x512xf32> to vector<1x512xf32>
    %14 = vector.broadcast %13 : vector<1x512xf32> to vector<8x512xf32>
    %c0_14 = arith.constant 0 : index
    %c0_15 = arith.constant 0 : index
    %15 = vector.load %arg9[%c0_14, %c0_15] : memref<8x128xf32, #tpu.memory_space<vmem>>, vector<8x128xf32>
    %c0_16 = arith.constant 0 : index
    %c0_17 = arith.constant 0 : index
    %16 = vector.load %arg10[%c0_16, %c0_17] : memref<8x128xf32, #tpu.memory_space<vmem>>, vector<8x128xf32>
    %c0_18 = arith.constant 0 : index
    %c0_19 = arith.constant 0 : index
    %17 = vector.load %arg11[%c0_18, %c0_19] : memref<8x128xf32, #tpu.memory_space<vmem>>, vector<8x128xf32>
    %c0_20 = arith.constant 0 : index
    %c0_21 = arith.constant 0 : index
    %18 = vector.load %arg12[%c0_20, %c0_21] : memref<8x128xf32, #tpu.memory_space<vmem>>, vector<8x128xf32>
    %19 = vector.extract_strided_slice %8 {offsets = [0, 0], sizes = [8, 512], strides = [1, 1]} : vector<64x512xf32> to vector<8x512xf32>
    %20 = arith.truncf %15 : vector<8x128xf32> to vector<8x128xbf16>
    %cst_22 = arith.constant dense<0.000000e+00> : vector<8x512xf32>
    %21 = tpu.matmul %20, %9, %cst_22 {dimension_numbers = #tpu.dot_dimension_numbers<[1], [0], [0], [1], [0, 0, 1, 1], [], []>} : vector<8x128xbf16>, vector<128x512xbf16>, vector<8x512xf32> -> vector<8x512xf32>
    %22 = arith.addf %19, %21 : vector<8x512xf32>
    %23 = vector.extract_strided_slice %22 {offsets = [0, 0], sizes = [8, 384], strides = [1, 1]} : vector<8x512xf32> to vector<8x384xf32>
    %24 = arith.negf %23 : vector<8x384xf32>
    %25 = math.exp %24 : vector<8x384xf32>
    %cst_23 = arith.constant 1.000000e+00 : f32
    %26 = vector.broadcast %cst_23 : f32 to vector<8x384xf32>
    %27 = arith.addf %26, %25 : vector<8x384xf32>
    %28 = arith.divf %26, %27 : vector<8x384xf32>
    %29 = vector.extract_strided_slice %22 {offsets = [0, 384], sizes = [8, 128], strides = [1, 1]} : vector<8x512xf32> to vector<8x128xf32>
    %30 = math.tanh %29 : vector<8x128xf32>
    %31 = vector.extract_strided_slice %28 {offsets = [0, 0], sizes = [8, 128], strides = [1, 1]} : vector<8x384xf32> to vector<8x128xf32>
    %32 = vector.extract_strided_slice %28 {offsets = [0, 128], sizes = [8, 128], strides = [1, 1]} : vector<8x384xf32> to vector<8x128xf32>
    %33 = vector.extract_strided_slice %28 {offsets = [0, 256], sizes = [8, 128], strides = [1, 1]} : vector<8x384xf32> to vector<8x128xf32>
    %34 = arith.mulf %32, %16 : vector<8x128xf32>
    %35 = arith.mulf %31, %30 : vector<8x128xf32>
    %36 = arith.addf %34, %35 : vector<8x128xf32>
    %37 = math.tanh %36 : vector<8x128xf32>
    %38 = arith.mulf %33, %37 : vector<8x128xf32>
    %39 = arith.truncf %38 : vector<8x128xf32> to vector<8x128xbf16>
    %cst_24 = arith.constant dense<0.000000e+00> : vector<8x512xf32>
    %40 = tpu.matmul %39, %10, %cst_24 {dimension_numbers = #tpu.dot_dimension_numbers<[1], [0], [0], [1], [0, 0, 1, 1], [], []>} : vector<8x128xbf16>, vector<128x512xbf16>, vector<8x512xf32> -> vector<8x512xf32>
    %41 = arith.truncf %17 : vector<8x128xf32> to vector<8x128xbf16>
    %cst_25 = arith.constant dense<0.000000e+00> : vector<8x512xf32>
    %42 = tpu.matmul %41, %11, %cst_25 {dimension_numbers = #tpu.dot_dimension_numbers<[1], [0], [0], [1], [0, 0, 1, 1], [], []>} : vector<8x128xbf16>, vector<128x512xbf16>, vector<8x512xf32> -> vector<8x512xf32>
    %43 = arith.addf %40, %42 : vector<8x512xf32>
    %44 = arith.addf %43, %14 : vector<8x512xf32>
    %45 = vector.extract_strided_slice %44 {offsets = [0, 0], sizes = [8, 384], strides = [1, 1]} : vector<8x512xf32> to vector<8x384xf32>
    %46 = arith.negf %45 : vector<8x384xf32>
    %47 = math.exp %46 : vector<8x384xf32>
    %cst_26 = arith.constant 1.000000e+00 : f32
    %48 = vector.broadcast %cst_26 : f32 to vector<8x384xf32>
    %49 = arith.addf %48, %47 : vector<8x384xf32>
    %50 = arith.divf %48, %49 : vector<8x384xf32>
    %51 = vector.extract_strided_slice %44 {offsets = [0, 384], sizes = [8, 128], strides = [1, 1]} : vector<8x512xf32> to vector<8x128xf32>
    %52 = math.tanh %51 : vector<8x128xf32>
    %53 = vector.extract_strided_slice %50 {offsets = [0, 0], sizes = [8, 128], strides = [1, 1]} : vector<8x384xf32> to vector<8x128xf32>
    %54 = vector.extract_strided_slice %50 {offsets = [0, 128], sizes = [8, 128], strides = [1, 1]} : vector<8x384xf32> to vector<8x128xf32>
    %55 = vector.extract_strided_slice %50 {offsets = [0, 256], sizes = [8, 128], strides = [1, 1]} : vector<8x384xf32> to vector<8x128xf32>
    %56 = arith.mulf %54, %18 : vector<8x128xf32>
    %57 = arith.mulf %53, %52 : vector<8x128xf32>
    %58 = arith.addf %56, %57 : vector<8x128xf32>
    %59 = math.tanh %58 : vector<8x128xf32>
    %60 = arith.mulf %55, %59 : vector<8x128xf32>
    %61 = vector.extract_strided_slice %8 {offsets = [8, 0], sizes = [8, 512], strides = [1, 1]} : vector<64x512xf32> to vector<8x512xf32>
    %62 = arith.truncf %38 : vector<8x128xf32> to vector<8x128xbf16>
    %cst_27 = arith.constant dense<0.000000e+00> : vector<8x512xf32>
    %63 = tpu.matmul %62, %9, %cst_27 {dimension_numbers = #tpu.dot_dimension_numbers<[1], [0], [0], [1], [0, 0, 1, 1], [], []>} : vector<8x128xbf16>, vector<128x512xbf16>, vector<8x512xf32> -> vector<8x512xf32>
    %64 = arith.addf %61, %63 : vector<8x512xf32>
    %65 = vector.extract_strided_slice %64 {offsets = [0, 0], sizes = [8, 384], strides = [1, 1]} : vector<8x512xf32> to vector<8x384xf32>
    %66 = arith.negf %65 : vector<8x384xf32>
    %67 = math.exp %66 : vector<8x384xf32>
    %cst_28 = arith.constant 1.000000e+00 : f32
    %68 = vector.broadcast %cst_28 : f32 to vector<8x384xf32>
    %69 = arith.addf %68, %67 : vector<8x384xf32>
    %70 = arith.divf %68, %69 : vector<8x384xf32>
    %71 = vector.extract_strided_slice %64 {offsets = [0, 384], sizes = [8, 128], strides = [1, 1]} : vector<8x512xf32> to vector<8x128xf32>
    %72 = math.tanh %71 : vector<8x128xf32>
    %73 = vector.extract_strided_slice %70 {offsets = [0, 0], sizes = [8, 128], strides = [1, 1]} : vector<8x384xf32> to vector<8x128xf32>
    %74 = vector.extract_strided_slice %70 {offsets = [0, 128], sizes = [8, 128], strides = [1, 1]} : vector<8x384xf32> to vector<8x128xf32>
    %75 = vector.extract_strided_slice %70 {offsets = [0, 256], sizes = [8, 128], strides = [1, 1]} : vector<8x384xf32> to vector<8x128xf32>
    %76 = arith.mulf %74, %36 : vector<8x128xf32>
    %77 = arith.mulf %73, %72 : vector<8x128xf32>
    %78 = arith.addf %76, %77 : vector<8x128xf32>
    %79 = math.tanh %78 : vector<8x128xf32>
    %80 = arith.mulf %75, %79 : vector<8x128xf32>
    %81 = arith.truncf %80 : vector<8x128xf32> to vector<8x128xbf16>
    %cst_29 = arith.constant dense<0.000000e+00> : vector<8x512xf32>
    %82 = tpu.matmul %81, %10, %cst_29 {dimension_numbers = #tpu.dot_dimension_numbers<[1], [0], [0], [1], [0, 0, 1, 1], [], []>} : vector<8x128xbf16>, vector<128x512xbf16>, vector<8x512xf32> -> vector<8x512xf32>
    %83 = arith.truncf %60 : vector<8x128xf32> to vector<8x128xbf16>
    %cst_30 = arith.constant dense<0.000000e+00> : vector<8x512xf32>
    %84 = tpu.matmul %83, %11, %cst_30 {dimension_numbers = #tpu.dot_dimension_numbers<[1], [0], [0], [1], [0, 0, 1, 1], [], []>} : vector<8x128xbf16>, vector<128x512xbf16>, vector<8x512xf32> -> vector<8x512xf32>
    %85 = arith.addf %82, %84 : vector<8x512xf32>
    %86 = arith.addf %85, %14 : vector<8x512xf32>
    %87 = vector.extract_strided_slice %86 {offsets = [0, 0], sizes = [8, 384], strides = [1, 1]} : vector<8x512xf32> to vector<8x384xf32>
    %88 = arith.negf %87 : vector<8x384xf32>
    %89 = math.exp %88 : vector<8x384xf32>
    %cst_31 = arith.constant 1.000000e+00 : f32
    %90 = vector.broadcast %cst_31 : f32 to vector<8x384xf32>
    %91 = arith.addf %90, %89 : vector<8x384xf32>
    %92 = arith.divf %90, %91 : vector<8x384xf32>
    %93 = vector.extract_strided_slice %86 {offsets = [0, 384], sizes = [8, 128], strides = [1, 1]} : vector<8x512xf32> to vector<8x128xf32>
    %94 = math.tanh %93 : vector<8x128xf32>
    %95 = vector.extract_strided_slice %92 {offsets = [0, 0], sizes = [8, 128], strides = [1, 1]} : vector<8x384xf32> to vector<8x128xf32>
    %96 = vector.extract_strided_slice %92 {offsets = [0, 128], sizes = [8, 128], strides = [1, 1]} : vector<8x384xf32> to vector<8x128xf32>
    %97 = vector.extract_strided_slice %92 {offsets = [0, 256], sizes = [8, 128], strides = [1, 1]} : vector<8x384xf32> to vector<8x128xf32>
    %98 = arith.mulf %96, %58 : vector<8x128xf32>
    %99 = arith.mulf %95, %94 : vector<8x128xf32>
    %100 = arith.addf %98, %99 : vector<8x128xf32>
    %101 = math.tanh %100 : vector<8x128xf32>
    %102 = arith.mulf %97, %101 : vector<8x128xf32>
    %103 = vector.extract_strided_slice %8 {offsets = [16, 0], sizes = [8, 512], strides = [1, 1]} : vector<64x512xf32> to vector<8x512xf32>
    %104 = arith.truncf %80 : vector<8x128xf32> to vector<8x128xbf16>
    %cst_32 = arith.constant dense<0.000000e+00> : vector<8x512xf32>
    %105 = tpu.matmul %104, %9, %cst_32 {dimension_numbers = #tpu.dot_dimension_numbers<[1], [0], [0], [1], [0, 0, 1, 1], [], []>} : vector<8x128xbf16>, vector<128x512xbf16>, vector<8x512xf32> -> vector<8x512xf32>
    %106 = arith.addf %103, %105 : vector<8x512xf32>
    %107 = vector.extract_strided_slice %106 {offsets = [0, 0], sizes = [8, 384], strides = [1, 1]} : vector<8x512xf32> to vector<8x384xf32>
    %108 = arith.negf %107 : vector<8x384xf32>
    %109 = math.exp %108 : vector<8x384xf32>
    %cst_33 = arith.constant 1.000000e+00 : f32
    %110 = vector.broadcast %cst_33 : f32 to vector<8x384xf32>
    %111 = arith.addf %110, %109 : vector<8x384xf32>
    %112 = arith.divf %110, %111 : vector<8x384xf32>
    %113 = vector.extract_strided_slice %106 {offsets = [0, 384], sizes = [8, 128], strides = [1, 1]} : vector<8x512xf32> to vector<8x128xf32>
    %114 = math.tanh %113 : vector<8x128xf32>
    %115 = vector.extract_strided_slice %112 {offsets = [0, 0], sizes = [8, 128], strides = [1, 1]} : vector<8x384xf32> to vector<8x128xf32>
    %116 = vector.extract_strided_slice %112 {offsets = [0, 128], sizes = [8, 128], strides = [1, 1]} : vector<8x384xf32> to vector<8x128xf32>
    %117 = vector.extract_strided_slice %112 {offsets = [0, 256], sizes = [8, 128], strides = [1, 1]} : vector<8x384xf32> to vector<8x128xf32>
    %118 = arith.mulf %116, %78 : vector<8x128xf32>
    %119 = arith.mulf %115, %114 : vector<8x128xf32>
    %120 = arith.addf %118, %119 : vector<8x128xf32>
    %121 = math.tanh %120 : vector<8x128xf32>
    %122 = arith.mulf %117, %121 : vector<8x128xf32>
    %123 = arith.truncf %122 : vector<8x128xf32> to vector<8x128xbf16>
    %cst_34 = arith.constant dense<0.000000e+00> : vector<8x512xf32>
    %124 = tpu.matmul %123, %10, %cst_34 {dimension_numbers = #tpu.dot_dimension_numbers<[1], [0], [0], [1], [0, 0, 1, 1], [], []>} : vector<8x128xbf16>, vector<128x512xbf16>, vector<8x512xf32> -> vector<8x512xf32>
    %125 = arith.truncf %102 : vector<8x128xf32> to vector<8x128xbf16>
    %cst_35 = arith.constant dense<0.000000e+00> : vector<8x512xf32>
    %126 = tpu.matmul %125, %11, %cst_35 {dimension_numbers = #tpu.dot_dimension_numbers<[1], [0], [0], [1], [0, 0, 1, 1], [], []>} : vector<8x128xbf16>, vector<128x512xbf16>, vector<8x512xf32> -> vector<8x512xf32>
    %127 = arith.addf %124, %126 : vector<8x512xf32>
    %128 = arith.addf %127, %14 : vector<8x512xf32>
    %129 = vector.extract_strided_slice %128 {offsets = [0, 0], sizes = [8, 384], strides = [1, 1]} : vector<8x512xf32> to vector<8x384xf32>
    %130 = arith.negf %129 : vector<8x384xf32>
    %131 = math.exp %130 : vector<8x384xf32>
    %cst_36 = arith.constant 1.000000e+00 : f32
    %132 = vector.broadcast %cst_36 : f32 to vector<8x384xf32>
    %133 = arith.addf %132, %131 : vector<8x384xf32>
    %134 = arith.divf %132, %133 : vector<8x384xf32>
    %135 = vector.extract_strided_slice %128 {offsets = [0, 384], sizes = [8, 128], strides = [1, 1]} : vector<8x512xf32> to vector<8x128xf32>
    %136 = math.tanh %135 : vector<8x128xf32>
    %137 = vector.extract_strided_slice %134 {offsets = [0, 0], sizes = [8, 128], strides = [1, 1]} : vector<8x384xf32> to vector<8x128xf32>
    %138 = vector.extract_strided_slice %134 {offsets = [0, 128], sizes = [8, 128], strides = [1, 1]} : vector<8x384xf32> to vector<8x128xf32>
    %139 = vector.extract_strided_slice %134 {offsets = [0, 256], sizes = [8, 128], strides = [1, 1]} : vector<8x384xf32> to vector<8x128xf32>
    %140 = arith.mulf %138, %100 : vector<8x128xf32>
    %141 = arith.mulf %137, %136 : vector<8x128xf32>
    %142 = arith.addf %140, %141 : vector<8x128xf32>
    %143 = math.tanh %142 : vector<8x128xf32>
    %144 = arith.mulf %139, %143 : vector<8x128xf32>
    %145 = vector.extract_strided_slice %8 {offsets = [24, 0], sizes = [8, 512], strides = [1, 1]} : vector<64x512xf32> to vector<8x512xf32>
    %146 = arith.truncf %122 : vector<8x128xf32> to vector<8x128xbf16>
    %cst_37 = arith.constant dense<0.000000e+00> : vector<8x512xf32>
    %147 = tpu.matmul %146, %9, %cst_37 {dimension_numbers = #tpu.dot_dimension_numbers<[1], [0], [0], [1], [0, 0, 1, 1], [], []>} : vector<8x128xbf16>, vector<128x512xbf16>, vector<8x512xf32> -> vector<8x512xf32>
    %148 = arith.addf %145, %147 : vector<8x512xf32>
    %149 = vector.extract_strided_slice %148 {offsets = [0, 0], sizes = [8, 384], strides = [1, 1]} : vector<8x512xf32> to vector<8x384xf32>
    %150 = arith.negf %149 : vector<8x384xf32>
    %151 = math.exp %150 : vector<8x384xf32>
    %cst_38 = arith.constant 1.000000e+00 : f32
    %152 = vector.broadcast %cst_38 : f32 to vector<8x384xf32>
    %153 = arith.addf %152, %151 : vector<8x384xf32>
    %154 = arith.divf %152, %153 : vector<8x384xf32>
    %155 = vector.extract_strided_slice %148 {offsets = [0, 384], sizes = [8, 128], strides = [1, 1]} : vector<8x512xf32> to vector<8x128xf32>
    %156 = math.tanh %155 : vector<8x128xf32>
    %157 = vector.extract_strided_slice %154 {offsets = [0, 0], sizes = [8, 128], strides = [1, 1]} : vector<8x384xf32> to vector<8x128xf32>
    %158 = vector.extract_strided_slice %154 {offsets = [0, 128], sizes = [8, 128], strides = [1, 1]} : vector<8x384xf32> to vector<8x128xf32>
    %159 = vector.extract_strided_slice %154 {offsets = [0, 256], sizes = [8, 128], strides = [1, 1]} : vector<8x384xf32> to vector<8x128xf32>
    %160 = arith.mulf %158, %120 : vector<8x128xf32>
    %161 = arith.mulf %157, %156 : vector<8x128xf32>
    %162 = arith.addf %160, %161 : vector<8x128xf32>
    %163 = math.tanh %162 : vector<8x128xf32>
    %164 = arith.mulf %159, %163 : vector<8x128xf32>
    %165 = arith.truncf %164 : vector<8x128xf32> to vector<8x128xbf16>
    %cst_39 = arith.constant dense<0.000000e+00> : vector<8x512xf32>
    %166 = tpu.matmul %165, %10, %cst_39 {dimension_numbers = #tpu.dot_dimension_numbers<[1], [0], [0], [1], [0, 0, 1, 1], [], []>} : vector<8x128xbf16>, vector<128x512xbf16>, vector<8x512xf32> -> vector<8x512xf32>
    %167 = arith.truncf %144 : vector<8x128xf32> to vector<8x128xbf16>
    %cst_40 = arith.constant dense<0.000000e+00> : vector<8x512xf32>
    %168 = tpu.matmul %167, %11, %cst_40 {dimension_numbers = #tpu.dot_dimension_numbers<[1], [0], [0], [1], [0, 0, 1, 1], [], []>} : vector<8x128xbf16>, vector<128x512xbf16>, vector<8x512xf32> -> vector<8x512xf32>
    %169 = arith.addf %166, %168 : vector<8x512xf32>
    %170 = arith.addf %169, %14 : vector<8x512xf32>
    %171 = vector.extract_strided_slice %170 {offsets = [0, 0], sizes = [8, 384], strides = [1, 1]} : vector<8x512xf32> to vector<8x384xf32>
    %172 = arith.negf %171 : vector<8x384xf32>
    %173 = math.exp %172 : vector<8x384xf32>
    %cst_41 = arith.constant 1.000000e+00 : f32
    %174 = vector.broadcast %cst_41 : f32 to vector<8x384xf32>
    %175 = arith.addf %174, %173 : vector<8x384xf32>
    %176 = arith.divf %174, %175 : vector<8x384xf32>
    %177 = vector.extract_strided_slice %170 {offsets = [0, 384], sizes = [8, 128], strides = [1, 1]} : vector<8x512xf32> to vector<8x128xf32>
    %178 = math.tanh %177 : vector<8x128xf32>
    %179 = vector.extract_strided_slice %176 {offsets = [0, 0], sizes = [8, 128], strides = [1, 1]} : vector<8x384xf32> to vector<8x128xf32>
    %180 = vector.extract_strided_slice %176 {offsets = [0, 128], sizes = [8, 128], strides = [1, 1]} : vector<8x384xf32> to vector<8x128xf32>
    %181 = vector.extract_strided_slice %176 {offsets = [0, 256], sizes = [8, 128], strides = [1, 1]} : vector<8x384xf32> to vector<8x128xf32>
    %182 = arith.mulf %180, %142 : vector<8x128xf32>
    %183 = arith.mulf %179, %178 : vector<8x128xf32>
    %184 = arith.addf %182, %183 : vector<8x128xf32>
    %185 = math.tanh %184 : vector<8x128xf32>
    %186 = arith.mulf %181, %185 : vector<8x128xf32>
    %187 = vector.extract_strided_slice %8 {offsets = [32, 0], sizes = [8, 512], strides = [1, 1]} : vector<64x512xf32> to vector<8x512xf32>
    %188 = arith.truncf %164 : vector<8x128xf32> to vector<8x128xbf16>
    %cst_42 = arith.constant dense<0.000000e+00> : vector<8x512xf32>
    %189 = tpu.matmul %188, %9, %cst_42 {dimension_numbers = #tpu.dot_dimension_numbers<[1], [0], [0], [1], [0, 0, 1, 1], [], []>} : vector<8x128xbf16>, vector<128x512xbf16>, vector<8x512xf32> -> vector<8x512xf32>
    %190 = arith.addf %187, %189 : vector<8x512xf32>
    %191 = vector.extract_strided_slice %190 {offsets = [0, 0], sizes = [8, 384], strides = [1, 1]} : vector<8x512xf32> to vector<8x384xf32>
    %192 = arith.negf %191 : vector<8x384xf32>
    %193 = math.exp %192 : vector<8x384xf32>
    %cst_43 = arith.constant 1.000000e+00 : f32
    %194 = vector.broadcast %cst_43 : f32 to vector<8x384xf32>
    %195 = arith.addf %194, %193 : vector<8x384xf32>
    %196 = arith.divf %194, %195 : vector<8x384xf32>
    %197 = vector.extract_strided_slice %190 {offsets = [0, 384], sizes = [8, 128], strides = [1, 1]} : vector<8x512xf32> to vector<8x128xf32>
    %198 = math.tanh %197 : vector<8x128xf32>
    %199 = vector.extract_strided_slice %196 {offsets = [0, 0], sizes = [8, 128], strides = [1, 1]} : vector<8x384xf32> to vector<8x128xf32>
    %200 = vector.extract_strided_slice %196 {offsets = [0, 128], sizes = [8, 128], strides = [1, 1]} : vector<8x384xf32> to vector<8x128xf32>
    %201 = vector.extract_strided_slice %196 {offsets = [0, 256], sizes = [8, 128], strides = [1, 1]} : vector<8x384xf32> to vector<8x128xf32>
    %202 = arith.mulf %200, %162 : vector<8x128xf32>
    %203 = arith.mulf %199, %198 : vector<8x128xf32>
    %204 = arith.addf %202, %203 : vector<8x128xf32>
    %205 = math.tanh %204 : vector<8x128xf32>
    %206 = arith.mulf %201, %205 : vector<8x128xf32>
    %207 = arith.truncf %206 : vector<8x128xf32> to vector<8x128xbf16>
    %cst_44 = arith.constant dense<0.000000e+00> : vector<8x512xf32>
    %208 = tpu.matmul %207, %10, %cst_44 {dimension_numbers = #tpu.dot_dimension_numbers<[1], [0], [0], [1], [0, 0, 1, 1], [], []>} : vector<8x128xbf16>, vector<128x512xbf16>, vector<8x512xf32> -> vector<8x512xf32>
    %209 = arith.truncf %186 : vector<8x128xf32> to vector<8x128xbf16>
    %cst_45 = arith.constant dense<0.000000e+00> : vector<8x512xf32>
    %210 = tpu.matmul %209, %11, %cst_45 {dimension_numbers = #tpu.dot_dimension_numbers<[1], [0], [0], [1], [0, 0, 1, 1], [], []>} : vector<8x128xbf16>, vector<128x512xbf16>, vector<8x512xf32> -> vector<8x512xf32>
    %211 = arith.addf %208, %210 : vector<8x512xf32>
    %212 = arith.addf %211, %14 : vector<8x512xf32>
    %213 = vector.extract_strided_slice %212 {offsets = [0, 0], sizes = [8, 384], strides = [1, 1]} : vector<8x512xf32> to vector<8x384xf32>
    %214 = arith.negf %213 : vector<8x384xf32>
    %215 = math.exp %214 : vector<8x384xf32>
    %cst_46 = arith.constant 1.000000e+00 : f32
    %216 = vector.broadcast %cst_46 : f32 to vector<8x384xf32>
    %217 = arith.addf %216, %215 : vector<8x384xf32>
    %218 = arith.divf %216, %217 : vector<8x384xf32>
    %219 = vector.extract_strided_slice %212 {offsets = [0, 384], sizes = [8, 128], strides = [1, 1]} : vector<8x512xf32> to vector<8x128xf32>
    %220 = math.tanh %219 : vector<8x128xf32>
    %221 = vector.extract_strided_slice %218 {offsets = [0, 0], sizes = [8, 128], strides = [1, 1]} : vector<8x384xf32> to vector<8x128xf32>
    %222 = vector.extract_strided_slice %218 {offsets = [0, 128], sizes = [8, 128], strides = [1, 1]} : vector<8x384xf32> to vector<8x128xf32>
    %223 = vector.extract_strided_slice %218 {offsets = [0, 256], sizes = [8, 128], strides = [1, 1]} : vector<8x384xf32> to vector<8x128xf32>
    %224 = arith.mulf %222, %184 : vector<8x128xf32>
    %225 = arith.mulf %221, %220 : vector<8x128xf32>
    %226 = arith.addf %224, %225 : vector<8x128xf32>
    %227 = math.tanh %226 : vector<8x128xf32>
    %228 = arith.mulf %223, %227 : vector<8x128xf32>
    %229 = vector.extract_strided_slice %8 {offsets = [40, 0], sizes = [8, 512], strides = [1, 1]} : vector<64x512xf32> to vector<8x512xf32>
    %230 = arith.truncf %206 : vector<8x128xf32> to vector<8x128xbf16>
    %cst_47 = arith.constant dense<0.000000e+00> : vector<8x512xf32>
    %231 = tpu.matmul %230, %9, %cst_47 {dimension_numbers = #tpu.dot_dimension_numbers<[1], [0], [0], [1], [0, 0, 1, 1], [], []>} : vector<8x128xbf16>, vector<128x512xbf16>, vector<8x512xf32> -> vector<8x512xf32>
    %232 = arith.addf %229, %231 : vector<8x512xf32>
    %233 = vector.extract_strided_slice %232 {offsets = [0, 0], sizes = [8, 384], strides = [1, 1]} : vector<8x512xf32> to vector<8x384xf32>
    %234 = arith.negf %233 : vector<8x384xf32>
    %235 = math.exp %234 : vector<8x384xf32>
    %cst_48 = arith.constant 1.000000e+00 : f32
    %236 = vector.broadcast %cst_48 : f32 to vector<8x384xf32>
    %237 = arith.addf %236, %235 : vector<8x384xf32>
    %238 = arith.divf %236, %237 : vector<8x384xf32>
    %239 = vector.extract_strided_slice %232 {offsets = [0, 384], sizes = [8, 128], strides = [1, 1]} : vector<8x512xf32> to vector<8x128xf32>
    %240 = math.tanh %239 : vector<8x128xf32>
    %241 = vector.extract_strided_slice %238 {offsets = [0, 0], sizes = [8, 128], strides = [1, 1]} : vector<8x384xf32> to vector<8x128xf32>
    %242 = vector.extract_strided_slice %238 {offsets = [0, 128], sizes = [8, 128], strides = [1, 1]} : vector<8x384xf32> to vector<8x128xf32>
    %243 = vector.extract_strided_slice %238 {offsets = [0, 256], sizes = [8, 128], strides = [1, 1]} : vector<8x384xf32> to vector<8x128xf32>
    %244 = arith.mulf %242, %204 : vector<8x128xf32>
    %245 = arith.mulf %241, %240 : vector<8x128xf32>
    %246 = arith.addf %244, %245 : vector<8x128xf32>
    %247 = math.tanh %246 : vector<8x128xf32>
    %248 = arith.mulf %243, %247 : vector<8x128xf32>
    %249 = arith.truncf %248 : vector<8x128xf32> to vector<8x128xbf16>
    %cst_49 = arith.constant dense<0.000000e+00> : vector<8x512xf32>
    %250 = tpu.matmul %249, %10, %cst_49 {dimension_numbers = #tpu.dot_dimension_numbers<[1], [0], [0], [1], [0, 0, 1, 1], [], []>} : vector<8x128xbf16>, vector<128x512xbf16>, vector<8x512xf32> -> vector<8x512xf32>
    %251 = arith.truncf %228 : vector<8x128xf32> to vector<8x128xbf16>
    %cst_50 = arith.constant dense<0.000000e+00> : vector<8x512xf32>
    %252 = tpu.matmul %251, %11, %cst_50 {dimension_numbers = #tpu.dot_dimension_numbers<[1], [0], [0], [1], [0, 0, 1, 1], [], []>} : vector<8x128xbf16>, vector<128x512xbf16>, vector<8x512xf32> -> vector<8x512xf32>
    %253 = arith.addf %250, %252 : vector<8x512xf32>
    %254 = arith.addf %253, %14 : vector<8x512xf32>
    %255 = vector.extract_strided_slice %254 {offsets = [0, 0], sizes = [8, 384], strides = [1, 1]} : vector<8x512xf32> to vector<8x384xf32>
    %256 = arith.negf %255 : vector<8x384xf32>
    %257 = math.exp %256 : vector<8x384xf32>
    %cst_51 = arith.constant 1.000000e+00 : f32
    %258 = vector.broadcast %cst_51 : f32 to vector<8x384xf32>
    %259 = arith.addf %258, %257 : vector<8x384xf32>
    %260 = arith.divf %258, %259 : vector<8x384xf32>
    %261 = vector.extract_strided_slice %254 {offsets = [0, 384], sizes = [8, 128], strides = [1, 1]} : vector<8x512xf32> to vector<8x128xf32>
    %262 = math.tanh %261 : vector<8x128xf32>
    %263 = vector.extract_strided_slice %260 {offsets = [0, 0], sizes = [8, 128], strides = [1, 1]} : vector<8x384xf32> to vector<8x128xf32>
    %264 = vector.extract_strided_slice %260 {offsets = [0, 128], sizes = [8, 128], strides = [1, 1]} : vector<8x384xf32> to vector<8x128xf32>
    %265 = vector.extract_strided_slice %260 {offsets = [0, 256], sizes = [8, 128], strides = [1, 1]} : vector<8x384xf32> to vector<8x128xf32>
    %266 = arith.mulf %264, %226 : vector<8x128xf32>
    %267 = arith.mulf %263, %262 : vector<8x128xf32>
    %268 = arith.addf %266, %267 : vector<8x128xf32>
    %269 = math.tanh %268 : vector<8x128xf32>
    %270 = arith.mulf %265, %269 : vector<8x128xf32>
    %271 = vector.extract_strided_slice %8 {offsets = [48, 0], sizes = [8, 512], strides = [1, 1]} : vector<64x512xf32> to vector<8x512xf32>
    %272 = arith.truncf %248 : vector<8x128xf32> to vector<8x128xbf16>
    %cst_52 = arith.constant dense<0.000000e+00> : vector<8x512xf32>
    %273 = tpu.matmul %272, %9, %cst_52 {dimension_numbers = #tpu.dot_dimension_numbers<[1], [0], [0], [1], [0, 0, 1, 1], [], []>} : vector<8x128xbf16>, vector<128x512xbf16>, vector<8x512xf32> -> vector<8x512xf32>
    %274 = arith.addf %271, %273 : vector<8x512xf32>
    %275 = vector.extract_strided_slice %274 {offsets = [0, 0], sizes = [8, 384], strides = [1, 1]} : vector<8x512xf32> to vector<8x384xf32>
    %276 = arith.negf %275 : vector<8x384xf32>
    %277 = math.exp %276 : vector<8x384xf32>
    %cst_53 = arith.constant 1.000000e+00 : f32
    %278 = vector.broadcast %cst_53 : f32 to vector<8x384xf32>
    %279 = arith.addf %278, %277 : vector<8x384xf32>
    %280 = arith.divf %278, %279 : vector<8x384xf32>
    %281 = vector.extract_strided_slice %274 {offsets = [0, 384], sizes = [8, 128], strides = [1, 1]} : vector<8x512xf32> to vector<8x128xf32>
    %282 = math.tanh %281 : vector<8x128xf32>
    %283 = vector.extract_strided_slice %280 {offsets = [0, 0], sizes = [8, 128], strides = [1, 1]} : vector<8x384xf32> to vector<8x128xf32>
    %284 = vector.extract_strided_slice %280 {offsets = [0, 128], sizes = [8, 128], strides = [1, 1]} : vector<8x384xf32> to vector<8x128xf32>
    %285 = vector.extract_strided_slice %280 {offsets = [0, 256], sizes = [8, 128], strides = [1, 1]} : vector<8x384xf32> to vector<8x128xf32>
    %286 = arith.mulf %284, %246 : vector<8x128xf32>
    %287 = arith.mulf %283, %282 : vector<8x128xf32>
    %288 = arith.addf %286, %287 : vector<8x128xf32>
    %289 = math.tanh %288 : vector<8x128xf32>
    %290 = arith.mulf %285, %289 : vector<8x128xf32>
    %291 = arith.truncf %290 : vector<8x128xf32> to vector<8x128xbf16>
    %cst_54 = arith.constant dense<0.000000e+00> : vector<8x512xf32>
    %292 = tpu.matmul %291, %10, %cst_54 {dimension_numbers = #tpu.dot_dimension_numbers<[1], [0], [0], [1], [0, 0, 1, 1], [], []>} : vector<8x128xbf16>, vector<128x512xbf16>, vector<8x512xf32> -> vector<8x512xf32>
    %293 = arith.truncf %270 : vector<8x128xf32> to vector<8x128xbf16>
    %cst_55 = arith.constant dense<0.000000e+00> : vector<8x512xf32>
    %294 = tpu.matmul %293, %11, %cst_55 {dimension_numbers = #tpu.dot_dimension_numbers<[1], [0], [0], [1], [0, 0, 1, 1], [], []>} : vector<8x128xbf16>, vector<128x512xbf16>, vector<8x512xf32> -> vector<8x512xf32>
    %295 = arith.addf %292, %294 : vector<8x512xf32>
    %296 = arith.addf %295, %14 : vector<8x512xf32>
    %297 = vector.extract_strided_slice %296 {offsets = [0, 0], sizes = [8, 384], strides = [1, 1]} : vector<8x512xf32> to vector<8x384xf32>
    %298 = arith.negf %297 : vector<8x384xf32>
    %299 = math.exp %298 : vector<8x384xf32>
    %cst_56 = arith.constant 1.000000e+00 : f32
    %300 = vector.broadcast %cst_56 : f32 to vector<8x384xf32>
    %301 = arith.addf %300, %299 : vector<8x384xf32>
    %302 = arith.divf %300, %301 : vector<8x384xf32>
    %303 = vector.extract_strided_slice %296 {offsets = [0, 384], sizes = [8, 128], strides = [1, 1]} : vector<8x512xf32> to vector<8x128xf32>
    %304 = math.tanh %303 : vector<8x128xf32>
    %305 = vector.extract_strided_slice %302 {offsets = [0, 0], sizes = [8, 128], strides = [1, 1]} : vector<8x384xf32> to vector<8x128xf32>
    %306 = vector.extract_strided_slice %302 {offsets = [0, 128], sizes = [8, 128], strides = [1, 1]} : vector<8x384xf32> to vector<8x128xf32>
    %307 = vector.extract_strided_slice %302 {offsets = [0, 256], sizes = [8, 128], strides = [1, 1]} : vector<8x384xf32> to vector<8x128xf32>
    %308 = arith.mulf %306, %268 : vector<8x128xf32>
    %309 = arith.mulf %305, %304 : vector<8x128xf32>
    %310 = arith.addf %308, %309 : vector<8x128xf32>
    %311 = math.tanh %310 : vector<8x128xf32>
    %312 = arith.mulf %307, %311 : vector<8x128xf32>
    %313 = vector.extract_strided_slice %8 {offsets = [56, 0], sizes = [8, 512], strides = [1, 1]} : vector<64x512xf32> to vector<8x512xf32>
    %314 = arith.truncf %290 : vector<8x128xf32> to vector<8x128xbf16>
    %cst_57 = arith.constant dense<0.000000e+00> : vector<8x512xf32>
    %315 = tpu.matmul %314, %9, %cst_57 {dimension_numbers = #tpu.dot_dimension_numbers<[1], [0], [0], [1], [0, 0, 1, 1], [], []>} : vector<8x128xbf16>, vector<128x512xbf16>, vector<8x512xf32> -> vector<8x512xf32>
    %316 = arith.addf %313, %315 : vector<8x512xf32>
    %317 = vector.extract_strided_slice %316 {offsets = [0, 0], sizes = [8, 384], strides = [1, 1]} : vector<8x512xf32> to vector<8x384xf32>
    %318 = arith.negf %317 : vector<8x384xf32>
    %319 = math.exp %318 : vector<8x384xf32>
    %cst_58 = arith.constant 1.000000e+00 : f32
    %320 = vector.broadcast %cst_58 : f32 to vector<8x384xf32>
    %321 = arith.addf %320, %319 : vector<8x384xf32>
    %322 = arith.divf %320, %321 : vector<8x384xf32>
    %323 = vector.extract_strided_slice %316 {offsets = [0, 384], sizes = [8, 128], strides = [1, 1]} : vector<8x512xf32> to vector<8x128xf32>
    %324 = math.tanh %323 : vector<8x128xf32>
    %325 = vector.extract_strided_slice %322 {offsets = [0, 0], sizes = [8, 128], strides = [1, 1]} : vector<8x384xf32> to vector<8x128xf32>
    %326 = vector.extract_strided_slice %322 {offsets = [0, 128], sizes = [8, 128], strides = [1, 1]} : vector<8x384xf32> to vector<8x128xf32>
    %327 = vector.extract_strided_slice %322 {offsets = [0, 256], sizes = [8, 128], strides = [1, 1]} : vector<8x384xf32> to vector<8x128xf32>
    %328 = arith.mulf %326, %288 : vector<8x128xf32>
    %329 = arith.mulf %325, %324 : vector<8x128xf32>
    %330 = arith.addf %328, %329 : vector<8x128xf32>
    %331 = math.tanh %330 : vector<8x128xf32>
    %332 = arith.mulf %327, %331 : vector<8x128xf32>
    %333 = arith.truncf %332 : vector<8x128xf32> to vector<8x128xbf16>
    %cst_59 = arith.constant dense<0.000000e+00> : vector<8x512xf32>
    %334 = tpu.matmul %333, %10, %cst_59 {dimension_numbers = #tpu.dot_dimension_numbers<[1], [0], [0], [1], [0, 0, 1, 1], [], []>} : vector<8x128xbf16>, vector<128x512xbf16>, vector<8x512xf32> -> vector<8x512xf32>
    %335 = arith.truncf %312 : vector<8x128xf32> to vector<8x128xbf16>
    %cst_60 = arith.constant dense<0.000000e+00> : vector<8x512xf32>
    %336 = tpu.matmul %335, %11, %cst_60 {dimension_numbers = #tpu.dot_dimension_numbers<[1], [0], [0], [1], [0, 0, 1, 1], [], []>} : vector<8x128xbf16>, vector<128x512xbf16>, vector<8x512xf32> -> vector<8x512xf32>
    %337 = arith.addf %334, %336 : vector<8x512xf32>
    %338 = arith.addf %337, %14 : vector<8x512xf32>
    %339 = vector.extract_strided_slice %338 {offsets = [0, 0], sizes = [8, 384], strides = [1, 1]} : vector<8x512xf32> to vector<8x384xf32>
    %340 = arith.negf %339 : vector<8x384xf32>
    %341 = math.exp %340 : vector<8x384xf32>
    %cst_61 = arith.constant 1.000000e+00 : f32
    %342 = vector.broadcast %cst_61 : f32 to vector<8x384xf32>
    %343 = arith.addf %342, %341 : vector<8x384xf32>
    %344 = arith.divf %342, %343 : vector<8x384xf32>
    %345 = vector.extract_strided_slice %338 {offsets = [0, 384], sizes = [8, 128], strides = [1, 1]} : vector<8x512xf32> to vector<8x128xf32>
    %346 = math.tanh %345 : vector<8x128xf32>
    %347 = vector.extract_strided_slice %344 {offsets = [0, 0], sizes = [8, 128], strides = [1, 1]} : vector<8x384xf32> to vector<8x128xf32>
    %348 = vector.extract_strided_slice %344 {offsets = [0, 128], sizes = [8, 128], strides = [1, 1]} : vector<8x384xf32> to vector<8x128xf32>
    %349 = vector.extract_strided_slice %344 {offsets = [0, 256], sizes = [8, 128], strides = [1, 1]} : vector<8x384xf32> to vector<8x128xf32>
    %350 = arith.mulf %348, %310 : vector<8x128xf32>
    %351 = arith.mulf %347, %346 : vector<8x128xf32>
    %352 = arith.addf %350, %351 : vector<8x128xf32>
    %353 = math.tanh %352 : vector<8x128xf32>
    %354 = arith.mulf %349, %353 : vector<8x128xf32>
    %c0_62 = arith.constant 0 : index
    %c0_63 = arith.constant 0 : index
    %355 = vector.load %arg9[%c0_62, %c0_63] : memref<8x128xf32, #tpu.memory_space<vmem>>, vector<8x128xf32>
    tpu.vector_store %arg9[%c0_62, %c0_63], %332 {strides = array<i32>} : memref<8x128xf32, #tpu.memory_space<vmem>>, vector<8x128xf32>,
    %c0_64 = arith.constant 0 : index
    %c0_65 = arith.constant 0 : index
    %356 = vector.load %arg10[%c0_64, %c0_65] : memref<8x128xf32, #tpu.memory_space<vmem>>, vector<8x128xf32>
    tpu.vector_store %arg10[%c0_64, %c0_65], %330 {strides = array<i32>} : memref<8x128xf32, #tpu.memory_space<vmem>>, vector<8x128xf32>,
    %c0_66 = arith.constant 0 : index
    %c0_67 = arith.constant 0 : index
    %357 = vector.load %arg11[%c0_66, %c0_67] : memref<8x128xf32, #tpu.memory_space<vmem>>, vector<8x128xf32>
    tpu.vector_store %arg11[%c0_66, %c0_67], %354 {strides = array<i32>} : memref<8x128xf32, #tpu.memory_space<vmem>>, vector<8x128xf32>,
    %c0_68 = arith.constant 0 : index
    %c0_69 = arith.constant 0 : index
    %358 = vector.load %arg12[%c0_68, %c0_69] : memref<8x128xf32, #tpu.memory_space<vmem>>, vector<8x128xf32>
    tpu.vector_store %arg12[%c0_68, %c0_69], %352 {strides = array<i32>} : memref<8x128xf32, #tpu.memory_space<vmem>>, vector<8x128xf32>,
    %c1_i32 = arith.constant 1 : i32
    %359 = arith.cmpi eq, %arg0, %c1_i32 : i32
    %360 = arith.extui %359 : i1 to i32
    %c0_i32_70 = arith.constant 0 : i32
    %361 = arith.cmpi ne, %360, %c0_i32_70 : i32
    scf.if %361 {
      %c0_71 = arith.constant 0 : index
      %c0_72 = arith.constant 0 : index
      %362 = vector.load %arg8[%c0_71, %c0_72] : memref<8x128xf32, #tpu.memory_space<vmem>>, vector<8x128xf32>
      tpu.vector_store %arg8[%c0_71, %c0_72], %354 {strides = array<i32>} : memref<8x128xf32, #tpu.memory_space<vmem>>, vector<8x128xf32>,
    } else {
    }
    return
  }
  func.func @transform_0(%arg0: i32) -> (i32, i32) {
    %c0_i32 = arith.constant 0 : i32
    %c0_i32_0 = arith.constant 0 : i32
    return %arg0, %c0_i32 : i32, i32
  }
  func.func @transform_1(%arg0: i32) -> (i32, i32) {
    %c0_i32 = arith.constant 0 : i32
    %c0_i32_0 = arith.constant 0 : i32
    %c0_i32_1 = arith.constant 0 : i32
    return %c0_i32, %c0_i32_0 : i32, i32
  }
  func.func @transform_2(%arg0: i32) -> (i32, i32) {
    %c0_i32 = arith.constant 0 : i32
    %c0_i32_0 = arith.constant 0 : i32
    %c0_i32_1 = arith.constant 0 : i32
    return %c0_i32, %c0_i32_0 : i32, i32
  }
  func.func @transform_3(%arg0: i32) -> (i32, i32) {
    %c0_i32 = arith.constant 0 : i32
    %c0_i32_0 = arith.constant 0 : i32
    %c0_i32_1 = arith.constant 0 : i32
    return %c0_i32, %c0_i32_0 : i32, i32
  }
  func.func @transform_4(%arg0: i32) -> (i32, i32) {
    %c0_i32 = arith.constant 0 : i32
    %c0_i32_0 = arith.constant 0 : i32
    %c0_i32_1 = arith.constant 0 : i32
    return %c0_i32, %c0_i32_0 : i32, i32
  }
  func.func @transform_5(%arg0: i32) -> (i32, i32) {
    %c0_i32 = arith.constant 0 : i32
    %c0_i32_0 = arith.constant 0 : i32
    %c0_i32_1 = arith.constant 0 : i32
    return %c0_i32, %c0_i32_0 : i32, i32
  }
  func.func @transform_6(%arg0: i32) -> (i32, i32) {
    %c0_i32 = arith.constant 0 : i32
    %c0_i32_0 = arith.constant 0 : i32
    %c0_i32_1 = arith.constant 0 : i32
    return %c0_i32, %c0_i32_0 : i32, i32
  }
  func.func @transform_7(%arg0: i32) -> (i32, i32) {
    %c0_i32 = arith.constant 0 : i32
    %c0_i32_0 = arith.constant 0 : i32
    %c0_i32_1 = arith.constant 0 : i32
    return %c0_i32, %c0_i32_0 : i32, i32
  }
}

</mosaic_0001>

<llo_original>
// kernel: culinary_lm_forward.3
$region0: #{culinary_lm_forward.3}
  #allocation0 [shape = 'u32[]', space=smem, size = 0x4, offset = 0x4, fixed_abs, tag = 'smem constant byte address 0x4 - core index']
  #allocation1 [shape = 'u32[144,128]{1,0:T(1,128)}', space=vmem, size = 0x12000, scoped, tag = 'internal scratch']
  %s0 = inlined_call_operand.vmem [shape: f32[8,128], index: 0, kind: input, shape index: {}]
  %s1 = inlined_call_operand.vmem [shape: bf16[128,128], index: 1, kind: input, shape index: {}]
  %s2 = inlined_call_operand.vmem [shape: f32[1,128], index: 2, kind: input, shape index: {}]
  %s3 = inlined_call_operand.vmem [shape: bf16[128,128], index: 3, kind: input, shape index: {}]
  %s4 = inlined_call_operand.vmem [shape: f32[1,128], index: 4, kind: input, shape index: {}]
  %s5 = inlined_call_operand.vmem [shape: f32[8,128], index: 5, kind: output, shape index: {}]
  %s6 = sld [smem:[#allocation0]]
  $region30: #{culinary_lm_forward.3} parent=0
    _
  %s8 = ssub.s32 1, %s6
  %s9 = scalar_select 0, %s8, %s6
  // Predicated region
  $region2: #{culinary_lm_forward.3} parent=0 // pred_check
    _
  $region3: #{culinary_lm_forward.3} parent=0 // pred_check_branch
    %11 = sbr.rel (0) target = $region5
  $region4: #{culinary_lm_forward.3} parent=0 // pred_region
    _
  $region5: #{culinary_lm_forward.3} parent=0 // pred_fallthru
    _
  // Predicated region
  $region6: #{culinary_lm_forward.3} parent=0 // pred_check
    _
  $region7: #{culinary_lm_forward.3} parent=0 // pred_check_branch
    %13 = sbr.rel (0) target = $region9
  $region8: #{culinary_lm_forward.3} parent=0 // pred_region
    _
  $region9: #{culinary_lm_forward.3} parent=0 // pred_fallthru
    _
  // Predicated region
  $region10: #{culinary_lm_forward.3} parent=0 // pred_check
    _
  $region11: #{culinary_lm_forward.3} parent=0 // pred_check_branch
    %15 = sbr.rel (0) target = $region13
  $region12: #{culinary_lm_forward.3} parent=0 // pred_region
    _
  $region13: #{culinary_lm_forward.3} parent=0 // pred_fallthru
    _
  // Predicated region
  $region14: #{culinary_lm_forward.3} parent=0 // pred_check
    _
  $region15: #{culinary_lm_forward.3} parent=0 // pred_check_branch
    %17 = sbr.rel (0) target = $region17
  $region16: #{culinary_lm_forward.3} parent=0 // pred_region
    _
  $region17: #{culinary_lm_forward.3} parent=0 // pred_fallthru
    _
  // Predicated region
  $region18: #{culinary_lm_forward.3} parent=0 // pred_check
    _
  $region19: #{culinary_lm_forward.3} parent=0 // pred_check_branch
    %19 = sbr.rel (0) target = $region21
  $region20: #{culinary_lm_forward.3} parent=0 // pred_region
    _
  $region21: #{culinary_lm_forward.3} parent=0 // pred_fallthru
    _
  %v21 = vld [vmem:[%s0] sm:$0xff]
  %v22 = vpack.c.bf16 %v21, %v21
  %v23 = vld [vmem:[%s1] sm:$0xf]
  %v24 = vld [vmem:[%s1 + $0x4] sm:$0xf]
  %v25 = vld [vmem:[%s1 + $0x8] sm:$0xf]
  %v26 = vld [vmem:[%s1 + $0xc] sm:$0xf]
  %v27 = vld [vmem:[%s1 + $0x10] sm:$0xf]
  %v28 = vld [vmem:[%s1 + $0x14] sm:$0xf]
  %v29 = vld [vmem:[%s1 + $0x18] sm:$0xf]
  %v30 = vld [vmem:[%s1 + $0x1c] sm:$0xf]
  %v31 = vld [vmem:[%s1 + $0x20] sm:$0xf]
  %v32 = vld [vmem:[%s1 + $0x24] sm:$0xf]
  %v33 = vld [vmem:[%s1 + $0x28] sm:$0xf]
  %v34 = vld [vmem:[%s1 + $0x2c] sm:$0xf]
  %v35 = vld [vmem:[%s1 + $0x30] sm:$0xf]
  %v36 = vld [vmem:[%s1 + $0x34] sm:$0xf]
  %v37 = vld [vmem:[%s1 + $0x38] sm:$0xf]
  %v38 = vld [vmem:[%s1 + $0x3c] sm:$0xf]
  %v39 = vld [vmem:[%s2] sm:$0x1]
  %v41 = vlaneseq
  %v42 = vshrl.u32 %v41, 7
  %v43 = vsub.s32 0, %v42
  %v44 = vrot.slane %v39, %v43
  %v62 = vunpack.c.l.b16 %v23
  %v63 = vunpack.c.l.b16 %v24
  %v64 = vunpack.c.l.b16 %v25
  %v65 = vunpack.c.l.b16 %v26
  %v66 = vunpack.c.l.b16 %v27
  %v67 = vunpack.c.l.b16 %v28
  %v68 = vunpack.c.l.b16 %v29
  %v69 = vunpack.c.l.b16 %v30
  %v70 = vunpack.c.l.b16 %v31
  %v71 = vunpack.c.l.b16 %v32
  %v72 = vunpack.c.l.b16 %v33
  %v73 = vunpack.c.l.b16 %v34
  %v74 = vunpack.c.l.b16 %v35
  %v75 = vunpack.c.l.b16 %v36
  %v76 = vunpack.c.l.b16 %v37
  %v77 = vunpack.c.l.b16 %v38
  %v78 = vpack.c.b16 %v63, %v62
  %v79 = vpack.c.b16 %v65, %v64
  %v80 = vpack.c.b16 %v67, %v66
  %v81 = vpack.c.b16 %v69, %v68
  %v82 = vpack.c.b16 %v71, %v70
  %v83 = vpack.c.b16 %v73, %v72
  %v84 = vpack.c.b16 %v75, %v74
  %v85 = vpack.c.b16 %v77, %v76
  %94 = vmatprep.subr.bf16.mxu0 0
  %95 = vmatpush1.bf16.msra.mxu0 %v78
  %96 = vmatprep.subr.bf16.mxu0 0
  %97 = vmatpush1.bf16.msra.mxu0 %v79
  %98 = vmatprep.subr.bf16.mxu0 0
  %99 = vmatpush1.bf16.msra.mxu0 %v80
  %100 = vmatprep.subr.bf16.mxu0 0
  %101 = vmatpush1.bf16.msra.mxu0 %v81
  %102 = vmatprep.subr.bf16.mxu0 0
  %103 = vmatpush1.bf16.msra.mxu0 %v82
  %104 = vmatprep.subr.bf16.mxu0 0
  %105 = vmatpush1.bf16.msra.mxu0 %v83
  %106 = vmatprep.subr.bf16.mxu0 0
  %107 = vmatpush1.bf16.msra.mxu0 %v84
  %108 = vmatprep.subr.bf16.mxu0 0
  %109 = vmatpush1.bf16.msra.mxu0 %v85
  %110 = vmatprep.subr.bf16.mxu0 0
  %111 = vmatpush1.bf16.msra.mxu0 0
  %112 = vmatprep.subr.bf16.mxu0 0
  %113 = vmatpush1.bf16.msra.mxu0 0
  %114 = vmatprep.subr.bf16.mxu0 0
  %115 = vmatpush1.bf16.msra.mxu0 0
  %116 = vmatprep.subr.bf16.mxu0 0
  %117 = vmatpush1.bf16.msra.mxu0 0
  %118 = vmatprep.subr.bf16.mxu0 0
  %119 = vmatpush1.bf16.msra.mxu0 0
  %120 = vmatprep.subr.bf16.mxu0 0
  %121 = vmatpush1.bf16.msra.mxu0 0
  %122 = vmatprep.subr.bf16.mxu0 0
  %123 = vmatpush1.bf16.msra.mxu0 0
  %124 = vmatprep.subr.bf16.mxu0 0
  %125 = vmatpush1.bf16.msra.mxu0 0
  %126 = vmatprep.mubr.bf16.mxu0 0
  %127 = vmatmul.mubr.bf16.gmra.mrb[0].mxu0 %v22
  %v128 = vpop.f32.mrb[0].mxu0
  %v129 = vadd.f32 %v44, %v128
  %v130 = vpop.f32.mrb[0].mxu0
  %v131 = vpop.f32.mrb[0].mxu0
  %v132 = vpop.f32.mrb[0].mxu0
  %133 = vdwg.mxu0
  %v134 = vmax.f32 %v129, 0.0
  %v135 = vpack.c.bf16 %v134, %v134
  %v136 = vld [vmem:[%s3] sm:$0xf]
  %v137 = vld [vmem:[%s3 + $0x4] sm:$0xf]
  %v138 = vld [vmem:[%s3 + $0x8] sm:$0xf]
  %v139 = vld [vmem:[%s3 + $0xc] sm:$0xf]
  %v140 = vld [vmem:[%s3 + $0x10] sm:$0xf]
  %v141 = vld [vmem:[%s3 + $0x14] sm:$0xf]
  %v142 = vld [vmem:[%s3 + $0x18] sm:$0xf]
  %v143 = vld [vmem:[%s3 + $0x1c] sm:$0xf]
  %v144 = vld [vmem:[%s3 + $0x20] sm:$0xf]
  %v145 = vld [vmem:[%s3 + $0x24] sm:$0xf]
  %v146 = vld [vmem:[%s3 + $0x28] sm:$0xf]
  %v147 = vld [vmem:[%s3 + $0x2c] sm:$0xf]
  %v148 = vld [vmem:[%s3 + $0x30] sm:$0xf]
  %v149 = vld [vmem:[%s3 + $0x34] sm:$0xf]
  %v150 = vld [vmem:[%s3 + $0x38] sm:$0xf]
  %v151 = vld [vmem:[%s3 + $0x3c] sm:$0xf]
  %v152 = vld [vmem:[%s4] sm:$0x1]
  %v154 = vlaneseq
  %v155 = vshrl.u32 %v154, 7
  %v156 = vsub.s32 0, %v155
  %v157 = vrot.slane %v152, %v156
  %v175 = vunpack.c.l.b16 %v136
  %v176 = vunpack.c.l.b16 %v137
  %v177 = vunpack.c.l.b16 %v138
  %v178 = vunpack.c.l.b16 %v139
  %v179 = vunpack.c.l.b16 %v140
  %v180 = vunpack.c.l.b16 %v141
  %v181 = vunpack.c.l.b16 %v142
  %v182 = vunpack.c.l.b16 %v143
  %v183 = vunpack.c.l.b16 %v144
  %v184 = vunpack.c.l.b16 %v145
  %v185 = vunpack.c.l.b16 %v146
  %v186 = vunpack.c.l.b16 %v147
  %v187 = vunpack.c.l.b16 %v148
  %v188 = vunpack.c.l.b16 %v149
  %v189 = vunpack.c.l.b16 %v150
  %v190 = vunpack.c.l.b16 %v151
  %v191 = vpack.c.b16 %v176, %v175
  %v192 = vpack.c.b16 %v178, %v177
  %v193 = vpack.c.b16 %v180, %v179
  %v194 = vpack.c.b16 %v182, %v181
  %v195 = vpack.c.b16 %v184, %v183
  %v196 = vpack.c.b16 %v186, %v185
  %v197 = vpack.c.b16 %v188, %v187
  %v198 = vpack.c.b16 %v190, %v189
  %207 = vmatprep.subr.bf16.mxu0 0
  %208 = vmatpush1.bf16.msra.mxu0 %v191
  %209 = vmatprep.subr.bf16.mxu0 0
  %210 = vmatpush1.bf16.msra.mxu0 %v192
  %211 = vmatprep.subr.bf16.mxu0 0
  %212 = vmatpush1.bf16.msra.mxu0 %v193
  %213 = vmatprep.subr.bf16.mxu0 0
  %214 = vmatpush1.bf16.msra.mxu0 %v194
  %215 = vmatprep.subr.bf16.mxu0 0
  %216 = vmatpush1.bf16.msra.mxu0 %v195
  %217 = vmatprep.subr.bf16.mxu0 0
  %218 = vmatpush1.bf16.msra.mxu0 %v196
  %219 = vmatprep.subr.bf16.mxu0 0
  %220 = vmatpush1.bf16.msra.mxu0 %v197
  %221 = vmatprep.subr.bf16.mxu0 0
  %222 = vmatpush1.bf16.msra.mxu0 %v198
  %223 = vmatprep.subr.bf16.mxu0 0
  %224 = vmatpush1.bf16.msra.mxu0 0
  %225 = vmatprep.subr.bf16.mxu0 0
  %226 = vmatpush1.bf16.msra.mxu0 0
  %227 = vmatprep.subr.bf16.mxu0 0
  %228 = vmatpush1.bf16.msra.mxu0 0
  %229 = vmatprep.subr.bf16.mxu0 0
  %230 = vmatpush1.bf16.msra.mxu0 0
  %231 = vmatprep.subr.bf16.mxu0 0
  %232 = vmatpush1.bf16.msra.mxu0 0
  %233 = vmatprep.subr.bf16.mxu0 0
  %234 = vmatpush1.bf16.msra.mxu0 0
  %235 = vmatprep.subr.bf16.mxu0 0
  %236 = vmatpush1.bf16.msra.mxu0 0
  %237 = vmatprep.subr.bf16.mxu0 0
  %238 = vmatpush1.bf16.msra.mxu0 0
  %239 = vmatprep.mubr.bf16.mxu0 0
  %240 = vmatmul.mubr.bf16.gmra.mrb[0].mxu0 %v135
  %v241 = vpop.f32.mrb[0].mxu0
  %v242 = vadd.f32 %v157, %v241
  %v243 = vpop.f32.mrb[0].mxu0
  %v244 = vpop.f32.mrb[0].mxu0
  %v245 = vpop.f32.mrb[0].mxu0
  %246 = vdwg.mxu0
  %247 = vst [vmem:[%s5] sm:$0xff] %v242
  // Predicated region
  $region22: #{culinary_lm_forward.3} parent=0 // pred_check
    _
  $region23: #{culinary_lm_forward.3} parent=0 // pred_check_branch
    %249 = sbr.rel (0) target = $region25
  $region24: #{culinary_lm_forward.3} parent=0 // pred_region
    _
  $region25: #{culinary_lm_forward.3} parent=0 // pred_fallthru
    _
  // Predicated region
  $region26: #{culinary_lm_forward.3} parent=0 // pred_check
    _
  $region27: #{culinary_lm_forward.3} parent=0 // pred_check_branch
    %251 = sbr.rel (0) target = $region29
  $region28: #{culinary_lm_forward.3} parent=0 // pred_region
    _
  $region29: #{culinary_lm_forward.3} parent=0 // pred_fallthru
    _

// kernel: culinary_lm_forward.2
$region0: #{culinary_lm_forward.2}
  #allocation0 [shape = 'u32[]', space=smem, size = 0x4, offset = 0x4, fixed_abs, tag = 'smem constant byte address 0x4 - core index']
  #allocation1 [shape = 'u32[144,128]{1,0:T(1,128)}', space=vmem, size = 0x12000, scoped, tag = 'internal scratch']
  #allocation2 [shape = 'f32[8,128]{1,0:T(8,128)}', space=vmem, size = 0x1000, scoped, tag = 'scratch operand']
  #allocation3 [shape = 'f32[8,128]{1,0:T(8,128)}', space=vmem, size = 0x1000, scoped, tag = 'scratch operand']
  #allocation4 [shape = 'f32[8,128]{1,0:T(8,128)}', space=vmem, size = 0x1000, scoped, tag = 'scratch operand']
  #allocation5 [shape = 'f32[8,128]{1,0:T(8,128)}', space=vmem, size = 0x1000, scoped, tag = 'scratch operand']
  %s0 = inlined_call_operand.vmem [shape: bf16[128,128], index: 0, kind: input, shape index: {}]
  %s1 = inlined_call_operand.vmem [shape: bf16[128,512], index: 1, kind: input, shape index: {}]
  %s2 = inlined_call_operand.hbm [shape: bf16[128,512], index: 2, kind: input, shape index: {}]
  %s3 = inlined_call_operand.vmem [shape: f32[1,512], index: 3, kind: input, shape index: {}]
  %s4 = inlined_call_operand.hbm [shape: bf16[128,512], index: 4, kind: input, shape index: {}]
  %s5 = inlined_call_operand.hbm [shape: bf16[128,512], index: 5, kind: input, shape index: {}]
  %s6 = inlined_call_operand.vmem [shape: f32[1,512], index: 6, kind: input, shape index: {}]
  %s7 = inlined_call_operand.vmem [shape: f32[8,128], index: 7, kind: output, shape index: {}]
  %s8 = sld [smem:[#allocation0]]
  $region81: #{culinary_lm_forward.2} parent=0
    _
  %s10 = ssub.s32 1, %s8
  %s11 = scalar_select 0, %s10, %s8
  $region1: #{culinary_lm_forward.2} parent=0
    #allocation6 [shape = 'u8[131072]{0}', space=vmem, size = 0x20000, scoped, tag = 'input window, operand 2, single buffered']
    #allocation7 [shape = 's32[2]{0}', space=sflag, size = 0x8, scoped, tag = 'scoped memory for culinary_lm_forward.2']
    #allocation8 [shape = 'u8[131072]{0}', space=vmem, size = 0x20000, scoped, tag = 'input window, operand 4, single buffered']
    #allocation9 [shape = 's32[1]{0}', space=sflag, size = 0x4, scoped, tag = 'scoped memory for culinary_lm_forward.2']
    #allocation10 [shape = 'u8[131072]{0}', space=vmem, size = 0x20000, scoped, tag = 'input window, operand 5, single buffered']
    %12 = vsyncpa [#allocation7], 0
    %13 = vsyncpa [#allocation9], 0
    loop: start=0, step=1, limit=4
    $region2: #{culinary_lm_forward.2} parent=1 // loop_pre_header
      _
    $region3: #{culinary_lm_forward.2} parent=1 // loop_header
      %s15 = sphi 0, %s19
      %p16 = scmp.ge.s32.totalorder %s15, 4
      %s25 = sphi 0, %s27
      %s28 = sphi 0, %s25
      %s29 = sphi 0, %s28
      %s45 = sphi 0, %s29
      %s49 = sphi 0, %s49
      %s51 = sphi 0, %s49
      %s52 = sphi 0, %s51
      %s66 = sphi 0, %s52
      %s70 = sphi 0, %s70
      %s72 = sphi 0, %s70
      %s73 = sphi 0, %s72
      %s87 = sphi 0, %s73
      %s91 = sphi 0, %s91
      %s93 = sphi 0, %s91
      %s94 = sphi 0, %s93
      %s108 = sphi 0, %s94
      %s112 = sphi 0, %s112
      %s114 = sphi 0, %s112
      %s115 = sphi 0, %s114
      %s129 = sphi 0, %s115
      %s133 = sphi 0, %s133
      %s135 = sphi 0, %s133
      %s136 = sphi 0, %s135
      %s150 = sphi 0, %s136
      %s154 = sphi 0, %s154
      %s156 = sphi 0, %s154
      %s157 = sphi 0, %s156
      %s171 = sphi 0, %s157
      %s175 = sphi 0, %s175
      %s177 = sphi 0, %s175
      %s178 = sphi 0, %s177
      %s192 = sphi 0, %s178
    $region4: #{culinary_lm_forward.2} parent=1 // loop_header_branch
      %18 = sbr.rel (%p16) target = $region8
    $region5: #{culinary_lm_forward.2} parent=1 // loop_body
      %s20 = ssub.s32 %s15, 1
      %s21 = ssub.s32 %s15, 2
      %s22 = sadd.s32 %s15, 1
      %s23 = ssub.s32 %s15, %s22
      %p24 = scmp.eq.s32.totalorder %s23, 0
      %s26 = sadd.s32 %s25, 1
      %s27 = scalar_select %p24, %s25, %s26
      %p30 = pneg %p24
      %p31 = scmp.eq.s32.totalorder %s15, 1
      %p32 = por %p30, %p31
      %p33 = scmp.ne.s32.totalorder %s25, %s28
      %p34 = scmp.eq.s32.totalorder %s15, 0
      %p35 = por %p33, %p34
      %p36 = scmp.ne.s32.totalorder %s25, %s28
      %p37 = scmp.eq.s32.totalorder %s20, 1
      %p38 = por %p36, %p37
      %p39 = scmp.ne.s32.totalorder %s28, %s29
      %p40 = scmp.eq.s32.totalorder %s20, 0
      %p41 = por %p39, %p40
      %p42 = scmp.ne.s32.totalorder %s28, %s29
      %p43 = scmp.eq.s32.totalorder %s21, 1
      %p44 = por %p42, %p43
      %p46 = scmp.ne.s32.totalorder %s29, %s45
      %p47 = scmp.eq.s32.totalorder %s21, 0
      %p48 = por %p46, %p47
      %s50 = sadd.s32 %s49, 1
      %p53 = scmp.eq.s32.totalorder %s15, 1
      %p54 = scmp.ne.s32.totalorder %s49, %s51
      %p55 = scmp.eq.s32.totalorder %s15, 0
      %p56 = por %p54, %p55
      %p57 = scmp.ne.s32.totalorder %s49, %s51
      %p58 = scmp.eq.s32.totalorder %s20, 1
      %p59 = por %p57, %p58
      %p60 = scmp.ne.s32.totalorder %s51, %s52
      %p61 = scmp.eq.s32.totalorder %s20, 0
      %p62 = por %p60, %p61
      %p63 = scmp.ne.s32.totalorder %s51, %s52
      %p64 = scmp.eq.s32.totalorder %s21, 1
      %p65 = por %p63, %p64
      %p67 = scmp.ne.s32.totalorder %s52, %s66
      %p68 = scmp.eq.s32.totalorder %s21, 0
      %p69 = por %p67, %p68
      %s71 = sadd.s32 %s70, 1
      %p74 = scmp.eq.s32.totalorder %s15, 1
      %p75 = scmp.ne.s32.totalorder %s70, %s72
      %p76 = scmp.eq.s32.totalorder %s15, 0
      %p77 = por %p75, %p76
      %p78 = scmp.ne.s32.totalorder %s70, %s72
      %p79 = scmp.eq.s32.totalorder %s20, 1
      %p80 = por %p78, %p79
      %p81 = scmp.ne.s32.totalorder %s72, %s73
      %p82 = scmp.eq.s32.totalorder %s20, 0
      %p83 = por %p81, %p82
      %p84 = scmp.ne.s32.totalorder %s72, %s73
      %p85 = scmp.eq.s32.totalorder %s21, 1
      %p86 = por %p84, %p85
      %p88 = scmp.ne.s32.totalorder %s73, %s87
      %p89 = scmp.eq.s32.totalorder %s21, 0
      %p90 = por %p88, %p89
      %s92 = sadd.s32 %s91, 1
      %p95 = scmp.eq.s32.totalorder %s15, 1
      %p96 = scmp.ne.s32.totalorder %s91, %s93
      %p97 = scmp.eq.s32.totalorder %s15, 0
      %p98 = por %p96, %p97
      %p99 = scmp.ne.s32.totalorder %s91, %s93
      %p100 = scmp.eq.s32.totalorder %s20, 1
      %p101 = por %p99, %p100
      %p102 = scmp.ne.s32.totalorder %s93, %s94
      %p103 = scmp.eq.s32.totalorder %s20, 0
      %p104 = por %p102, %p103
      %p105 = scmp.ne.s32.totalorder %s93, %s94
      %p106 = scmp.eq.s32.totalorder %s21, 1
      %p107 = por %p105, %p106
      %p109 = scmp.ne.s32.totalorder %s94, %s108
      %p110 = scmp.eq.s32.totalorder %s21, 0
      %p111 = por %p109, %p110
      %s113 = sadd.s32 %s112, 1
      %p116 = scmp.eq.s32.totalorder %s15, 1
      %p117 = scmp.ne.s32.totalorder %s112, %s114
      %p118 = scmp.eq.s32.totalorder %s15, 0
      %p119 = por %p117, %p118
      %p120 = scmp.ne.s32.totalorder %s112, %s114
      %p121 = scmp.eq.s32.totalorder %s20, 1
      %p122 = por %p120, %p121
      %p123 = scmp.ne.s32.totalorder %s114, %s115
      %p124 = scmp.eq.s32.totalorder %s20, 0
      %p125 = por %p123, %p124
      %p126 = scmp.ne.s32.totalorder %s114, %s115
      %p127 = scmp.eq.s32.totalorder %s21, 1
      %p128 = por %p126, %p127
      %p130 = scmp.ne.s32.totalorder %s115, %s129
      %p131 = scmp.eq.s32.totalorder %s21, 0
      %p132 = por %p130, %p131
      %s134 = sadd.s32 %s133, 1
      %p137 = scmp.eq.s32.totalorder %s15, 1
      %p138 = scmp.ne.s32.totalorder %s133, %s135
      %p139 = scmp.eq.s32.totalorder %s15, 0
      %p140 = por %p138, %p139
      %p141 = scmp.ne.s32.totalorder %s133, %s135
      %p142 = scmp.eq.s32.totalorder %s20, 1
      %p143 = por %p141, %p142
      %p144 = scmp.ne.s32.totalorder %s135, %s136
      %p145 = scmp.eq.s32.totalorder %s20, 0
      %p146 = por %p144, %p145
      %p147 = scmp.ne.s32.totalorder %s135, %s136
      %p148 = scmp.eq.s32.totalorder %s21, 1
      %p149 = por %p147, %p148
      %p151 = scmp.ne.s32.totalorder %s136, %s150
      %p152 = scmp.eq.s32.totalorder %s21, 0
      %p153 = por %p151, %p152
      %s155 = sadd.s32 %s154, 1
      %p158 = scmp.eq.s32.totalorder %s15, 1
      %p159 = scmp.ne.s32.totalorder %s154, %s156
      %p160 = scmp.eq.s32.totalorder %s15, 0
      %p161 = por %p159, %p160
      %p162 = scmp.ne.s32.totalorder %s154, %s156
      %p163 = scmp.eq.s32.totalorder %s20, 1
      %p164 = por %p162, %p163
      %p165 = scmp.ne.s32.totalorder %s156, %s157
      %p166 = scmp.eq.s32.totalorder %s20, 0
      %p167 = por %p165, %p166
      %p168 = scmp.ne.s32.totalorder %s156, %s157
      %p169 = scmp.eq.s32.totalorder %s21, 1
      %p170 = por %p168, %p169
      %p172 = scmp.ne.s32.totalorder %s157, %s171
      %p173 = scmp.eq.s32.totalorder %s21, 0
      %p174 = por %p172, %p173
      %s176 = sadd.s32 %s175, 1
      %p179 = scmp.eq.s32.totalorder %s15, 1
      %p180 = scmp.ne.s32.totalorder %s175, %s177
      %p181 = scmp.eq.s32.totalorder %s15, 0
      %p182 = por %p180, %p181
      %p183 = scmp.ne.s32.totalorder %s175, %s177
      %p184 = scmp.eq.s32.totalorder %s20, 1
      %p185 = por %p183, %p184
      %p186 = scmp.ne.s32.totalorder %s177, %s178
      %p187 = scmp.eq.s32.totalorder %s20, 0
      %p188 = por %p186, %p187
      %p189 = scmp.ne.s32.totalorder %s177, %s178
      %p190 = scmp.eq.s32.totalorder %s21, 1
      %p191 = por %p189, %p190
      %p193 = scmp.ne.s32.totalorder %s178, %s192
      %p194 = scmp.eq.s32.totalorder %s21, 0
      %p195 = por %p193, %p194
      %p196 = scmp.le.s32.totalorder 1, %s15
      %p197 = scmp.lt.s32.totalorder %s15, 3
      %p198 = pnand %p196, %p197
      %p199 = pneg %p198
      // Predicated region
      $region9: #{culinary_lm_forward.2} parent=5 // pred_check
        _
      $region10: #{culinary_lm_forward.2} parent=5 // pred_check_branch
        %201 = sbr.rel (%p198) target = $region12
      $region11: #{culinary_lm_forward.2} parent=5 // pred_region
        %s202 = ssub.s32 %s15, 1
        // Predicated region
        $region13: #{culinary_lm_forward.2} parent=11 // pred_check
          %p203 = pneg %p62
        $region14: #{culinary_lm_forward.2} parent=11 // pred_check_branch
          %205 = sbr.rel (%p203) target = $region16
        $region15: #{culinary_lm_forward.2} parent=11 // pred_region
          _
        $region16: #{culinary_lm_forward.2} parent=11 // pred_fallthru
          _
        // Predicated region
        $region17: #{culinary_lm_forward.2} parent=11 // pred_check
          %p206 = pneg %p83
        $region18: #{culinary_lm_forward.2} parent=11 // pred_check_branch
          %208 = sbr.rel (%p206) target = $region20
        $region19: #{culinary_lm_forward.2} parent=11 // pred_region
          %s210 = ssub.s32 4096, 4096
          %211 = vsyncadd [#allocation7], %s210
          %s212 = sshll.u32 [#allocation6], 4
          %s213 = int_to_ptr.vmem [resolvable:$true] %s212
          %218 = dma.hbm_to_vmem [thread:$0]  %s2, 4096, %s213, [#allocation7], 256, 256, 16
        $region20: #{culinary_lm_forward.2} parent=11 // pred_fallthru
          _
        // Predicated region
        $region21: #{culinary_lm_forward.2} parent=11 // pred_check
          %p219 = pneg %p104
        $region22: #{culinary_lm_forward.2} parent=11 // pred_check_branch
          %221 = sbr.rel (%p219) target = $region24
        $region23: #{culinary_lm_forward.2} parent=11 // pred_region
          _
        $region24: #{culinary_lm_forward.2} parent=11 // pred_fallthru
          _
        // Predicated region
        $region25: #{culinary_lm_forward.2} parent=11 // pred_check
          %p222 = pneg %p125
        $region26: #{culinary_lm_forward.2} parent=11 // pred_check_branch
          %224 = sbr.rel (%p222) target = $region28
        $region27: #{culinary_lm_forward.2} parent=11 // pred_region
          %s226 = ssub.s32 4096, 4096
          %227 = vsyncadd [#allocation9], %s226
          %s228 = sshll.u32 [#allocation8], 4
          %s229 = int_to_ptr.vmem [resolvable:$true] %s228
          %234 = dma.hbm_to_vmem [thread:$0]  %s4, 4096, %s229, [#allocation9], 256, 256, 16
        $region28: #{culinary_lm_forward.2} parent=11 // pred_fallthru
          _
        // Predicated region
        $region29: #{culinary_lm_forward.2} parent=11 // pred_check
          %p235 = pneg %p146
        $region30: #{culinary_lm_forward.2} parent=11 // pred_check_branch
          %237 = sbr.rel (%p235) target = $region32
        $region31: #{culinary_lm_forward.2} parent=11 // pred_region
          %s239 = ssub.s32 4096, 4096
          %240 = vsyncadd [#allocation9], %s239
          %s241 = sshll.u32 [#allocation10], 4
          %s242 = int_to_ptr.vmem [resolvable:$true] %s241
          %247 = dma.hbm_to_vmem [thread:$0]  %s5, 4096, %s242, [#allocation9], 256, 256, 16
        $region32: #{culinary_lm_forward.2} parent=11 // pred_fallthru
          _
        // Predicated region
        $region33: #{culinary_lm_forward.2} parent=11 // pred_check
          %p248 = pneg %p167
        $region34: #{culinary_lm_forward.2} parent=11 // pred_check_branch
          %250 = sbr.rel (%p248) target = $region36
        $region35: #{culinary_lm_forward.2} parent=11 // pred_region
          _
        $region36: #{culinary_lm_forward.2} parent=11 // pred_fallthru
          _
      $region12: #{culinary_lm_forward.2} parent=5 // pred_fallthru
        _
      %p251 = scmp.lt.s32.totalorder %s15, 2
      // Predicated region
      $region37: #{culinary_lm_forward.2} parent=5 // pred_check
        %p252 = pneg %p251
      $region38: #{culinary_lm_forward.2} parent=5 // pred_check_branch
        %254 = sbr.rel (%p252) target = $region40
      $region39: #{culinary_lm_forward.2} parent=5 // pred_region
        // Predicated region
        $region41: #{culinary_lm_forward.2} parent=39 // pred_check
          %p255 = pneg %p35
        $region42: #{culinary_lm_forward.2} parent=39 // pred_check_branch
          %257 = sbr.rel (%p255) target = $region44
        $region43: #{culinary_lm_forward.2} parent=39 // pred_region
          %s258 = smul.u32 8, %s15
          %p259 = scmp.lt.s32.totalorder %s258, 15
          %s260 = scalar_select %p259, %s258, 15
          %s261 = smul.addr %s260, 4
          %s262 = scalar_lea.vmem %s0, %s261
          %s263 = smul.u32 8, %s15
        $region44: #{culinary_lm_forward.2} parent=39 // pred_fallthru
          _
      $region40: #{culinary_lm_forward.2} parent=5 // pred_fallthru
        _
      %p264 = scmp.le.s32.totalorder 1, %s15
      %p265 = scmp.lt.s32.totalorder %s15, 3
      %p266 = pnand %p264, %p265
      %p267 = pneg %p266
      // Predicated region
      $region45: #{culinary_lm_forward.2} parent=5 // pred_check
        _
      $region46: #{culinary_lm_forward.2} parent=5 // pred_check_branch
        %269 = sbr.rel (%p266) target = $region48
      $region47: #{culinary_lm_forward.2} parent=5 // pred_region
        %s270 = ssub.s32 %s15, 1
        // Predicated region
        $region49: #{culinary_lm_forward.2} parent=47 // pred_check
          %p271 = pneg %p83
        $region50: #{culinary_lm_forward.2} parent=47 // pred_check_branch
          %273 = sbr.rel (%p271) target = $region52
        $region51: #{culinary_lm_forward.2} parent=47 // pred_region
          %274 = dma.done [#allocation7], 4096
        $region52: #{culinary_lm_forward.2} parent=47 // pred_fallthru
          _
        // Predicated region
        $region53: #{culinary_lm_forward.2} parent=47 // pred_check
          %p275 = pneg %p125
        $region54: #{culinary_lm_forward.2} parent=47 // pred_check_branch
          %277 = sbr.rel (%p275) target = $region56
        $region55: #{culinary_lm_forward.2} parent=47 // pred_region
          %278 = dma.done [#allocation9], 4096
        $region56: #{culinary_lm_forward.2} parent=47 // pred_fallthru
          _
        // Predicated region
        $region57: #{culinary_lm_forward.2} parent=47 // pred_check
          %p279 = pneg %p146
        $region58: #{culinary_lm_forward.2} parent=47 // pred_check_branch
          %281 = sbr.rel (%p279) target = $region60
        $region59: #{culinary_lm_forward.2} parent=47 // pred_region
          %282 = dma.done [#allocation9], 4096
        $region60: #{culinary_lm_forward.2} parent=47 // pred_fallthru
          _
        %s283 = smul.u32 8, %s20
        %p284 = scmp.lt.s32.totalorder %s283, 15
        %s285 = scalar_select %p284, %s283, 15
        %s286 = smul.addr %s285, 4
        %s287 = scalar_lea.vmem %s0, %s286
        %p288 = pneg %p41
        %p289 = pneg %p38
        %p290 = pneg %p62
        %p291 = pneg %p59
        %p292 = pneg %p83
        %p293 = pneg %p80
        %p294 = pneg %p104
        %p295 = pneg %p101
        %p296 = pneg %p125
        %p297 = pneg %p122
        %p298 = pneg %p146
        %p299 = pneg %p143
        %p300 = pneg %p167
        %p301 = pneg %p164
        %p302 = pneg %p188
        %p303 = pneg %p185
        %s304 = smul.u32 8, %s20
        %p305 = scmp.lt.s32.totalorder %s304, 15
        %s306 = scalar_select %p305, %s304, 15
        %s307 = smul.addr %s306, 4
        %s308 = scalar_lea.vmem %s0, %s307
        %s309 = smul.u32 8, %s20
        %p311 = scmp.eq.s32.totalorder %s20, 0
        // Predicated region
        $region61: #{culinary_lm_forward.2} parent=47 // pred_check
          %p312 = pneg %p311
        $region62: #{culinary_lm_forward.2} parent=47 // pred_check_branch
          %314 = sbr.rel (%p312) target = $region64
        $region63: #{culinary_lm_forward.2} parent=47 // pred_region
          %315 = vst [vmem:[#allocation2] sm:$0xff] 0.0
          %316 = vst [vmem:[#allocation3] sm:$0xff] 0.0
          %317 = vst [vmem:[#allocation4] sm:$0xff] 0.0
          %318 = vst [vmem:[#allocation5] sm:$0xff] 0.0
        $region64: #{culinary_lm_forward.2} parent=47 // pred_fallthru
          _
        %v319 = vld [vmem:[%s308] sm:$0xf]
        %v320 = vld [vmem:[%s308 + $0x4] sm:$0xf]
        %v321 = vld [vmem:[%s308 + $0x8] sm:$0xf]
        %v322 = vld [vmem:[%s308 + $0xc] sm:$0xf]
        %v323 = vld [vmem:[%s308 + $0x10] sm:$0xf]
        %v324 = vld [vmem:[%s308 + $0x14] sm:$0xf]
        %v325 = vld [vmem:[%s308 + $0x18] sm:$0xf]
        %v326 = vld [vmem:[%s308 + $0x1c] sm:$0xf]
        %v327 = vld [vmem:[%s1] sm:$0xff]
        %v328 = vld [vmem:[%s1 + $0x8] sm:$0xff]
        %v329 = vld [vmem:[%s1 + $0x10] sm:$0xff]
        %v330 = vld [vmem:[%s1 + $0x18] sm:$0xff]
        %v331 = vld [vmem:[%s1 + $0x20] sm:$0xff]
        %v332 = vld [vmem:[%s1 + $0x28] sm:$0xff]
        %v333 = vld [vmem:[%s1 + $0x30] sm:$0xff]
        %v334 = vld [vmem:[%s1 + $0x38] sm:$0xff]
        %v335 = vld [vmem:[%s1 + $0x40] sm:$0xff]
        %v336 = vld [vmem:[%s1 + $0x48] sm:$0xff]
        %v337 = vld [vmem:[%s1 + $0x50] sm:$0xff]
        %v338 = vld [vmem:[%s1 + $0x58] sm:$0xff]
        %v339 = vld [vmem:[%s1 + $0x60] sm:$0xff]
        %v340 = vld [vmem:[%s1 + $0x68] sm:$0xff]
        %v341 = vld [vmem:[%s1 + $0x70] sm:$0xff]
        %v342 = vld [vmem:[%s1 + $0x78] sm:$0xff]
        %v343 = vld [vmem:[%s1 + $0x80] sm:$0xff]
        %v344 = vld [vmem:[%s1 + $0x88] sm:$0xff]
        %v345 = vld [vmem:[%s1 + $0x90] sm:$0xff]
        %v346 = vld [vmem:[%s1 + $0x98] sm:$0xff]
        %v347 = vld [vmem:[%s1 + $0xa0] sm:$0xff]
        %v348 = vld [vmem:[%s1 + $0xa8] sm:$0xff]
        %v349 = vld [vmem:[%s1 + $0xb0] sm:$0xff]
        %v350 = vld [vmem:[%s1 + $0xb8] sm:$0xff]
        %v351 = vld [vmem:[%s1 + $0xc0] sm:$0xff]
        %v352 = vld [vmem:[%s1 + $0xc8] sm:$0xff]
        %v353 = vld [vmem:[%s1 + $0xd0] sm:$0xff]
        %v354 = vld [vmem:[%s1 + $0xd8] sm:$0xff]
        %v355 = vld [vmem:[%s1 + $0xe0] sm:$0xff]
        %v356 = vld [vmem:[%s1 + $0xe8] sm:$0xff]
        %v357 = vld [vmem:[%s1 + $0xf0] sm:$0xff]
        %v358 = vld [vmem:[%s1 + $0xf8] sm:$0xff]
        %v359 = vld [vmem:[%s3] sm:$0xf]
        %v361 = vlaneseq
        %v362 = vshrl.u32 %v361, 7
        %v363 = vsub.s32 0, %v362
        %v364 = vrot.slane %v359, %v363
        %v365 = vlaneseq
        %v366 = vshrl.u32 %v365, 7
        %v367 = vsub.s32 1, %v366
        %v368 = vrot.slane %v359, %v367
        %v369 = vlaneseq
        %v370 = vshrl.u32 %v369, 7
        %v371 = vsub.s32 2, %v370
        %v372 = vrot.slane %v359, %v371
        %v373 = vlaneseq
        %v374 = vshrl.u32 %v373, 7
        %v375 = vsub.s32 3, %v374
        %v376 = vrot.slane %v359, %v375
        %v389 = vunpack.c.l.b16 %v319
        %v390 = vunpack.c.l.b16 %v320
        %v391 = vunpack.c.l.b16 %v321
        %v392 = vunpack.c.l.b16 %v322
        %v393 = vunpack.c.l.b16 %v323
        %v394 = vunpack.c.l.b16 %v324
        %v395 = vunpack.c.l.b16 %v325
        %v396 = vunpack.c.l.b16 %v326
        %v397 = vpack.c.b16 %v390, %v389
        %v398 = vpack.c.b16 %v392, %v391
        %v399 = vpack.c.b16 %v394, %v393
        %v400 = vpack.c.b16 %v396, %v395
        %v437 = vunpack.c.l.b16 %v327
        %v438 = vunpack.c.h.b16 %v327
        %v439 = vunpack.c.l.b16 %v328
        %v440 = vunpack.c.h.b16 %v328
        %v441 = vunpack.c.l.b16 %v329
        %v442 = vunpack.c.h.b16 %v329
        %v443 = vunpack.c.l.b16 %v330
        %v444 = vunpack.c.h.b16 %v330
        %v445 = vunpack.c.l.b16 %v331
        %v446 = vunpack.c.h.b16 %v331
        %v447 = vunpack.c.l.b16 %v332
        %v448 = vunpack.c.h.b16 %v332
        %v449 = vunpack.c.l.b16 %v333
        %v450 = vunpack.c.h.b16 %v333
        %v451 = vunpack.c.l.b16 %v334
        %v452 = vunpack.c.h.b16 %v334
        %v453 = vunpack.c.l.b16 %v335
        %v454 = vunpack.c.h.b16 %v335
        %v455 = vunpack.c.l.b16 %v336
        %v456 = vunpack.c.h.b16 %v336
        %v457 = vunpack.c.l.b16 %v337
        %v458 = vunpack.c.h.b16 %v337
        %v459 = vunpack.c.l.b16 %v338
        %v460 = vunpack.c.h.b16 %v338
        %v461 = vunpack.c.l.b16 %v339
        %v462 = vunpack.c.h.b16 %v339
        %v463 = vunpack.c.l.b16 %v340
        %v464 = vunpack.c.h.b16 %v340
        %v465 = vunpack.c.l.b16 %v341
        %v466 = vunpack.c.h.b16 %v341
        %v467 = vunpack.c.l.b16 %v342
        %v468 = vunpack.c.h.b16 %v342
        %v469 = vunpack.c.l.b16 %v343
        %v470 = vunpack.c.h.b16 %v343
        %v471 = vunpack.c.l.b16 %v344
        %v472 = vunpack.c.h.b16 %v344
        %v473 = vunpack.c.l.b16 %v345
        %v474 = vunpack.c.h.b16 %v345
        %v475 = vunpack.c.l.b16 %v346
        %v476 = vunpack.c.h.b16 %v346
        %v477 = vunpack.c.l.b16 %v347
        %v478 = vunpack.c.h.b16 %v347
        %v479 = vunpack.c.l.b16 %v348
        %v480 = vunpack.c.h.b16 %v348
        %v481 = vunpack.c.l.b16 %v349
        %v482 = vunpack.c.h.b16 %v349
        %v483 = vunpack.c.l.b16 %v350
        %v484 = vunpack.c.h.b16 %v350
        %v485 = vunpack.c.l.b16 %v351
        %v486 = vunpack.c.h.b16 %v351
        %v487 = vunpack.c.l.b16 %v352
        %v488 = vunpack.c.h.b16 %v352
        %v489 = vunpack.c.l.b16 %v353
        %v490 = vunpack.c.h.b16 %v353
        %v491 = vunpack.c.l.b16 %v354
        %v492 = vunpack.c.h.b16 %v354
        %v493 = vunpack.c.l.b16 %v355
        %v494 = vunpack.c.h.b16 %v355
        %v495 = vunpack.c.l.b16 %v356
        %v496 = vunpack.c.h.b16 %v356
        %v497 = vunpack.c.l.b16 %v357
        %v498 = vunpack.c.h.b16 %v357
        %v499 = vunpack.c.l.b16 %v358
        %v500 = vunpack.c.h.b16 %v358
        %v501 = vpack.c.b16 %v441, %v437
        %v502 = vpack.c.b16 %v442, %v438
        %v503 = vpack.c.b16 %v443, %v439
        %v504 = vpack.c.b16 %v444, %v440
        %v505 = vpack.c.b16 %v449, %v445
        %v506 = vpack.c.b16 %v450, %v446
        %v507 = vpack.c.b16 %v451, %v447
        %v508 = vpack.c.b16 %v452, %v448
        %v509 = vpack.c.b16 %v457, %v453
        %v510 = vpack.c.b16 %v458, %v454
        %v511 = vpack.c.b16 %v459, %v455
        %v512 = vpack.c.b16 %v460, %v456
        %v513 = vpack.c.b16 %v465, %v461
        %v514 = vpack.c.b16 %v466, %v462
        %v515 = vpack.c.b16 %v467, %v463
        %v516 = vpack.c.b16 %v468, %v464
        %v517 = vpack.c.b16 %v473, %v469
        %v518 = vpack.c.b16 %v474, %v470
        %v519 = vpack.c.b16 %v475, %v471
        %v520 = vpack.c.b16 %v476, %v472
        %v521 = vpack.c.b16 %v481, %v477
        %v522 = vpack.c.b16 %v482, %v478
        %v523 = vpack.c.b16 %v483, %v479
        %v524 = vpack.c.b16 %v484, %v480
        %v525 = vpack.c.b16 %v489, %v485
        %v526 = vpack.c.b16 %v490, %v486
        %v527 = vpack.c.b16 %v491, %v487
        %v528 = vpack.c.b16 %v492, %v488
        %v529 = vpack.c.b16 %v497, %v493
        %v530 = vpack.c.b16 %v498, %v494
        %v531 = vpack.c.b16 %v499, %v495
        %v532 = vpack.c.b16 %v500, %v496
        %565 = vmatprep.subr.bf16.mxu0 %v502
        %566 = vmatpush1.bf16.msra.mxu0 %v501
        %567 = vmatprep.subr.bf16.mxu0 %v506
        %568 = vmatpush1.bf16.msra.mxu0 %v505
        %569 = vmatprep.subr.bf16.mxu0 %v510
        %570 = vmatpush1.bf16.msra.mxu0 %v509
        %571 = vmatprep.subr.bf16.mxu0 %v514
        %572 = vmatpush1.bf16.msra.mxu0 %v513
        %573 = vmatprep.subr.bf16.mxu0 %v518
        %574 = vmatpush1.bf16.msra.mxu0 %v517
        %575 = vmatprep.subr.bf16.mxu0 %v522
        %576 = vmatpush1.bf16.msra.mxu0 %v521
        %577 = vmatprep.subr.bf16.mxu0 %v526
        %578 = vmatpush1.bf16.msra.mxu0 %v525
        %579 = vmatprep.subr.bf16.mxu0 %v530
        %580 = vmatpush1.bf16.msra.mxu0 %v529
        %581 = vmatprep.subr.bf16.mxu0 0
        %582 = vmatpush1.bf16.msra.mxu0 0
        %583 = vmatprep.subr.bf16.mxu0 0
        %584 = vmatpush1.bf16.msra.mxu0 0
        %585 = vmatprep.subr.bf16.mxu0 0
        %586 = vmatpush1.bf16.msra.mxu0 0
        %587 = vmatprep.subr.bf16.mxu0 0
        %588 = vmatpush1.bf16.msra.mxu0 0
        %589 = vmatprep.subr.bf16.mxu0 0
        %590 = vmatpush1.bf16.msra.mxu0 0
        %591 = vmatprep.subr.bf16.mxu0 0
        %592 = vmatpush1.bf16.msra.mxu0 0
        %593 = vmatprep.subr.bf16.mxu0 0
        %594 = vmatpush1.bf16.msra.mxu0 0
        %595 = vmatprep.subr.bf16.mxu0 0
        %596 = vmatpush1.bf16.msra.mxu0 0
        %597 = vmatprep.mubr.bf16.mxu0 0
        %598 = vmatmul.mubr.bf16.gmra.mrb[0].mxu0 %v397
        %v599 = vpop.f32.mrb[0].mxu0
        %v600 = vadd.f32 %v364, %v599
        %v601 = vpop.f32.mrb[0].mxu0
        %v602 = vadd.f32 %v368, %v601
        %v603 = vpop.f32.mrb[0].mxu0
        %v604 = vadd.f32 %v364, %v603
        %v605 = vpop.f32.mrb[0].mxu0
        %v606 = vadd.f32 %v368, %v605
        %607 = vmatprep.mubr.bf16.mxu0 0
        %608 = vmatmul.mubr.bf16.gmra.mrb[0].mxu0 %v398
        %v609 = vpop.f32.mrb[0].mxu0
        %v610 = vadd.f32 %v364, %v609
        %v611 = vpop.f32.mrb[0].mxu0
        %v612 = vadd.f32 %v368, %v611
        %v613 = vpop.f32.mrb[0].mxu0
        %v614 = vadd.f32 %v364, %v613
        %v615 = vpop.f32.mrb[0].mxu0
        %v616 = vadd.f32 %v368, %v615
        %617 = vmatprep.mubr.bf16.mxu0 0
        %618 = vmatmul.mubr.bf16.gmra.mrb[0].mxu0 %v399
        %v619 = vpop.f32.mrb[0].mxu0
        %v620 = vadd.f32 %v364, %v619
        %v621 = vpop.f32.mrb[0].mxu0
        %v622 = vadd.f32 %v368, %v621
        %v623 = vpop.f32.mrb[0].mxu0
        %v624 = vadd.f32 %v364, %v623
        %v625 = vpop.f32.mrb[0].mxu0
        %v626 = vadd.f32 %v368, %v625
        %627 = vmatprep.mubr.bf16.mxu0 0
        %628 = vmatmul.mubr.bf16.gmra.mrb[0].mxu0 %v400
        %v629 = vpop.f32.mrb[0].mxu0
        %v630 = vadd.f32 %v364, %v629
        %v631 = vpop.f32.mrb[0].mxu0
        %v632 = vadd.f32 %v368, %v631
        %v633 = vpop.f32.mrb[0].mxu0
        %v634 = vadd.f32 %v364, %v633
        %v635 = vpop.f32.mrb[0].mxu0
        %v636 = vadd.f32 %v368, %v635
        %637 = vdwg.mxu0
        %638 = vmatprep.subr.bf16.mxu0 %v504
        %639 = vmatpush1.bf16.msra.mxu0 %v503
        %640 = vmatprep.subr.bf16.mxu0 %v508
        %641 = vmatpush1.bf16.msra.mxu0 %v507
        %642 = vmatprep.subr.bf16.mxu0 %v512
        %643 = vmatpush1.bf16.msra.mxu0 %v511
        %644 = vmatprep.subr.bf16.mxu0 %v516
        %645 = vmatpush1.bf16.msra.mxu0 %v515
        %646 = vmatprep.subr.bf16.mxu0 %v520
        %647 = vmatpush1.bf16.msra.mxu0 %v519
        %648 = vmatprep.subr.bf16.mxu0 %v524
        %649 = vmatpush1.bf16.msra.mxu0 %v523
        %650 = vmatprep.subr.bf16.mxu0 %v528
        %651 = vmatpush1.bf16.msra.mxu0 %v527
        %652 = vmatprep.subr.bf16.mxu0 %v532
        %653 = vmatpush1.bf16.msra.mxu0 %v531
        %654 = vmatprep.subr.bf16.mxu0 0
        %655 = vmatpush1.bf16.msra.mxu0 0
        %656 = vmatprep.subr.bf16.mxu0 0
        %657 = vmatpush1.bf16.msra.mxu0 0
        %658 = vmatprep.subr.bf16.mxu0 0
        %659 = vmatpush1.bf16.msra.mxu0 0
        %660 = vmatprep.subr.bf16.mxu0 0
        %661 = vmatpush1.bf16.msra.mxu0 0
        %662 = vmatprep.subr.bf16.mxu0 0
        %663 = vmatpush1.bf16.msra.mxu0 0
        %664 = vmatprep.subr.bf16.mxu0 0
        %665 = vmatpush1.bf16.msra.mxu0 0
        %666 = vmatprep.subr.bf16.mxu0 0
        %667 = vmatpush1.bf16.msra.mxu0 0
        %668 = vmatprep.subr.bf16.mxu0 0
        %669 = vmatpush1.bf16.msra.mxu0 0
        %670 = vmatprep.mubr.bf16.mxu0 0
        %671 = vmatmul.mubr.bf16.gmra.mrb[0].mxu0 %v397
        %v672 = vpop.f32.mrb[0].mxu0
        %v673 = vadd.f32 %v372, %v672
        %v674 = vpop.f32.mrb[0].mxu0
        %v675 = vadd.f32 %v376, %v674
        %v676 = vpop.f32.mrb[0].mxu0
        %v677 = vadd.f32 %v372, %v676
        %v678 = vpop.f32.mrb[0].mxu0
        %v679 = vadd.f32 %v376, %v678
        %680 = vmatprep.mubr.bf16.mxu0 0
        %681 = vmatmul.mubr.bf16.gmra.mrb[0].mxu0 %v398
        %v682 = vpop.f32.mrb[0].mxu0
        %v683 = vadd.f32 %v372, %v682
        %v684 = vpop.f32.mrb[0].mxu0
        %v685 = vadd.f32 %v376, %v684
        %v686 = vpop.f32.mrb[0].mxu0
        %v687 = vadd.f32 %v372, %v686
        %v688 = vpop.f32.mrb[0].mxu0
        %v689 = vadd.f32 %v376, %v688
        %690 = vmatprep.mubr.bf16.mxu0 0
        %691 = vmatmul.mubr.bf16.gmra.mrb[0].mxu0 %v399
        %v692 = vpop.f32.mrb[0].mxu0
        %v693 = vadd.f32 %v372, %v692
        %v694 = vpop.f32.mrb[0].mxu0
        %v695 = vadd.f32 %v376, %v694
        %v696 = vpop.f32.mrb[0].mxu0
        %v697 = vadd.f32 %v372, %v696
        %v698 = vpop.f32.mrb[0].mxu0
        %v699 = vadd.f32 %v376, %v698
        %700 = vmatprep.mubr.bf16.mxu0 0
        %701 = vmatmul.mubr.bf16.gmra.mrb[0].mxu0 %v400
        %v702 = vpop.f32.mrb[0].mxu0
        %v703 = vadd.f32 %v372, %v702
        %v704 = vpop.f32.mrb[0].mxu0
        %v705 = vadd.f32 %v376, %v704
        %v706 = vpop.f32.mrb[0].mxu0
        %v707 = vadd.f32 %v372, %v706
        %v708 = vpop.f32.mrb[0].mxu0
        %v709 = vadd.f32 %v376, %v708
        %710 = vdwg.mxu0
        %v711 = vld [vmem:[#allocation6] sm:$0xff]
        %v712 = vld [vmem:[#allocation6 + $0x8] sm:$0xff]
        %v713 = vld [vmem:[#allocation6 + $0x10] sm:$0xff]
        %v714 = vld [vmem:[#allocation6 + $0x18] sm:$0xff]
        %v715 = vld [vmem:[#allocation6 + $0x20] sm:$0xff]
        %v716 = vld [vmem:[#allocation6 + $0x28] sm:$0xff]
        %v717 = vld [vmem:[#allocation6 + $0x30] sm:$0xff]
        %v718 = vld [vmem:[#allocation6 + $0x38] sm:$0xff]
        %v719 = vld [vmem:[#allocation6 + $0x40] sm:$0xff]
        %v720 = vld [vmem:[#allocation6 + $0x48] sm:$0xff]
        %v721 = vld [vmem:[#allocation6 + $0x50] sm:$0xff]
        %v722 = vld [vmem:[#allocation6 + $0x58] sm:$0xff]
        %v723 = vld [vmem:[#allocation6 + $0x60] sm:$0xff]
        %v724 = vld [vmem:[#allocation6 + $0x68] sm:$0xff]
        %v725 = vld [vmem:[#allocation6 + $0x70] sm:$0xff]
        %v726 = vld [vmem:[#allocation6 + $0x78] sm:$0xff]
        %v727 = vld [vmem:[#allocation6 + $0x80] sm:$0xff]
        %v728 = vld [vmem:[#allocation6 + $0x88] sm:$0xff]
        %v729 = vld [vmem:[#allocation6 + $0x90] sm:$0xff]
        %v730 = vld [vmem:[#allocation6 + $0x98] sm:$0xff]
        %v731 = vld [vmem:[#allocation6 + $0xa0] sm:$0xff]
        %v732 = vld [vmem:[#allocation6 + $0xa8] sm:$0xff]
        %v733 = vld [vmem:[#allocation6 + $0xb0] sm:$0xff]
        %v734 = vld [vmem:[#allocation6 + $0xb8] sm:$0xff]
        %v735 = vld [vmem:[#allocation6 + $0xc0] sm:$0xff]
        %v736 = vld [vmem:[#allocation6 + $0xc8] sm:$0xff]
        %v737 = vld [vmem:[#allocation6 + $0xd0] sm:$0xff]
        %v738 = vld [vmem:[#allocation6 + $0xd8] sm:$0xff]
        %v739 = vld [vmem:[#allocation6 + $0xe0] sm:$0xff]
        %v740 = vld [vmem:[#allocation6 + $0xe8] sm:$0xff]
        %v741 = vld [vmem:[#allocation6 + $0xf0] sm:$0xff]
        %v742 = vld [vmem:[#allocation6 + $0xf8] sm:$0xff]
        %v743 = vld [vmem:[#allocation8] sm:$0xff]
        %v744 = vld [vmem:[#allocation8 + $0x8] sm:$0xff]
        %v745 = vld [vmem:[#allocation8 + $0x10] sm:$0xff]
        %v746 = vld [vmem:[#allocation8 + $0x18] sm:$0xff]
        %v747 = vld [vmem:[#allocation8 + $0x20] sm:$0xff]
        %v748 = vld [vmem:[#allocation8 + $0x28] sm:$0xff]
        %v749 = vld [vmem:[#allocation8 + $0x30] sm:$0xff]
        %v750 = vld [vmem:[#allocation8 + $0x38] sm:$0xff]
        %v751 = vld [vmem:[#allocation8 + $0x40] sm:$0xff]
        %v752 = vld [vmem:[#allocation8 + $0x48] sm:$0xff]
        %v753 = vld [vmem:[#allocation8 + $0x50] sm:$0xff]
        %v754 = vld [vmem:[#allocation8 + $0x58] sm:$0xff]
        %v755 = vld [vmem:[#allocation8 + $0x60] sm:$0xff]
        %v756 = vld [vmem:[#allocation8 + $0x68] sm:$0xff]
        %v757 = vld [vmem:[#allocation8 + $0x70] sm:$0xff]
        %v758 = vld [vmem:[#allocation8 + $0x78] sm:$0xff]
        %v759 = vld [vmem:[#allocation8 + $0x80] sm:$0xff]
        %v760 = vld [vmem:[#allocation8 + $0x88] sm:$0xff]
        %v761 = vld [vmem:[#allocation8 + $0x90] sm:$0xff]
        %v762 = vld [vmem:[#allocation8 + $0x98] sm:$0xff]
        %v763 = vld [vmem:[#allocation8 + $0xa0] sm:$0xff]
        %v764 = vld [vmem:[#allocation8 + $0xa8] sm:$0xff]
        %v765 = vld [vmem:[#allocation8 + $0xb0] sm:$0xff]
        %v766 = vld [vmem:[#allocation8 + $0xb8] sm:$0xff]
        %v767 = vld [vmem:[#allocation8 + $0xc0] sm:$0xff]
        %v768 = vld [vmem:[#allocation8 + $0xc8] sm:$0xff]
        %v769 = vld [vmem:[#allocation8 + $0xd0] sm:$0xff]
        %v770 = vld [vmem:[#allocation8 + $0xd8] sm:$0xff]
        %v771 = vld [vmem:[#allocation8 + $0xe0] sm:$0xff]
        %v772 = vld [vmem:[#allocation8 + $0xe8] sm:$0xff]
        %v773 = vld [vmem:[#allocation8 + $0xf0] sm:$0xff]
        %v774 = vld [vmem:[#allocation8 + $0xf8] sm:$0xff]
        %v775 = vld [vmem:[#allocation10] sm:$0xff]
        %v776 = vld [vmem:[#allocation10 + $0x8] sm:$0xff]
        %v777 = vld [vmem:[#allocation10 + $0x10] sm:$0xff]
        %v778 = vld [vmem:[#allocation10 + $0x18] sm:$0xff]
        %v779 = vld [vmem:[#allocation10 + $0x20] sm:$0xff]
        %v780 = vld [vmem:[#allocation10 + $0x28] sm:$0xff]
        %v781 = vld [vmem:[#allocation10 + $0x30] sm:$0xff]
        %v782 = vld [vmem:[#allocation10 + $0x38] sm:$0xff]
        %v783 = vld [vmem:[#allocation10 + $0x40] sm:$0xff]
        %v784 = vld [vmem:[#allocation10 + $0x48] sm:$0xff]
        %v785 = vld [vmem:[#allocation10 + $0x50] sm:$0xff]
        %v786 = vld [vmem:[#allocation10 + $0x58] sm:$0xff]
        %v787 = vld [vmem:[#allocation10 + $0x60] sm:$0xff]
        %v788 = vld [vmem:[#allocation10 + $0x68] sm:$0xff]
        %v789 = vld [vmem:[#allocation10 + $0x70] sm:$0xff]
        %v790 = vld [vmem:[#allocation10 + $0x78] sm:$0xff]
        %v791 = vld [vmem:[#allocation10 + $0x80] sm:$0xff]
        %v792 = vld [vmem:[#allocation10 + $0x88] sm:$0xff]
        %v793 = vld [vmem:[#allocation10 + $0x90] sm:$0xff]
        %v794 = vld [vmem:[#allocation10 + $0x98] sm:$0xff]
        %v795 = vld [vmem:[#allocation10 + $0xa0] sm:$0xff]
        %v796 = vld [vmem:[#allocation10 + $0xa8] sm:$0xff]
        %v797 = vld [vmem:[#allocation10 + $0xb0] sm:$0xff]
        %v798 = vld [vmem:[#allocation10 + $0xb8] sm:$0xff]
        %v799 = vld [vmem:[#allocation10 + $0xc0] sm:$0xff]
        %v800 = vld [vmem:[#allocation10 + $0xc8] sm:$0xff]
        %v801 = vld [vmem:[#allocation10 + $0xd0] sm:$0xff]
        %v802 = vld [vmem:[#allocation10 + $0xd8] sm:$0xff]
        %v803 = vld [vmem:[#allocation10 + $0xe0] sm:$0xff]
        %v804 = vld [vmem:[#allocation10 + $0xe8] sm:$0xff]
        %v805 = vld [vmem:[#allocation10 + $0xf0] sm:$0xff]
        %v806 = vld [vmem:[#allocation10 + $0xf8] sm:$0xff]
        %v807 = vld [vmem:[%s6] sm:$0xf]
        %v809 = vlaneseq
        %v810 = vshrl.u32 %v809, 7
        %v811 = vsub.s32 0, %v810
        %v812 = vrot.slane %v807, %v811
        %v813 = vlaneseq
        %v814 = vshrl.u32 %v813, 7
        %v815 = vsub.s32 1, %v814
        %v816 = vrot.slane %v807, %v815
        %v817 = vlaneseq
        %v818 = vshrl.u32 %v817, 7
        %v819 = vsub.s32 2, %v818
        %v820 = vrot.slane %v807, %v819
        %v821 = vlaneseq
        %v822 = vshrl.u32 %v821, 7
        %v823 = vsub.s32 3, %v822
        %v824 = vrot.slane %v807, %v823
        %v829 = vld [vmem:[#allocation2] sm:$0xff]
        %v830 = vld [vmem:[#allocation3] sm:$0xff]
        %v831 = vld [vmem:[#allocation4] sm:$0xff]
        %v832 = vld [vmem:[#allocation5] sm:$0xff]
        %v833 = vpack.c.bf16 %v829, %v829
        %v866 = vunpack.c.l.b16 %v711
        %v867 = vunpack.c.h.b16 %v711
        %v868 = vunpack.c.l.b16 %v712
        %v869 = vunpack.c.h.b16 %v712
        %v870 = vunpack.c.l.b16 %v713
        %v871 = vunpack.c.h.b16 %v713
        %v872 = vunpack.c.l.b16 %v714
        %v873 = vunpack.c.h.b16 %v714
        %v874 = vunpack.c.l.b16 %v715
        %v875 = vunpack.c.h.b16 %v715
        %v876 = vunpack.c.l.b16 %v716
        %v877 = vunpack.c.h.b16 %v716
        %v878 = vunpack.c.l.b16 %v717
        %v879 = vunpack.c.h.b16 %v717
        %v880 = vunpack.c.l.b16 %v718
        %v881 = vunpack.c.h.b16 %v718
        %v882 = vunpack.c.l.b16 %v719
        %v883 = vunpack.c.h.b16 %v719
        %v884 = vunpack.c.l.b16 %v720
        %v885 = vunpack.c.h.b16 %v720
        %v886 = vunpack.c.l.b16 %v721
        %v887 = vunpack.c.h.b16 %v721
        %v888 = vunpack.c.l.b16 %v722
        %v889 = vunpack.c.h.b16 %v722
        %v890 = vunpack.c.l.b16 %v723
        %v891 = vunpack.c.h.b16 %v723
        %v892 = vunpack.c.l.b16 %v724
        %v893 = vunpack.c.h.b16 %v724
        %v894 = vunpack.c.l.b16 %v725
        %v895 = vunpack.c.h.b16 %v725
        %v896 = vunpack.c.l.b16 %v726
        %v897 = vunpack.c.h.b16 %v726
        %v898 = vunpack.c.l.b16 %v727
        %v899 = vunpack.c.h.b16 %v727
        %v900 = vunpack.c.l.b16 %v728
        %v901 = vunpack.c.h.b16 %v728
        %v902 = vunpack.c.l.b16 %v729
        %v903 = vunpack.c.h.b16 %v729
        %v904 = vunpack.c.l.b16 %v730
        %v905 = vunpack.c.h.b16 %v730
        %v906 = vunpack.c.l.b16 %v731
        %v907 = vunpack.c.h.b16 %v731
        %v908 = vunpack.c.l.b16 %v732
        %v909 = vunpack.c.h.b16 %v732
        %v910 = vunpack.c.l.b16 %v733
        %v911 = vunpack.c.h.b16 %v733
        %v912 = vunpack.c.l.b16 %v734
        %v913 = vunpack.c.h.b16 %v734
        %v914 = vunpack.c.l.b16 %v735
        %v915 = vunpack.c.h.b16 %v735
        %v916 = vunpack.c.l.b16 %v736
        %v917 = vunpack.c.h.b16 %v736
        %v918 = vunpack.c.l.b16 %v737
        %v919 = vunpack.c.h.b16 %v737
        %v920 = vunpack.c.l.b16 %v738
        %v921 = vunpack.c.h.b16 %v738
        %v922 = vunpack.c.l.b16 %v739
        %v923 = vunpack.c.h.b16 %v739
        %v924 = vunpack.c.l.b16 %v740
        %v925 = vunpack.c.h.b16 %v740
        %v926 = vunpack.c.l.b16 %v741
        %v927 = vunpack.c.h.b16 %v741
        %v928 = vunpack.c.l.b16 %v742
        %v929 = vunpack.c.h.b16 %v742
        %v930 = vpack.c.b16 %v870, %v866
        %v931 = vpack.c.b16 %v871, %v867
        %v932 = vpack.c.b16 %v872, %v868
        %v933 = vpack.c.b16 %v873, %v869
        %v934 = vpack.c.b16 %v878, %v874
        %v935 = vpack.c.b16 %v879, %v875
        %v936 = vpack.c.b16 %v880, %v876
        %v937 = vpack.c.b16 %v881, %v877
        %v938 = vpack.c.b16 %v886, %v882
        %v939 = vpack.c.b16 %v887, %v883
        %v940 = vpack.c.b16 %v888, %v884
        %v941 = vpack.c.b16 %v889, %v885
        %v942 = vpack.c.b16 %v894, %v890
        %v943 = vpack.c.b16 %v895, %v891
        %v944 = vpack.c.b16 %v896, %v892
        %v945 = vpack.c.b16 %v897, %v893
        %v946 = vpack.c.b16 %v902, %v898
        %v947 = vpack.c.b16 %v903, %v899
        %v948 = vpack.c.b16 %v904, %v900
        %v949 = vpack.c.b16 %v905, %v901
        %v950 = vpack.c.b16 %v910, %v906
        %v951 = vpack.c.b16 %v911, %v907
        %v952 = vpack.c.b16 %v912, %v908
        %v953 = vpack.c.b16 %v913, %v909
        %v954 = vpack.c.b16 %v918, %v914
        %v955 = vpack.c.b16 %v919, %v915
        %v956 = vpack.c.b16 %v920, %v916
        %v957 = vpack.c.b16 %v921, %v917
        %v958 = vpack.c.b16 %v926, %v922
        %v959 = vpack.c.b16 %v927, %v923
        %v960 = vpack.c.b16 %v928, %v924
        %v961 = vpack.c.b16 %v929, %v925
        %994 = vmatprep.subr.bf16.mxu0 %v931
        %995 = vmatpush1.bf16.msra.mxu0 %v930
        %996 = vmatprep.subr.bf16.mxu0 %v935
        %997 = vmatpush1.bf16.msra.mxu0 %v934
        %998 = vmatprep.subr.bf16.mxu0 %v939
        %999 = vmatpush1.bf16.msra.mxu0 %v938
        %1000 = vmatprep.subr.bf16.mxu0 %v943
        %1001 = vmatpush1.bf16.msra.mxu0 %v942
        %1002 = vmatprep.subr.bf16.mxu0 %v947
        %1003 = vmatpush1.bf16.msra.mxu0 %v946
        %1004 = vmatprep.subr.bf16.mxu0 %v951
        %1005 = vmatpush1.bf16.msra.mxu0 %v950
        %1006 = vmatprep.subr.bf16.mxu0 %v955
        %1007 = vmatpush1.bf16.msra.mxu0 %v954
        %1008 = vmatprep.subr.bf16.mxu0 %v959
        %1009 = vmatpush1.bf16.msra.mxu0 %v958
        %1010 = vmatprep.subr.bf16.mxu0 0
        %1011 = vmatpush1.bf16.msra.mxu0 0
        %1012 = vmatprep.subr.bf16.mxu0 0
        %1013 = vmatpush1.bf16.msra.mxu0 0
        %1014 = vmatprep.subr.bf16.mxu0 0
        %1015 = vmatpush1.bf16.msra.mxu0 0
        %1016 = vmatprep.subr.bf16.mxu0 0
        %1017 = vmatpush1.bf16.msra.mxu0 0
        %1018 = vmatprep.subr.bf16.mxu0 0
        %1019 = vmatpush1.bf16.msra.mxu0 0
        %1020 = vmatprep.subr.bf16.mxu0 0
        %1021 = vmatpush1.bf16.msra.mxu0 0
        %1022 = vmatprep.subr.bf16.mxu0 0
        %1023 = vmatpush1.bf16.msra.mxu0 0
        %1024 = vmatprep.subr.bf16.mxu0 0
        %1025 = vmatpush1.bf16.msra.mxu0 0
        %1026 = vmatprep.mubr.bf16.mxu0 0
        %1027 = vmatmul.mubr.bf16.gmra.mrb[0].mxu0 %v833
        %v1028 = vpop.f32.mrb[0].mxu0
        %v1029 = vadd.f32 0.0, %v1028
        %v1030 = vpop.f32.mrb[0].mxu0
        %v1031 = vadd.f32 0.0, %v1030
        %v1032 = vpop.f32.mrb[0].mxu0
        %v1033 = vpop.f32.mrb[0].mxu0
        %1034 = vdwg.mxu0
        %1035 = vmatprep.subr.bf16.mxu0 %v933
        %1036 = vmatpush1.bf16.msra.mxu0 %v932
        %1037 = vmatprep.subr.bf16.mxu0 %v937
        %1038 = vmatpush1.bf16.msra.mxu0 %v936
        %1039 = vmatprep.subr.bf16.mxu0 %v941
        %1040 = vmatpush1.bf16.msra.mxu0 %v940
        %1041 = vmatprep.subr.bf16.mxu0 %v945
        %1042 = vmatpush1.bf16.msra.mxu0 %v944
        %1043 = vmatprep.subr.bf16.mxu0 %v949
        %1044 = vmatpush1.bf16.msra.mxu0 %v948
        %1045 = vmatprep.subr.bf16.mxu0 %v953
        %1046 = vmatpush1.bf16.msra.mxu0 %v952
        %1047 = vmatprep.subr.bf16.mxu0 %v957
        %1048 = vmatpush1.bf16.msra.mxu0 %v956
        %1049 = vmatprep.subr.bf16.mxu0 %v961
        %1050 = vmatpush1.bf16.msra.mxu0 %v960
        %1051 = vmatprep.subr.bf16.mxu0 0
        %1052 = vmatpush1.bf16.msra.mxu0 0
        %1053 = vmatprep.subr.bf16.mxu0 0
        %1054 = vmatpush1.bf16.msra.mxu0 0
        %1055 = vmatprep.subr.bf16.mxu0 0
        %1056 = vmatpush1.bf16.msra.mxu0 0
        %1057 = vmatprep.subr.bf16.mxu0 0
        %1058 = vmatpush1.bf16.msra.mxu0 0
        %1059 = vmatprep.subr.bf16.mxu0 0
        %1060 = vmatpush1.bf16.msra.mxu0 0
        %1061 = vmatprep.subr.bf16.mxu0 0
        %1062 = vmatpush1.bf16.msra.mxu0 0
        %1063 = vmatprep.subr.bf16.mxu0 0
        %1064 = vmatpush1.bf16.msra.mxu0 0
        %1065 = vmatprep.subr.bf16.mxu0 0
        %1066 = vmatpush1.bf16.msra.mxu0 0
        %1067 = vmatprep.mubr.bf16.mxu0 0
        %1068 = vmatmul.mubr.bf16.gmra.mrb[0].mxu0 %v833
        %v1069 = vpop.f32.mrb[0].mxu0
        %v1070 = vadd.f32 0.0, %v1069
        %v1071 = vpop.f32.mrb[0].mxu0
        %v1072 = vadd.f32 0.0, %v1071
        %v1073 = vpop.f32.mrb[0].mxu0
        %v1074 = vpop.f32.mrb[0].mxu0
        %1075 = vdwg.mxu0
        %v1076 = vadd.f32 %v600, %v1029
        %v1077 = vadd.f32 %v602, %v1031
        %v1078 = vadd.f32 %v673, %v1070
        %v1079 = vadd.f32 %v675, %v1072
        %v1080 = vxor.u32 %v1076, 2147483648
        %v1081 = vxor.u32 %v1077, 2147483648
        %v1082 = vxor.u32 %v1078, 2147483648
        %v1083 = vmul.f32 %v1080, 1.442695
        %v1084 = vpow.pop %v1083
        %v1085 = vmul.f32 %v1081, 1.442695
        %v1086 = vpow.pop %v1085
        %v1087 = vmul.f32 %v1082, 1.442695
        %v1088 = vpow.pop %v1087
        %v1089 = vadd.f32 %v1084, 1.0
        %v1090 = vadd.f32 %v1086, 1.0
        %v1091 = vadd.f32 %v1088, 1.0
        %v1092 = vrcp.pop %v1089
        %v1093 = vmul.f32 1.0, %v1092
        %v1094 = vrcp.pop %v1090
        %v1095 = vmul.f32 1.0, %v1094
        %v1096 = vrcp.pop %v1091
        %v1097 = vmul.f32 1.0, %v1096
        %v1098 = vtanh.pop %v1079
        %v1099 = vmul.f32 %v1095, %v830
        %v1100 = vmul.f32 %v1093, %v1098
        %v1101 = vadd.f32 %v1099, %v1100
        %v1102 = vtanh.pop %v1101
        %v1103 = vmul.f32 %v1097, %v1102
        %v1104 = vpack.c.bf16 %v1103, %v1103
        %v1105 = vpack.c.bf16 %v831, %v831
        %v1138 = vunpack.c.l.b16 %v775
        %v1139 = vunpack.c.h.b16 %v775
        %v1140 = vunpack.c.l.b16 %v776
        %v1141 = vunpack.c.h.b16 %v776
        %v1142 = vunpack.c.l.b16 %v777
        %v1143 = vunpack.c.h.b16 %v777
        %v1144 = vunpack.c.l.b16 %v778
        %v1145 = vunpack.c.h.b16 %v778
        %v1146 = vunpack.c.l.b16 %v779
        %v1147 = vunpack.c.h.b16 %v779
        %v1148 = vunpack.c.l.b16 %v780
        %v1149 = vunpack.c.h.b16 %v780
        %v1150 = vunpack.c.l.b16 %v781
        %v1151 = vunpack.c.h.b16 %v781
        %v1152 = vunpack.c.l.b16 %v782
        %v1153 = vunpack.c.h.b16 %v782
        %v1154 = vunpack.c.l.b16 %v783
        %v1155 = vunpack.c.h.b16 %v783
        %v1156 = vunpack.c.l.b16 %v784
        %v1157 = vunpack.c.h.b16 %v784
        %v1158 = vunpack.c.l.b16 %v785
        %v1159 = vunpack.c.h.b16 %v785
        %v1160 = vunpack.c.l.b16 %v786
        %v1161 = vunpack.c.h.b16 %v786
        %v1162 = vunpack.c.l.b16 %v787
        %v1163 = vunpack.c.h.b16 %v787
        %v1164 = vunpack.c.l.b16 %v788
        %v1165 = vunpack.c.h.b16 %v788
        %v1166 = vunpack.c.l.b16 %v789
        %v1167 = vunpack.c.h.b16 %v789
        %v1168 = vunpack.c.l.b16 %v790
        %v1169 = vunpack.c.h.b16 %v790
        %v1170 = vunpack.c.l.b16 %v791
        %v1171 = vunpack.c.h.b16 %v791
        %v1172 = vunpack.c.l.b16 %v792
        %v1173 = vunpack.c.h.b16 %v792
        %v1174 = vunpack.c.l.b16 %v793
        %v1175 = vunpack.c.h.b16 %v793
        %v1176 = vunpack.c.l.b16 %v794
        %v1177 = vunpack.c.h.b16 %v794
        %v1178 = vunpack.c.l.b16 %v795
        %v1179 = vunpack.c.h.b16 %v795
        %v1180 = vunpack.c.l.b16 %v796
        %v1181 = vunpack.c.h.b16 %v796
        %v1182 = vunpack.c.l.b16 %v797
        %v1183 = vunpack.c.h.b16 %v797
        %v1184 = vunpack.c.l.b16 %v798
        %v1185 = vunpack.c.h.b16 %v798
        %v1186 = vunpack.c.l.b16 %v799
        %v1187 = vunpack.c.h.b16 %v799
        %v1188 = vunpack.c.l.b16 %v800
        %v1189 = vunpack.c.h.b16 %v800
        %v1190 = vunpack.c.l.b16 %v801
        %v1191 = vunpack.c.h.b16 %v801
        %v1192 = vunpack.c.l.b16 %v802
        %v1193 = vunpack.c.h.b16 %v802
        %v1194 = vunpack.c.l.b16 %v803
        %v1195 = vunpack.c.h.b16 %v803
        %v1196 = vunpack.c.l.b16 %v804
        %v1197 = vunpack.c.h.b16 %v804
        %v1198 = vunpack.c.l.b16 %v805
        %v1199 = vunpack.c.h.b16 %v805
        %v1200 = vunpack.c.l.b16 %v806
        %v1201 = vunpack.c.h.b16 %v806
        %v1202 = vpack.c.b16 %v1142, %v1138
        %v1203 = vpack.c.b16 %v1143, %v1139
        %v1204 = vpack.c.b16 %v1144, %v1140
        %v1205 = vpack.c.b16 %v1145, %v1141
        %v1206 = vpack.c.b16 %v1150, %v1146
        %v1207 = vpack.c.b16 %v1151, %v1147
        %v1208 = vpack.c.b16 %v1152, %v1148
        %v1209 = vpack.c.b16 %v1153, %v1149
        %v1210 = vpack.c.b16 %v1158, %v1154
        %v1211 = vpack.c.b16 %v1159, %v1155
        %v1212 = vpack.c.b16 %v1160, %v1156
        %v1213 = vpack.c.b16 %v1161, %v1157
        %v1214 = vpack.c.b16 %v1166, %v1162
        %v1215 = vpack.c.b16 %v1167, %v1163
        %v1216 = vpack.c.b16 %v1168, %v1164
        %v1217 = vpack.c.b16 %v1169, %v1165
        %v1218 = vpack.c.b16 %v1174, %v1170
        %v1219 = vpack.c.b16 %v1175, %v1171
        %v1220 = vpack.c.b16 %v1176, %v1172
        %v1221 = vpack.c.b16 %v1177, %v1173
        %v1222 = vpack.c.b16 %v1182, %v1178
        %v1223 = vpack.c.b16 %v1183, %v1179
        %v1224 = vpack.c.b16 %v1184, %v1180
        %v1225 = vpack.c.b16 %v1185, %v1181
        %v1226 = vpack.c.b16 %v1190, %v1186
        %v1227 = vpack.c.b16 %v1191, %v1187
        %v1228 = vpack.c.b16 %v1192, %v1188
        %v1229 = vpack.c.b16 %v1193, %v1189
        %v1230 = vpack.c.b16 %v1198, %v1194
        %v1231 = vpack.c.b16 %v1199, %v1195
        %v1232 = vpack.c.b16 %v1200, %v1196
        %v1233 = vpack.c.b16 %v1201, %v1197
        %1266 = vmatprep.subr.bf16.mxu0 %v1203
        %1267 = vmatpush1.bf16.msra.mxu0 %v1202
        %1268 = vmatprep.subr.bf16.mxu0 %v1207
        %1269 = vmatpush1.bf16.msra.mxu0 %v1206
        %1270 = vmatprep.subr.bf16.mxu0 %v1211
        %1271 = vmatpush1.bf16.msra.mxu0 %v1210
        %1272 = vmatprep.subr.bf16.mxu0 %v1215
        %1273 = vmatpush1.bf16.msra.mxu0 %v1214
        %1274 = vmatprep.subr.bf16.mxu0 %v1219
        %1275 = vmatpush1.bf16.msra.mxu0 %v1218
        %1276 = vmatprep.subr.bf16.mxu0 %v1223
        %1277 = vmatpush1.bf16.msra.mxu0 %v1222
        %1278 = vmatprep.subr.bf16.mxu0 %v1227
        %1279 = vmatpush1.bf16.msra.mxu0 %v1226
        %1280 = vmatprep.subr.bf16.mxu0 %v1231
        %1281 = vmatpush1.bf16.msra.mxu0 %v1230
        %1282 = vmatprep.subr.bf16.mxu0 0
        %1283 = vmatpush1.bf16.msra.mxu0 0
        %1284 = vmatprep.subr.bf16.mxu0 0
        %1285 = vmatpush1.bf16.msra.mxu0 0
        %1286 = vmatprep.subr.bf16.mxu0 0
        %1287 = vmatpush1.bf16.msra.mxu0 0
        %1288 = vmatprep.subr.bf16.mxu0 0
        %1289 = vmatpush1.bf16.msra.mxu0 0
        %1290 = vmatprep.subr.bf16.mxu0 0
        %1291 = vmatpush1.bf16.msra.mxu0 0
        %1292 = vmatprep.subr.bf16.mxu0 0
        %1293 = vmatpush1.bf16.msra.mxu0 0
        %1294 = vmatprep.subr.bf16.mxu0 0
        %1295 = vmatpush1.bf16.msra.mxu0 0
        %1296 = vmatprep.subr.bf16.mxu0 0
        %1297 = vmatpush1.bf16.msra.mxu0 0
        %1298 = vmatprep.mubr.bf16.mxu0 0
        %1299 = vmatmul.mubr.bf16.gmra.mrb[0].mxu0 %v1105
        %v1300 = vpop.f32.mrb[0].mxu0
        %v1301 = vadd.f32 0.0, %v1300
        %v1302 = vpop.f32.mrb[0].mxu0
        %v1303 = vadd.f32 0.0, %v1302
        %v1304 = vpop.f32.mrb[0].mxu0
        %v1305 = vpop.f32.mrb[0].mxu0
        %1306 = vdwg.mxu0
        %1307 = vmatprep.subr.bf16.mxu0 %v1205
        %1308 = vmatpush1.bf16.msra.mxu0 %v1204
        %1309 = vmatprep.subr.bf16.mxu0 %v1209
        %1310 = vmatpush1.bf16.msra.mxu0 %v1208
        %1311 = vmatprep.subr.bf16.mxu0 %v1213
        %1312 = vmatpush1.bf16.msra.mxu0 %v1212
        %1313 = vmatprep.subr.bf16.mxu0 %v1217
        %1314 = vmatpush1.bf16.msra.mxu0 %v1216
        %1315 = vmatprep.subr.bf16.mxu0 %v1221
        %1316 = vmatpush1.bf16.msra.mxu0 %v1220
        %1317 = vmatprep.subr.bf16.mxu0 %v1225
        %1318 = vmatpush1.bf16.msra.mxu0 %v1224
        %1319 = vmatprep.subr.bf16.mxu0 %v1229
        %1320 = vmatpush1.bf16.msra.mxu0 %v1228
        %1321 = vmatprep.subr.bf16.mxu0 %v1233
        %1322 = vmatpush1.bf16.msra.mxu0 %v1232
        %1323 = vmatprep.subr.bf16.mxu0 0
        %1324 = vmatpush1.bf16.msra.mxu0 0
        %1325 = vmatprep.subr.bf16.mxu0 0
        %1326 = vmatpush1.bf16.msra.mxu0 0
        %1327 = vmatprep.subr.bf16.mxu0 0
        %1328 = vmatpush1.bf16.msra.mxu0 0
        %1329 = vmatprep.subr.bf16.mxu0 0
        %1330 = vmatpush1.bf16.msra.mxu0 0
        %1331 = vmatprep.subr.bf16.mxu0 0
        %1332 = vmatpush1.bf16.msra.mxu0 0
        %1333 = vmatprep.subr.bf16.mxu0 0
        %1334 = vmatpush1.bf16.msra.mxu0 0
        %1335 = vmatprep.subr.bf16.mxu0 0
        %1336 = vmatpush1.bf16.msra.mxu0 0
        %1337 = vmatprep.subr.bf16.mxu0 0
        %1338 = vmatpush1.bf16.msra.mxu0 0
        %1339 = vmatprep.mubr.bf16.mxu0 0
        %1340 = vmatmul.mubr.bf16.gmra.mrb[0].mxu0 %v1105
        %v1341 = vpop.f32.mrb[0].mxu0
        %v1342 = vadd.f32 0.0, %v1341
        %v1343 = vpop.f32.mrb[0].mxu0
        %v1344 = vadd.f32 0.0, %v1343
        %v1345 = vpop.f32.mrb[0].mxu0
        %v1346 = vpop.f32.mrb[0].mxu0
        %1347 = vdwg.mxu0
        %v1380 = vunpack.c.l.b16 %v743
        %v1381 = vunpack.c.h.b16 %v743
        %v1382 = vunpack.c.l.b16 %v744
        %v1383 = vunpack.c.h.b16 %v744
        %v1384 = vunpack.c.l.b16 %v745
        %v1385 = vunpack.c.h.b16 %v745
        %v1386 = vunpack.c.l.b16 %v746
        %v1387 = vunpack.c.h.b16 %v746
        %v1388 = vunpack.c.l.b16 %v747
        %v1389 = vunpack.c.h.b16 %v747
        %v1390 = vunpack.c.l.b16 %v748
        %v1391 = vunpack.c.h.b16 %v748
        %v1392 = vunpack.c.l.b16 %v749
        %v1393 = vunpack.c.h.b16 %v749
        %v1394 = vunpack.c.l.b16 %v750
        %v1395 = vunpack.c.h.b16 %v750
        %v1396 = vunpack.c.l.b16 %v751
        %v1397 = vunpack.c.h.b16 %v751
        %v1398 = vunpack.c.l.b16 %v752
        %v1399 = vunpack.c.h.b16 %v752
        %v1400 = vunpack.c.l.b16 %v753
        %v1401 = vunpack.c.h.b16 %v753
        %v1402 = vunpack.c.l.b16 %v754
        %v1403 = vunpack.c.h.b16 %v754
        %v1404 = vunpack.c.l.b16 %v755
        %v1405 = vunpack.c.h.b16 %v755
        %v1406 = vunpack.c.l.b16 %v756
        %v1407 = vunpack.c.h.b16 %v756
        %v1408 = vunpack.c.l.b16 %v757
        %v1409 = vunpack.c.h.b16 %v757
        %v1410 = vunpack.c.l.b16 %v758
        %v1411 = vunpack.c.h.b16 %v758
        %v1412 = vunpack.c.l.b16 %v759
        %v1413 = vunpack.c.h.b16 %v759
        %v1414 = vunpack.c.l.b16 %v760
        %v1415 = vunpack.c.h.b16 %v760
        %v1416 = vunpack.c.l.b16 %v761
        %v1417 = vunpack.c.h.b16 %v761
        %v1418 = vunpack.c.l.b16 %v762
        %v1419 = vunpack.c.h.b16 %v762
        %v1420 = vunpack.c.l.b16 %v763
        %v1421 = vunpack.c.h.b16 %v763
        %v1422 = vunpack.c.l.b16 %v764
        %v1423 = vunpack.c.h.b16 %v764
        %v1424 = vunpack.c.l.b16 %v765
        %v1425 = vunpack.c.h.b16 %v765
        %v1426 = vunpack.c.l.b16 %v766
        %v1427 = vunpack.c.h.b16 %v766
        %v1428 = vunpack.c.l.b16 %v767
        %v1429 = vunpack.c.h.b16 %v767
        %v1430 = vunpack.c.l.b16 %v768
        %v1431 = vunpack.c.h.b16 %v768
        %v1432 = vunpack.c.l.b16 %v769
        %v1433 = vunpack.c.h.b16 %v769
        %v1434 = vunpack.c.l.b16 %v770
        %v1435 = vunpack.c.h.b16 %v770
        %v1436 = vunpack.c.l.b16 %v771
        %v1437 = vunpack.c.h.b16 %v771
        %v1438 = vunpack.c.l.b16 %v772
        %v1439 = vunpack.c.h.b16 %v772
        %v1440 = vunpack.c.l.b16 %v773
        %v1441 = vunpack.c.h.b16 %v773
        %v1442 = vunpack.c.l.b16 %v774
        %v1443 = vunpack.c.h.b16 %v774
        %v1444 = vpack.c.b16 %v1384, %v1380
        %v1445 = vpack.c.b16 %v1385, %v1381
        %v1446 = vpack.c.b16 %v1386, %v1382
        %v1447 = vpack.c.b16 %v1387, %v1383
        %v1448 = vpack.c.b16 %v1392, %v1388
        %v1449 = vpack.c.b16 %v1393, %v1389
        %v1450 = vpack.c.b16 %v1394, %v1390
        %v1451 = vpack.c.b16 %v1395, %v1391
        %v1452 = vpack.c.b16 %v1400, %v1396
        %v1453 = vpack.c.b16 %v1401, %v1397
        %v1454 = vpack.c.b16 %v1402, %v1398
        %v1455 = vpack.c.b16 %v1403, %v1399
        %v1456 = vpack.c.b16 %v1408, %v1404
        %v1457 = vpack.c.b16 %v1409, %v1405
        %v1458 = vpack.c.b16 %v1410, %v1406
        %v1459 = vpack.c.b16 %v1411, %v1407
        %v1460 = vpack.c.b16 %v1416, %v1412
        %v1461 = vpack.c.b16 %v1417, %v1413
        %v1462 = vpack.c.b16 %v1418, %v1414
        %v1463 = vpack.c.b16 %v1419, %v1415
        %v1464 = vpack.c.b16 %v1424, %v1420
        %v1465 = vpack.c.b16 %v1425, %v1421
        %v1466 = vpack.c.b16 %v1426, %v1422
        %v1467 = vpack.c.b16 %v1427, %v1423
        %v1468 = vpack.c.b16 %v1432, %v1428
        %v1469 = vpack.c.b16 %v1433, %v1429
        %v1470 = vpack.c.b16 %v1434, %v1430
        %v1471 = vpack.c.b16 %v1435, %v1431
        %v1472 = vpack.c.b16 %v1440, %v1436
        %v1473 = vpack.c.b16 %v1441, %v1437
        %v1474 = vpack.c.b16 %v1442, %v1438
        %v1475 = vpack.c.b16 %v1443, %v1439
        %1508 = vmatprep.subr.bf16.mxu0 %v1445
        %1509 = vmatpush1.bf16.msra.mxu0 %v1444
        %1510 = vmatprep.subr.bf16.mxu0 %v1449
        %1511 = vmatpush1.bf16.msra.mxu0 %v1448
        %1512 = vmatprep.subr.bf16.mxu0 %v1453
        %1513 = vmatpush1.bf16.msra.mxu0 %v1452
        %1514 = vmatprep.subr.bf16.mxu0 %v1457
        %1515 = vmatpush1.bf16.msra.mxu0 %v1456
        %1516 = vmatprep.subr.bf16.mxu0 %v1461
        %1517 = vmatpush1.bf16.msra.mxu0 %v1460
        %1518 = vmatprep.subr.bf16.mxu0 %v1465
        %1519 = vmatpush1.bf16.msra.mxu0 %v1464
        %1520 = vmatprep.subr.bf16.mxu0 %v1469
        %1521 = vmatpush1.bf16.msra.mxu0 %v1468
        %1522 = vmatprep.subr.bf16.mxu0 %v1473
        %1523 = vmatpush1.bf16.msra.mxu0 %v1472
        %1524 = vmatprep.subr.bf16.mxu0 0
        %1525 = vmatpush1.bf16.msra.mxu0 0
        %1526 = vmatprep.subr.bf16.mxu0 0
        %1527 = vmatpush1.bf16.msra.mxu0 0
        %1528 = vmatprep.subr.bf16.mxu0 0
        %1529 = vmatpush1.bf16.msra.mxu0 0
        %1530 = vmatprep.subr.bf16.mxu0 0
        %1531 = vmatpush1.bf16.msra.mxu0 0
        %1532 = vmatprep.subr.bf16.mxu0 0
        %1533 = vmatpush1.bf16.msra.mxu0 0
        %1534 = vmatprep.subr.bf16.mxu0 0
        %1535 = vmatpush1.bf16.msra.mxu0 0
        %1536 = vmatprep.subr.bf16.mxu0 0
        %1537 = vmatpush1.bf16.msra.mxu0 0
        %1538 = vmatprep.subr.bf16.mxu0 0
        %1539 = vmatpush1.bf16.msra.mxu0 0
        %1540 = vmatprep.mubr.bf16.mxu0 0
        %1541 = vmatmul.mubr.bf16.gmra.mrb[0].mxu0 %v1104
        %v1542 = vpop.f32.mrb[0].mxu0
        %v1543 = vadd.f32 %v1301, %v1542
        %v1544 = vpop.f32.mrb[0].mxu0
        %v1545 = vadd.f32 %v1303, %v1544
        %v1546 = vpop.f32.mrb[0].mxu0
        %v1547 = vpop.f32.mrb[0].mxu0
        %1548 = vdwg.mxu0
        %1549 = vmatprep.subr.bf16.mxu0 %v1447
        %1550 = vmatpush1.bf16.msra.mxu0 %v1446
        %1551 = vmatprep.subr.bf16.mxu0 %v1451
        %1552 = vmatpush1.bf16.msra.mxu0 %v1450
        %1553 = vmatprep.subr.bf16.mxu0 %v1455
        %1554 = vmatpush1.bf16.msra.mxu0 %v1454
        %1555 = vmatprep.subr.bf16.mxu0 %v1459
        %1556 = vmatpush1.bf16.msra.mxu0 %v1458
        %1557 = vmatprep.subr.bf16.mxu0 %v1463
        %1558 = vmatpush1.bf16.msra.mxu0 %v1462
        %1559 = vmatprep.subr.bf16.mxu0 %v1467
        %1560 = vmatpush1.bf16.msra.mxu0 %v1466
        %1561 = vmatprep.subr.bf16.mxu0 %v1471
        %1562 = vmatpush1.bf16.msra.mxu0 %v1470
        %1563 = vmatprep.subr.bf16.mxu0 %v1475
        %1564 = vmatpush1.bf16.msra.mxu0 %v1474
        %1565 = vmatprep.subr.bf16.mxu0 0
        %1566 = vmatpush1.bf16.msra.mxu0 0
        %1567 = vmatprep.subr.bf16.mxu0 0
        %1568 = vmatpush1.bf16.msra.mxu0 0
        %1569 = vmatprep.subr.bf16.mxu0 0
        %1570 = vmatpush1.bf16.msra.mxu0 0
        %1571 = vmatprep.subr.bf16.mxu0 0
        %1572 = vmatpush1.bf16.msra.mxu0 0
        %1573 = vmatprep.subr.bf16.mxu0 0
        %1574 = vmatpush1.bf16.msra.mxu0 0
        %1575 = vmatprep.subr.bf16.mxu0 0
        %1576 = vmatpush1.bf16.msra.mxu0 0
        %1577 = vmatprep.subr.bf16.mxu0 0
        %1578 = vmatpush1.bf16.msra.mxu0 0
        %1579 = vmatprep.subr.bf16.mxu0 0
        %1580 = vmatpush1.bf16.msra.mxu0 0
        %1581 = vmatprep.mubr.bf16.mxu0 0
        %1582 = vmatmul.mubr.bf16.gmra.mrb[0].mxu0 %v1104
        %v1583 = vpop.f32.mrb[0].mxu0
        %v1584 = vadd.f32 %v1342, %v1583
        %v1585 = vpop.f32.mrb[0].mxu0
        %v1586 = vadd.f32 %v1344, %v1585
        %v1587 = vpop.f32.mrb[0].mxu0
        %v1588 = vpop.f32.mrb[0].mxu0
        %1589 = vdwg.mxu0
        %v1590 = vadd.f32 %v1543, %v812
        %v1591 = vadd.f32 %v1545, %v816
        %v1592 = vadd.f32 %v1584, %v820
        %v1593 = vadd.f32 %v1586, %v824
        %v1594 = vxor.u32 %v1590, 2147483648
        %v1595 = vxor.u32 %v1591, 2147483648
        %v1596 = vxor.u32 %v1592, 2147483648
        %v1597 = vmul.f32 %v1594, 1.442695
        %v1598 = vpow.pop %v1597
        %v1599 = vmul.f32 %v1595, 1.442695
        %v1600 = vpow.pop %v1599
        %v1601 = vmul.f32 %v1596, 1.442695
        %v1602 = vpow.pop %v1601
        %v1603 = vadd.f32 %v1598, 1.0
        %v1604 = vadd.f32 %v1600, 1.0
        %v1605 = vadd.f32 %v1602, 1.0
        %v1606 = vrcp.pop %v1603
        %v1607 = vmul.f32 1.0, %v1606
        %v1608 = vrcp.pop %v1604
        %v1609 = vmul.f32 1.0, %v1608
        %v1610 = vrcp.pop %v1605
        %v1611 = vmul.f32 1.0, %v1610
        %v1612 = vtanh.pop %v1593
        %v1613 = vmul.f32 %v1609, %v832
        %v1614 = vmul.f32 %v1607, %v1612
        %v1615 = vadd.f32 %v1613, %v1614
        %v1616 = vtanh.pop %v1615
        %v1617 = vmul.f32 %v1611, %v1616
        %1618 = vmatprep.subr.bf16.mxu0 %v931
        %1619 = vmatpush1.bf16.msra.mxu0 %v930
        %1620 = vmatprep.subr.bf16.mxu0 %v935
        %1621 = vmatpush1.bf16.msra.mxu0 %v934
        %1622 = vmatprep.subr.bf16.mxu0 %v939
        %1623 = vmatpush1.bf16.msra.mxu0 %v938
        %1624 = vmatprep.subr.bf16.mxu0 %v943
        %1625 = vmatpush1.bf16.msra.mxu0 %v942
        %1626 = vmatprep.subr.bf16.mxu0 %v947
        %1627 = vmatpush1.bf16.msra.mxu0 %v946
        %1628 = vmatprep.subr.bf16.mxu0 %v951
        %1629 = vmatpush1.bf16.msra.mxu0 %v950
        %1630 = vmatprep.subr.bf16.mxu0 %v955
        %1631 = vmatpush1.bf16.msra.mxu0 %v954
        %1632 = vmatprep.subr.bf16.mxu0 %v959
        %1633 = vmatpush1.bf16.msra.mxu0 %v958
        %1634 = vmatprep.subr.bf16.mxu0 0
        %1635 = vmatpush1.bf16.msra.mxu0 0
        %1636 = vmatprep.subr.bf16.mxu0 0
        %1637 = vmatpush1.bf16.msra.mxu0 0
        %1638 = vmatprep.subr.bf16.mxu0 0
        %1639 = vmatpush1.bf16.msra.mxu0 0
        %1640 = vmatprep.subr.bf16.mxu0 0
        %1641 = vmatpush1.bf16.msra.mxu0 0
        %1642 = vmatprep.subr.bf16.mxu0 0
        %1643 = vmatpush1.bf16.msra.mxu0 0
        %1644 = vmatprep.subr.bf16.mxu0 0
        %1645 = vmatpush1.bf16.msra.mxu0 0
        %1646 = vmatprep.subr.bf16.mxu0 0
        %1647 = vmatpush1.bf16.msra.mxu0 0
        %1648 = vmatprep.subr.bf16.mxu0 0
        %1649 = vmatpush1.bf16.msra.mxu0 0
        %1650 = vmatprep.mubr.bf16.mxu0 0
        %1651 = vmatmul.mubr.bf16.gmra.mrb[0].mxu0 %v1104
        %v1652 = vpop.f32.mrb[0].mxu0
        %v1653 = vadd.f32 0.0, %v1652
        %v1654 = vpop.f32.mrb[0].mxu0
        %v1655 = vadd.f32 0.0, %v1654
        %v1656 = vpop.f32.mrb[0].mxu0
        %v1657 = vpop.f32.mrb[0].mxu0
        %1658 = vdwg.mxu0
        %1659 = vmatprep.subr.bf16.mxu0 %v933
        %1660 = vmatpush1.bf16.msra.mxu0 %v932
        %1661 = vmatprep.subr.bf16.mxu0 %v937
        %1662 = vmatpush1.bf16.msra.mxu0 %v936
        %1663 = vmatprep.subr.bf16.mxu0 %v941
        %1664 = vmatpush1.bf16.msra.mxu0 %v940
        %1665 = vmatprep.subr.bf16.mxu0 %v945
        %1666 = vmatpush1.bf16.msra.mxu0 %v944
        %1667 = vmatprep.subr.bf16.mxu0 %v949
        %1668 = vmatpush1.bf16.msra.mxu0 %v948
        %1669 = vmatprep.subr.bf16.mxu0 %v953
        %1670 = vmatpush1.bf16.msra.mxu0 %v952
        %1671 = vmatprep.subr.bf16.mxu0 %v957
        %1672 = vmatpush1.bf16.msra.mxu0 %v956
        %1673 = vmatprep.subr.bf16.mxu0 %v961
        %1674 = vmatpush1.bf16.msra.mxu0 %v960
        %1675 = vmatprep.subr.bf16.mxu0 0
        %1676 = vmatpush1.bf16.msra.mxu0 0
        %1677 = vmatprep.subr.bf16.mxu0 0
        %1678 = vmatpush1.bf16.msra.mxu0 0
        %1679 = vmatprep.subr.bf16.mxu0 0
        %1680 = vmatpush1.bf16.msra.mxu0 0
        %1681 = vmatprep.subr.bf16.mxu0 0
        %1682 = vmatpush1.bf16.msra.mxu0 0
        %1683 = vmatprep.subr.bf16.mxu0 0
        %1684 = vmatpush1.bf16.msra.mxu0 0
        %1685 = vmatprep.subr.bf16.mxu0 0
        %1686 = vmatpush1.bf16.msra.mxu0 0
        %1687 = vmatprep.subr.bf16.mxu0 0
        %1688 = vmatpush1.bf16.msra.mxu0 0
        %1689 = vmatprep.subr.bf16.mxu0 0
        %1690 = vmatpush1.bf16.msra.mxu0 0
        %1691 = vmatprep.mubr.bf16.mxu0 0
        %1692 = vmatmul.mubr.bf16.gmra.mrb[0].mxu0 %v1104
        %v1693 = vpop.f32.mrb[0].mxu0
        %v1694 = vadd.f32 0.0, %v1693
        %v1695 = vpop.f32.mrb[0].mxu0
        %v1696 = vadd.f32 0.0, %v1695
        %v1697 = vpop.f32.mrb[0].mxu0
        %v1698 = vpop.f32.mrb[0].mxu0
        %1699 = vdwg.mxu0
        %v1700 = vadd.f32 %v604, %v1653
        %v1701 = vadd.f32 %v606, %v1655
        %v1702 = vadd.f32 %v677, %v1694
        %v1703 = vadd.f32 %v679, %v1696
        %v1704 = vxor.u32 %v1700, 2147483648
        %v1705 = vxor.u32 %v1701, 2147483648
        %v1706 = vxor.u32 %v1702, 2147483648
        %v1707 = vmul.f32 %v1704, 1.442695
        %v1708 = vpow.pop %v1707
        %v1709 = vmul.f32 %v1705, 1.442695
        %v1710 = vpow.pop %v1709
        %v1711 = vmul.f32 %v1706, 1.442695
        %v1712 = vpow.pop %v1711
        %v1713 = vadd.f32 %v1708, 1.0
        %v1714 = vadd.f32 %v1710, 1.0
        %v1715 = vadd.f32 %v1712, 1.0
        %v1716 = vrcp.pop %v1713
        %v1717 = vmul.f32 1.0, %v1716
        %v1718 = vrcp.pop %v1714
        %v1719 = vmul.f32 1.0, %v1718
        %v1720 = vrcp.pop %v1715
        %v1721 = vmul.f32 1.0, %v1720
        %v1722 = vtanh.pop %v1703
        %v1723 = vmul.f32 %v1719, %v1101
        %v1724 = vmul.f32 %v1717, %v1722
        %v1725 = vadd.f32 %v1723, %v1724
        %v1726 = vtanh.pop %v1725
        %v1727 = vmul.f32 %v1721, %v1726
        %v1728 = vpack.c.bf16 %v1727, %v1727
        %v1729 = vpack.c.bf16 %v1617, %v1617
        %1730 = vmatprep.subr.bf16.mxu0 %v1203
        %1731 = vmatpush1.bf16.msra.mxu0 %v1202
        %1732 = vmatprep.subr.bf16.mxu0 %v1207
        %1733 = vmatpush1.bf16.msra.mxu0 %v1206
        %1734 = vmatprep.subr.bf16.mxu0 %v1211
        %1735 = vmatpush1.bf16.msra.mxu0 %v1210
        %1736 = vmatprep.subr.bf16.mxu0 %v1215
        %1737 = vmatpush1.bf16.msra.mxu0 %v1214
        %1738 = vmatprep.subr.bf16.mxu0 %v1219
        %1739 = vmatpush1.bf16.msra.mxu0 %v1218
        %1740 = vmatprep.subr.bf16.mxu0 %v1223
        %1741 = vmatpush1.bf16.msra.mxu0 %v1222
        %1742 = vmatprep.subr.bf16.mxu0 %v1227
        %1743 = vmatpush1.bf16.msra.mxu0 %v1226
        %1744 = vmatprep.subr.bf16.mxu0 %v1231
        %1745 = vmatpush1.bf16.msra.mxu0 %v1230
        %1746 = vmatprep.subr.bf16.mxu0 0
        %1747 = vmatpush1.bf16.msra.mxu0 0
        %1748 = vmatprep.subr.bf16.mxu0 0
        %1749 = vmatpush1.bf16.msra.mxu0 0
        %1750 = vmatprep.subr.bf16.mxu0 0
        %1751 = vmatpush1.bf16.msra.mxu0 0
        %1752 = vmatprep.subr.bf16.mxu0 0
        %1753 = vmatpush1.bf16.msra.mxu0 0
        %1754 = vmatprep.subr.bf16.mxu0 0
        %1755 = vmatpush1.bf16.msra.mxu0 0
        %1756 = vmatprep.subr.bf16.mxu0 0
        %1757 = vmatpush1.bf16.msra.mxu0 0
        %1758 = vmatprep.subr.bf16.mxu0 0
        %1759 = vmatpush1.bf16.msra.mxu0 0
        %1760 = vmatprep.subr.bf16.mxu0 0
        %1761 = vmatpush1.bf16.msra.mxu0 0
        %1762 = vmatprep.mubr.bf16.mxu0 0
        %1763 = vmatmul.mubr.bf16.gmra.mrb[0].mxu0 %v1729
        %v1764 = vpop.f32.mrb[0].mxu0
        %v1765 = vadd.f32 0.0, %v1764
        %v1766 = vpop.f32.mrb[0].mxu0
        %v1767 = vadd.f32 0.0, %v1766
        %v1768 = vpop.f32.mrb[0].mxu0
        %v1769 = vpop.f32.mrb[0].mxu0
        %1770 = vdwg.mxu0
        %1771 = vmatprep.subr.bf16.mxu0 %v1205
        %1772 = vmatpush1.bf16.msra.mxu0 %v1204
        %1773 = vmatprep.subr.bf16.mxu0 %v1209
        %1774 = vmatpush1.bf16.msra.mxu0 %v1208
        %1775 = vmatprep.subr.bf16.mxu0 %v1213
        %1776 = vmatpush1.bf16.msra.mxu0 %v1212
        %1777 = vmatprep.subr.bf16.mxu0 %v1217
        %1778 = vmatpush1.bf16.msra.mxu0 %v1216
        %1779 = vmatprep.subr.bf16.mxu0 %v1221
        %1780 = vmatpush1.bf16.msra.mxu0 %v1220
        %1781 = vmatprep.subr.bf16.mxu0 %v1225
        %1782 = vmatpush1.bf16.msra.mxu0 %v1224
        %1783 = vmatprep.subr.bf16.mxu0 %v1229
        %1784 = vmatpush1.bf16.msra.mxu0 %v1228
        %1785 = vmatprep.subr.bf16.mxu0 %v1233
        %1786 = vmatpush1.bf16.msra.mxu0 %v1232
        %1787 = vmatprep.subr.bf16.mxu0 0
        %1788 = vmatpush1.bf16.msra.mxu0 0
        %1789 = vmatprep.subr.bf16.mxu0 0
        %1790 = vmatpush1.bf16.msra.mxu0 0
        %1791 = vmatprep.subr.bf16.mxu0 0
        %1792 = vmatpush1.bf16.msra.mxu0 0
        %1793 = vmatprep.subr.bf16.mxu0 0
        %1794 = vmatpush1.bf16.msra.mxu0 0
        %1795 = vmatprep.subr.bf16.mxu0 0
        %1796 = vmatpush1.bf16.msra.mxu0 0
        %1797 = vmatprep.subr.bf16.mxu0 0
        %1798 = vmatpush1.bf16.msra.mxu0 0
        %1799 = vmatprep.subr.bf16.mxu0 0
        %1800 = vmatpush1.bf16.msra.mxu0 0
        %1801 = vmatprep.subr.bf16.mxu0 0
        %1802 = vmatpush1.bf16.msra.mxu0 0
        %1803 = vmatprep.mubr.bf16.mxu0 0
        %1804 = vmatmul.mubr.bf16.gmra.mrb[0].mxu0 %v1729
        %v1805 = vpop.f32.mrb[0].mxu0
        %v1806 = vadd.f32 0.0, %v1805
        %v1807 = vpop.f32.mrb[0].mxu0
        %v1808 = vadd.f32 0.0, %v1807
        %v1809 = vpop.f32.mrb[0].mxu0
        %v1810 = vpop.f32.mrb[0].mxu0
        %1811 = vdwg.mxu0
        %1812 = vmatprep.subr.bf16.mxu0 %v1445
        %1813 = vmatpush1.bf16.msra.mxu0 %v1444
        %1814 = vmatprep.subr.bf16.mxu0 %v1449
        %1815 = vmatpush1.bf16.msra.mxu0 %v1448
        %1816 = vmatprep.subr.bf16.mxu0 %v1453
        %1817 = vmatpush1.bf16.msra.mxu0 %v1452
        %1818 = vmatprep.subr.bf16.mxu0 %v1457
        %1819 = vmatpush1.bf16.msra.mxu0 %v1456
        %1820 = vmatprep.subr.bf16.mxu0 %v1461
        %1821 = vmatpush1.bf16.msra.mxu0 %v1460
        %1822 = vmatprep.subr.bf16.mxu0 %v1465
        %1823 = vmatpush1.bf16.msra.mxu0 %v1464
        %1824 = vmatprep.subr.bf16.mxu0 %v1469
        %1825 = vmatpush1.bf16.msra.mxu0 %v1468
        %1826 = vmatprep.subr.bf16.mxu0 %v1473
        %1827 = vmatpush1.bf16.msra.mxu0 %v1472
        %1828 = vmatprep.subr.bf16.mxu0 0
        %1829 = vmatpush1.bf16.msra.mxu0 0
        %1830 = vmatprep.subr.bf16.mxu0 0
        %1831 = vmatpush1.bf16.msra.mxu0 0
        %1832 = vmatprep.subr.bf16.mxu0 0
        %1833 = vmatpush1.bf16.msra.mxu0 0
        %1834 = vmatprep.subr.bf16.mxu0 0
        %1835 = vmatpush1.bf16.msra.mxu0 0
        %1836 = vmatprep.subr.bf16.mxu0 0
        %1837 = vmatpush1.bf16.msra.mxu0 0
        %1838 = vmatprep.subr.bf16.mxu0 0
        %1839 = vmatpush1.bf16.msra.mxu0 0
        %1840 = vmatprep.subr.bf16.mxu0 0
        %1841 = vmatpush1.bf16.msra.mxu0 0
        %1842 = vmatprep.subr.bf16.mxu0 0
        %1843 = vmatpush1.bf16.msra.mxu0 0
        %1844 = vmatprep.mubr.bf16.mxu0 0
        %1845 = vmatmul.mubr.bf16.gmra.mrb[0].mxu0 %v1728
        %v1846 = vpop.f32.mrb[0].mxu0
        %v1847 = vadd.f32 %v1765, %v1846
        %v1848 = vpop.f32.mrb[0].mxu0
        %v1849 = vadd.f32 %v1767, %v1848
        %v1850 = vpop.f32.mrb[0].mxu0
        %v1851 = vpop.f32.mrb[0].mxu0
        %1852 = vdwg.mxu0
        %1853 = vmatprep.subr.bf16.mxu0 %v1447
        %1854 = vmatpush1.bf16.msra.mxu0 %v1446
        %1855 = vmatprep.subr.bf16.mxu0 %v1451
        %1856 = vmatpush1.bf16.msra.mxu0 %v1450
        %1857 = vmatprep.subr.bf16.mxu0 %v1455
        %1858 = vmatpush1.bf16.msra.mxu0 %v1454
        %1859 = vmatprep.subr.bf16.mxu0 %v1459
        %1860 = vmatpush1.bf16.msra.mxu0 %v1458
        %1861 = vmatprep.subr.bf16.mxu0 %v1463
        %1862 = vmatpush1.bf16.msra.mxu0 %v1462
        %1863 = vmatprep.subr.bf16.mxu0 %v1467
        %1864 = vmatpush1.bf16.msra.mxu0 %v1466
        %1865 = vmatprep.subr.bf16.mxu0 %v1471
        %1866 = vmatpush1.bf16.msra.mxu0 %v1470
        %1867 = vmatprep.subr.bf16.mxu0 %v1475
        %1868 = vmatpush1.bf16.msra.mxu0 %v1474
        %1869 = vmatprep.subr.bf16.mxu0 0
        %1870 = vmatpush1.bf16.msra.mxu0 0
        %1871 = vmatprep.subr.bf16.mxu0 0
        %1872 = vmatpush1.bf16.msra.mxu0 0
        %1873 = vmatprep.subr.bf16.mxu0 0
        %1874 = vmatpush1.bf16.msra.mxu0 0
        %1875 = vmatprep.subr.bf16.mxu0 0
        %1876 = vmatpush1.bf16.msra.mxu0 0
        %1877 = vmatprep.subr.bf16.mxu0 0
        %1878 = vmatpush1.bf16.msra.mxu0 0
        %1879 = vmatprep.subr.bf16.mxu0 0
        %1880 = vmatpush1.bf16.msra.mxu0 0
        %1881 = vmatprep.subr.bf16.mxu0 0
        %1882 = vmatpush1.bf16.msra.mxu0 0
        %1883 = vmatprep.subr.bf16.mxu0 0
        %1884 = vmatpush1.bf16.msra.mxu0 0
        %1885 = vmatprep.mubr.bf16.mxu0 0
        %1886 = vmatmul.mubr.bf16.gmra.mrb[0].mxu0 %v1728
        %v1887 = vpop.f32.mrb[0].mxu0
        %v1888 = vadd.f32 %v1806, %v1887
        %v1889 = vpop.f32.mrb[0].mxu0
        %v1890 = vadd.f32 %v1808, %v1889
        %v1891 = vpop.f32.mrb[0].mxu0
        %v1892 = vpop.f32.mrb[0].mxu0
        %1893 = vdwg.mxu0
        %v1894 = vadd.f32 %v1847, %v812
        %v1895 = vadd.f32 %v1849, %v816
        %v1896 = vadd.f32 %v1888, %v820
        %v1897 = vadd.f32 %v1890, %v824
        %v1898 = vxor.u32 %v1894, 2147483648
        %v1899 = vxor.u32 %v1895, 2147483648
        %v1900 = vxor.u32 %v1896, 2147483648
        %v1901 = vmul.f32 %v1898, 1.442695
        %v1902 = vpow.pop %v1901
        %v1903 = vmul.f32 %v1899, 1.442695
        %v1904 = vpow.pop %v1903
        %v1905 = vmul.f32 %v1900, 1.442695
        %v1906 = vpow.pop %v1905
        %v1907 = vadd.f32 %v1902, 1.0
        %v1908 = vadd.f32 %v1904, 1.0
        %v1909 = vadd.f32 %v1906, 1.0
        %v1910 = vrcp.pop %v1907
        %v1911 = vmul.f32 1.0, %v1910
        %v1912 = vrcp.pop %v1908
        %v1913 = vmul.f32 1.0, %v1912
        %v1914 = vrcp.pop %v1909
        %v1915 = vmul.f32 1.0, %v1914
        %v1916 = vtanh.pop %v1897
        %v1917 = vmul.f32 %v1913, %v1615
        %v1918 = vmul.f32 %v1911, %v1916
        %v1919 = vadd.f32 %v1917, %v1918
        %v1920 = vtanh.pop %v1919
        %v1921 = vmul.f32 %v1915, %v1920
        %1922 = vmatprep.subr.bf16.mxu0 %v931
        %1923 = vmatpush1.bf16.msra.mxu0 %v930
        %1924 = vmatprep.subr.bf16.mxu0 %v935
        %1925 = vmatpush1.bf16.msra.mxu0 %v934
        %1926 = vmatprep.subr.bf16.mxu0 %v939
        %1927 = vmatpush1.bf16.msra.mxu0 %v938
        %1928 = vmatprep.subr.bf16.mxu0 %v943
        %1929 = vmatpush1.bf16.msra.mxu0 %v942
        %1930 = vmatprep.subr.bf16.mxu0 %v947
        %1931 = vmatpush1.bf16.msra.mxu0 %v946
        %1932 = vmatprep.subr.bf16.mxu0 %v951
        %1933 = vmatpush1.bf16.msra.mxu0 %v950
        %1934 = vmatprep.subr.bf16.mxu0 %v955
        %1935 = vmatpush1.bf16.msra.mxu0 %v954
        %1936 = vmatprep.subr.bf16.mxu0 %v959
        %1937 = vmatpush1.bf16.msra.mxu0 %v958
        %1938 = vmatprep.subr.bf16.mxu0 0
        %1939 = vmatpush1.bf16.msra.mxu0 0
        %1940 = vmatprep.subr.bf16.mxu0 0
        %1941 = vmatpush1.bf16.msra.mxu0 0
        %1942 = vmatprep.subr.bf16.mxu0 0
        %1943 = vmatpush1.bf16.msra.mxu0 0
        %1944 = vmatprep.subr.bf16.mxu0 0
        %1945 = vmatpush1.bf16.msra.mxu0 0
        %1946 = vmatprep.subr.bf16.mxu0 0
        %1947 = vmatpush1.bf16.msra.mxu0 0
        %1948 = vmatprep.subr.bf16.mxu0 0
        %1949 = vmatpush1.bf16.msra.mxu0 0
        %1950 = vmatprep.subr.bf16.mxu0 0
        %1951 = vmatpush1.bf16.msra.mxu0 0
        %1952 = vmatprep.subr.bf16.mxu0 0
        %1953 = vmatpush1.bf16.msra.mxu0 0
        %1954 = vmatprep.mubr.bf16.mxu0 0
        %1955 = vmatmul.mubr.bf16.gmra.mrb[0].mxu0 %v1728
        %v1956 = vpop.f32.mrb[0].mxu0
        %v1957 = vadd.f32 0.0, %v1956
        %v1958 = vpop.f32.mrb[0].mxu0
        %v1959 = vadd.f32 0.0, %v1958
        %v1960 = vpop.f32.mrb[0].mxu0
        %v1961 = vpop.f32.mrb[0].mxu0
        %1962 = vdwg.mxu0
        %1963 = vmatprep.subr.bf16.mxu0 %v933
        %1964 = vmatpush1.bf16.msra.mxu0 %v932
        %1965 = vmatprep.subr.bf16.mxu0 %v937
        %1966 = vmatpush1.bf16.msra.mxu0 %v936
        %1967 = vmatprep.subr.bf16.mxu0 %v941
        %1968 = vmatpush1.bf16.msra.mxu0 %v940
        %1969 = vmatprep.subr.bf16.mxu0 %v945
        %1970 = vmatpush1.bf16.msra.mxu0 %v944
        %1971 = vmatprep.subr.bf16.mxu0 %v949
        %1972 = vmatpush1.bf16.msra.mxu0 %v948
        %1973 = vmatprep.subr.bf16.mxu0 %v953
        %1974 = vmatpush1.bf16.msra.mxu0 %v952
        %1975 = vmatprep.subr.bf16.mxu0 %v957
        %1976 = vmatpush1.bf16.msra.mxu0 %v956
        %1977 = vmatprep.subr.bf16.mxu0 %v961
        %1978 = vmatpush1.bf16.msra.mxu0 %v960
        %1979 = vmatprep.subr.bf16.mxu0 0
        %1980 = vmatpush1.bf16.msra.mxu0 0
        %1981 = vmatprep.subr.bf16.mxu0 0
        %1982 = vmatpush1.bf16.msra.mxu0 0
        %1983 = vmatprep.subr.bf16.mxu0 0
        %1984 = vmatpush1.bf16.msra.mxu0 0
        %1985 = vmatprep.subr.bf16.mxu0 0
        %1986 = vmatpush1.bf16.msra.mxu0 0
        %1987 = vmatprep.subr.bf16.mxu0 0
        %1988 = vmatpush1.bf16.msra.mxu0 0
        %1989 = vmatprep.subr.bf16.mxu0 0
        %1990 = vmatpush1.bf16.msra.mxu0 0
        %1991 = vmatprep.subr.bf16.mxu0 0
        %1992 = vmatpush1.bf16.msra.mxu0 0
        %1993 = vmatprep.subr.bf16.mxu0 0
        %1994 = vmatpush1.bf16.msra.mxu0 0
        %1995 = vmatprep.mubr.bf16.mxu0 0
        %1996 = vmatmul.mubr.bf16.gmra.mrb[0].mxu0 %v1728
        %v1997 = vpop.f32.mrb[0].mxu0
        %v1998 = vadd.f32 0.0, %v1997
        %v1999 = vpop.f32.mrb[0].mxu0
        %v2000 = vadd.f32 0.0, %v1999
        %v2001 = vpop.f32.mrb[0].mxu0
        %v2002 = vpop.f32.mrb[0].mxu0
        %2003 = vdwg.mxu0
        %v2004 = vadd.f32 %v610, %v1957
        %v2005 = vadd.f32 %v612, %v1959
        %v2006 = vadd.f32 %v683, %v1998
        %v2007 = vadd.f32 %v685, %v2000
        %v2008 = vxor.u32 %v2004, 2147483648
        %v2009 = vxor.u32 %v2005, 2147483648
        %v2010 = vxor.u32 %v2006, 2147483648
        %v2011 = vmul.f32 %v2008, 1.442695
        %v2012 = vpow.pop %v2011
        %v2013 = vmul.f32 %v2009, 1.442695
        %v2014 = vpow.pop %v2013
        %v2015 = vmul.f32 %v2010, 1.442695
        %v2016 = vpow.pop %v2015
        %v2017 = vadd.f32 %v2012, 1.0
        %v2018 = vadd.f32 %v2014, 1.0
        %v2019 = vadd.f32 %v2016, 1.0
        %v2020 = vrcp.pop %v2017
        %v2021 = vmul.f32 1.0, %v2020
        %v2022 = vrcp.pop %v2018
        %v2023 = vmul.f32 1.0, %v2022
        %v2024 = vrcp.pop %v2019
        %v2025 = vmul.f32 1.0, %v2024
        %v2026 = vtanh.pop %v2007
        %v2027 = vmul.f32 %v2023, %v1725
        %v2028 = vmul.f32 %v2021, %v2026
        %v2029 = vadd.f32 %v2027, %v2028
        %v2030 = vtanh.pop %v2029
        %v2031 = vmul.f32 %v2025, %v2030
        %v2032 = vpack.c.bf16 %v2031, %v2031
        %v2033 = vpack.c.bf16 %v1921, %v1921
        %2034 = vmatprep.subr.bf16.mxu0 %v1203
        %2035 = vmatpush1.bf16.msra.mxu0 %v1202
        %2036 = vmatprep.subr.bf16.mxu0 %v1207
        %2037 = vmatpush1.bf16.msra.mxu0 %v1206
        %2038 = vmatprep.subr.bf16.mxu0 %v1211
        %2039 = vmatpush1.bf16.msra.mxu0 %v1210
        %2040 = vmatprep.subr.bf16.mxu0 %v1215
        %2041 = vmatpush1.bf16.msra.mxu0 %v1214
        %2042 = vmatprep.subr.bf16.mxu0 %v1219
        %2043 = vmatpush1.bf16.msra.mxu0 %v1218
        %2044 = vmatprep.subr.bf16.mxu0 %v1223
        %2045 = vmatpush1.bf16.msra.mxu0 %v1222
        %2046 = vmatprep.subr.bf16.mxu0 %v1227
        %2047 = vmatpush1.bf16.msra.mxu0 %v1226
        %2048 = vmatprep.subr.bf16.mxu0 %v1231
        %2049 = vmatpush1.bf16.msra.mxu0 %v1230
        %2050 = vmatprep.subr.bf16.mxu0 0
        %2051 = vmatpush1.bf16.msra.mxu0 0
        %2052 = vmatprep.subr.bf16.mxu0 0
        %2053 = vmatpush1.bf16.msra.mxu0 0
        %2054 = vmatprep.subr.bf16.mxu0 0
        %2055 = vmatpush1.bf16.msra.mxu0 0
        %2056 = vmatprep.subr.bf16.mxu0 0
        %2057 = vmatpush1.bf16.msra.mxu0 0
        %2058 = vmatprep.subr.bf16.mxu0 0
        %2059 = vmatpush1.bf16.msra.mxu0 0
        %2060 = vmatprep.subr.bf16.mxu0 0
        %2061 = vmatpush1.bf16.msra.mxu0 0
        %2062 = vmatprep.subr.bf16.mxu0 0
        %2063 = vmatpush1.bf16.msra.mxu0 0
        %2064 = vmatprep.subr.bf16.mxu0 0
        %2065 = vmatpush1.bf16.msra.mxu0 0
        %2066 = vmatprep.mubr.bf16.mxu0 0
        %2067 = vmatmul.mubr.bf16.gmra.mrb[0].mxu0 %v2033
        %v2068 = vpop.f32.mrb[0].mxu0
        %v2069 = vadd.f32 0.0, %v2068
        %v2070 = vpop.f32.mrb[0].mxu0
        %v2071 = vadd.f32 0.0, %v2070
        %v2072 = vpop.f32.mrb[0].mxu0
        %v2073 = vpop.f32.mrb[0].mxu0
        %2074 = vdwg.mxu0
        %2075 = vmatprep.subr.bf16.mxu0 %v1205
        %2076 = vmatpush1.bf16.msra.mxu0 %v1204
        %2077 = vmatprep.subr.bf16.mxu0 %v1209
        %2078 = vmatpush1.bf16.msra.mxu0 %v1208
        %2079 = vmatprep.subr.bf16.mxu0 %v1213
        %2080 = vmatpush1.bf16.msra.mxu0 %v1212
        %2081 = vmatprep.subr.bf16.mxu0 %v1217
        %2082 = vmatpush1.bf16.msra.mxu0 %v1216
        %2083 = vmatprep.subr.bf16.mxu0 %v1221
        %2084 = vmatpush1.bf16.msra.mxu0 %v1220
        %2085 = vmatprep.subr.bf16.mxu0 %v1225
        %2086 = vmatpush1.bf16.msra.mxu0 %v1224
        %2087 = vmatprep.subr.bf16.mxu0 %v1229
        %2088 = vmatpush1.bf16.msra.mxu0 %v1228
        %2089 = vmatprep.subr.bf16.mxu0 %v1233
        %2090 = vmatpush1.bf16.msra.mxu0 %v1232
        %2091 = vmatprep.subr.bf16.mxu0 0
        %2092 = vmatpush1.bf16.msra.mxu0 0
        %2093 = vmatprep.subr.bf16.mxu0 0
        %2094 = vmatpush1.bf16.msra.mxu0 0
        %2095 = vmatprep.subr.bf16.mxu0 0
        %2096 = vmatpush1.bf16.msra.mxu0 0
        %2097 = vmatprep.subr.bf16.mxu0 0
        %2098 = vmatpush1.bf16.msra.mxu0 0
        %2099 = vmatprep.subr.bf16.mxu0 0
        %2100 = vmatpush1.bf16.msra.mxu0 0
        %2101 = vmatprep.subr.bf16.mxu0 0
        %2102 = vmatpush1.bf16.msra.mxu0 0
        %2103 = vmatprep.subr.bf16.mxu0 0
        %2104 = vmatpush1.bf16.msra.mxu0 0
        %2105 = vmatprep.subr.bf16.mxu0 0
        %2106 = vmatpush1.bf16.msra.mxu0 0
        %2107 = vmatprep.mubr.bf16.mxu0 0
        %2108 = vmatmul.mubr.bf16.gmra.mrb[0].mxu0 %v2033
        %v2109 = vpop.f32.mrb[0].mxu0
        %v2110 = vadd.f32 0.0, %v2109
        %v2111 = vpop.f32.mrb[0].mxu0
        %v2112 = vadd.f32 0.0, %v2111
        %v2113 = vpop.f32.mrb[0].mxu0
        %v2114 = vpop.f32.mrb[0].mxu0
        %2115 = vdwg.mxu0
        %2116 = vmatprep.subr.bf16.mxu0 %v1445
        %2117 = vmatpush1.bf16.msra.mxu0 %v1444
        %2118 = vmatprep.subr.bf16.mxu0 %v1449
        %2119 = vmatpush1.bf16.msra.mxu0 %v1448
        %2120 = vmatprep.subr.bf16.mxu0 %v1453
        %2121 = vmatpush1.bf16.msra.mxu0 %v1452
        %2122 = vmatprep.subr.bf16.mxu0 %v1457
        %2123 = vmatpush1.bf16.msra.mxu0 %v1456
        %2124 = vmatprep.subr.bf16.mxu0 %v1461
        %2125 = vmatpush1.bf16.msra.mxu0 %v1460
        %2126 = vmatprep.subr.bf16.mxu0 %v1465
        %2127 = vmatpush1.bf16.msra.mxu0 %v1464
        %2128 = vmatprep.subr.bf16.mxu0 %v1469
        %2129 = vmatpush1.bf16.msra.mxu0 %v1468
        %2130 = vmatprep.subr.bf16.mxu0 %v1473
        %2131 = vmatpush1.bf16.msra.mxu0 %v1472
        %2132 = vmatprep.subr.bf16.mxu0 0
        %2133 = vmatpush1.bf16.msra.mxu0 0
        %2134 = vmatprep.subr.bf16.mxu0 0
        %2135 = vmatpush1.bf16.msra.mxu0 0
        %2136 = vmatprep.subr.bf16.mxu0 0
        %2137 = vmatpush1.bf16.msra.mxu0 0
        %2138 = vmatprep.subr.bf16.mxu0 0
        %2139 = vmatpush1.bf16.msra.mxu0 0
        %2140 = vmatprep.subr.bf16.mxu0 0
        %2141 = vmatpush1.bf16.msra.mxu0 0
        %2142 = vmatprep.subr.bf16.mxu0 0
        %2143 = vmatpush1.bf16.msra.mxu0 0
        %2144 = vmatprep.subr.bf16.mxu0 0
        %2145 = vmatpush1.bf16.msra.mxu0 0
        %2146 = vmatprep.subr.bf16.mxu0 0
        %2147 = vmatpush1.bf16.msra.mxu0 0
        %2148 = vmatprep.mubr.bf16.mxu0 0
        %2149 = vmatmul.mubr.bf16.gmra.mrb[0].mxu0 %v2032
        %v2150 = vpop.f32.mrb[0].mxu0
        %v2151 = vadd.f32 %v2069, %v2150
        %v2152 = vpop.f32.mrb[0].mxu0
        %v2153 = vadd.f32 %v2071, %v2152
        %v2154 = vpop.f32.mrb[0].mxu0
        %v2155 = vpop.f32.mrb[0].mxu0
        %2156 = vdwg.mxu0
        %2157 = vmatprep.subr.bf16.mxu0 %v1447
        %2158 = vmatpush1.bf16.msra.mxu0 %v1446
        %2159 = vmatprep.subr.bf16.mxu0 %v1451
        %2160 = vmatpush1.bf16.msra.mxu0 %v1450
        %2161 = vmatprep.subr.bf16.mxu0 %v1455
        %2162 = vmatpush1.bf16.msra.mxu0 %v1454
        %2163 = vmatprep.subr.bf16.mxu0 %v1459
        %2164 = vmatpush1.bf16.msra.mxu0 %v1458
        %2165 = vmatprep.subr.bf16.mxu0 %v1463
        %2166 = vmatpush1.bf16.msra.mxu0 %v1462
        %2167 = vmatprep.subr.bf16.mxu0 %v1467
        %2168 = vmatpush1.bf16.msra.mxu0 %v1466
        %2169 = vmatprep.subr.bf16.mxu0 %v1471
        %2170 = vmatpush1.bf16.msra.mxu0 %v1470
        %2171 = vmatprep.subr.bf16.mxu0 %v1475
        %2172 = vmatpush1.bf16.msra.mxu0 %v1474
        %2173 = vmatprep.subr.bf16.mxu0 0
        %2174 = vmatpush1.bf16.msra.mxu0 0
        %2175 = vmatprep.subr.bf16.mxu0 0
        %2176 = vmatpush1.bf16.msra.mxu0 0
        %2177 = vmatprep.subr.bf16.mxu0 0
        %2178 = vmatpush1.bf16.msra.mxu0 0
        %2179 = vmatprep.subr.bf16.mxu0 0
        %2180 = vmatpush1.bf16.msra.mxu0 0
        %2181 = vmatprep.subr.bf16.mxu0 0
        %2182 = vmatpush1.bf16.msra.mxu0 0
        %2183 = vmatprep.subr.bf16.mxu0 0
        %2184 = vmatpush1.bf16.msra.mxu0 0
        %2185 = vmatprep.subr.bf16.mxu0 0
        %2186 = vmatpush1.bf16.msra.mxu0 0
        %2187 = vmatprep.subr.bf16.mxu0 0
        %2188 = vmatpush1.bf16.msra.mxu0 0
        %2189 = vmatprep.mubr.bf16.mxu0 0
        %2190 = vmatmul.mubr.bf16.gmra.mrb[0].mxu0 %v2032
        %v2191 = vpop.f32.mrb[0].mxu0
        %v2192 = vadd.f32 %v2110, %v2191
        %v2193 = vpop.f32.mrb[0].mxu0
        %v2194 = vadd.f32 %v2112, %v2193
        %v2195 = vpop.f32.mrb[0].mxu0
        %v2196 = vpop.f32.mrb[0].mxu0
        %2197 = vdwg.mxu0
        %v2198 = vadd.f32 %v2151, %v812
        %v2199 = vadd.f32 %v2153, %v816
        %v2200 = vadd.f32 %v2192, %v820
        %v2201 = vadd.f32 %v2194, %v824
        %v2202 = vxor.u32 %v2198, 2147483648
        %v2203 = vxor.u32 %v2199, 2147483648
        %v2204 = vxor.u32 %v2200, 2147483648
        %v2205 = vmul.f32 %v2202, 1.442695
        %v2206 = vpow.pop %v2205
        %v2207 = vmul.f32 %v2203, 1.442695
        %v2208 = vpow.pop %v2207
        %v2209 = vmul.f32 %v2204, 1.442695
        %v2210 = vpow.pop %v2209
        %v2211 = vadd.f32 %v2206, 1.0
        %v2212 = vadd.f32 %v2208, 1.0
        %v2213 = vadd.f32 %v2210, 1.0
        %v2214 = vrcp.pop %v2211
        %v2215 = vmul.f32 1.0, %v2214
        %v2216 = vrcp.pop %v2212
        %v2217 = vmul.f32 1.0, %v2216
        %v2218 = vrcp.pop %v2213
        %v2219 = vmul.f32 1.0, %v2218
        %v2220 = vtanh.pop %v2201
        %v2221 = vmul.f32 %v2217, %v1919
        %v2222 = vmul.f32 %v2215, %v2220
        %v2223 = vadd.f32 %v2221, %v2222
        %v2224 = vtanh.pop %v2223
        %v2225 = vmul.f32 %v2219, %v2224
        %2226 = vmatprep.subr.bf16.mxu0 %v931
        %2227 = vmatpush1.bf16.msra.mxu0 %v930
        %2228 = vmatprep.subr.bf16.mxu0 %v935
        %2229 = vmatpush1.bf16.msra.mxu0 %v934
        %2230 = vmatprep.subr.bf16.mxu0 %v939
        %2231 = vmatpush1.bf16.msra.mxu0 %v938
        %2232 = vmatprep.subr.bf16.mxu0 %v943
        %2233 = vmatpush1.bf16.msra.mxu0 %v942
        %2234 = vmatprep.subr.bf16.mxu0 %v947
        %2235 = vmatpush1.bf16.msra.mxu0 %v946
        %2236 = vmatprep.subr.bf16.mxu0 %v951
        %2237 = vmatpush1.bf16.msra.mxu0 %v950
        %2238 = vmatprep.subr.bf16.mxu0 %v955
        %2239 = vmatpush1.bf16.msra.mxu0 %v954
        %2240 = vmatprep.subr.bf16.mxu0 %v959
        %2241 = vmatpush1.bf16.msra.mxu0 %v958
        %2242 = vmatprep.subr.bf16.mxu0 0
        %2243 = vmatpush1.bf16.msra.mxu0 0
        %2244 = vmatprep.subr.bf16.mxu0 0
        %2245 = vmatpush1.bf16.msra.mxu0 0
        %2246 = vmatprep.subr.bf16.mxu0 0
        %2247 = vmatpush1.bf16.msra.mxu0 0
        %2248 = vmatprep.subr.bf16.mxu0 0
        %2249 = vmatpush1.bf16.msra.mxu0 0
        %2250 = vmatprep.subr.bf16.mxu0 0
        %2251 = vmatpush1.bf16.msra.mxu0 0
        %2252 = vmatprep.subr.bf16.mxu0 0
        %2253 = vmatpush1.bf16.msra.mxu0 0
        %2254 = vmatprep.subr.bf16.mxu0 0
        %2255 = vmatpush1.bf16.msra.mxu0 0
        %2256 = vmatprep.subr.bf16.mxu0 0
        %2257 = vmatpush1.bf16.msra.mxu0 0
        %2258 = vmatprep.mubr.bf16.mxu0 0
        %2259 = vmatmul.mubr.bf16.gmra.mrb[0].mxu0 %v2032
        %v2260 = vpop.f32.mrb[0].mxu0
        %v2261 = vadd.f32 0.0, %v2260
        %v2262 = vpop.f32.mrb[0].mxu0
        %v2263 = vadd.f32 0.0, %v2262
        %v2264 = vpop.f32.mrb[0].mxu0
        %v2265 = vpop.f32.mrb[0].mxu0
        %2266 = vdwg.mxu0
        %2267 = vmatprep.subr.bf16.mxu0 %v933
        %2268 = vmatpush1.bf16.msra.mxu0 %v932
        %2269 = vmatprep.subr.bf16.mxu0 %v937
        %2270 = vmatpush1.bf16.msra.mxu0 %v936
        %2271 = vmatprep.subr.bf16.mxu0 %v941
        %2272 = vmatpush1.bf16.msra.mxu0 %v940
        %2273 = vmatprep.subr.bf16.mxu0 %v945
        %2274 = vmatpush1.bf16.msra.mxu0 %v944
        %2275 = vmatprep.subr.bf16.mxu0 %v949
        %2276 = vmatpush1.bf16.msra.mxu0 %v948
        %2277 = vmatprep.subr.bf16.mxu0 %v953
        %2278 = vmatpush1.bf16.msra.mxu0 %v952
        %2279 = vmatprep.subr.bf16.mxu0 %v957
        %2280 = vmatpush1.bf16.msra.mxu0 %v956
        %2281 = vmatprep.subr.bf16.mxu0 %v961
        %2282 = vmatpush1.bf16.msra.mxu0 %v960
        %2283 = vmatprep.subr.bf16.mxu0 0
        %2284 = vmatpush1.bf16.msra.mxu0 0
        %2285 = vmatprep.subr.bf16.mxu0 0
        %2286 = vmatpush1.bf16.msra.mxu0 0
        %2287 = vmatprep.subr.bf16.mxu0 0
        %2288 = vmatpush1.bf16.msra.mxu0 0
        %2289 = vmatprep.subr.bf16.mxu0 0
        %2290 = vmatpush1.bf16.msra.mxu0 0
        %2291 = vmatprep.subr.bf16.mxu0 0
        %2292 = vmatpush1.bf16.msra.mxu0 0
        %2293 = vmatprep.subr.bf16.mxu0 0
        %2294 = vmatpush1.bf16.msra.mxu0 0
        %2295 = vmatprep.subr.bf16.mxu0 0
        %2296 = vmatpush1.bf16.msra.mxu0 0
        %2297 = vmatprep.subr.bf16.mxu0 0
        %2298 = vmatpush1.bf16.msra.mxu0 0
        %2299 = vmatprep.mubr.bf16.mxu0 0
        %2300 = vmatmul.mubr.bf16.gmra.mrb[0].mxu0 %v2032
        %v2301 = vpop.f32.mrb[0].mxu0
        %v2302 = vadd.f32 0.0, %v2301
        %v2303 = vpop.f32.mrb[0].mxu0
        %v2304 = vadd.f32 0.0, %v2303
        %v2305 = vpop.f32.mrb[0].mxu0
        %v2306 = vpop.f32.mrb[0].mxu0
        %2307 = vdwg.mxu0
        %v2308 = vadd.f32 %v614, %v2261
        %v2309 = vadd.f32 %v616, %v2263
        %v2310 = vadd.f32 %v687, %v2302
        %v2311 = vadd.f32 %v689, %v2304
        %v2312 = vxor.u32 %v2308, 2147483648
        %v2313 = vxor.u32 %v2309, 2147483648
        %v2314 = vxor.u32 %v2310, 2147483648
        %v2315 = vmul.f32 %v2312, 1.442695
        %v2316 = vpow.pop %v2315
        %v2317 = vmul.f32 %v2313, 1.442695
        %v2318 = vpow.pop %v2317
        %v2319 = vmul.f32 %v2314, 1.442695
        %v2320 = vpow.pop %v2319
        %v2321 = vadd.f32 %v2316, 1.0
        %v2322 = vadd.f32 %v2318, 1.0
        %v2323 = vadd.f32 %v2320, 1.0
        %v2324 = vrcp.pop %v2321
        %v2325 = vmul.f32 1.0, %v2324
        %v2326 = vrcp.pop %v2322
        %v2327 = vmul.f32 1.0, %v2326
        %v2328 = vrcp.pop %v2323
        %v2329 = vmul.f32 1.0, %v2328
        %v2330 = vtanh.pop %v2311
        %v2331 = vmul.f32 %v2327, %v2029
        %v2332 = vmul.f32 %v2325, %v2330
        %v2333 = vadd.f32 %v2331, %v2332
        %v2334 = vtanh.pop %v2333
        %v2335 = vmul.f32 %v2329, %v2334
        %v2336 = vpack.c.bf16 %v2335, %v2335
        %v2337 = vpack.c.bf16 %v2225, %v2225
        %2338 = vmatprep.subr.bf16.mxu0 %v1203
        %2339 = vmatpush1.bf16.msra.mxu0 %v1202
        %2340 = vmatprep.subr.bf16.mxu0 %v1207
        %2341 = vmatpush1.bf16.msra.mxu0 %v1206
        %2342 = vmatprep.subr.bf16.mxu0 %v1211
        %2343 = vmatpush1.bf16.msra.mxu0 %v1210
        %2344 = vmatprep.subr.bf16.mxu0 %v1215
        %2345 = vmatpush1.bf16.msra.mxu0 %v1214
        %2346 = vmatprep.subr.bf16.mxu0 %v1219
        %2347 = vmatpush1.bf16.msra.mxu0 %v1218
        %2348 = vmatprep.subr.bf16.mxu0 %v1223
        %2349 = vmatpush1.bf16.msra.mxu0 %v1222
        %2350 = vmatprep.subr.bf16.mxu0 %v1227
        %2351 = vmatpush1.bf16.msra.mxu0 %v1226
        %2352 = vmatprep.subr.bf16.mxu0 %v1231
        %2353 = vmatpush1.bf16.msra.mxu0 %v1230
        %2354 = vmatprep.subr.bf16.mxu0 0
        %2355 = vmatpush1.bf16.msra.mxu0 0
        %2356 = vmatprep.subr.bf16.mxu0 0
        %2357 = vmatpush1.bf16.msra.mxu0 0
        %2358 = vmatprep.subr.bf16.mxu0 0
        %2359 = vmatpush1.bf16.msra.mxu0 0
        %2360 = vmatprep.subr.bf16.mxu0 0
        %2361 = vmatpush1.bf16.msra.mxu0 0
        %2362 = vmatprep.subr.bf16.mxu0 0
        %2363 = vmatpush1.bf16.msra.mxu0 0
        %2364 = vmatprep.subr.bf16.mxu0 0
        %2365 = vmatpush1.bf16.msra.mxu0 0
        %2366 = vmatprep.subr.bf16.mxu0 0
        %2367 = vmatpush1.bf16.msra.mxu0 0
        %2368 = vmatprep.subr.bf16.mxu0 0
        %2369 = vmatpush1.bf16.msra.mxu0 0
        %2370 = vmatprep.mubr.bf16.mxu0 0
        %2371 = vmatmul.mubr.bf16.gmra.mrb[0].mxu0 %v2337
        %v2372 = vpop.f32.mrb[0].mxu0
        %v2373 = vadd.f32 0.0, %v2372
        %v2374 = vpop.f32.mrb[0].mxu0
        %v2375 = vadd.f32 0.0, %v2374
        %v2376 = vpop.f32.mrb[0].mxu0
        %v2377 = vpop.f32.mrb[0].mxu0
        %2378 = vdwg.mxu0
        %2379 = vmatprep.subr.bf16.mxu0 %v1205
        %2380 = vmatpush1.bf16.msra.mxu0 %v1204
        %2381 = vmatprep.subr.bf16.mxu0 %v1209
        %2382 = vmatpush1.bf16.msra.mxu0 %v1208
        %2383 = vmatprep.subr.bf16.mxu0 %v1213
        %2384 = vmatpush1.bf16.msra.mxu0 %v1212
        %2385 = vmatprep.subr.bf16.mxu0 %v1217
        %2386 = vmatpush1.bf16.msra.mxu0 %v1216
        %2387 = vmatprep.subr.bf16.mxu0 %v1221
        %2388 = vmatpush1.bf16.msra.mxu0 %v1220
        %2389 = vmatprep.subr.bf16.mxu0 %v1225
        %2390 = vmatpush1.bf16.msra.mxu0 %v1224
        %2391 = vmatprep.subr.bf16.mxu0 %v1229
        %2392 = vmatpush1.bf16.msra.mxu0 %v1228
        %2393 = vmatprep.subr.bf16.mxu0 %v1233
        %2394 = vmatpush1.bf16.msra.mxu0 %v1232
        %2395 = vmatprep.subr.bf16.mxu0 0
        %2396 = vmatpush1.bf16.msra.mxu0 0
        %2397 = vmatprep.subr.bf16.mxu0 0
        %2398 = vmatpush1.bf16.msra.mxu0 0
        %2399 = vmatprep.subr.bf16.mxu0 0
        %2400 = vmatpush1.bf16.msra.mxu0 0
        %2401 = vmatprep.subr.bf16.mxu0 0
        %2402 = vmatpush1.bf16.msra.mxu0 0
        %2403 = vmatprep.subr.bf16.mxu0 0
        %2404 = vmatpush1.bf16.msra.mxu0 0
        %2405 = vmatprep.subr.bf16.mxu0 0
        %2406 = vmatpush1.bf16.msra.mxu0 0
        %2407 = vmatprep.subr.bf16.mxu0 0
        %2408 = vmatpush1.bf16.msra.mxu0 0
        %2409 = vmatprep.subr.bf16.mxu0 0
        %2410 = vmatpush1.bf16.msra.mxu0 0
        %2411 = vmatprep.mubr.bf16.mxu0 0
        %2412 = vmatmul.mubr.bf16.gmra.mrb[0].mxu0 %v2337
        %v2413 = vpop.f32.mrb[0].mxu0
        %v2414 = vadd.f32 0.0, %v2413
        %v2415 = vpop.f32.mrb[0].mxu0
        %v2416 = vadd.f32 0.0, %v2415
        %v2417 = vpop.f32.mrb[0].mxu0
        %v2418 = vpop.f32.mrb[0].mxu0
        %2419 = vdwg.mxu0
        %2420 = vmatprep.subr.bf16.mxu0 %v1445
        %2421 = vmatpush1.bf16.msra.mxu0 %v1444
        %2422 = vmatprep.subr.bf16.mxu0 %v1449
        %2423 = vmatpush1.bf16.msra.mxu0 %v1448
        %2424 = vmatprep.subr.bf16.mxu0 %v1453
        %2425 = vmatpush1.bf16.msra.mxu0 %v1452
        %2426 = vmatprep.subr.bf16.mxu0 %v1457
        %2427 = vmatpush1.bf16.msra.mxu0 %v1456
        %2428 = vmatprep.subr.bf16.mxu0 %v1461
        %2429 = vmatpush1.bf16.msra.mxu0 %v1460
        %2430 = vmatprep.subr.bf16.mxu0 %v1465
        %2431 = vmatpush1.bf16.msra.mxu0 %v1464
        %2432 = vmatprep.subr.bf16.mxu0 %v1469
        %2433 = vmatpush1.bf16.msra.mxu0 %v1468
        %2434 = vmatprep.subr.bf16.mxu0 %v1473
        %2435 = vmatpush1.bf16.msra.mxu0 %v1472
        %2436 = vmatprep.subr.bf16.mxu0 0
        %2437 = vmatpush1.bf16.msra.mxu0 0
        %2438 = vmatprep.subr.bf16.mxu0 0
        %2439 = vmatpush1.bf16.msra.mxu0 0
        %2440 = vmatprep.subr.bf16.mxu0 0
        %2441 = vmatpush1.bf16.msra.mxu0 0
        %2442 = vmatprep.subr.bf16.mxu0 0
        %2443 = vmatpush1.bf16.msra.mxu0 0
        %2444 = vmatprep.subr.bf16.mxu0 0
        %2445 = vmatpush1.bf16.msra.mxu0 0
        %2446 = vmatprep.subr.bf16.mxu0 0
        %2447 = vmatpush1.bf16.msra.mxu0 0
        %2448 = vmatprep.subr.bf16.mxu0 0
        %2449 = vmatpush1.bf16.msra.mxu0 0
        %2450 = vmatprep.subr.bf16.mxu0 0
        %2451 = vmatpush1.bf16.msra.mxu0 0
        %2452 = vmatprep.mubr.bf16.mxu0 0
        %2453 = vmatmul.mubr.bf16.gmra.mrb[0].mxu0 %v2336
        %v2454 = vpop.f32.mrb[0].mxu0
        %v2455 = vadd.f32 %v2373, %v2454
        %v2456 = vpop.f32.mrb[0].mxu0
        %v2457 = vadd.f32 %v2375, %v2456
        %v2458 = vpop.f32.mrb[0].mxu0
        %v2459 = vpop.f32.mrb[0].mxu0
        %2460 = vdwg.mxu0
        %2461 = vmatprep.subr.bf16.mxu0 %v1447
        %2462 = vmatpush1.bf16.msra.mxu0 %v1446
        %2463 = vmatprep.subr.bf16.mxu0 %v1451
        %2464 = vmatpush1.bf16.msra.mxu0 %v1450
        %2465 = vmatprep.subr.bf16.mxu0 %v1455
        %2466 = vmatpush1.bf16.msra.mxu0 %v1454
        %2467 = vmatprep.subr.bf16.mxu0 %v1459
        %2468 = vmatpush1.bf16.msra.mxu0 %v1458
        %2469 = vmatprep.subr.bf16.mxu0 %v1463
        %2470 = vmatpush1.bf16.msra.mxu0 %v1462
        %2471 = vmatprep.subr.bf16.mxu0 %v1467
        %2472 = vmatpush1.bf16.msra.mxu0 %v1466
        %2473 = vmatprep.subr.bf16.mxu0 %v1471
        %2474 = vmatpush1.bf16.msra.mxu0 %v1470
        %2475 = vmatprep.subr.bf16.mxu0 %v1475
        %2476 = vmatpush1.bf16.msra.mxu0 %v1474
        %2477 = vmatprep.subr.bf16.mxu0 0
        %2478 = vmatpush1.bf16.msra.mxu0 0
        %2479 = vmatprep.subr.bf16.mxu0 0
        %2480 = vmatpush1.bf16.msra.mxu0 0
        %2481 = vmatprep.subr.bf16.mxu0 0
        %2482 = vmatpush1.bf16.msra.mxu0 0
        %2483 = vmatprep.subr.bf16.mxu0 0
        %2484 = vmatpush1.bf16.msra.mxu0 0
        %2485 = vmatprep.subr.bf16.mxu0 0
        %2486 = vmatpush1.bf16.msra.mxu0 0
        %2487 = vmatprep.subr.bf16.mxu0 0
        %2488 = vmatpush1.bf16.msra.mxu0 0
        %2489 = vmatprep.subr.bf16.mxu0 0
        %2490 = vmatpush1.bf16.msra.mxu0 0
        %2491 = vmatprep.subr.bf16.mxu0 0
        %2492 = vmatpush1.bf16.msra.mxu0 0
        %2493 = vmatprep.mubr.bf16.mxu0 0
        %2494 = vmatmul.mubr.bf16.gmra.mrb[0].mxu0 %v2336
        %v2495 = vpop.f32.mrb[0].mxu0
        %v2496 = vadd.f32 %v2414, %v2495
        %v2497 = vpop.f32.mrb[0].mxu0
        %v2498 = vadd.f32 %v2416, %v2497
        %v2499 = vpop.f32.mrb[0].mxu0
        %v2500 = vpop.f32.mrb[0].mxu0
        %2501 = vdwg.mxu0
        %v2502 = vadd.f32 %v2455, %v812
        %v2503 = vadd.f32 %v2457, %v816
        %v2504 = vadd.f32 %v2496, %v820
        %v2505 = vadd.f32 %v2498, %v824
        %v2506 = vxor.u32 %v2502, 2147483648
        %v2507 = vxor.u32 %v2503, 2147483648
        %v2508 = vxor.u32 %v2504, 2147483648
        %v2509 = vmul.f32 %v2506, 1.442695
        %v2510 = vpow.pop %v2509
        %v2511 = vmul.f32 %v2507, 1.442695
        %v2512 = vpow.pop %v2511
        %v2513 = vmul.f32 %v2508, 1.442695
        %v2514 = vpow.pop %v2513
        %v2515 = vadd.f32 %v2510, 1.0
        %v2516 = vadd.f32 %v2512, 1.0
        %v2517 = vadd.f32 %v2514, 1.0
        %v2518 = vrcp.pop %v2515
        %v2519 = vmul.f32 1.0, %v2518
        %v2520 = vrcp.pop %v2516
        %v2521 = vmul.f32 1.0, %v2520
        %v2522 = vrcp.pop %v2517
        %v2523 = vmul.f32 1.0, %v2522
        %v2524 = vtanh.pop %v2505
        %v2525 = vmul.f32 %v2521, %v2223
        %v2526 = vmul.f32 %v2519, %v2524
        %v2527 = vadd.f32 %v2525, %v2526
        %v2528 = vtanh.pop %v2527
        %v2529 = vmul.f32 %v2523, %v2528
        %2530 = vmatprep.subr.bf16.mxu0 %v931
        %2531 = vmatpush1.bf16.msra.mxu0 %v930
        %2532 = vmatprep.subr.bf16.mxu0 %v935
        %2533 = vmatpush1.bf16.msra.mxu0 %v934
        %2534 = vmatprep.subr.bf16.mxu0 %v939
        %2535 = vmatpush1.bf16.msra.mxu0 %v938
        %2536 = vmatprep.subr.bf16.mxu0 %v943
        %2537 = vmatpush1.bf16.msra.mxu0 %v942
        %2538 = vmatprep.subr.bf16.mxu0 %v947
        %2539 = vmatpush1.bf16.msra.mxu0 %v946
        %2540 = vmatprep.subr.bf16.mxu0 %v951
        %2541 = vmatpush1.bf16.msra.mxu0 %v950
        %2542 = vmatprep.subr.bf16.mxu0 %v955
        %2543 = vmatpush1.bf16.msra.mxu0 %v954
        %2544 = vmatprep.subr.bf16.mxu0 %v959
        %2545 = vmatpush1.bf16.msra.mxu0 %v958
        %2546 = vmatprep.subr.bf16.mxu0 0
        %2547 = vmatpush1.bf16.msra.mxu0 0
        %2548 = vmatprep.subr.bf16.mxu0 0
        %2549 = vmatpush1.bf16.msra.mxu0 0
        %2550 = vmatprep.subr.bf16.mxu0 0
        %2551 = vmatpush1.bf16.msra.mxu0 0
        %2552 = vmatprep.subr.bf16.mxu0 0
        %2553 = vmatpush1.bf16.msra.mxu0 0
        %2554 = vmatprep.subr.bf16.mxu0 0
        %2555 = vmatpush1.bf16.msra.mxu0 0
        %2556 = vmatprep.subr.bf16.mxu0 0
        %2557 = vmatpush1.bf16.msra.mxu0 0
        %2558 = vmatprep.subr.bf16.mxu0 0
        %2559 = vmatpush1.bf16.msra.mxu0 0
        %2560 = vmatprep.subr.bf16.mxu0 0
        %2561 = vmatpush1.bf16.msra.mxu0 0
        %2562 = vmatprep.mubr.bf16.mxu0 0
        %2563 = vmatmul.mubr.bf16.gmra.mrb[0].mxu0 %v2336
        %v2564 = vpop.f32.mrb[0].mxu0
        %v2565 = vadd.f32 0.0, %v2564
        %v2566 = vpop.f32.mrb[0].mxu0
        %v2567 = vadd.f32 0.0, %v2566
        %v2568 = vpop.f32.mrb[0].mxu0
        %v2569 = vpop.f32.mrb[0].mxu0
        %2570 = vdwg.mxu0
        %2571 = vmatprep.subr.bf16.mxu0 %v933
        %2572 = vmatpush1.bf16.msra.mxu0 %v932
        %2573 = vmatprep.subr.bf16.mxu0 %v937
        %2574 = vmatpush1.bf16.msra.mxu0 %v936
        %2575 = vmatprep.subr.bf16.mxu0 %v941
        %2576 = vmatpush1.bf16.msra.mxu0 %v940
        %2577 = vmatprep.subr.bf16.mxu0 %v945
        %2578 = vmatpush1.bf16.msra.mxu0 %v944
        %2579 = vmatprep.subr.bf16.mxu0 %v949
        %2580 = vmatpush1.bf16.msra.mxu0 %v948
        %2581 = vmatprep.subr.bf16.mxu0 %v953
        %2582 = vmatpush1.bf16.msra.mxu0 %v952
        %2583 = vmatprep.subr.bf16.mxu0 %v957
        %2584 = vmatpush1.bf16.msra.mxu0 %v956
        %2585 = vmatprep.subr.bf16.mxu0 %v961
        %2586 = vmatpush1.bf16.msra.mxu0 %v960
        %2587 = vmatprep.subr.bf16.mxu0 0
        %2588 = vmatpush1.bf16.msra.mxu0 0
        %2589 = vmatprep.subr.bf16.mxu0 0
        %2590 = vmatpush1.bf16.msra.mxu0 0
        %2591 = vmatprep.subr.bf16.mxu0 0
        %2592 = vmatpush1.bf16.msra.mxu0 0
        %2593 = vmatprep.subr.bf16.mxu0 0
        %2594 = vmatpush1.bf16.msra.mxu0 0
        %2595 = vmatprep.subr.bf16.mxu0 0
        %2596 = vmatpush1.bf16.msra.mxu0 0
        %2597 = vmatprep.subr.bf16.mxu0 0
        %2598 = vmatpush1.bf16.msra.mxu0 0
        %2599 = vmatprep.subr.bf16.mxu0 0
        %2600 = vmatpush1.bf16.msra.mxu0 0
        %2601 = vmatprep.subr.bf16.mxu0 0
        %2602 = vmatpush1.bf16.msra.mxu0 0
        %2603 = vmatprep.mubr.bf16.mxu0 0
        %2604 = vmatmul.mubr.bf16.gmra.mrb[0].mxu0 %v2336
        %v2605 = vpop.f32.mrb[0].mxu0
        %v2606 = vadd.f32 0.0, %v2605
        %v2607 = vpop.f32.mrb[0].mxu0
        %v2608 = vadd.f32 0.0, %v2607
        %v2609 = vpop.f32.mrb[0].mxu0
        %v2610 = vpop.f32.mrb[0].mxu0
        %2611 = vdwg.mxu0
        %v2612 = vadd.f32 %v620, %v2565
        %v2613 = vadd.f32 %v622, %v2567
        %v2614 = vadd.f32 %v693, %v2606
        %v2615 = vadd.f32 %v695, %v2608
        %v2616 = vxor.u32 %v2612, 2147483648
        %v2617 = vxor.u32 %v2613, 2147483648
        %v2618 = vxor.u32 %v2614, 2147483648
        %v2619 = vmul.f32 %v2616, 1.442695
        %v2620 = vpow.pop %v2619
        %v2621 = vmul.f32 %v2617, 1.442695
        %v2622 = vpow.pop %v2621
        %v2623 = vmul.f32 %v2618, 1.442695
        %v2624 = vpow.pop %v2623
        %v2625 = vadd.f32 %v2620, 1.0
        %v2626 = vadd.f32 %v2622, 1.0
        %v2627 = vadd.f32 %v2624, 1.0
        %v2628 = vrcp.pop %v2625
        %v2629 = vmul.f32 1.0, %v2628
        %v2630 = vrcp.pop %v2626
        %v2631 = vmul.f32 1.0, %v2630
        %v2632 = vrcp.pop %v2627
        %v2633 = vmul.f32 1.0, %v2632
        %v2634 = vtanh.pop %v2615
        %v2635 = vmul.f32 %v2631, %v2333
        %v2636 = vmul.f32 %v2629, %v2634
        %v2637 = vadd.f32 %v2635, %v2636
        %v2638 = vtanh.pop %v2637
        %v2639 = vmul.f32 %v2633, %v2638
        %v2640 = vpack.c.bf16 %v2639, %v2639
        %v2641 = vpack.c.bf16 %v2529, %v2529
        %2642 = vmatprep.subr.bf16.mxu0 %v1203
        %2643 = vmatpush1.bf16.msra.mxu0 %v1202
        %2644 = vmatprep.subr.bf16.mxu0 %v1207
        %2645 = vmatpush1.bf16.msra.mxu0 %v1206
        %2646 = vmatprep.subr.bf16.mxu0 %v1211
        %2647 = vmatpush1.bf16.msra.mxu0 %v1210
        %2648 = vmatprep.subr.bf16.mxu0 %v1215
        %2649 = vmatpush1.bf16.msra.mxu0 %v1214
        %2650 = vmatprep.subr.bf16.mxu0 %v1219
        %2651 = vmatpush1.bf16.msra.mxu0 %v1218
        %2652 = vmatprep.subr.bf16.mxu0 %v1223
        %2653 = vmatpush1.bf16.msra.mxu0 %v1222
        %2654 = vmatprep.subr.bf16.mxu0 %v1227
        %2655 = vmatpush1.bf16.msra.mxu0 %v1226
        %2656 = vmatprep.subr.bf16.mxu0 %v1231
        %2657 = vmatpush1.bf16.msra.mxu0 %v1230
        %2658 = vmatprep.subr.bf16.mxu0 0
        %2659 = vmatpush1.bf16.msra.mxu0 0
        %2660 = vmatprep.subr.bf16.mxu0 0
        %2661 = vmatpush1.bf16.msra.mxu0 0
        %2662 = vmatprep.subr.bf16.mxu0 0
        %2663 = vmatpush1.bf16.msra.mxu0 0
        %2664 = vmatprep.subr.bf16.mxu0 0
        %2665 = vmatpush1.bf16.msra.mxu0 0
        %2666 = vmatprep.subr.bf16.mxu0 0
        %2667 = vmatpush1.bf16.msra.mxu0 0
        %2668 = vmatprep.subr.bf16.mxu0 0
        %2669 = vmatpush1.bf16.msra.mxu0 0
        %2670 = vmatprep.subr.bf16.mxu0 0
        %2671 = vmatpush1.bf16.msra.mxu0 0
        %2672 = vmatprep.subr.bf16.mxu0 0
        %2673 = vmatpush1.bf16.msra.mxu0 0
        %2674 = vmatprep.mubr.bf16.mxu0 0
        %2675 = vmatmul.mubr.bf16.gmra.mrb[0].mxu0 %v2641
        %v2676 = vpop.f32.mrb[0].mxu0
        %v2677 = vadd.f32 0.0, %v2676
        %v2678 = vpop.f32.mrb[0].mxu0
        %v2679 = vadd.f32 0.0, %v2678
        %v2680 = vpop.f32.mrb[0].mxu0
        %v2681 = vpop.f32.mrb[0].mxu0
        %2682 = vdwg.mxu0
        %2683 = vmatprep.subr.bf16.mxu0 %v1205
        %2684 = vmatpush1.bf16.msra.mxu0 %v1204
        %2685 = vmatprep.subr.bf16.mxu0 %v1209
        %2686 = vmatpush1.bf16.msra.mxu0 %v1208
        %2687 = vmatprep.subr.bf16.mxu0 %v1213
        %2688 = vmatpush1.bf16.msra.mxu0 %v1212
        %2689 = vmatprep.subr.bf16.mxu0 %v1217
        %2690 = vmatpush1.bf16.msra.mxu0 %v1216
        %2691 = vmatprep.subr.bf16.mxu0 %v1221
        %2692 = vmatpush1.bf16.msra.mxu0 %v1220
        %2693 = vmatprep.subr.bf16.mxu0 %v1225
        %2694 = vmatpush1.bf16.msra.mxu0 %v1224
        %2695 = vmatprep.subr.bf16.mxu0 %v1229
        %2696 = vmatpush1.bf16.msra.mxu0 %v1228
        %2697 = vmatprep.subr.bf16.mxu0 %v1233
        %2698 = vmatpush1.bf16.msra.mxu0 %v1232
        %2699 = vmatprep.subr.bf16.mxu0 0
        %2700 = vmatpush1.bf16.msra.mxu0 0
        %2701 = vmatprep.subr.bf16.mxu0 0
        %2702 = vmatpush1.bf16.msra.mxu0 0
        %2703 = vmatprep.subr.bf16.mxu0 0
        %2704 = vmatpush1.bf16.msra.mxu0 0
        %2705 = vmatprep.subr.bf16.mxu0 0
        %2706 = vmatpush1.bf16.msra.mxu0 0
        %2707 = vmatprep.subr.bf16.mxu0 0
        %2708 = vmatpush1.bf16.msra.mxu0 0
        %2709 = vmatprep.subr.bf16.mxu0 0
        %2710 = vmatpush1.bf16.msra.mxu0 0
        %2711 = vmatprep.subr.bf16.mxu0 0
        %2712 = vmatpush1.bf16.msra.mxu0 0
        %2713 = vmatprep.subr.bf16.mxu0 0
        %2714 = vmatpush1.bf16.msra.mxu0 0
        %2715 = vmatprep.mubr.bf16.mxu0 0
        %2716 = vmatmul.mubr.bf16.gmra.mrb[0].mxu0 %v2641
        %v2717 = vpop.f32.mrb[0].mxu0
        %v2718 = vadd.f32 0.0, %v2717
        %v2719 = vpop.f32.mrb[0].mxu0
        %v2720 = vadd.f32 0.0, %v2719
        %v2721 = vpop.f32.mrb[0].mxu0
        %v2722 = vpop.f32.mrb[0].mxu0
        %2723 = vdwg.mxu0
        %2724 = vmatprep.subr.bf16.mxu0 %v1445
        %2725 = vmatpush1.bf16.msra.mxu0 %v1444
        %2726 = vmatprep.subr.bf16.mxu0 %v1449
        %2727 = vmatpush1.bf16.msra.mxu0 %v1448
        %2728 = vmatprep.subr.bf16.mxu0 %v1453
        %2729 = vmatpush1.bf16.msra.mxu0 %v1452
        %2730 = vmatprep.subr.bf16.mxu0 %v1457
        %2731 = vmatpush1.bf16.msra.mxu0 %v1456
        %2732 = vmatprep.subr.bf16.mxu0 %v1461
        %2733 = vmatpush1.bf16.msra.mxu0 %v1460
        %2734 = vmatprep.subr.bf16.mxu0 %v1465
        %2735 = vmatpush1.bf16.msra.mxu0 %v1464
        %2736 = vmatprep.subr.bf16.mxu0 %v1469
        %2737 = vmatpush1.bf16.msra.mxu0 %v1468
        %2738 = vmatprep.subr.bf16.mxu0 %v1473
        %2739 = vmatpush1.bf16.msra.mxu0 %v1472
        %2740 = vmatprep.subr.bf16.mxu0 0
        %2741 = vmatpush1.bf16.msra.mxu0 0
        %2742 = vmatprep.subr.bf16.mxu0 0
        %2743 = vmatpush1.bf16.msra.mxu0 0
        %2744 = vmatprep.subr.bf16.mxu0 0
        %2745 = vmatpush1.bf16.msra.mxu0 0
        %2746 = vmatprep.subr.bf16.mxu0 0
        %2747 = vmatpush1.bf16.msra.mxu0 0
        %2748 = vmatprep.subr.bf16.mxu0 0
        %2749 = vmatpush1.bf16.msra.mxu0 0
        %2750 = vmatprep.subr.bf16.mxu0 0
        %2751 = vmatpush1.bf16.msra.mxu0 0
        %2752 = vmatprep.subr.bf16.mxu0 0
        %2753 = vmatpush1.bf16.msra.mxu0 0
        %2754 = vmatprep.subr.bf16.mxu0 0
        %2755 = vmatpush1.bf16.msra.mxu0 0
        %2756 = vmatprep.mubr.bf16.mxu0 0
        %2757 = vmatmul.mubr.bf16.gmra.mrb[0].mxu0 %v2640
        %v2758 = vpop.f32.mrb[0].mxu0
        %v2759 = vadd.f32 %v2677, %v2758
        %v2760 = vpop.f32.mrb[0].mxu0
        %v2761 = vadd.f32 %v2679, %v2760
        %v2762 = vpop.f32.mrb[0].mxu0
        %v2763 = vpop.f32.mrb[0].mxu0
        %2764 = vdwg.mxu0
        %2765 = vmatprep.subr.bf16.mxu0 %v1447
        %2766 = vmatpush1.bf16.msra.mxu0 %v1446
        %2767 = vmatprep.subr.bf16.mxu0 %v1451
        %2768 = vmatpush1.bf16.msra.mxu0 %v1450
        %2769 = vmatprep.subr.bf16.mxu0 %v1455
        %2770 = vmatpush1.bf16.msra.mxu0 %v1454
        %2771 = vmatprep.subr.bf16.mxu0 %v1459
        %2772 = vmatpush1.bf16.msra.mxu0 %v1458
        %2773 = vmatprep.subr.bf16.mxu0 %v1463
        %2774 = vmatpush1.bf16.msra.mxu0 %v1462
        %2775 = vmatprep.subr.bf16.mxu0 %v1467
        %2776 = vmatpush1.bf16.msra.mxu0 %v1466
        %2777 = vmatprep.subr.bf16.mxu0 %v1471
        %2778 = vmatpush1.bf16.msra.mxu0 %v1470
        %2779 = vmatprep.subr.bf16.mxu0 %v1475
        %2780 = vmatpush1.bf16.msra.mxu0 %v1474
        %2781 = vmatprep.subr.bf16.mxu0 0
        %2782 = vmatpush1.bf16.msra.mxu0 0
        %2783 = vmatprep.subr.bf16.mxu0 0
        %2784 = vmatpush1.bf16.msra.mxu0 0
        %2785 = vmatprep.subr.bf16.mxu0 0
        %2786 = vmatpush1.bf16.msra.mxu0 0
        %2787 = vmatprep.subr.bf16.mxu0 0
        %2788 = vmatpush1.bf16.msra.mxu0 0
        %2789 = vmatprep.subr.bf16.mxu0 0
        %2790 = vmatpush1.bf16.msra.mxu0 0
        %2791 = vmatprep.subr.bf16.mxu0 0
        %2792 = vmatpush1.bf16.msra.mxu0 0
        %2793 = vmatprep.subr.bf16.mxu0 0
        %2794 = vmatpush1.bf16.msra.mxu0 0
        %2795 = vmatprep.subr.bf16.mxu0 0
        %2796 = vmatpush1.bf16.msra.mxu0 0
        %2797 = vmatprep.mubr.bf16.mxu0 0
        %2798 = vmatmul.mubr.bf16.gmra.mrb[0].mxu0 %v2640
        %v2799 = vpop.f32.mrb[0].mxu0
        %v2800 = vadd.f32 %v2718, %v2799
        %v2801 = vpop.f32.mrb[0].mxu0
        %v2802 = vadd.f32 %v2720, %v2801
        %v2803 = vpop.f32.mrb[0].mxu0
        %v2804 = vpop.f32.mrb[0].mxu0
        %2805 = vdwg.mxu0
        %v2806 = vadd.f32 %v2759, %v812
        %v2807 = vadd.f32 %v2761, %v816
        %v2808 = vadd.f32 %v2800, %v820
        %v2809 = vadd.f32 %v2802, %v824
        %v2810 = vxor.u32 %v2806, 2147483648
        %v2811 = vxor.u32 %v2807, 2147483648
        %v2812 = vxor.u32 %v2808, 2147483648
        %v2813 = vmul.f32 %v2810, 1.442695
        %v2814 = vpow.pop %v2813
        %v2815 = vmul.f32 %v2811, 1.442695
        %v2816 = vpow.pop %v2815
        %v2817 = vmul.f32 %v2812, 1.442695
        %v2818 = vpow.pop %v2817
        %v2819 = vadd.f32 %v2814, 1.0
        %v2820 = vadd.f32 %v2816, 1.0
        %v2821 = vadd.f32 %v2818, 1.0
        %v2822 = vrcp.pop %v2819
        %v2823 = vmul.f32 1.0, %v2822
        %v2824 = vrcp.pop %v2820
        %v2825 = vmul.f32 1.0, %v2824
        %v2826 = vrcp.pop %v2821
        %v2827 = vmul.f32 1.0, %v2826
        %v2828 = vtanh.pop %v2809
        %v2829 = vmul.f32 %v2825, %v2527
        %v2830 = vmul.f32 %v2823, %v2828
        %v2831 = vadd.f32 %v2829, %v2830
        %v2832 = vtanh.pop %v2831
        %v2833 = vmul.f32 %v2827, %v2832
        %2834 = vmatprep.subr.bf16.mxu0 %v931
        %2835 = vmatpush1.bf16.msra.mxu0 %v930
        %2836 = vmatprep.subr.bf16.mxu0 %v935
        %2837 = vmatpush1.bf16.msra.mxu0 %v934
        %2838 = vmatprep.subr.bf16.mxu0 %v939
        %2839 = vmatpush1.bf16.msra.mxu0 %v938
        %2840 = vmatprep.subr.bf16.mxu0 %v943
        %2841 = vmatpush1.bf16.msra.mxu0 %v942
        %2842 = vmatprep.subr.bf16.mxu0 %v947
        %2843 = vmatpush1.bf16.msra.mxu0 %v946
        %2844 = vmatprep.subr.bf16.mxu0 %v951
        %2845 = vmatpush1.bf16.msra.mxu0 %v950
        %2846 = vmatprep.subr.bf16.mxu0 %v955
        %2847 = vmatpush1.bf16.msra.mxu0 %v954
        %2848 = vmatprep.subr.bf16.mxu0 %v959
        %2849 = vmatpush1.bf16.msra.mxu0 %v958
        %2850 = vmatprep.subr.bf16.mxu0 0
        %2851 = vmatpush1.bf16.msra.mxu0 0
        %2852 = vmatprep.subr.bf16.mxu0 0
        %2853 = vmatpush1.bf16.msra.mxu0 0
        %2854 = vmatprep.subr.bf16.mxu0 0
        %2855 = vmatpush1.bf16.msra.mxu0 0
        %2856 = vmatprep.subr.bf16.mxu0 0
        %2857 = vmatpush1.bf16.msra.mxu0 0
        %2858 = vmatprep.subr.bf16.mxu0 0
        %2859 = vmatpush1.bf16.msra.mxu0 0
        %2860 = vmatprep.subr.bf16.mxu0 0
        %2861 = vmatpush1.bf16.msra.mxu0 0
        %2862 = vmatprep.subr.bf16.mxu0 0
        %2863 = vmatpush1.bf16.msra.mxu0 0
        %2864 = vmatprep.subr.bf16.mxu0 0
        %2865 = vmatpush1.bf16.msra.mxu0 0
        %2866 = vmatprep.mubr.bf16.mxu0 0
        %2867 = vmatmul.mubr.bf16.gmra.mrb[0].mxu0 %v2640
        %v2868 = vpop.f32.mrb[0].mxu0
        %v2869 = vadd.f32 0.0, %v2868
        %v2870 = vpop.f32.mrb[0].mxu0
        %v2871 = vadd.f32 0.0, %v2870
        %v2872 = vpop.f32.mrb[0].mxu0
        %v2873 = vpop.f32.mrb[0].mxu0
        %2874 = vdwg.mxu0
        %2875 = vmatprep.subr.bf16.mxu0 %v933
        %2876 = vmatpush1.bf16.msra.mxu0 %v932
        %2877 = vmatprep.subr.bf16.mxu0 %v937
        %2878 = vmatpush1.bf16.msra.mxu0 %v936
        %2879 = vmatprep.subr.bf16.mxu0 %v941
        %2880 = vmatpush1.bf16.msra.mxu0 %v940
        %2881 = vmatprep.subr.bf16.mxu0 %v945
        %2882 = vmatpush1.bf16.msra.mxu0 %v944
        %2883 = vmatprep.subr.bf16.mxu0 %v949
        %2884 = vmatpush1.bf16.msra.mxu0 %v948
        %2885 = vmatprep.subr.bf16.mxu0 %v953
        %2886 = vmatpush1.bf16.msra.mxu0 %v952
        %2887 = vmatprep.subr.bf16.mxu0 %v957
        %2888 = vmatpush1.bf16.msra.mxu0 %v956
        %2889 = vmatprep.subr.bf16.mxu0 %v961
        %2890 = vmatpush1.bf16.msra.mxu0 %v960
        %2891 = vmatprep.subr.bf16.mxu0 0
        %2892 = vmatpush1.bf16.msra.mxu0 0
        %2893 = vmatprep.subr.bf16.mxu0 0
        %2894 = vmatpush1.bf16.msra.mxu0 0
        %2895 = vmatprep.subr.bf16.mxu0 0
        %2896 = vmatpush1.bf16.msra.mxu0 0
        %2897 = vmatprep.subr.bf16.mxu0 0
        %2898 = vmatpush1.bf16.msra.mxu0 0
        %2899 = vmatprep.subr.bf16.mxu0 0
        %2900 = vmatpush1.bf16.msra.mxu0 0
        %2901 = vmatprep.subr.bf16.mxu0 0
        %2902 = vmatpush1.bf16.msra.mxu0 0
        %2903 = vmatprep.subr.bf16.mxu0 0
        %2904 = vmatpush1.bf16.msra.mxu0 0
        %2905 = vmatprep.subr.bf16.mxu0 0
        %2906 = vmatpush1.bf16.msra.mxu0 0
        %2907 = vmatprep.mubr.bf16.mxu0 0
        %2908 = vmatmul.mubr.bf16.gmra.mrb[0].mxu0 %v2640
        %v2909 = vpop.f32.mrb[0].mxu0
        %v2910 = vadd.f32 0.0, %v2909
        %v2911 = vpop.f32.mrb[0].mxu0
        %v2912 = vadd.f32 0.0, %v2911
        %v2913 = vpop.f32.mrb[0].mxu0
        %v2914 = vpop.f32.mrb[0].mxu0
        %2915 = vdwg.mxu0
        %v2916 = vadd.f32 %v624, %v2869
        %v2917 = vadd.f32 %v626, %v2871
        %v2918 = vadd.f32 %v697, %v2910
        %v2919 = vadd.f32 %v699, %v2912
        %v2920 = vxor.u32 %v2916, 2147483648
        %v2921 = vxor.u32 %v2917, 2147483648
        %v2922 = vxor.u32 %v2918, 2147483648
        %v2923 = vmul.f32 %v2920, 1.442695
        %v2924 = vpow.pop %v2923
        %v2925 = vmul.f32 %v2921, 1.442695
        %v2926 = vpow.pop %v2925
        %v2927 = vmul.f32 %v2922, 1.442695
        %v2928 = vpow.pop %v2927
        %v2929 = vadd.f32 %v2924, 1.0
        %v2930 = vadd.f32 %v2926, 1.0
        %v2931 = vadd.f32 %v2928, 1.0
        %v2932 = vrcp.pop %v2929
        %v2933 = vmul.f32 1.0, %v2932
        %v2934 = vrcp.pop %v2930
        %v2935 = vmul.f32 1.0, %v2934
        %v2936 = vrcp.pop %v2931
        %v2937 = vmul.f32 1.0, %v2936
        %v2938 = vtanh.pop %v2919
        %v2939 = vmul.f32 %v2935, %v2637
        %v2940 = vmul.f32 %v2933, %v2938
        %v2941 = vadd.f32 %v2939, %v2940
        %v2942 = vtanh.pop %v2941
        %v2943 = vmul.f32 %v2937, %v2942
        %v2944 = vpack.c.bf16 %v2943, %v2943
        %v2945 = vpack.c.bf16 %v2833, %v2833
        %2946 = vmatprep.subr.bf16.mxu0 %v1203
        %2947 = vmatpush1.bf16.msra.mxu0 %v1202
        %2948 = vmatprep.subr.bf16.mxu0 %v1207
        %2949 = vmatpush1.bf16.msra.mxu0 %v1206
        %2950 = vmatprep.subr.bf16.mxu0 %v1211
        %2951 = vmatpush1.bf16.msra.mxu0 %v1210
        %2952 = vmatprep.subr.bf16.mxu0 %v1215
        %2953 = vmatpush1.bf16.msra.mxu0 %v1214
        %2954 = vmatprep.subr.bf16.mxu0 %v1219
        %2955 = vmatpush1.bf16.msra.mxu0 %v1218
        %2956 = vmatprep.subr.bf16.mxu0 %v1223
        %2957 = vmatpush1.bf16.msra.mxu0 %v1222
        %2958 = vmatprep.subr.bf16.mxu0 %v1227
        %2959 = vmatpush1.bf16.msra.mxu0 %v1226
        %2960 = vmatprep.subr.bf16.mxu0 %v1231
        %2961 = vmatpush1.bf16.msra.mxu0 %v1230
        %2962 = vmatprep.subr.bf16.mxu0 0
        %2963 = vmatpush1.bf16.msra.mxu0 0
        %2964 = vmatprep.subr.bf16.mxu0 0
        %2965 = vmatpush1.bf16.msra.mxu0 0
        %2966 = vmatprep.subr.bf16.mxu0 0
        %2967 = vmatpush1.bf16.msra.mxu0 0
        %2968 = vmatprep.subr.bf16.mxu0 0
        %2969 = vmatpush1.bf16.msra.mxu0 0
        %2970 = vmatprep.subr.bf16.mxu0 0
        %2971 = vmatpush1.bf16.msra.mxu0 0
        %2972 = vmatprep.subr.bf16.mxu0 0
        %2973 = vmatpush1.bf16.msra.mxu0 0
        %2974 = vmatprep.subr.bf16.mxu0 0
        %2975 = vmatpush1.bf16.msra.mxu0 0
        %2976 = vmatprep.subr.bf16.mxu0 0
        %2977 = vmatpush1.bf16.msra.mxu0 0
        %2978 = vmatprep.mubr.bf16.mxu0 0
        %2979 = vmatmul.mubr.bf16.gmra.mrb[0].mxu0 %v2945
        %v2980 = vpop.f32.mrb[0].mxu0
        %v2981 = vadd.f32 0.0, %v2980
        %v2982 = vpop.f32.mrb[0].mxu0
        %v2983 = vadd.f32 0.0, %v2982
        %v2984 = vpop.f32.mrb[0].mxu0
        %v2985 = vpop.f32.mrb[0].mxu0
        %2986 = vdwg.mxu0
        %2987 = vmatprep.subr.bf16.mxu0 %v1205
        %2988 = vmatpush1.bf16.msra.mxu0 %v1204
        %2989 = vmatprep.subr.bf16.mxu0 %v1209
        %2990 = vmatpush1.bf16.msra.mxu0 %v1208
        %2991 = vmatprep.subr.bf16.mxu0 %v1213
        %2992 = vmatpush1.bf16.msra.mxu0 %v1212
        %2993 = vmatprep.subr.bf16.mxu0 %v1217
        %2994 = vmatpush1.bf16.msra.mxu0 %v1216
        %2995 = vmatprep.subr.bf16.mxu0 %v1221
        %2996 = vmatpush1.bf16.msra.mxu0 %v1220
        %2997 = vmatprep.subr.bf16.mxu0 %v1225
        %2998 = vmatpush1.bf16.msra.mxu0 %v1224
        %2999 = vmatprep.subr.bf16.mxu0 %v1229
        %3000 = vmatpush1.bf16.msra.mxu0 %v1228
        %3001 = vmatprep.subr.bf16.mxu0 %v1233
        %3002 = vmatpush1.bf16.msra.mxu0 %v1232
        %3003 = vmatprep.subr.bf16.mxu0 0
        %3004 = vmatpush1.bf16.msra.mxu0 0
        %3005 = vmatprep.subr.bf16.mxu0 0
        %3006 = vmatpush1.bf16.msra.mxu0 0
        %3007 = vmatprep.subr.bf16.mxu0 0
        %3008 = vmatpush1.bf16.msra.mxu0 0
        %3009 = vmatprep.subr.bf16.mxu0 0
        %3010 = vmatpush1.bf16.msra.mxu0 0
        %3011 = vmatprep.subr.bf16.mxu0 0
        %3012 = vmatpush1.bf16.msra.mxu0 0
        %3013 = vmatprep.subr.bf16.mxu0 0
        %3014 = vmatpush1.bf16.msra.mxu0 0
        %3015 = vmatprep.subr.bf16.mxu0 0
        %3016 = vmatpush1.bf16.msra.mxu0 0
        %3017 = vmatprep.subr.bf16.mxu0 0
        %3018 = vmatpush1.bf16.msra.mxu0 0
        %3019 = vmatprep.mubr.bf16.mxu0 0
        %3020 = vmatmul.mubr.bf16.gmra.mrb[0].mxu0 %v2945
        %v3021 = vpop.f32.mrb[0].mxu0
        %v3022 = vadd.f32 0.0, %v3021
        %v3023 = vpop.f32.mrb[0].mxu0
        %v3024 = vadd.f32 0.0, %v3023
        %v3025 = vpop.f32.mrb[0].mxu0
        %v3026 = vpop.f32.mrb[0].mxu0
        %3027 = vdwg.mxu0
        %3028 = vmatprep.subr.bf16.mxu0 %v1445
        %3029 = vmatpush1.bf16.msra.mxu0 %v1444
        %3030 = vmatprep.subr.bf16.mxu0 %v1449
        %3031 = vmatpush1.bf16.msra.mxu0 %v1448
        %3032 = vmatprep.subr.bf16.mxu0 %v1453
        %3033 = vmatpush1.bf16.msra.mxu0 %v1452
        %3034 = vmatprep.subr.bf16.mxu0 %v1457
        %3035 = vmatpush1.bf16.msra.mxu0 %v1456
        %3036 = vmatprep.subr.bf16.mxu0 %v1461
        %3037 = vmatpush1.bf16.msra.mxu0 %v1460
        %3038 = vmatprep.subr.bf16.mxu0 %v1465
        %3039 = vmatpush1.bf16.msra.mxu0 %v1464
        %3040 = vmatprep.subr.bf16.mxu0 %v1469
        %3041 = vmatpush1.bf16.msra.mxu0 %v1468
        %3042 = vmatprep.subr.bf16.mxu0 %v1473
        %3043 = vmatpush1.bf16.msra.mxu0 %v1472
        %3044 = vmatprep.subr.bf16.mxu0 0
        %3045 = vmatpush1.bf16.msra.mxu0 0
        %3046 = vmatprep.subr.bf16.mxu0 0
        %3047 = vmatpush1.bf16.msra.mxu0 0
        %3048 = vmatprep.subr.bf16.mxu0 0
        %3049 = vmatpush1.bf16.msra.mxu0 0
        %3050 = vmatprep.subr.bf16.mxu0 0
        %3051 = vmatpush1.bf16.msra.mxu0 0
        %3052 = vmatprep.subr.bf16.mxu0 0
        %3053 = vmatpush1.bf16.msra.mxu0 0
        %3054 = vmatprep.subr.bf16.mxu0 0
        %3055 = vmatpush1.bf16.msra.mxu0 0
        %3056 = vmatprep.subr.bf16.mxu0 0
        %3057 = vmatpush1.bf16.msra.mxu0 0
        %3058 = vmatprep.subr.bf16.mxu0 0
        %3059 = vmatpush1.bf16.msra.mxu0 0
        %3060 = vmatprep.mubr.bf16.mxu0 0
        %3061 = vmatmul.mubr.bf16.gmra.mrb[0].mxu0 %v2944
        %v3062 = vpop.f32.mrb[0].mxu0
        %v3063 = vadd.f32 %v2981, %v3062
        %v3064 = vpop.f32.mrb[0].mxu0
        %v3065 = vadd.f32 %v2983, %v3064
        %v3066 = vpop.f32.mrb[0].mxu0
        %v3067 = vpop.f32.mrb[0].mxu0
        %3068 = vdwg.mxu0
        %3069 = vmatprep.subr.bf16.mxu0 %v1447
        %3070 = vmatpush1.bf16.msra.mxu0 %v1446
        %3071 = vmatprep.subr.bf16.mxu0 %v1451
        %3072 = vmatpush1.bf16.msra.mxu0 %v1450
        %3073 = vmatprep.subr.bf16.mxu0 %v1455
        %3074 = vmatpush1.bf16.msra.mxu0 %v1454
        %3075 = vmatprep.subr.bf16.mxu0 %v1459
        %3076 = vmatpush1.bf16.msra.mxu0 %v1458
        %3077 = vmatprep.subr.bf16.mxu0 %v1463
        %3078 = vmatpush1.bf16.msra.mxu0 %v1462
        %3079 = vmatprep.subr.bf16.mxu0 %v1467
        %3080 = vmatpush1.bf16.msra.mxu0 %v1466
        %3081 = vmatprep.subr.bf16.mxu0 %v1471
        %3082 = vmatpush1.bf16.msra.mxu0 %v1470
        %3083 = vmatprep.subr.bf16.mxu0 %v1475
        %3084 = vmatpush1.bf16.msra.mxu0 %v1474
        %3085 = vmatprep.subr.bf16.mxu0 0
        %3086 = vmatpush1.bf16.msra.mxu0 0
        %3087 = vmatprep.subr.bf16.mxu0 0
        %3088 = vmatpush1.bf16.msra.mxu0 0
        %3089 = vmatprep.subr.bf16.mxu0 0
        %3090 = vmatpush1.bf16.msra.mxu0 0
        %3091 = vmatprep.subr.bf16.mxu0 0
        %3092 = vmatpush1.bf16.msra.mxu0 0
        %3093 = vmatprep.subr.bf16.mxu0 0
        %3094 = vmatpush1.bf16.msra.mxu0 0
        %3095 = vmatprep.subr.bf16.mxu0 0
        %3096 = vmatpush1.bf16.msra.mxu0 0
        %3097 = vmatprep.subr.bf16.mxu0 0
        %3098 = vmatpush1.bf16.msra.mxu0 0
        %3099 = vmatprep.subr.bf16.mxu0 0
        %3100 = vmatpush1.bf16.msra.mxu0 0
        %3101 = vmatprep.mubr.bf16.mxu0 0
        %3102 = vmatmul.mubr.bf16.gmra.mrb[0].mxu0 %v2944
        %v3103 = vpop.f32.mrb[0].mxu0
        %v3104 = vadd.f32 %v3022, %v3103
        %v3105 = vpop.f32.mrb[0].mxu0
        %v3106 = vadd.f32 %v3024, %v3105
        %v3107 = vpop.f32.mrb[0].mxu0
        %v3108 = vpop.f32.mrb[0].mxu0
        %3109 = vdwg.mxu0
        %v3110 = vadd.f32 %v3063, %v812
        %v3111 = vadd.f32 %v3065, %v816
        %v3112 = vadd.f32 %v3104, %v820
        %v3113 = vadd.f32 %v3106, %v824
        %v3114 = vxor.u32 %v3110, 2147483648
        %v3115 = vxor.u32 %v3111, 2147483648
        %v3116 = vxor.u32 %v3112, 2147483648
        %v3117 = vmul.f32 %v3114, 1.442695
        %v3118 = vpow.pop %v3117
        %v3119 = vmul.f32 %v3115, 1.442695
        %v3120 = vpow.pop %v3119
        %v3121 = vmul.f32 %v3116, 1.442695
        %v3122 = vpow.pop %v3121
        %v3123 = vadd.f32 %v3118, 1.0
        %v3124 = vadd.f32 %v3120, 1.0
        %v3125 = vadd.f32 %v3122, 1.0
        %v3126 = vrcp.pop %v3123
        %v3127 = vmul.f32 1.0, %v3126
        %v3128 = vrcp.pop %v3124
        %v3129 = vmul.f32 1.0, %v3128
        %v3130 = vrcp.pop %v3125
        %v3131 = vmul.f32 1.0, %v3130
        %v3132 = vtanh.pop %v3113
        %v3133 = vmul.f32 %v3129, %v2831
        %v3134 = vmul.f32 %v3127, %v3132
        %v3135 = vadd.f32 %v3133, %v3134
        %v3136 = vtanh.pop %v3135
        %v3137 = vmul.f32 %v3131, %v3136
        %3138 = vmatprep.subr.bf16.mxu0 %v931
        %3139 = vmatpush1.bf16.msra.mxu0 %v930
        %3140 = vmatprep.subr.bf16.mxu0 %v935
        %3141 = vmatpush1.bf16.msra.mxu0 %v934
        %3142 = vmatprep.subr.bf16.mxu0 %v939
        %3143 = vmatpush1.bf16.msra.mxu0 %v938
        %3144 = vmatprep.subr.bf16.mxu0 %v943
        %3145 = vmatpush1.bf16.msra.mxu0 %v942
        %3146 = vmatprep.subr.bf16.mxu0 %v947
        %3147 = vmatpush1.bf16.msra.mxu0 %v946
        %3148 = vmatprep.subr.bf16.mxu0 %v951
        %3149 = vmatpush1.bf16.msra.mxu0 %v950
        %3150 = vmatprep.subr.bf16.mxu0 %v955
        %3151 = vmatpush1.bf16.msra.mxu0 %v954
        %3152 = vmatprep.subr.bf16.mxu0 %v959
        %3153 = vmatpush1.bf16.msra.mxu0 %v958
        %3154 = vmatprep.subr.bf16.mxu0 0
        %3155 = vmatpush1.bf16.msra.mxu0 0
        %3156 = vmatprep.subr.bf16.mxu0 0
        %3157 = vmatpush1.bf16.msra.mxu0 0
        %3158 = vmatprep.subr.bf16.mxu0 0
        %3159 = vmatpush1.bf16.msra.mxu0 0
        %3160 = vmatprep.subr.bf16.mxu0 0
        %3161 = vmatpush1.bf16.msra.mxu0 0
        %3162 = vmatprep.subr.bf16.mxu0 0
        %3163 = vmatpush1.bf16.msra.mxu0 0
        %3164 = vmatprep.subr.bf16.mxu0 0
        %3165 = vmatpush1.bf16.msra.mxu0 0
        %3166 = vmatprep.subr.bf16.mxu0 0
        %3167 = vmatpush1.bf16.msra.mxu0 0
        %3168 = vmatprep.subr.bf16.mxu0 0
        %3169 = vmatpush1.bf16.msra.mxu0 0
        %3170 = vmatprep.mubr.bf16.mxu0 0
        %3171 = vmatmul.mubr.bf16.gmra.mrb[0].mxu0 %v2944
        %v3172 = vpop.f32.mrb[0].mxu0
        %v3173 = vadd.f32 0.0, %v3172
        %v3174 = vpop.f32.mrb[0].mxu0
        %v3175 = vadd.f32 0.0, %v3174
        %v3176 = vpop.f32.mrb[0].mxu0
        %v3177 = vpop.f32.mrb[0].mxu0
        %3178 = vdwg.mxu0
        %3179 = vmatprep.subr.bf16.mxu0 %v933
        %3180 = vmatpush1.bf16.msra.mxu0 %v932
        %3181 = vmatprep.subr.bf16.mxu0 %v937
        %3182 = vmatpush1.bf16.msra.mxu0 %v936
        %3183 = vmatprep.subr.bf16.mxu0 %v941
        %3184 = vmatpush1.bf16.msra.mxu0 %v940
        %3185 = vmatprep.subr.bf16.mxu0 %v945
        %3186 = vmatpush1.bf16.msra.mxu0 %v944
        %3187 = vmatprep.subr.bf16.mxu0 %v949
        %3188 = vmatpush1.bf16.msra.mxu0 %v948
        %3189 = vmatprep.subr.bf16.mxu0 %v953
        %3190 = vmatpush1.bf16.msra.mxu0 %v952
        %3191 = vmatprep.subr.bf16.mxu0 %v957
        %3192 = vmatpush1.bf16.msra.mxu0 %v956
        %3193 = vmatprep.subr.bf16.mxu0 %v961
        %3194 = vmatpush1.bf16.msra.mxu0 %v960
        %3195 = vmatprep.subr.bf16.mxu0 0
        %3196 = vmatpush1.bf16.msra.mxu0 0
        %3197 = vmatprep.subr.bf16.mxu0 0
        %3198 = vmatpush1.bf16.msra.mxu0 0
        %3199 = vmatprep.subr.bf16.mxu0 0
        %3200 = vmatpush1.bf16.msra.mxu0 0
        %3201 = vmatprep.subr.bf16.mxu0 0
        %3202 = vmatpush1.bf16.msra.mxu0 0
        %3203 = vmatprep.subr.bf16.mxu0 0
        %3204 = vmatpush1.bf16.msra.mxu0 0
        %3205 = vmatprep.subr.bf16.mxu0 0
        %3206 = vmatpush1.bf16.msra.mxu0 0
        %3207 = vmatprep.subr.bf16.mxu0 0
        %3208 = vmatpush1.bf16.msra.mxu0 0
        %3209 = vmatprep.subr.bf16.mxu0 0
        %3210 = vmatpush1.bf16.msra.mxu0 0
        %3211 = vmatprep.mubr.bf16.mxu0 0
        %3212 = vmatmul.mubr.bf16.gmra.mrb[0].mxu0 %v2944
        %v3213 = vpop.f32.mrb[0].mxu0
        %v3214 = vadd.f32 0.0, %v3213
        %v3215 = vpop.f32.mrb[0].mxu0
        %v3216 = vadd.f32 0.0, %v3215
        %v3217 = vpop.f32.mrb[0].mxu0
        %v3218 = vpop.f32.mrb[0].mxu0
        %3219 = vdwg.mxu0
        %v3220 = vadd.f32 %v630, %v3173
        %v3221 = vadd.f32 %v632, %v3175
        %v3222 = vadd.f32 %v703, %v3214
        %v3223 = vadd.f32 %v705, %v3216
        %v3224 = vxor.u32 %v3220, 2147483648
        %v3225 = vxor.u32 %v3221, 2147483648
        %v3226 = vxor.u32 %v3222, 2147483648
        %v3227 = vmul.f32 %v3224, 1.442695
        %v3228 = vpow.pop %v3227
        %v3229 = vmul.f32 %v3225, 1.442695
        %v3230 = vpow.pop %v3229
        %v3231 = vmul.f32 %v3226, 1.442695
        %v3232 = vpow.pop %v3231
        %v3233 = vadd.f32 %v3228, 1.0
        %v3234 = vadd.f32 %v3230, 1.0
        %v3235 = vadd.f32 %v3232, 1.0
        %v3236 = vrcp.pop %v3233
        %v3237 = vmul.f32 1.0, %v3236
        %v3238 = vrcp.pop %v3234
        %v3239 = vmul.f32 1.0, %v3238
        %v3240 = vrcp.pop %v3235
        %v3241 = vmul.f32 1.0, %v3240
        %v3242 = vtanh.pop %v3223
        %v3243 = vmul.f32 %v3239, %v2941
        %v3244 = vmul.f32 %v3237, %v3242
        %v3245 = vadd.f32 %v3243, %v3244
        %v3246 = vtanh.pop %v3245
        %v3247 = vmul.f32 %v3241, %v3246
        %v3248 = vpack.c.bf16 %v3247, %v3247
        %v3249 = vpack.c.bf16 %v3137, %v3137
        %3250 = vmatprep.subr.bf16.mxu0 %v1203
        %3251 = vmatpush1.bf16.msra.mxu0 %v1202
        %3252 = vmatprep.subr.bf16.mxu0 %v1207
        %3253 = vmatpush1.bf16.msra.mxu0 %v1206
        %3254 = vmatprep.subr.bf16.mxu0 %v1211
        %3255 = vmatpush1.bf16.msra.mxu0 %v1210
        %3256 = vmatprep.subr.bf16.mxu0 %v1215
        %3257 = vmatpush1.bf16.msra.mxu0 %v1214
        %3258 = vmatprep.subr.bf16.mxu0 %v1219
        %3259 = vmatpush1.bf16.msra.mxu0 %v1218
        %3260 = vmatprep.subr.bf16.mxu0 %v1223
        %3261 = vmatpush1.bf16.msra.mxu0 %v1222
        %3262 = vmatprep.subr.bf16.mxu0 %v1227
        %3263 = vmatpush1.bf16.msra.mxu0 %v1226
        %3264 = vmatprep.subr.bf16.mxu0 %v1231
        %3265 = vmatpush1.bf16.msra.mxu0 %v1230
        %3266 = vmatprep.subr.bf16.mxu0 0
        %3267 = vmatpush1.bf16.msra.mxu0 0
        %3268 = vmatprep.subr.bf16.mxu0 0
        %3269 = vmatpush1.bf16.msra.mxu0 0
        %3270 = vmatprep.subr.bf16.mxu0 0
        %3271 = vmatpush1.bf16.msra.mxu0 0
        %3272 = vmatprep.subr.bf16.mxu0 0
        %3273 = vmatpush1.bf16.msra.mxu0 0
        %3274 = vmatprep.subr.bf16.mxu0 0
        %3275 = vmatpush1.bf16.msra.mxu0 0
        %3276 = vmatprep.subr.bf16.mxu0 0
        %3277 = vmatpush1.bf16.msra.mxu0 0
        %3278 = vmatprep.subr.bf16.mxu0 0
        %3279 = vmatpush1.bf16.msra.mxu0 0
        %3280 = vmatprep.subr.bf16.mxu0 0
        %3281 = vmatpush1.bf16.msra.mxu0 0
        %3282 = vmatprep.mubr.bf16.mxu0 0
        %3283 = vmatmul.mubr.bf16.gmra.mrb[0].mxu0 %v3249
        %v3284 = vpop.f32.mrb[0].mxu0
        %v3285 = vadd.f32 0.0, %v3284
        %v3286 = vpop.f32.mrb[0].mxu0
        %v3287 = vadd.f32 0.0, %v3286
        %v3288 = vpop.f32.mrb[0].mxu0
        %v3289 = vpop.f32.mrb[0].mxu0
        %3290 = vdwg.mxu0
        %3291 = vmatprep.subr.bf16.mxu0 %v1205
        %3292 = vmatpush1.bf16.msra.mxu0 %v1204
        %3293 = vmatprep.subr.bf16.mxu0 %v1209
        %3294 = vmatpush1.bf16.msra.mxu0 %v1208
        %3295 = vmatprep.subr.bf16.mxu0 %v1213
        %3296 = vmatpush1.bf16.msra.mxu0 %v1212
        %3297 = vmatprep.subr.bf16.mxu0 %v1217
        %3298 = vmatpush1.bf16.msra.mxu0 %v1216
        %3299 = vmatprep.subr.bf16.mxu0 %v1221
        %3300 = vmatpush1.bf16.msra.mxu0 %v1220
        %3301 = vmatprep.subr.bf16.mxu0 %v1225
        %3302 = vmatpush1.bf16.msra.mxu0 %v1224
        %3303 = vmatprep.subr.bf16.mxu0 %v1229
        %3304 = vmatpush1.bf16.msra.mxu0 %v1228
        %3305 = vmatprep.subr.bf16.mxu0 %v1233
        %3306 = vmatpush1.bf16.msra.mxu0 %v1232
        %3307 = vmatprep.subr.bf16.mxu0 0
        %3308 = vmatpush1.bf16.msra.mxu0 0
        %3309 = vmatprep.subr.bf16.mxu0 0
        %3310 = vmatpush1.bf16.msra.mxu0 0
        %3311 = vmatprep.subr.bf16.mxu0 0
        %3312 = vmatpush1.bf16.msra.mxu0 0
        %3313 = vmatprep.subr.bf16.mxu0 0
        %3314 = vmatpush1.bf16.msra.mxu0 0
        %3315 = vmatprep.subr.bf16.mxu0 0
        %3316 = vmatpush1.bf16.msra.mxu0 0
        %3317 = vmatprep.subr.bf16.mxu0 0
        %3318 = vmatpush1.bf16.msra.mxu0 0
        %3319 = vmatprep.subr.bf16.mxu0 0
        %3320 = vmatpush1.bf16.msra.mxu0 0
        %3321 = vmatprep.subr.bf16.mxu0 0
        %3322 = vmatpush1.bf16.msra.mxu0 0
        %3323 = vmatprep.mubr.bf16.mxu0 0
        %3324 = vmatmul.mubr.bf16.gmra.mrb[0].mxu0 %v3249
        %v3325 = vpop.f32.mrb[0].mxu0
        %v3326 = vadd.f32 0.0, %v3325
        %v3327 = vpop.f32.mrb[0].mxu0
        %v3328 = vadd.f32 0.0, %v3327
        %v3329 = vpop.f32.mrb[0].mxu0
        %v3330 = vpop.f32.mrb[0].mxu0
        %3331 = vdwg.mxu0
        %3332 = vmatprep.subr.bf16.mxu0 %v1445
        %3333 = vmatpush1.bf16.msra.mxu0 %v1444
        %3334 = vmatprep.subr.bf16.mxu0 %v1449
        %3335 = vmatpush1.bf16.msra.mxu0 %v1448
        %3336 = vmatprep.subr.bf16.mxu0 %v1453
        %3337 = vmatpush1.bf16.msra.mxu0 %v1452
        %3338 = vmatprep.subr.bf16.mxu0 %v1457
        %3339 = vmatpush1.bf16.msra.mxu0 %v1456
        %3340 = vmatprep.subr.bf16.mxu0 %v1461
        %3341 = vmatpush1.bf16.msra.mxu0 %v1460
        %3342 = vmatprep.subr.bf16.mxu0 %v1465
        %3343 = vmatpush1.bf16.msra.mxu0 %v1464
        %3344 = vmatprep.subr.bf16.mxu0 %v1469
        %3345 = vmatpush1.bf16.msra.mxu0 %v1468
        %3346 = vmatprep.subr.bf16.mxu0 %v1473
        %3347 = vmatpush1.bf16.msra.mxu0 %v1472
        %3348 = vmatprep.subr.bf16.mxu0 0
        %3349 = vmatpush1.bf16.msra.mxu0 0
        %3350 = vmatprep.subr.bf16.mxu0 0
        %3351 = vmatpush1.bf16.msra.mxu0 0
        %3352 = vmatprep.subr.bf16.mxu0 0
        %3353 = vmatpush1.bf16.msra.mxu0 0
        %3354 = vmatprep.subr.bf16.mxu0 0
        %3355 = vmatpush1.bf16.msra.mxu0 0
        %3356 = vmatprep.subr.bf16.mxu0 0
        %3357 = vmatpush1.bf16.msra.mxu0 0
        %3358 = vmatprep.subr.bf16.mxu0 0
        %3359 = vmatpush1.bf16.msra.mxu0 0
        %3360 = vmatprep.subr.bf16.mxu0 0
        %3361 = vmatpush1.bf16.msra.mxu0 0
        %3362 = vmatprep.subr.bf16.mxu0 0
        %3363 = vmatpush1.bf16.msra.mxu0 0
        %3364 = vmatprep.mubr.bf16.mxu0 0
        %3365 = vmatmul.mubr.bf16.gmra.mrb[0].mxu0 %v3248
        %v3366 = vpop.f32.mrb[0].mxu0
        %v3367 = vadd.f32 %v3285, %v3366
        %v3368 = vpop.f32.mrb[0].mxu0
        %v3369 = vadd.f32 %v3287, %v3368
        %v3370 = vpop.f32.mrb[0].mxu0
        %v3371 = vpop.f32.mrb[0].mxu0
        %3372 = vdwg.mxu0
        %3373 = vmatprep.subr.bf16.mxu0 %v1447
        %3374 = vmatpush1.bf16.msra.mxu0 %v1446
        %3375 = vmatprep.subr.bf16.mxu0 %v1451
        %3376 = vmatpush1.bf16.msra.mxu0 %v1450
        %3377 = vmatprep.subr.bf16.mxu0 %v1455
        %3378 = vmatpush1.bf16.msra.mxu0 %v1454
        %3379 = vmatprep.subr.bf16.mxu0 %v1459
        %3380 = vmatpush1.bf16.msra.mxu0 %v1458
        %3381 = vmatprep.subr.bf16.mxu0 %v1463
        %3382 = vmatpush1.bf16.msra.mxu0 %v1462
        %3383 = vmatprep.subr.bf16.mxu0 %v1467
        %3384 = vmatpush1.bf16.msra.mxu0 %v1466
        %3385 = vmatprep.subr.bf16.mxu0 %v1471
        %3386 = vmatpush1.bf16.msra.mxu0 %v1470
        %3387 = vmatprep.subr.bf16.mxu0 %v1475
        %3388 = vmatpush1.bf16.msra.mxu0 %v1474
        %3389 = vmatprep.subr.bf16.mxu0 0
        %3390 = vmatpush1.bf16.msra.mxu0 0
        %3391 = vmatprep.subr.bf16.mxu0 0
        %3392 = vmatpush1.bf16.msra.mxu0 0
        %3393 = vmatprep.subr.bf16.mxu0 0
        %3394 = vmatpush1.bf16.msra.mxu0 0
        %3395 = vmatprep.subr.bf16.mxu0 0
        %3396 = vmatpush1.bf16.msra.mxu0 0
        %3397 = vmatprep.subr.bf16.mxu0 0
        %3398 = vmatpush1.bf16.msra.mxu0 0
        %3399 = vmatprep.subr.bf16.mxu0 0
        %3400 = vmatpush1.bf16.msra.mxu0 0
        %3401 = vmatprep.subr.bf16.mxu0 0
        %3402 = vmatpush1.bf16.msra.mxu0 0
        %3403 = vmatprep.subr.bf16.mxu0 0
        %3404 = vmatpush1.bf16.msra.mxu0 0
        %3405 = vmatprep.mubr.bf16.mxu0 0
        %3406 = vmatmul.mubr.bf16.gmra.mrb[0].mxu0 %v3248
        %v3407 = vpop.f32.mrb[0].mxu0
        %v3408 = vadd.f32 %v3326, %v3407
        %v3409 = vpop.f32.mrb[0].mxu0
        %v3410 = vadd.f32 %v3328, %v3409
        %v3411 = vpop.f32.mrb[0].mxu0
        %v3412 = vpop.f32.mrb[0].mxu0
        %3413 = vdwg.mxu0
        %v3414 = vadd.f32 %v3367, %v812
        %v3415 = vadd.f32 %v3369, %v816
        %v3416 = vadd.f32 %v3408, %v820
        %v3417 = vadd.f32 %v3410, %v824
        %v3418 = vxor.u32 %v3414, 2147483648
        %v3419 = vxor.u32 %v3415, 2147483648
        %v3420 = vxor.u32 %v3416, 2147483648
        %v3421 = vmul.f32 %v3418, 1.442695
        %v3422 = vpow.pop %v3421
        %v3423 = vmul.f32 %v3419, 1.442695
        %v3424 = vpow.pop %v3423
        %v3425 = vmul.f32 %v3420, 1.442695
        %v3426 = vpow.pop %v3425
        %v3427 = vadd.f32 %v3422, 1.0
        %v3428 = vadd.f32 %v3424, 1.0
        %v3429 = vadd.f32 %v3426, 1.0
        %v3430 = vrcp.pop %v3427
        %v3431 = vmul.f32 1.0, %v3430
        %v3432 = vrcp.pop %v3428
        %v3433 = vmul.f32 1.0, %v3432
        %v3434 = vrcp.pop %v3429
        %v3435 = vmul.f32 1.0, %v3434
        %v3436 = vtanh.pop %v3417
        %v3437 = vmul.f32 %v3433, %v3135
        %v3438 = vmul.f32 %v3431, %v3436
        %v3439 = vadd.f32 %v3437, %v3438
        %v3440 = vtanh.pop %v3439
        %v3441 = vmul.f32 %v3435, %v3440
        %3442 = vmatprep.subr.bf16.mxu0 %v931
        %3443 = vmatpush1.bf16.msra.mxu0 %v930
        %3444 = vmatprep.subr.bf16.mxu0 %v935
        %3445 = vmatpush1.bf16.msra.mxu0 %v934
        %3446 = vmatprep.subr.bf16.mxu0 %v939
        %3447 = vmatpush1.bf16.msra.mxu0 %v938
        %3448 = vmatprep.subr.bf16.mxu0 %v943
        %3449 = vmatpush1.bf16.msra.mxu0 %v942
        %3450 = vmatprep.subr.bf16.mxu0 %v947
        %3451 = vmatpush1.bf16.msra.mxu0 %v946
        %3452 = vmatprep.subr.bf16.mxu0 %v951
        %3453 = vmatpush1.bf16.msra.mxu0 %v950
        %3454 = vmatprep.subr.bf16.mxu0 %v955
        %3455 = vmatpush1.bf16.msra.mxu0 %v954
        %3456 = vmatprep.subr.bf16.mxu0 %v959
        %3457 = vmatpush1.bf16.msra.mxu0 %v958
        %3458 = vmatprep.subr.bf16.mxu0 0
        %3459 = vmatpush1.bf16.msra.mxu0 0
        %3460 = vmatprep.subr.bf16.mxu0 0
        %3461 = vmatpush1.bf16.msra.mxu0 0
        %3462 = vmatprep.subr.bf16.mxu0 0
        %3463 = vmatpush1.bf16.msra.mxu0 0
        %3464 = vmatprep.subr.bf16.mxu0 0
        %3465 = vmatpush1.bf16.msra.mxu0 0
        %3466 = vmatprep.subr.bf16.mxu0 0
        %3467 = vmatpush1.bf16.msra.mxu0 0
        %3468 = vmatprep.subr.bf16.mxu0 0
        %3469 = vmatpush1.bf16.msra.mxu0 0
        %3470 = vmatprep.subr.bf16.mxu0 0
        %3471 = vmatpush1.bf16.msra.mxu0 0
        %3472 = vmatprep.subr.bf16.mxu0 0
        %3473 = vmatpush1.bf16.msra.mxu0 0
        %3474 = vmatprep.mubr.bf16.mxu0 0
        %3475 = vmatmul.mubr.bf16.gmra.mrb[0].mxu0 %v3248
        %v3476 = vpop.f32.mrb[0].mxu0
        %v3477 = vadd.f32 0.0, %v3476
        %v3478 = vpop.f32.mrb[0].mxu0
        %v3479 = vadd.f32 0.0, %v3478
        %v3480 = vpop.f32.mrb[0].mxu0
        %v3481 = vpop.f32.mrb[0].mxu0
        %3482 = vdwg.mxu0
        %3483 = vmatprep.subr.bf16.mxu0 %v933
        %3484 = vmatpush1.bf16.msra.mxu0 %v932
        %3485 = vmatprep.subr.bf16.mxu0 %v937
        %3486 = vmatpush1.bf16.msra.mxu0 %v936
        %3487 = vmatprep.subr.bf16.mxu0 %v941
        %3488 = vmatpush1.bf16.msra.mxu0 %v940
        %3489 = vmatprep.subr.bf16.mxu0 %v945
        %3490 = vmatpush1.bf16.msra.mxu0 %v944
        %3491 = vmatprep.subr.bf16.mxu0 %v949
        %3492 = vmatpush1.bf16.msra.mxu0 %v948
        %3493 = vmatprep.subr.bf16.mxu0 %v953
        %3494 = vmatpush1.bf16.msra.mxu0 %v952
        %3495 = vmatprep.subr.bf16.mxu0 %v957
        %3496 = vmatpush1.bf16.msra.mxu0 %v956
        %3497 = vmatprep.subr.bf16.mxu0 %v961
        %3498 = vmatpush1.bf16.msra.mxu0 %v960
        %3499 = vmatprep.subr.bf16.mxu0 0
        %3500 = vmatpush1.bf16.msra.mxu0 0
        %3501 = vmatprep.subr.bf16.mxu0 0
        %3502 = vmatpush1.bf16.msra.mxu0 0
        %3503 = vmatprep.subr.bf16.mxu0 0
        %3504 = vmatpush1.bf16.msra.mxu0 0
        %3505 = vmatprep.subr.bf16.mxu0 0
        %3506 = vmatpush1.bf16.msra.mxu0 0
        %3507 = vmatprep.subr.bf16.mxu0 0
        %3508 = vmatpush1.bf16.msra.mxu0 0
        %3509 = vmatprep.subr.bf16.mxu0 0
        %3510 = vmatpush1.bf16.msra.mxu0 0
        %3511 = vmatprep.subr.bf16.mxu0 0
        %3512 = vmatpush1.bf16.msra.mxu0 0
        %3513 = vmatprep.subr.bf16.mxu0 0
        %3514 = vmatpush1.bf16.msra.mxu0 0
        %3515 = vmatprep.mubr.bf16.mxu0 0
        %3516 = vmatmul.mubr.bf16.gmra.mrb[0].mxu0 %v3248
        %v3517 = vpop.f32.mrb[0].mxu0
        %v3518 = vadd.f32 0.0, %v3517
        %v3519 = vpop.f32.mrb[0].mxu0
        %v3520 = vadd.f32 0.0, %v3519
        %v3521 = vpop.f32.mrb[0].mxu0
        %v3522 = vpop.f32.mrb[0].mxu0
        %3523 = vdwg.mxu0
        %v3524 = vadd.f32 %v634, %v3477
        %v3525 = vadd.f32 %v636, %v3479
        %v3526 = vadd.f32 %v707, %v3518
        %v3527 = vadd.f32 %v709, %v3520
        %v3528 = vxor.u32 %v3524, 2147483648
        %v3529 = vxor.u32 %v3525, 2147483648
        %v3530 = vxor.u32 %v3526, 2147483648
        %v3531 = vmul.f32 %v3528, 1.442695
        %v3532 = vpow.pop %v3531
        %v3533 = vmul.f32 %v3529, 1.442695
        %v3534 = vpow.pop %v3533
        %v3535 = vmul.f32 %v3530, 1.442695
        %v3536 = vpow.pop %v3535
        %v3537 = vadd.f32 %v3532, 1.0
        %v3538 = vadd.f32 %v3534, 1.0
        %v3539 = vadd.f32 %v3536, 1.0
        %v3540 = vrcp.pop %v3537
        %v3541 = vmul.f32 1.0, %v3540
        %v3542 = vrcp.pop %v3538
        %v3543 = vmul.f32 1.0, %v3542
        %v3544 = vrcp.pop %v3539
        %v3545 = vmul.f32 1.0, %v3544
        %v3546 = vtanh.pop %v3527
        %v3547 = vmul.f32 %v3543, %v3245
        %v3548 = vmul.f32 %v3541, %v3546
        %v3549 = vadd.f32 %v3547, %v3548
        %v3550 = vtanh.pop %v3549
        %v3551 = vmul.f32 %v3545, %v3550
        %v3552 = vpack.c.bf16 %v3551, %v3551
        %v3553 = vpack.c.bf16 %v3441, %v3441
        %3554 = vmatprep.subr.bf16.mxu0 %v1203
        %3555 = vmatpush1.bf16.msra.mxu0 %v1202
        %3556 = vmatprep.subr.bf16.mxu0 %v1207
        %3557 = vmatpush1.bf16.msra.mxu0 %v1206
        %3558 = vmatprep.subr.bf16.mxu0 %v1211
        %3559 = vmatpush1.bf16.msra.mxu0 %v1210
        %3560 = vmatprep.subr.bf16.mxu0 %v1215
        %3561 = vmatpush1.bf16.msra.mxu0 %v1214
        %3562 = vmatprep.subr.bf16.mxu0 %v1219
        %3563 = vmatpush1.bf16.msra.mxu0 %v1218
        %3564 = vmatprep.subr.bf16.mxu0 %v1223
        %3565 = vmatpush1.bf16.msra.mxu0 %v1222
        %3566 = vmatprep.subr.bf16.mxu0 %v1227
        %3567 = vmatpush1.bf16.msra.mxu0 %v1226
        %3568 = vmatprep.subr.bf16.mxu0 %v1231
        %3569 = vmatpush1.bf16.msra.mxu0 %v1230
        %3570 = vmatprep.subr.bf16.mxu0 0
        %3571 = vmatpush1.bf16.msra.mxu0 0
        %3572 = vmatprep.subr.bf16.mxu0 0
        %3573 = vmatpush1.bf16.msra.mxu0 0
        %3574 = vmatprep.subr.bf16.mxu0 0
        %3575 = vmatpush1.bf16.msra.mxu0 0
        %3576 = vmatprep.subr.bf16.mxu0 0
        %3577 = vmatpush1.bf16.msra.mxu0 0
        %3578 = vmatprep.subr.bf16.mxu0 0
        %3579 = vmatpush1.bf16.msra.mxu0 0
        %3580 = vmatprep.subr.bf16.mxu0 0
        %3581 = vmatpush1.bf16.msra.mxu0 0
        %3582 = vmatprep.subr.bf16.mxu0 0
        %3583 = vmatpush1.bf16.msra.mxu0 0
        %3584 = vmatprep.subr.bf16.mxu0 0
        %3585 = vmatpush1.bf16.msra.mxu0 0
        %3586 = vmatprep.mubr.bf16.mxu0 0
        %3587 = vmatmul.mubr.bf16.gmra.mrb[0].mxu0 %v3553
        %v3588 = vpop.f32.mrb[0].mxu0
        %v3589 = vadd.f32 0.0, %v3588
        %v3590 = vpop.f32.mrb[0].mxu0
        %v3591 = vadd.f32 0.0, %v3590
        %v3592 = vpop.f32.mrb[0].mxu0
        %v3593 = vpop.f32.mrb[0].mxu0
        %3594 = vdwg.mxu0
        %3595 = vmatprep.subr.bf16.mxu0 %v1205
        %3596 = vmatpush1.bf16.msra.mxu0 %v1204
        %3597 = vmatprep.subr.bf16.mxu0 %v1209
        %3598 = vmatpush1.bf16.msra.mxu0 %v1208
        %3599 = vmatprep.subr.bf16.mxu0 %v1213
        %3600 = vmatpush1.bf16.msra.mxu0 %v1212
        %3601 = vmatprep.subr.bf16.mxu0 %v1217
        %3602 = vmatpush1.bf16.msra.mxu0 %v1216
        %3603 = vmatprep.subr.bf16.mxu0 %v1221
        %3604 = vmatpush1.bf16.msra.mxu0 %v1220
        %3605 = vmatprep.subr.bf16.mxu0 %v1225
        %3606 = vmatpush1.bf16.msra.mxu0 %v1224
        %3607 = vmatprep.subr.bf16.mxu0 %v1229
        %3608 = vmatpush1.bf16.msra.mxu0 %v1228
        %3609 = vmatprep.subr.bf16.mxu0 %v1233
        %3610 = vmatpush1.bf16.msra.mxu0 %v1232
        %3611 = vmatprep.subr.bf16.mxu0 0
        %3612 = vmatpush1.bf16.msra.mxu0 0
        %3613 = vmatprep.subr.bf16.mxu0 0
        %3614 = vmatpush1.bf16.msra.mxu0 0
        %3615 = vmatprep.subr.bf16.mxu0 0
        %3616 = vmatpush1.bf16.msra.mxu0 0
        %3617 = vmatprep.subr.bf16.mxu0 0
        %3618 = vmatpush1.bf16.msra.mxu0 0
        %3619 = vmatprep.subr.bf16.mxu0 0
        %3620 = vmatpush1.bf16.msra.mxu0 0
        %3621 = vmatprep.subr.bf16.mxu0 0
        %3622 = vmatpush1.bf16.msra.mxu0 0
        %3623 = vmatprep.subr.bf16.mxu0 0
        %3624 = vmatpush1.bf16.msra.mxu0 0
        %3625 = vmatprep.subr.bf16.mxu0 0
        %3626 = vmatpush1.bf16.msra.mxu0 0
        %3627 = vmatprep.mubr.bf16.mxu0 0
        %3628 = vmatmul.mubr.bf16.gmra.mrb[0].mxu0 %v3553
        %v3629 = vpop.f32.mrb[0].mxu0
        %v3630 = vadd.f32 0.0, %v3629
        %v3631 = vpop.f32.mrb[0].mxu0
        %v3632 = vadd.f32 0.0, %v3631
        %v3633 = vpop.f32.mrb[0].mxu0
        %v3634 = vpop.f32.mrb[0].mxu0
        %3635 = vdwg.mxu0
        %3636 = vmatprep.subr.bf16.mxu0 %v1445
        %3637 = vmatpush1.bf16.msra.mxu0 %v1444
        %3638 = vmatprep.subr.bf16.mxu0 %v1449
        %3639 = vmatpush1.bf16.msra.mxu0 %v1448
        %3640 = vmatprep.subr.bf16.mxu0 %v1453
        %3641 = vmatpush1.bf16.msra.mxu0 %v1452
        %3642 = vmatprep.subr.bf16.mxu0 %v1457
        %3643 = vmatpush1.bf16.msra.mxu0 %v1456
        %3644 = vmatprep.subr.bf16.mxu0 %v1461
        %3645 = vmatpush1.bf16.msra.mxu0 %v1460
        %3646 = vmatprep.subr.bf16.mxu0 %v1465
        %3647 = vmatpush1.bf16.msra.mxu0 %v1464
        %3648 = vmatprep.subr.bf16.mxu0 %v1469
        %3649 = vmatpush1.bf16.msra.mxu0 %v1468
        %3650 = vmatprep.subr.bf16.mxu0 %v1473
        %3651 = vmatpush1.bf16.msra.mxu0 %v1472
        %3652 = vmatprep.subr.bf16.mxu0 0
        %3653 = vmatpush1.bf16.msra.mxu0 0
        %3654 = vmatprep.subr.bf16.mxu0 0
        %3655 = vmatpush1.bf16.msra.mxu0 0
        %3656 = vmatprep.subr.bf16.mxu0 0
        %3657 = vmatpush1.bf16.msra.mxu0 0
        %3658 = vmatprep.subr.bf16.mxu0 0
        %3659 = vmatpush1.bf16.msra.mxu0 0
        %3660 = vmatprep.subr.bf16.mxu0 0
        %3661 = vmatpush1.bf16.msra.mxu0 0
        %3662 = vmatprep.subr.bf16.mxu0 0
        %3663 = vmatpush1.bf16.msra.mxu0 0
        %3664 = vmatprep.subr.bf16.mxu0 0
        %3665 = vmatpush1.bf16.msra.mxu0 0
        %3666 = vmatprep.subr.bf16.mxu0 0
        %3667 = vmatpush1.bf16.msra.mxu0 0
        %3668 = vmatprep.mubr.bf16.mxu0 0
        %3669 = vmatmul.mubr.bf16.gmra.mrb[0].mxu0 %v3552
        %v3670 = vpop.f32.mrb[0].mxu0
        %v3671 = vadd.f32 %v3589, %v3670
        %v3672 = vpop.f32.mrb[0].mxu0
        %v3673 = vadd.f32 %v3591, %v3672
        %v3674 = vpop.f32.mrb[0].mxu0
        %v3675 = vpop.f32.mrb[0].mxu0
        %3676 = vdwg.mxu0
        %3677 = vmatprep.subr.bf16.mxu0 %v1447
        %3678 = vmatpush1.bf16.msra.mxu0 %v1446
        %3679 = vmatprep.subr.bf16.mxu0 %v1451
        %3680 = vmatpush1.bf16.msra.mxu0 %v1450
        %3681 = vmatprep.subr.bf16.mxu0 %v1455
        %3682 = vmatpush1.bf16.msra.mxu0 %v1454
        %3683 = vmatprep.subr.bf16.mxu0 %v1459
        %3684 = vmatpush1.bf16.msra.mxu0 %v1458
        %3685 = vmatprep.subr.bf16.mxu0 %v1463
        %3686 = vmatpush1.bf16.msra.mxu0 %v1462
        %3687 = vmatprep.subr.bf16.mxu0 %v1467
        %3688 = vmatpush1.bf16.msra.mxu0 %v1466
        %3689 = vmatprep.subr.bf16.mxu0 %v1471
        %3690 = vmatpush1.bf16.msra.mxu0 %v1470
        %3691 = vmatprep.subr.bf16.mxu0 %v1475
        %3692 = vmatpush1.bf16.msra.mxu0 %v1474
        %3693 = vmatprep.subr.bf16.mxu0 0
        %3694 = vmatpush1.bf16.msra.mxu0 0
        %3695 = vmatprep.subr.bf16.mxu0 0
        %3696 = vmatpush1.bf16.msra.mxu0 0
        %3697 = vmatprep.subr.bf16.mxu0 0
        %3698 = vmatpush1.bf16.msra.mxu0 0
        %3699 = vmatprep.subr.bf16.mxu0 0
        %3700 = vmatpush1.bf16.msra.mxu0 0
        %3701 = vmatprep.subr.bf16.mxu0 0
        %3702 = vmatpush1.bf16.msra.mxu0 0
        %3703 = vmatprep.subr.bf16.mxu0 0
        %3704 = vmatpush1.bf16.msra.mxu0 0
        %3705 = vmatprep.subr.bf16.mxu0 0
        %3706 = vmatpush1.bf16.msra.mxu0 0
        %3707 = vmatprep.subr.bf16.mxu0 0
        %3708 = vmatpush1.bf16.msra.mxu0 0
        %3709 = vmatprep.mubr.bf16.mxu0 0
        %3710 = vmatmul.mubr.bf16.gmra.mrb[0].mxu0 %v3552
        %v3711 = vpop.f32.mrb[0].mxu0
        %v3712 = vadd.f32 %v3630, %v3711
        %v3713 = vpop.f32.mrb[0].mxu0
        %v3714 = vadd.f32 %v3632, %v3713
        %v3715 = vpop.f32.mrb[0].mxu0
        %v3716 = vpop.f32.mrb[0].mxu0
        %3717 = vdwg.mxu0
        %v3718 = vadd.f32 %v3671, %v812
        %v3719 = vadd.f32 %v3673, %v816
        %v3720 = vadd.f32 %v3712, %v820
        %v3721 = vadd.f32 %v3714, %v824
        %v3722 = vxor.u32 %v3718, 2147483648
        %v3723 = vxor.u32 %v3719, 2147483648
        %v3724 = vxor.u32 %v3720, 2147483648
        %v3725 = vmul.f32 %v3722, 1.442695
        %v3726 = vpow.pop %v3725
        %v3727 = vmul.f32 %v3723, 1.442695
        %v3728 = vpow.pop %v3727
        %v3729 = vmul.f32 %v3724, 1.442695
        %v3730 = vpow.pop %v3729
        %v3731 = vadd.f32 %v3726, 1.0
        %v3732 = vadd.f32 %v3728, 1.0
        %v3733 = vadd.f32 %v3730, 1.0
        %v3734 = vrcp.pop %v3731
        %v3735 = vmul.f32 1.0, %v3734
        %v3736 = vrcp.pop %v3732
        %v3737 = vmul.f32 1.0, %v3736
        %v3738 = vrcp.pop %v3733
        %v3739 = vmul.f32 1.0, %v3738
        %v3740 = vtanh.pop %v3721
        %v3741 = vmul.f32 %v3737, %v3439
        %v3742 = vmul.f32 %v3735, %v3740
        %v3743 = vadd.f32 %v3741, %v3742
        %v3744 = vtanh.pop %v3743
        %v3745 = vmul.f32 %v3739, %v3744
        %3746 = vst [vmem:[#allocation2] sm:$0xff] %v3551
        %3747 = vst [vmem:[#allocation3] sm:$0xff] %v3549
        %3748 = vst [vmem:[#allocation4] sm:$0xff] %v3745
        %3749 = vst [vmem:[#allocation5] sm:$0xff] %v3743
        %p3750 = scmp.eq.s32.totalorder %s20, 1
        // Predicated region
        $region65: #{culinary_lm_forward.2} parent=47 // pred_check
          %p3751 = pneg %p3750
        $region66: #{culinary_lm_forward.2} parent=47 // pred_check_branch
          %3753 = sbr.rel (%p3751) target = $region68
        $region67: #{culinary_lm_forward.2} parent=47 // pred_region
          %3754 = vst [vmem:[%s7] sm:$0xff] %v3745
        $region68: #{culinary_lm_forward.2} parent=47 // pred_fallthru
          _
        // Predicated region
        $region69: #{culinary_lm_forward.2} parent=47 // pred_check
          %p3755 = pneg %p185
        $region70: #{culinary_lm_forward.2} parent=47 // pred_check_branch
          %3757 = sbr.rel (%p3755) target = $region72
        $region71: #{culinary_lm_forward.2} parent=47 // pred_region
          _
        $region72: #{culinary_lm_forward.2} parent=47 // pred_fallthru
          _
        // Predicated region
        $region73: #{culinary_lm_forward.2} parent=47 // pred_check
          %p3758 = pneg %p185
        $region74: #{culinary_lm_forward.2} parent=47 // pred_check_branch
          %3760 = sbr.rel (%p3758) target = $region76
        $region75: #{culinary_lm_forward.2} parent=47 // pred_region
          _
        $region76: #{culinary_lm_forward.2} parent=47 // pred_fallthru
          _
      $region48: #{culinary_lm_forward.2} parent=5 // pred_fallthru
        _
      %p3761 = scmp.le.s32.totalorder 2, %s15
      // Predicated region
      $region77: #{culinary_lm_forward.2} parent=5 // pred_check
        %p3762 = pneg %p3761
      $region78: #{culinary_lm_forward.2} parent=5 // pred_check_branch
        %3764 = sbr.rel (%p3762) target = $region80
      $region79: #{culinary_lm_forward.2} parent=5 // pred_region
        %s3765 = ssub.s32 %s15, 2
      $region80: #{culinary_lm_forward.2} parent=5 // pred_fallthru
        _
    $region6: #{culinary_lm_forward.2} parent=1 // loop_footer
      %s19 = sadd.s32 1, %s15
    $region7: #{culinary_lm_forward.2} parent=1 // loop_footer_branch
      %14 = sbr.rel target = $region3
    $region8: #{culinary_lm_forward.2} parent=1 // loop_exit
      _
    %3766 = vsyncpa [#allocation7], 1
    %s3767 = scalar_lea.sflag [#allocation7], 1
    %3768 = vsyncpa %s3767, 1
    %3769 = vsyncpa [#allocation9], 1

// kernel: culinary_lm_forward.3
$region0: #{culinary_lm_forward.3}
  #allocation0 [shape = 'u32[]', space=smem, size = 0x4, offset = 0x4, fixed_abs, tag = 'smem constant byte address 0x4 - core index']
  #allocation1 [shape = 'u32[144,128]{1,0:T(1,128)}', space=vmem, size = 0x12000, scoped, tag = 'internal scratch']
  %s0 = inlined_call_operand.vmem [shape: f32[8,128], index: 0, kind: input, shape index: {}]
  %s1 = inlined_call_operand.vmem [shape: bf16[128,128], index: 1, kind: input, shape index: {}]
  %s2 = inlined_call_operand.vmem [shape: f32[1,128], index: 2, kind: input, shape index: {}]
  %s3 = inlined_call_operand.vmem [shape: bf16[128,128], index: 3, kind: input, shape index: {}]
  %s4 = inlined_call_operand.vmem [shape: f32[1,128], index: 4, kind: input, shape index: {}]
  %s5 = inlined_call_operand.vmem [shape: f32[8,128], index: 5, kind: output, shape index: {}]
  %s6 = sld [smem:[#allocation0]]
  $region30: #{culinary_lm_forward.3} parent=0
    _
  %s8 = ssub.s32 1, %s6
  %s9 = scalar_select 0, %s8, %s6
  // Predicated region
  $region2: #{culinary_lm_forward.3} parent=0 // pred_check
    _
  $region3: #{culinary_lm_forward.3} parent=0 // pred_check_branch
    %11 = sbr.rel (0) target = $region5
  $region4: #{culinary_lm_forward.3} parent=0 // pred_region
    _
  $region5: #{culinary_lm_forward.3} parent=0 // pred_fallthru
    _
  // Predicated region
  $region6: #{culinary_lm_forward.3} parent=0 // pred_check
    _
  $region7: #{culinary_lm_forward.3} parent=0 // pred_check_branch
    %13 = sbr.rel (0) target = $region9
  $region8: #{culinary_lm_forward.3} parent=0 // pred_region
    _
  $region9: #{culinary_lm_forward.3} parent=0 // pred_fallthru
    _
  // Predicated region
  $region10: #{culinary_lm_forward.3} parent=0 // pred_check
    _
  $region11: #{culinary_lm_forward.3} parent=0 // pred_check_branch
    %15 = sbr.rel (0) target = $region13
  $region12: #{culinary_lm_forward.3} parent=0 // pred_region
    _
  $region13: #{culinary_lm_forward.3} parent=0 // pred_fallthru
    _
  // Predicated region
  $region14: #{culinary_lm_forward.3} parent=0 // pred_check
    _
  $region15: #{culinary_lm_forward.3} parent=0 // pred_check_branch
    %17 = sbr.rel (0) target = $region17
  $region16: #{culinary_lm_forward.3} parent=0 // pred_region
    _
  $region17: #{culinary_lm_forward.3} parent=0 // pred_fallthru
    _
  // Predicated region
  $region18: #{culinary_lm_forward.3} parent=0 // pred_check
    _
  $region19: #{culinary_lm_forward.3} parent=0 // pred_check_branch
    %19 = sbr.rel (0) target = $region21
  $region20: #{culinary_lm_forward.3} parent=0 // pred_region
    _
  $region21: #{culinary_lm_forward.3} parent=0 // pred_fallthru
    _
  %v21 = vld [vmem:[%s0] sm:$0xff]
  %v22 = vpack.c.bf16 %v21, %v21
  %v23 = vld [vmem:[%s1] sm:$0xf]
  %v24 = vld [vmem:[%s1 + $0x4] sm:$0xf]
  %v25 = vld [vmem:[%s1 + $0x8] sm:$0xf]
  %v26 = vld [vmem:[%s1 + $0xc] sm:$0xf]
  %v27 = vld [vmem:[%s1 + $0x10] sm:$0xf]
  %v28 = vld [vmem:[%s1 + $0x14] sm:$0xf]
  %v29 = vld [vmem:[%s1 + $0x18] sm:$0xf]
  %v30 = vld [vmem:[%s1 + $0x1c] sm:$0xf]
  %v31 = vld [vmem:[%s1 + $0x20] sm:$0xf]
  %v32 = vld [vmem:[%s1 + $0x24] sm:$0xf]
  %v33 = vld [vmem:[%s1 + $0x28] sm:$0xf]
  %v34 = vld [vmem:[%s1 + $0x2c] sm:$0xf]
  %v35 = vld [vmem:[%s1 + $0x30] sm:$0xf]
  %v36 = vld [vmem:[%s1 + $0x34] sm:$0xf]
  %v37 = vld [vmem:[%s1 + $0x38] sm:$0xf]
  %v38 = vld [vmem:[%s1 + $0x3c] sm:$0xf]
  %v39 = vld [vmem:[%s2] sm:$0x1]
  %v41 = vlaneseq
  %v42 = vshrl.u32 %v41, 7
  %v43 = vsub.s32 0, %v42
  %v44 = vrot.slane %v39, %v43
  %v62 = vunpack.c.l.b16 %v23
  %v63 = vunpack.c.l.b16 %v24
  %v64 = vunpack.c.l.b16 %v25
  %v65 = vunpack.c.l.b16 %v26
  %v66 = vunpack.c.l.b16 %v27
  %v67 = vunpack.c.l.b16 %v28
  %v68 = vunpack.c.l.b16 %v29
  %v69 = vunpack.c.l.b16 %v30
  %v70 = vunpack.c.l.b16 %v31
  %v71 = vunpack.c.l.b16 %v32
  %v72 = vunpack.c.l.b16 %v33
  %v73 = vunpack.c.l.b16 %v34
  %v74 = vunpack.c.l.b16 %v35
  %v75 = vunpack.c.l.b16 %v36
  %v76 = vunpack.c.l.b16 %v37
  %v77 = vunpack.c.l.b16 %v38
  %v78 = vpack.c.b16 %v63, %v62
  %v79 = vpack.c.b16 %v65, %v64
  %v80 = vpack.c.b16 %v67, %v66
  %v81 = vpack.c.b16 %v69, %v68
  %v82 = vpack.c.b16 %v71, %v70
  %v83 = vpack.c.b16 %v73, %v72
  %v84 = vpack.c.b16 %v75, %v74
  %v85 = vpack.c.b16 %v77, %v76
  %94 = vmatprep.subr.bf16.mxu0 0
  %95 = vmatpush1.bf16.msra.mxu0 %v78
  %96 = vmatprep.subr.bf16.mxu0 0
  %97 = vmatpush1.bf16.msra.mxu0 %v79
  %98 = vmatprep.subr.bf16.mxu0 0
  %99 = vmatpush1.bf16.msra.mxu0 %v80
  %100 = vmatprep.subr.bf16.mxu0 0
  %101 = vmatpush1.bf16.msra.mxu0 %v81
  %102 = vmatprep.subr.bf16.mxu0 0
  %103 = vmatpush1.bf16.msra.mxu0 %v82
  %104 = vmatprep.subr.bf16.mxu0 0
  %105 = vmatpush1.bf16.msra.mxu0 %v83
  %106 = vmatprep.subr.bf16.mxu0 0
  %107 = vmatpush1.bf16.msra.mxu0 %v84
  %108 = vmatprep.subr.bf16.mxu0 0
  %109 = vmatpush1.bf16.msra.mxu0 %v85
  %110 = vmatprep.subr.bf16.mxu0 0
  %111 = vmatpush1.bf16.msra.mxu0 0
  %112 = vmatprep.subr.bf16.mxu0 0
  %113 = vmatpush1.bf16.msra.mxu0 0
  %114 = vmatprep.subr.bf16.mxu0 0
  %115 = vmatpush1.bf16.msra.mxu0 0
  %116 = vmatprep.subr.bf16.mxu0 0
  %117 = vmatpush1.bf16.msra.mxu0 0
  %118 = vmatprep.subr.bf16.mxu0 0
  %119 = vmatpush1.bf16.msra.mxu0 0
  %120 = vmatprep.subr.bf16.mxu0 0
  %121 = vmatpush1.bf16.msra.mxu0 0
  %122 = vmatprep.subr.bf16.mxu0 0
  %123 = vmatpush1.bf16.msra.mxu0 0
  %124 = vmatprep.subr.bf16.mxu0 0
  %125 = vmatpush1.bf16.msra.mxu0 0
  %126 = vmatprep.mubr.bf16.mxu0 0
  %127 = vmatmul.mubr.bf16.gmra.mrb[0].mxu0 %v22
  %v128 = vpop.f32.mrb[0].mxu0
  %v129 = vadd.f32 %v44, %v128
  %v130 = vpop.f32.mrb[0].mxu0
  %v131 = vpop.f32.mrb[0].mxu0
  %v132 = vpop.f32.mrb[0].mxu0
  %133 = vdwg.mxu0
  %v134 = vmax.f32 %v129, 0.0
  %v135 = vpack.c.bf16 %v134, %v134
  %v136 = vld [vmem:[%s3] sm:$0xf]
  %v137 = vld [vmem:[%s3 + $0x4] sm:$0xf]
  %v138 = vld [vmem:[%s3 + $0x8] sm:$0xf]
  %v139 = vld [vmem:[%s3 + $0xc] sm:$0xf]
  %v140 = vld [vmem:[%s3 + $0x10] sm:$0xf]
  %v141 = vld [vmem:[%s3 + $0x14] sm:$0xf]
  %v142 = vld [vmem:[%s3 + $0x18] sm:$0xf]
  %v143 = vld [vmem:[%s3 + $0x1c] sm:$0xf]
  %v144 = vld [vmem:[%s3 + $0x20] sm:$0xf]
  %v145 = vld [vmem:[%s3 + $0x24] sm:$0xf]
  %v146 = vld [vmem:[%s3 + $0x28] sm:$0xf]
  %v147 = vld [vmem:[%s3 + $0x2c] sm:$0xf]
  %v148 = vld [vmem:[%s3 + $0x30] sm:$0xf]
  %v149 = vld [vmem:[%s3 + $0x34] sm:$0xf]
  %v150 = vld [vmem:[%s3 + $0x38] sm:$0xf]
  %v151 = vld [vmem:[%s3 + $0x3c] sm:$0xf]
  %v152 = vld [vmem:[%s4] sm:$0x1]
  %v154 = vlaneseq
  %v155 = vshrl.u32 %v154, 7
  %v156 = vsub.s32 0, %v155
  %v157 = vrot.slane %v152, %v156
  %v175 = vunpack.c.l.b16 %v136
  %v176 = vunpack.c.l.b16 %v137
  %v177 = vunpack.c.l.b16 %v138
  %v178 = vunpack.c.l.b16 %v139
  %v179 = vunpack.c.l.b16 %v140
  %v180 = vunpack.c.l.b16 %v141
  %v181 = vunpack.c.l.b16 %v142
  %v182 = vunpack.c.l.b16 %v143
  %v183 = vunpack.c.l.b16 %v144
  %v184 = vunpack.c.l.b16 %v145
  %v185 = vunpack.c.l.b16 %v146
  %v186 = vunpack.c.l.b16 %v147
  %v187 = vunpack.c.l.b16 %v148
  %v188 = vunpack.c.l.b16 %v149
  %v189 = vunpack.c.l.b16 %v150
  %v190 = vunpack.c.l.b16 %v151
  %v191 = vpack.c.b16 %v176, %v175
  %v192 = vpack.c.b16 %v178, %v177
  %v193 = vpack.c.b16 %v180, %v179
  %v194 = vpack.c.b16 %v182, %v181
  %v195 = vpack.c.b16 %v184, %v183
  %v196 = vpack.c.b16 %v186, %v185
  %v197 = vpack.c.b16 %v188, %v187
  %v198 = vpack.c.b16 %v190, %v189
  %207 = vmatprep.subr.bf16.mxu0 0
  %208 = vmatpush1.bf16.msra.mxu0 %v191
  %209 = vmatprep.subr.bf16.mxu0 0
  %210 = vmatpush1.bf16.msra.mxu0 %v192
  %211 = vmatprep.subr.bf16.mxu0 0
  %212 = vmatpush1.bf16.msra.mxu0 %v193
  %213 = vmatprep.subr.bf16.mxu0 0
  %214 = vmatpush1.bf16.msra.mxu0 %v194
  %215 = vmatprep.subr.bf16.mxu0 0
  %216 = vmatpush1.bf16.msra.mxu0 %v195
  %217 = vmatprep.subr.bf16.mxu0 0
  %218 = vmatpush1.bf16.msra.mxu0 %v196
  %219 = vmatprep.subr.bf16.mxu0 0
  %220 = vmatpush1.bf16.msra.mxu0 %v197
  %221 = vmatprep.subr.bf16.mxu0 0
  %222 = vmatpush1.bf16.msra.mxu0 %v198
  %223 = vmatprep.subr.bf16.mxu0 0
  %224 = vmatpush1.bf16.msra.mxu0 0
  %225 = vmatprep.subr.bf16.mxu0 0
  %226 = vmatpush1.bf16.msra.mxu0 0
  %227 = vmatprep.subr.bf16.mxu0 0
  %228 = vmatpush1.bf16.msra.mxu0 0
  %229 = vmatprep.subr.bf16.mxu0 0
  %230 = vmatpush1.bf16.msra.mxu0 0
  %231 = vmatprep.subr.bf16.mxu0 0
  %232 = vmatpush1.bf16.msra.mxu0 0
  %233 = vmatprep.subr.bf16.mxu0 0
  %234 = vmatpush1.bf16.msra.mxu0 0
  %235 = vmatprep.subr.bf16.mxu0 0
  %236 = vmatpush1.bf16.msra.mxu0 0
  %237 = vmatprep.subr.bf16.mxu0 0
  %238 = vmatpush1.bf16.msra.mxu0 0
  %239 = vmatprep.mubr.bf16.mxu0 0
  %240 = vmatmul.mubr.bf16.gmra.mrb[0].mxu0 %v135
  %v241 = vpop.f32.mrb[0].mxu0
  %v242 = vadd.f32 %v157, %v241
  %v243 = vpop.f32.mrb[0].mxu0
  %v244 = vpop.f32.mrb[0].mxu0
  %v245 = vpop.f32.mrb[0].mxu0
  %246 = vdwg.mxu0
  %247 = vst [vmem:[%s5] sm:$0xff] %v242
  // Predicated region
  $region22: #{culinary_lm_forward.3} parent=0 // pred_check
    _
  $region23: #{culinary_lm_forward.3} parent=0 // pred_check_branch
    %249 = sbr.rel (0) target = $region25
  $region24: #{culinary_lm_forward.3} parent=0 // pred_region
    _
  $region25: #{culinary_lm_forward.3} parent=0 // pred_fallthru
    _
  // Predicated region
  $region26: #{culinary_lm_forward.3} parent=0 // pred_check
    _
  $region27: #{culinary_lm_forward.3} parent=0 // pred_check_branch
    %251 = sbr.rel (0) target = $region29
  $region28: #{culinary_lm_forward.3} parent=0 // pred_region
    _
  $region29: #{culinary_lm_forward.3} parent=0 // pred_fallthru
    _

// kernel: culinary_lm_forward.2
$region0: #{culinary_lm_forward.2}
  #allocation0 [shape = 'u32[]', space=smem, size = 0x4, offset = 0x4, fixed_abs, tag = 'smem constant byte address 0x4 - core index']
  #allocation1 [shape = 'u32[144,128]{1,0:T(1,128)}', space=vmem, size = 0x12000, scoped, tag = 'internal scratch']
  #allocation2 [shape = 'f32[8,128]{1,0:T(8,128)}', space=vmem, size = 0x1000, scoped, tag = 'scratch operand']
  #allocation3 [shape = 'f32[8,128]{1,0:T(8,128)}', space=vmem, size = 0x1000, scoped, tag = 'scratch operand']
  #allocation4 [shape = 'f32[8,128]{1,0:T(8,128)}', space=vmem, size = 0x1000, scoped, tag = 'scratch operand']
  #allocation5 [shape = 'f32[8,128]{1,0:T(8,128)}', space=vmem, size = 0x1000, scoped, tag = 'scratch operand']
  %s0 = inlined_call_operand.vmem [shape: bf16[128,128], index: 0, kind: input, shape index: {}]
  %s1 = inlined_call_operand.vmem [shape: bf16[128,512], index: 1, kind: input, shape index: {}]
  %s2 = inlined_call_operand.hbm [shape: bf16[128,512], index: 2, kind: input, shape index: {}]
  %s3 = inlined_call_operand.vmem [shape: f32[1,512], index: 3, kind: input, shape index: {}]
  %s4 = inlined_call_operand.hbm [shape: bf16[128,512], index: 4, kind: input, shape index: {}]
  %s5 = inlined_call_operand.hbm [shape: bf16[128,512], index: 5, kind: input, shape index: {}]
  %s6 = inlined_call_operand.vmem [shape: f32[1,512], index: 6, kind: input, shape index: {}]
  %s7 = inlined_call_operand.vmem [shape: f32[8,128], index: 7, kind: output, shape index: {}]
  %s8 = sld [smem:[#allocation0]]
  $region81: #{culinary_lm_forward.2} parent=0
    _
  %s10 = ssub.s32 1, %s8
  %s11 = scalar_select 0, %s10, %s8
  $region1: #{culinary_lm_forward.2} parent=0
    #allocation6 [shape = 'u8[131072]{0}', space=vmem, size = 0x20000, scoped, tag = 'input window, operand 2, single buffered']
    #allocation7 [shape = 's32[2]{0}', space=sflag, size = 0x8, scoped, tag = 'scoped memory for culinary_lm_forward.2']
    #allocation8 [shape = 'u8[131072]{0}', space=vmem, size = 0x20000, scoped, tag = 'input window, operand 4, single buffered']
    #allocation9 [shape = 's32[1]{0}', space=sflag, size = 0x4, scoped, tag = 'scoped memory for culinary_lm_forward.2']
    #allocation10 [shape = 'u8[131072]{0}', space=vmem, size = 0x20000, scoped, tag = 'input window, operand 5, single buffered']
    %12 = vsyncpa [#allocation7], 0
    %13 = vsyncpa [#allocation9], 0
    loop: start=0, step=1, limit=4
    $region2: #{culinary_lm_forward.2} parent=1 // loop_pre_header
      _
    $region3: #{culinary_lm_forward.2} parent=1 // loop_header
      %s15 = sphi 0, %s19
      %p16 = scmp.ge.s32.totalorder %s15, 4
      %s25 = sphi 0, %s27
      %s28 = sphi 0, %s25
      %s29 = sphi 0, %s28
      %s45 = sphi 0, %s29
      %s49 = sphi 0, %s49
      %s51 = sphi 0, %s49
      %s52 = sphi 0, %s51
      %s66 = sphi 0, %s52
      %s70 = sphi 0, %s70
      %s72 = sphi 0, %s70
      %s73 = sphi 0, %s72
      %s87 = sphi 0, %s73
      %s91 = sphi 0, %s91
      %s93 = sphi 0, %s91
      %s94 = sphi 0, %s93
      %s108 = sphi 0, %s94
      %s112 = sphi 0, %s112
      %s114 = sphi 0, %s112
      %s115 = sphi 0, %s114
      %s129 = sphi 0, %s115
      %s133 = sphi 0, %s133
      %s135 = sphi 0, %s133
      %s136 = sphi 0, %s135
      %s150 = sphi 0, %s136
      %s154 = sphi 0, %s154
      %s156 = sphi 0, %s154
      %s157 = sphi 0, %s156
      %s171 = sphi 0, %s157
      %s175 = sphi 0, %s175
      %s177 = sphi 0, %s175
      %s178 = sphi 0, %s177
      %s192 = sphi 0, %s178
    $region4: #{culinary_lm_forward.2} parent=1 // loop_header_branch
      %18 = sbr.rel (%p16) target = $region8
    $region5: #{culinary_lm_forward.2} parent=1 // loop_body
      %s20 = ssub.s32 %s15, 1
      %s21 = ssub.s32 %s15, 2
      %s22 = sadd.s32 %s15, 1
      %s23 = ssub.s32 %s15, %s22
      %p24 = scmp.eq.s32.totalorder %s23, 0
      %s26 = sadd.s32 %s25, 1
      %s27 = scalar_select %p24, %s25, %s26
      %p30 = pneg %p24
      %p31 = scmp.eq.s32.totalorder %s15, 1
      %p32 = por %p30, %p31
      %p33 = scmp.ne.s32.totalorder %s25, %s28
      %p34 = scmp.eq.s32.totalorder %s15, 0
      %p35 = por %p33, %p34
      %p36 = scmp.ne.s32.totalorder %s25, %s28
      %p37 = scmp.eq.s32.totalorder %s20, 1
      %p38 = por %p36, %p37
      %p39 = scmp.ne.s32.totalorder %s28, %s29
      %p40 = scmp.eq.s32.totalorder %s20, 0
      %p41 = por %p39, %p40
      %p42 = scmp.ne.s32.totalorder %s28, %s29
      %p43 = scmp.eq.s32.totalorder %s21, 1
      %p44 = por %p42, %p43
      %p46 = scmp.ne.s32.totalorder %s29, %s45
      %p47 = scmp.eq.s32.totalorder %s21, 0
      %p48 = por %p46, %p47
      %s50 = sadd.s32 %s49, 1
      %p53 = scmp.eq.s32.totalorder %s15, 1
      %p54 = scmp.ne.s32.totalorder %s49, %s51
      %p55 = scmp.eq.s32.totalorder %s15, 0
      %p56 = por %p54, %p55
      %p57 = scmp.ne.s32.totalorder %s49, %s51
      %p58 = scmp.eq.s32.totalorder %s20, 1
      %p59 = por %p57, %p58
      %p60 = scmp.ne.s32.totalorder %s51, %s52
      %p61 = scmp.eq.s32.totalorder %s20, 0
      %p62 = por %p60, %p61
      %p63 = scmp.ne.s32.totalorder %s51, %s52
      %p64 = scmp.eq.s32.totalorder %s21, 1
      %p65 = por %p63, %p64
      %p67 = scmp.ne.s32.totalorder %s52, %s66
      %p68 = scmp.eq.s32.totalorder %s21, 0
      %p69 = por %p67, %p68
      %s71 = sadd.s32 %s70, 1
      %p74 = scmp.eq.s32.totalorder %s15, 1
      %p75 = scmp.ne.s32.totalorder %s70, %s72
      %p76 = scmp.eq.s32.totalorder %s15, 0
      %p77 = por %p75, %p76
      %p78 = scmp.ne.s32.totalorder %s70, %s72
      %p79 = scmp.eq.s32.totalorder %s20, 1
      %p80 = por %p78, %p79
      %p81 = scmp.ne.s32.totalorder %s72, %s73
      %p82 = scmp.eq.s32.totalorder %s20, 0
      %p83 = por %p81, %p82
      %p84 = scmp.ne.s32.totalorder %s72, %s73
      %p85 = scmp.eq.s32.totalorder %s21, 1
      %p86 = por %p84, %p85
      %p88 = scmp.ne.s32.totalorder %s73, %s87
      %p89 = scmp.eq.s32.totalorder %s21, 0
      %p90 = por %p88, %p89
      %s92 = sadd.s32 %s91, 1
      %p95 = scmp.eq.s32.totalorder %s15, 1
      %p96 = scmp.ne.s32.totalorder %s91, %s93
      %p97 = scmp.eq.s32.totalorder %s15, 0
      %p98 = por %p96, %p97
      %p99 = scmp.ne.s32.totalorder %s91, %s93
      %p100 = scmp.eq.s32.totalorder %s20, 1
      %p101 = por %p99, %p100
      %p102 = scmp.ne.s32.totalorder %s93, %s94
      %p103 = scmp.eq.s32.totalorder %s20, 0
      %p104 = por %p102, %p103
      %p105 = scmp.ne.s32.totalorder %s93, %s94
      %p106 = scmp.eq.s32.totalorder %s21, 1
      %p107 = por %p105, %p106
      %p109 = scmp.ne.s32.totalorder %s94, %s108
      %p110 = scmp.eq.s32.totalorder %s21, 0
      %p111 = por %p109, %p110
      %s113 = sadd.s32 %s112, 1
      %p116 = scmp.eq.s32.totalorder %s15, 1
      %p117 = scmp.ne.s32.totalorder %s112, %s114
      %p118 = scmp.eq.s32.totalorder %s15, 0
      %p119 = por %p117, %p118
      %p120 = scmp.ne.s32.totalorder %s112, %s114
      %p121 = scmp.eq.s32.totalorder %s20, 1
      %p122 = por %p120, %p121
      %p123 = scmp.ne.s32.totalorder %s114, %s115
      %p124 = scmp.eq.s32.totalorder %s20, 0
      %p125 = por %p123, %p124
      %p126 = scmp.ne.s32.totalorder %s114, %s115
      %p127 = scmp.eq.s32.totalorder %s21, 1
      %p128 = por %p126, %p127
      %p130 = scmp.ne.s32.totalorder %s115, %s129
      %p131 = scmp.eq.s32.totalorder %s21, 0
      %p132 = por %p130, %p131
      %s134 = sadd.s32 %s133, 1
      %p137 = scmp.eq.s32.totalorder %s15, 1
      %p138 = scmp.ne.s32.totalorder %s133, %s135
      %p139 = scmp.eq.s32.totalorder %s15, 0
      %p140 = por %p138, %p139
      %p141 = scmp.ne.s32.totalorder %s133, %s135
      %p142 = scmp.eq.s32.totalorder %s20, 1
      %p143 = por %p141, %p142
      %p144 = scmp.ne.s32.totalorder %s135, %s136
      %p145 = scmp.eq.s32.totalorder %s20, 0
      %p146 = por %p144, %p145
      %p147 = scmp.ne.s32.totalorder %s135, %s136
      %p148 = scmp.eq.s32.totalorder %s21, 1
      %p149 = por %p147, %p148
      %p151 = scmp.ne.s32.totalorder %s136, %s150
      %p152 = scmp.eq.s32.totalorder %s21, 0
      %p153 = por %p151, %p152
      %s155 = sadd.s32 %s154, 1
      %p158 = scmp.eq.s32.totalorder %s15, 1
      %p159 = scmp.ne.s32.totalorder %s154, %s156
      %p160 = scmp.eq.s32.totalorder %s15, 0
      %p161 = por %p159, %p160
      %p162 = scmp.ne.s32.totalorder %s154, %s156
      %p163 = scmp.eq.s32.totalorder %s20, 1
      %p164 = por %p162, %p163
      %p165 = scmp.ne.s32.totalorder %s156, %s157
      %p166 = scmp.eq.s32.totalorder %s20, 0
      %p167 = por %p165, %p166
      %p168 = scmp.ne.s32.totalorder %s156, %s157
      %p169 = scmp.eq.s32.totalorder %s21, 1
      %p170 = por %p168, %p169
      %p172 = scmp.ne.s32.totalorder %s157, %s171
      %p173 = scmp.eq.s32.totalorder %s21, 0
      %p174 = por %p172, %p173
      %s176 = sadd.s32 %s175, 1
      %p179 = scmp.eq.s32.totalorder %s15, 1
      %p180 = scmp.ne.s32.totalorder %s175, %s177
      %p181 = scmp.eq.s32.totalorder %s15, 0
      %p182 = por %p180, %p181
      %p183 = scmp.ne.s32.totalorder %s175, %s177
      %p184 = scmp.eq.s32.totalorder %s20, 1
      %p185 = por %p183, %p184
      %p186 = scmp.ne.s32.totalorder %s177, %s178
      %p187 = scmp.eq.s32.totalorder %s20, 0
      %p188 = por %p186, %p187
      %p189 = scmp.ne.s32.totalorder %s177, %s178
      %p190 = scmp.eq.s32.totalorder %s21, 1
      %p191 = por %p189, %p190
      %p193 = scmp.ne.s32.totalorder %s178, %s192
      %p194 = scmp.eq.s32.totalorder %s21, 0
      %p195 = por %p193, %p194
      %p196 = scmp.le.s32.totalorder 1, %s15
      %p197 = scmp.lt.s32.totalorder %s15, 3
      %p198 = pnand %p196, %p197
      %p199 = pneg %p198
      // Predicated region
      $region9: #{culinary_lm_forward.2} parent=5 // pred_check
        _
      $region10: #{culinary_lm_forward.2} parent=5 // pred_check_branch
        %201 = sbr.rel (%p198) target = $region12
      $region11: #{culinary_lm_forward.2} parent=5 // pred_region
        %s202 = ssub.s32 %s15, 1
        // Predicated region
        $region13: #{culinary_lm_forward.2} parent=11 // pred_check
          %p203 = pneg %p62
        $region14: #{culinary_lm_forward.2} parent=11 // pred_check_branch
          %205 = sbr.rel (%p203) target = $region16
        $region15: #{culinary_lm_forward.2} parent=11 // pred_region
          _
        $region16: #{culinary_lm_forward.2} parent=11 // pred_fallthru
          _
        // Predicated region
        $region17: #{culinary_lm_forward.2} parent=11 // pred_check
          %p206 = pneg %p83
        $region18: #{culinary_lm_forward.2} parent=11 // pred_check_branch
          %208 = sbr.rel (%p206) target = $region20
        $region19: #{culinary_lm_forward.2} parent=11 // pred_region
          %s210 = ssub.s32 4096, 4096
          %211 = vsyncadd [#allocation7], %s210
          %s212 = sshll.u32 [#allocation6], 4
          %s213 = int_to_ptr.vmem [resolvable:$true] %s212
          %218 = dma.hbm_to_vmem [thread:$0]  %s2, 4096, %s213, [#allocation7], 256, 256, 16
        $region20: #{culinary_lm_forward.2} parent=11 // pred_fallthru
          _
        // Predicated region
        $region21: #{culinary_lm_forward.2} parent=11 // pred_check
          %p219 = pneg %p104
        $region22: #{culinary_lm_forward.2} parent=11 // pred_check_branch
          %221 = sbr.rel (%p219) target = $region24
        $region23: #{culinary_lm_forward.2} parent=11 // pred_region
          _
        $region24: #{culinary_lm_forward.2} parent=11 // pred_fallthru
          _
        // Predicated region
        $region25: #{culinary_lm_forward.2} parent=11 // pred_check
          %p222 = pneg %p125
        $region26: #{culinary_lm_forward.2} parent=11 // pred_check_branch
          %224 = sbr.rel (%p222) target = $region28
        $region27: #{culinary_lm_forward.2} parent=11 // pred_region
          %s226 = ssub.s32 4096, 4096
          %227 = vsyncadd [#allocation9], %s226
          %s228 = sshll.u32 [#allocation8], 4
          %s229 = int_to_ptr.vmem [resolvable:$true] %s228
          %234 = dma.hbm_to_vmem [thread:$0]  %s4, 4096, %s229, [#allocation9], 256, 256, 16
        $region28: #{culinary_lm_forward.2} parent=11 // pred_fallthru
          _
        // Predicated region
        $region29: #{culinary_lm_forward.2} parent=11 // pred_check
          %p235 = pneg %p146
        $region30: #{culinary_lm_forward.2} parent=11 // pred_check_branch
          %237 = sbr.rel (%p235) target = $region32
        $region31: #{culinary_lm_forward.2} parent=11 // pred_region
          %s239 = ssub.s32 4096, 4096
          %240 = vsyncadd [#allocation9], %s239
          %s241 = sshll.u32 [#allocation10], 4
          %s242 = int_to_ptr.vmem [resolvable:$true] %s241
          %247 = dma.hbm_to_vmem [thread:$0]  %s5, 4096, %s242, [#allocation9], 256, 256, 16
        $region32: #{culinary_lm_forward.2} parent=11 // pred_fallthru
          _
        // Predicated region
        $region33: #{culinary_lm_forward.2} parent=11 // pred_check
          %p248 = pneg %p167
        $region34: #{culinary_lm_forward.2} parent=11 // pred_check_branch
          %250 = sbr.rel (%p248) target = $region36
        $region35: #{culinary_lm_forward.2} parent=11 // pred_region
          _
        $region36: #{culinary_lm_forward.2} parent=11 // pred_fallthru
          _
      $region12: #{culinary_lm_forward.2} parent=5 // pred_fallthru
        _
      %p251 = scmp.lt.s32.totalorder %s15, 2
      // Predicated region
      $region37: #{culinary_lm_forward.2} parent=5 // pred_check
        %p252 = pneg %p251
      $region38: #{culinary_lm_forward.2} parent=5 // pred_check_branch
        %254 = sbr.rel (%p252) target = $region40
      $region39: #{culinary_lm_forward.2} parent=5 // pred_region
        // Predicated region
        $region41: #{culinary_lm_forward.2} parent=39 // pred_check
          %p255 = pneg %p35
        $region42: #{culinary_lm_forward.2} parent=39 // pred_check_branch
          %257 = sbr.rel (%p255) target = $region44
        $region43: #{culinary_lm_forward.2} parent=39 // pred_region
          %s258 = smul.u32 8, %s15
          %p259 = scmp.lt.s32.totalorder %s258, 15
          %s260 = scalar_select %p259, %s258, 15
          %s261 = smul.addr %s260, 4
          %s262 = scalar_lea.vmem %s0, %s261
          %s263 = smul.u32 8, %s15
        $region44: #{culinary_lm_forward.2} parent=39 // pred_fallthru
          _
      $region40: #{culinary_lm_forward.2} parent=5 // pred_fallthru
        _
      %p264 = scmp.le.s32.totalorder 1, %s15
      %p265 = scmp.lt.s32.totalorder %s15, 3
      %p266 = pnand %p264, %p265
      %p267 = pneg %p266
      // Predicated region
      $region45: #{culinary_lm_forward.2} parent=5 // pred_check
        _
      $region46: #{culinary_lm_forward.2} parent=5 // pred_check_branch
        %269 = sbr.rel (%p266) target = $region48
      $region47: #{culinary_lm_forward.2} parent=5 // pred_region
        %s270 = ssub.s32 %s15, 1
        // Predicated region
        $region49: #{culinary_lm_forward.2} parent=47 // pred_check
          %p271 = pneg %p83
        $region50: #{culinary_lm_forward.2} parent=47 // pred_check_branch
          %273 = sbr.rel (%p271) target = $region52
        $region51: #{culinary_lm_forward.2} parent=47 // pred_region
          %274 = dma.done [#allocation7], 4096
        $region52: #{culinary_lm_forward.2} parent=47 // pred_fallthru
          _
        // Predicated region
        $region53: #{culinary_lm_forward.2} parent=47 // pred_check
          %p275 = pneg %p125
        $region54: #{culinary_lm_forward.2} parent=47 // pred_check_branch
          %277 = sbr.rel (%p275) target = $region56
        $region55: #{culinary_lm_forward.2} parent=47 // pred_region
          %278 = dma.done [#allocation9], 4096
        $region56: #{culinary_lm_forward.2} parent=47 // pred_fallthru
          _
        // Predicated region
        $region57: #{culinary_lm_forward.2} parent=47 // pred_check
          %p279 = pneg %p146
        $region58: #{culinary_lm_forward.2} parent=47 // pred_check_branch
          %281 = sbr.rel (%p279) target = $region60
        $region59: #{culinary_lm_forward.2} parent=47 // pred_region
          %282 = dma.done [#allocation9], 4096
        $region60: #{culinary_lm_forward.2} parent=47 // pred_fallthru
          _
        %s283 = smul.u32 8, %s20
        %p284 = scmp.lt.s32.totalorder %s283, 15
        %s285 = scalar_select %p284, %s283, 15
        %s286 = smul.addr %s285, 4
        %s287 = scalar_lea.vmem %s0, %s286
        %p288 = pneg %p41
        %p289 = pneg %p38
        %p290 = pneg %p62
        %p291 = pneg %p59
        %p292 = pneg %p83
        %p293 = pneg %p80
        %p294 = pneg %p104
        %p295 = pneg %p101
        %p296 = pneg %p125
        %p297 = pneg %p122
        %p298 = pneg %p146
        %p299 = pneg %p143
        %p300 = pneg %p167
        %p301 = pneg %p164
        %p302 = pneg %p188
        %p303 = pneg %p185
        %s304 = smul.u32 8, %s20
        %p305 = scmp.lt.s32.totalorder %s304, 15
        %s306 = scalar_select %p305, %s304, 15
        %s307 = smul.addr %s306, 4
        %s308 = scalar_lea.vmem %s0, %s307
        %s309 = smul.u32 8, %s20
        %p311 = scmp.eq.s32.totalorder %s20, 0
        // Predicated region
        $region61: #{culinary_lm_forward.2} parent=47 // pred_check
          %p312 = pneg %p311
        $region62: #{culinary_lm_forward.2} parent=47 // pred_check_branch
          %314 = sbr.rel (%p312) target = $region64
        $region63: #{culinary_lm_forward.2} parent=47 // pred_region
          %315 = vst [vmem:[#allocation2] sm:$0xff] 0.0
          %316 = vst [vmem:[#allocation3] sm:$0xff] 0.0
          %317 = vst [vmem:[#allocation4] sm:$0xff] 0.0
          %318 = vst [vmem:[#allocation5] sm:$0xff] 0.0
        $region64: #{culinary_lm_forward.2} parent=47 // pred_fallthru
          _
        %v319 = vld [vmem:[%s308] sm:$0xf]
        %v320 = vld [vmem:[%s308 + $0x4] sm:$0xf]
        %v321 = vld [vmem:[%s308 + $0x8] sm:$0xf]
        %v322 = vld [vmem:[%s308 + $0xc] sm:$0xf]
        %v323 = vld [vmem:[%s308 + $0x10] sm:$0xf]
        %v324 = vld [vmem:[%s308 + $0x14] sm:$0xf]
        %v325 = vld [vmem:[%s308 + $0x18] sm:$0xf]
        %v326 = vld [vmem:[%s308 + $0x1c] sm:$0xf]
        %v327 = vld [vmem:[%s1] sm:$0xff]
        %v328 = vld [vmem:[%s1 + $0x8] sm:$0xff]
        %v329 = vld [vmem:[%s1 + $0x10] sm:$0xff]
        %v330 = vld [vmem:[%s1 + $0x18] sm:$0xff]
        %v331 = vld [vmem:[%s1 + $0x20] sm:$0xff]
        %v332 = vld [vmem:[%s1 + $0x28] sm:$0xff]
        %v333 = vld [vmem:[%s1 + $0x30] sm:$0xff]
        %v334 = vld [vmem:[%s1 + $0x38] sm:$0xff]
        %v335 = vld [vmem:[%s1 + $0x40] sm:$0xff]
        %v336 = vld [vmem:[%s1 + $0x48] sm:$0xff]
        %v337 = vld [vmem:[%s1 + $0x50] sm:$0xff]
        %v338 = vld [vmem:[%s1 + $0x58] sm:$0xff]
        %v339 = vld [vmem:[%s1 + $0x60] sm:$0xff]
        %v340 = vld [vmem:[%s1 + $0x68] sm:$0xff]
        %v341 = vld [vmem:[%s1 + $0x70] sm:$0xff]
        %v342 = vld [vmem:[%s1 + $0x78] sm:$0xff]
        %v343 = vld [vmem:[%s1 + $0x80] sm:$0xff]
        %v344 = vld [vmem:[%s1 + $0x88] sm:$0xff]
        %v345 = vld [vmem:[%s1 + $0x90] sm:$0xff]
        %v346 = vld [vmem:[%s1 + $0x98] sm:$0xff]
        %v347 = vld [vmem:[%s1 + $0xa0] sm:$0xff]
        %v348 = vld [vmem:[%s1 + $0xa8] sm:$0xff]
        %v349 = vld [vmem:[%s1 + $0xb0] sm:$0xff]
        %v350 = vld [vmem:[%s1 + $0xb8] sm:$0xff]
        %v351 = vld [vmem:[%s1 + $0xc0] sm:$0xff]
        %v352 = vld [vmem:[%s1 + $0xc8] sm:$0xff]
        %v353 = vld [vmem:[%s1 + $0xd0] sm:$0xff]
        %v354 = vld [vmem:[%s1 + $0xd8] sm:$0xff]
        %v355 = vld [vmem:[%s1 + $0xe0] sm:$0xff]
        %v356 = vld [vmem:[%s1 + $0xe8] sm:$0xff]
        %v357 = vld [vmem:[%s1 + $0xf0] sm:$0xff]
        %v358 = vld [vmem:[%s1 + $0xf8] sm:$0xff]
        %v359 = vld [vmem:[%s3] sm:$0xf]
        %v361 = vlaneseq
        %v362 = vshrl.u32 %v361, 7
        %v363 = vsub.s32 0, %v362
        %v364 = vrot.slane %v359, %v363
        %v365 = vlaneseq
        %v366 = vshrl.u32 %v365, 7
        %v367 = vsub.s32 1, %v366
        %v368 = vrot.slane %v359, %v367
        %v369 = vlaneseq
        %v370 = vshrl.u32 %v369, 7
        %v371 = vsub.s32 2, %v370
        %v372 = vrot.slane %v359, %v371
        %v373 = vlaneseq
        %v374 = vshrl.u32 %v373, 7
        %v375 = vsub.s32 3, %v374
        %v376 = vrot.slane %v359, %v375
        %v389 = vunpack.c.l.b16 %v319
        %v390 = vunpack.c.l.b16 %v320
        %v391 = vunpack.c.l.b16 %v321
        %v392 = vunpack.c.l.b16 %v322
        %v393 = vunpack.c.l.b16 %v323
        %v394 = vunpack.c.l.b16 %v324
        %v395 = vunpack.c.l.b16 %v325
        %v396 = vunpack.c.l.b16 %v326
        %v397 = vpack.c.b16 %v390, %v389
        %v398 = vpack.c.b16 %v392, %v391
        %v399 = vpack.c.b16 %v394, %v393
        %v400 = vpack.c.b16 %v396, %v395
        %v437 = vunpack.c.l.b16 %v327
        %v438 = vunpack.c.h.b16 %v327
        %v439 = vunpack.c.l.b16 %v328
        %v440 = vunpack.c.h.b16 %v328
        %v441 = vunpack.c.l.b16 %v329
        %v442 = vunpack.c.h.b16 %v329
        %v443 = vunpack.c.l.b16 %v330
        %v444 = vunpack.c.h.b16 %v330
        %v445 = vunpack.c.l.b16 %v331
        %v446 = vunpack.c.h.b16 %v331
        %v447 = vunpack.c.l.b16 %v332
        %v448 = vunpack.c.h.b16 %v332
        %v449 = vunpack.c.l.b16 %v333
        %v450 = vunpack.c.h.b16 %v333
        %v451 = vunpack.c.l.b16 %v334
        %v452 = vunpack.c.h.b16 %v334
        %v453 = vunpack.c.l.b16 %v335
        %v454 = vunpack.c.h.b16 %v335
        %v455 = vunpack.c.l.b16 %v336
        %v456 = vunpack.c.h.b16 %v336
        %v457 = vunpack.c.l.b16 %v337
        %v458 = vunpack.c.h.b16 %v337
        %v459 = vunpack.c.l.b16 %v338
        %v460 = vunpack.c.h.b16 %v338
        %v461 = vunpack.c.l.b16 %v339
        %v462 = vunpack.c.h.b16 %v339
        %v463 = vunpack.c.l.b16 %v340
        %v464 = vunpack.c.h.b16 %v340
        %v465 = vunpack.c.l.b16 %v341
        %v466 = vunpack.c.h.b16 %v341
        %v467 = vunpack.c.l.b16 %v342
        %v468 = vunpack.c.h.b16 %v342
        %v469 = vunpack.c.l.b16 %v343
        %v470 = vunpack.c.h.b16 %v343
        %v471 = vunpack.c.l.b16 %v344
        %v472 = vunpack.c.h.b16 %v344
        %v473 = vunpack.c.l.b16 %v345
        %v474 = vunpack.c.h.b16 %v345
        %v475 = vunpack.c.l.b16 %v346
        %v476 = vunpack.c.h.b16 %v346
        %v477 = vunpack.c.l.b16 %v347
        %v478 = vunpack.c.h.b16 %v347
        %v479 = vunpack.c.l.b16 %v348
        %v480 = vunpack.c.h.b16 %v348
        %v481 = vunpack.c.l.b16 %v349
        %v482 = vunpack.c.h.b16 %v349
        %v483 = vunpack.c.l.b16 %v350
        %v484 = vunpack.c.h.b16 %v350
        %v485 = vunpack.c.l.b16 %v351
        %v486 = vunpack.c.h.b16 %v351
        %v487 = vunpack.c.l.b16 %v352
        %v488 = vunpack.c.h.b16 %v352
        %v489 = vunpack.c.l.b16 %v353
        %v490 = vunpack.c.h.b16 %v353
        %v491 = vunpack.c.l.b16 %v354
        %v492 = vunpack.c.h.b16 %v354
        %v493 = vunpack.c.l.b16 %v355
        %v494 = vunpack.c.h.b16 %v355
        %v495 = vunpack.c.l.b16 %v356
        %v496 = vunpack.c.h.b16 %v356
        %v497 = vunpack.c.l.b16 %v357
        %v498 = vunpack.c.h.b16 %v357
        %v499 = vunpack.c.l.b16 %v358
        %v500 = vunpack.c.h.b16 %v358
        %v501 = vpack.c.b16 %v441, %v437
        %v502 = vpack.c.b16 %v442, %v438
        %v503 = vpack.c.b16 %v443, %v439
        %v504 = vpack.c.b16 %v444, %v440
        %v505 = vpack.c.b16 %v449, %v445
        %v506 = vpack.c.b16 %v450, %v446
        %v507 = vpack.c.b16 %v451, %v447
        %v508 = vpack.c.b16 %v452, %v448
        %v509 = vpack.c.b16 %v457, %v453
        %v510 = vpack.c.b16 %v458, %v454
        %v511 = vpack.c.b16 %v459, %v455
        %v512 = vpack.c.b16 %v460, %v456
        %v513 = vpack.c.b16 %v465, %v461
        %v514 = vpack.c.b16 %v466, %v462
        %v515 = vpack.c.b16 %v467, %v463
        %v516 = vpack.c.b16 %v468, %v464
        %v517 = vpack.c.b16 %v473, %v469
        %v518 = vpack.c.b16 %v474, %v470
        %v519 = vpack.c.b16 %v475, %v471
        %v520 = vpack.c.b16 %v476, %v472
        %v521 = vpack.c.b16 %v481, %v477
        %v522 = vpack.c.b16 %v482, %v478
        %v523 = vpack.c.b16 %v483, %v479
        %v524 = vpack.c.b16 %v484, %v480
        %v525 = vpack.c.b16 %v489, %v485
        %v526 = vpack.c.b16 %v490, %v486
        %v527 = vpack.c.b16 %v491, %v487
        %v528 = vpack.c.b16 %v492, %v488
        %v529 = vpack.c.b16 %v497, %v493
        %v530 = vpack.c.b16 %v498, %v494
        %v531 = vpack.c.b16 %v499, %v495
        %v532 = vpack.c.b16 %v500, %v496
        %565 = vmatprep.subr.bf16.mxu0 %v502
        %566 = vmatpush1.bf16.msra.mxu0 %v501
        %567 = vmatprep.subr.bf16.mxu0 %v506
        %568 = vmatpush1.bf16.msra.mxu0 %v505
        %569 = vmatprep.subr.bf16.mxu0 %v510
        %570 = vmatpush1.bf16.msra.mxu0 %v509
        %571 = vmatprep.subr.bf16.mxu0 %v514
        %572 = vmatpush1.bf16.msra.mxu0 %v513
        %573 = vmatprep.subr.bf16.mxu0 %v518
        %574 = vmatpush1.bf16.msra.mxu0 %v517
        %575 = vmatprep.subr.bf16.mxu0 %v522
        %576 = vmatpush1.bf16.msra.mxu0 %v521
        %577 = vmatprep.subr.bf16.mxu0 %v526
        %578 = vmatpush1.bf16.msra.mxu0 %v525
        %579 = vmatprep.subr.bf16.mxu0 %v530
        %580 = vmatpush1.bf16.msra.mxu0 %v529
        %581 = vmatprep.subr.bf16.mxu0 0
        %582 = vmatpush1.bf16.msra.mxu0 0
        %583 = vmatprep.subr.bf16.mxu0 0
        %584 = vmatpush1.bf16.msra.mxu0 0
        %585 = vmatprep.subr.bf16.mxu0 0
        %586 = vmatpush1.bf16.msra.mxu0 0
        %587 = vmatprep.subr.bf16.mxu0 0
        %588 = vmatpush1.bf16.msra.mxu0 0
        %589 = vmatprep.subr.bf16.mxu0 0
        %590 = vmatpush1.bf16.msra.mxu0 0
        %591 = vmatprep.subr.bf16.mxu0 0
        %592 = vmatpush1.bf16.msra.mxu0 0
        %593 = vmatprep.subr.bf16.mxu0 0
        %594 = vmatpush1.bf16.msra.mxu0 0
        %595 = vmatprep.subr.bf16.mxu0 0
        %596 = vmatpush1.bf16.msra.mxu0 0
        %597 = vmatprep.mubr.bf16.mxu0 0
        %598 = vmatmul.mubr.bf16.gmra.mrb[0].mxu0 %v397
        %v599 = vpop.f32.mrb[0].mxu0
        %v600 = vadd.f32 %v364, %v599
        %v601 = vpop.f32.mrb[0].mxu0
        %v602 = vadd.f32 %v368, %v601
        %v603 = vpop.f32.mrb[0].mxu0
        %v604 = vadd.f32 %v364, %v603
        %v605 = vpop.f32.mrb[0].mxu0
        %v606 = vadd.f32 %v368, %v605
        %607 = vmatprep.mubr.bf16.mxu0 0
        %608 = vmatmul.mubr.bf16.gmra.mrb[0].mxu0 %v398
        %v609 = vpop.f32.mrb[0].mxu0
        %v610 = vadd.f32 %v364, %v609
        %v611 = vpop.f32.mrb[0].mxu0
        %v612 = vadd.f32 %v368, %v611
        %v613 = vpop.f32.mrb[0].mxu0
        %v614 = vadd.f32 %v364, %v613
        %v615 = vpop.f32.mrb[0].mxu0
        %v616 = vadd.f32 %v368, %v615
        %617 = vmatprep.mubr.bf16.mxu0 0
        %618 = vmatmul.mubr.bf16.gmra.mrb[0].mxu0 %v399
        %v619 = vpop.f32.mrb[0].mxu0
        %v620 = vadd.f32 %v364, %v619
        %v621 = vpop.f32.mrb[0].mxu0
        %v622 = vadd.f32 %v368, %v621
        %v623 = vpop.f32.mrb[0].mxu0
        %v624 = vadd.f32 %v364, %v623
        %v625 = vpop.f32.mrb[0].mxu0
        %v626 = vadd.f32 %v368, %v625
        %627 = vmatprep.mubr.bf16.mxu0 0
        %628 = vmatmul.mubr.bf16.gmra.mrb[0].mxu0 %v400
        %v629 = vpop.f32.mrb[0].mxu0
        %v630 = vadd.f32 %v364, %v629
        %v631 = vpop.f32.mrb[0].mxu0
        %v632 = vadd.f32 %v368, %v631
        %v633 = vpop.f32.mrb[0].mxu0
        %v634 = vadd.f32 %v364, %v633
        %v635 = vpop.f32.mrb[0].mxu0
        %v636 = vadd.f32 %v368, %v635
        %637 = vdwg.mxu0
        %638 = vmatprep.subr.bf16.mxu0 %v504
        %639 = vmatpush1.bf16.msra.mxu0 %v503
        %640 = vmatprep.subr.bf16.mxu0 %v508
        %641 = vmatpush1.bf16.msra.mxu0 %v507
        %642 = vmatprep.subr.bf16.mxu0 %v512
        %643 = vmatpush1.bf16.msra.mxu0 %v511
        %644 = vmatprep.subr.bf16.mxu0 %v516
        %645 = vmatpush1.bf16.msra.mxu0 %v515
        %646 = vmatprep.subr.bf16.mxu0 %v520
        %647 = vmatpush1.bf16.msra.mxu0 %v519
        %648 = vmatprep.subr.bf16.mxu0 %v524
        %649 = vmatpush1.bf16.msra.mxu0 %v523
        %650 = vmatprep.subr.bf16.mxu0 %v528
        %651 = vmatpush1.bf16.msra.mxu0 %v527
        %652 = vmatprep.subr.bf16.mxu0 %v532
        %653 = vmatpush1.bf16.msra.mxu0 %v531
        %654 = vmatprep.subr.bf16.mxu0 0
        %655 = vmatpush1.bf16.msra.mxu0 0
        %656 = vmatprep.subr.bf16.mxu0 0
        %657 = vmatpush1.bf16.msra.mxu0 0
        %658 = vmatprep.subr.bf16.mxu0 0
        %659 = vmatpush1.bf16.msra.mxu0 0
        %660 = vmatprep.subr.bf16.mxu0 0
        %661 = vmatpush1.bf16.msra.mxu0 0
        %662 = vmatprep.subr.bf16.mxu0 0
        %663 = vmatpush1.bf16.msra.mxu0 0
        %664 = vmatprep.subr.bf16.mxu0 0
        %665 = vmatpush1.bf16.msra.mxu0 0
        %666 = vmatprep.subr.bf16.mxu0 0
        %667 = vmatpush1.bf16.msra.mxu0 0
        %668 = vmatprep.subr.bf16.mxu0 0
        %669 = vmatpush1.bf16.msra.mxu0 0
        %670 = vmatprep.mubr.bf16.mxu0 0
        %671 = vmatmul.mubr.bf16.gmra.mrb[0].mxu0 %v397
        %v672 = vpop.f32.mrb[0].mxu0
        %v673 = vadd.f32 %v372, %v672
        %v674 = vpop.f32.mrb[0].mxu0
        %v675 = vadd.f32 %v376, %v674
        %v676 = vpop.f32.mrb[0].mxu0
        %v677 = vadd.f32 %v372, %v676
        %v678 = vpop.f32.mrb[0].mxu0
        %v679 = vadd.f32 %v376, %v678
        %680 = vmatprep.mubr.bf16.mxu0 0
        %681 = vmatmul.mubr.bf16.gmra.mrb[0].mxu0 %v398
        %v682 = vpop.f32.mrb[0].mxu0
        %v683 = vadd.f32 %v372, %v682
        %v684 = vpop.f32.mrb[0].mxu0
        %v685 = vadd.f32 %v376, %v684
        %v686 = vpop.f32.mrb[0].mxu0
        %v687 = vadd.f32 %v372, %v686
        %v688 = vpop.f32.mrb[0].mxu0
        %v689 = vadd.f32 %v376, %v688
        %690 = vmatprep.mubr.bf16.mxu0 0
        %691 = vmatmul.mubr.bf16.gmra.mrb[0].mxu0 %v399
        %v692 = vpop.f32.mrb[0].mxu0
        %v693 = vadd.f32 %v372, %v692
        %v694 = vpop.f32.mrb[0].mxu0
        %v695 = vadd.f32 %v376, %v694
        %v696 = vpop.f32.mrb[0].mxu0
        %v697 = vadd.f32 %v372, %v696
        %v698 = vpop.f32.mrb[0].mxu0
        %v699 = vadd.f32 %v376, %v698
        %700 = vmatprep.mubr.bf16.mxu0 0
        %701 = vmatmul.mubr.bf16.gmra.mrb[0].mxu0 %v400
        %v702 = vpop.f32.mrb[0].mxu0
        %v703 = vadd.f32 %v372, %v702
        %v704 = vpop.f32.mrb[0].mxu0
        %v705 = vadd.f32 %v376, %v704
        %v706 = vpop.f32.mrb[0].mxu0
        %v707 = vadd.f32 %v372, %v706
        %v708 = vpop.f32.mrb[0].mxu0
        %v709 = vadd.f32 %v376, %v708
        %710 = vdwg.mxu0
        %v711 = vld [vmem:[#allocation6] sm:$0xff]
        %v712 = vld [vmem:[#allocation6 + $0x8] sm:$0xff]
        %v713 = vld [vmem:[#allocation6 + $0x10] sm:$0xff]
        %v714 = vld [vmem:[#allocation6 + $0x18] sm:$0xff]
        %v715 = vld [vmem:[#allocation6 + $0x20] sm:$0xff]
        %v716 = vld [vmem:[#allocation6 + $0x28] sm:$0xff]
        %v717 = vld [vmem:[#allocation6 + $0x30] sm:$0xff]
        %v718 = vld [vmem:[#allocation6 + $0x38] sm:$0xff]
        %v719 = vld [vmem:[#allocation6 + $0x40] sm:$0xff]
        %v720 = vld [vmem:[#allocation6 + $0x48] sm:$0xff]
        %v721 = vld [vmem:[#allocation6 + $0x50] sm:$0xff]
        %v722 = vld [vmem:[#allocation6 + $0x58] sm:$0xff]
        %v723 = vld [vmem:[#allocation6 + $0x60] sm:$0xff]
        %v724 = vld [vmem:[#allocation6 + $0x68] sm:$0xff]
        %v725 = vld [vmem:[#allocation6 + $0x70] sm:$0xff]
        %v726 = vld [vmem:[#allocation6 + $0x78] sm:$0xff]
        %v727 = vld [vmem:[#allocation6 + $0x80] sm:$0xff]
        %v728 = vld [vmem:[#allocation6 + $0x88] sm:$0xff]
        %v729 = vld [vmem:[#allocation6 + $0x90] sm:$0xff]
        %v730 = vld [vmem:[#allocation6 + $0x98] sm:$0xff]
        %v731 = vld [vmem:[#allocation6 + $0xa0] sm:$0xff]
        %v732 = vld [vmem:[#allocation6 + $0xa8] sm:$0xff]
        %v733 = vld [vmem:[#allocation6 + $0xb0] sm:$0xff]
        %v734 = vld [vmem:[#allocation6 + $0xb8] sm:$0xff]
        %v735 = vld [vmem:[#allocation6 + $0xc0] sm:$0xff]
        %v736 = vld [vmem:[#allocation6 + $0xc8] sm:$0xff]
        %v737 = vld [vmem:[#allocation6 + $0xd0] sm:$0xff]
        %v738 = vld [vmem:[#allocation6 + $0xd8] sm:$0xff]
        %v739 = vld [vmem:[#allocation6 + $0xe0] sm:$0xff]
        %v740 = vld [vmem:[#allocation6 + $0xe8] sm:$0xff]
        %v741 = vld [vmem:[#allocation6 + $0xf0] sm:$0xff]
        %v742 = vld [vmem:[#allocation6 + $0xf8] sm:$0xff]
        %v743 = vld [vmem:[#allocation8] sm:$0xff]
        %v744 = vld [vmem:[#allocation8 + $0x8] sm:$0xff]
        %v745 = vld [vmem:[#allocation8 + $0x10] sm:$0xff]
        %v746 = vld [vmem:[#allocation8 + $0x18] sm:$0xff]
        %v747 = vld [vmem:[#allocation8 + $0x20] sm:$0xff]
        %v748 = vld [vmem:[#allocation8 + $0x28] sm:$0xff]
        %v749 = vld [vmem:[#allocation8 + $0x30] sm:$0xff]
        %v750 = vld [vmem:[#allocation8 + $0x38] sm:$0xff]
        %v751 = vld [vmem:[#allocation8 + $0x40] sm:$0xff]
        %v752 = vld [vmem:[#allocation8 + $0x48] sm:$0xff]
        %v753 = vld [vmem:[#allocation8 + $0x50] sm:$0xff]
        %v754 = vld [vmem:[#allocation8 + $0x58] sm:$0xff]
        %v755 = vld [vmem:[#allocation8 + $0x60] sm:$0xff]
        %v756 = vld [vmem:[#allocation8 + $0x68] sm:$0xff]
        %v757 = vld [vmem:[#allocation8 + $0x70] sm:$0xff]
        %v758 = vld [vmem:[#allocation8 + $0x78] sm:$0xff]
        %v759 = vld [vmem:[#allocation8 + $0x80] sm:$0xff]
        %v760 = vld [vmem:[#allocation8 + $0x88] sm:$0xff]
        %v761 = vld [vmem:[#allocation8 + $0x90] sm:$0xff]
        %v762 = vld [vmem:[#allocation8 + $0x98] sm:$0xff]
        %v763 = vld [vmem:[#allocation8 + $0xa0] sm:$0xff]
        %v764 = vld [vmem:[#allocation8 + $0xa8] sm:$0xff]
        %v765 = vld [vmem:[#allocation8 + $0xb0] sm:$0xff]
        %v766 = vld [vmem:[#allocation8 + $0xb8] sm:$0xff]
        %v767 = vld [vmem:[#allocation8 + $0xc0] sm:$0xff]
        %v768 = vld [vmem:[#allocation8 + $0xc8] sm:$0xff]
        %v769 = vld [vmem:[#allocation8 + $0xd0] sm:$0xff]
        %v770 = vld [vmem:[#allocation8 + $0xd8] sm:$0xff]
        %v771 = vld [vmem:[#allocation8 + $0xe0] sm:$0xff]
        %v772 = vld [vmem:[#allocation8 + $0xe8] sm:$0xff]
        %v773 = vld [vmem:[#allocation8 + $0xf0] sm:$0xff]
        %v774 = vld [vmem:[#allocation8 + $0xf8] sm:$0xff]
        %v775 = vld [vmem:[#allocation10] sm:$0xff]
        %v776 = vld [vmem:[#allocation10 + $0x8] sm:$0xff]
        %v777 = vld [vmem:[#allocation10 + $0x10] sm:$0xff]
        %v778 = vld [vmem:[#allocation10 + $0x18] sm:$0xff]
        %v779 = vld [vmem:[#allocation10 + $0x20] sm:$0xff]
        %v780 = vld [vmem:[#allocation10 + $0x28] sm:$0xff]
        %v781 = vld [vmem:[#allocation10 + $0x30] sm:$0xff]
        %v782 = vld [vmem:[#allocation10 + $0x38] sm:$0xff]
        %v783 = vld [vmem:[#allocation10 + $0x40] sm:$0xff]
        %v784 = vld [vmem:[#allocation10 + $0x48] sm:$0xff]
        %v785 = vld [vmem:[#allocation10 + $0x50] sm:$0xff]
        %v786 = vld [vmem:[#allocation10 + $0x58] sm:$0xff]
        %v787 = vld [vmem:[#allocation10 + $0x60] sm:$0xff]
        %v788 = vld [vmem:[#allocation10 + $0x68] sm:$0xff]
        %v789 = vld [vmem:[#allocation10 + $0x70] sm:$0xff]
        %v790 = vld [vmem:[#allocation10 + $0x78] sm:$0xff]
        %v791 = vld [vmem:[#allocation10 + $0x80] sm:$0xff]
        %v792 = vld [vmem:[#allocation10 + $0x88] sm:$0xff]
        %v793 = vld [vmem:[#allocation10 + $0x90] sm:$0xff]
        %v794 = vld [vmem:[#allocation10 + $0x98] sm:$0xff]
        %v795 = vld [vmem:[#allocation10 + $0xa0] sm:$0xff]
        %v796 = vld [vmem:[#allocation10 + $0xa8] sm:$0xff]
        %v797 = vld [vmem:[#allocation10 + $0xb0] sm:$0xff]
        %v798 = vld [vmem:[#allocation10 + $0xb8] sm:$0xff]
        %v799 = vld [vmem:[#allocation10 + $0xc0] sm:$0xff]
        %v800 = vld [vmem:[#allocation10 + $0xc8] sm:$0xff]
        %v801 = vld [vmem:[#allocation10 + $0xd0] sm:$0xff]
        %v802 = vld [vmem:[#allocation10 + $0xd8] sm:$0xff]
        %v803 = vld [vmem:[#allocation10 + $0xe0] sm:$0xff]
        %v804 = vld [vmem:[#allocation10 + $0xe8] sm:$0xff]
        %v805 = vld [vmem:[#allocation10 + $0xf0] sm:$0xff]
        %v806 = vld [vmem:[#allocation10 + $0xf8] sm:$0xff]
        %v807 = vld [vmem:[%s6] sm:$0xf]
        %v809 = vlaneseq
        %v810 = vshrl.u32 %v809, 7
        %v811 = vsub.s32 0, %v810
        %v812 = vrot.slane %v807, %v811
        %v813 = vlaneseq
        %v814 = vshrl.u32 %v813, 7
        %v815 = vsub.s32 1, %v814
        %v816 = vrot.slane %v807, %v815
        %v817 = vlaneseq
        %v818 = vshrl.u32 %v817, 7
        %v819 = vsub.s32 2, %v818
        %v820 = vrot.slane %v807, %v819
        %v821 = vlaneseq
        %v822 = vshrl.u32 %v821, 7
        %v823 = vsub.s32 3, %v822
        %v824 = vrot.slane %v807, %v823
        %v829 = vld [vmem:[#allocation2] sm:$0xff]
        %v830 = vld [vmem:[#allocation3] sm:$0xff]
        %v831 = vld [vmem:[#allocation4] sm:$0xff]
        %v832 = vld [vmem:[#allocation5] sm:$0xff]
        %v833 = vpack.c.bf16 %v829, %v829
        %v866 = vunpack.c.l.b16 %v711
        %v867 = vunpack.c.h.b16 %v711
        %v868 = vunpack.c.l.b16 %v712
        %v869 = vunpack.c.h.b16 %v712
        %v870 = vunpack.c.l.b16 %v713
        %v871 = vunpack.c.h.b16 %v713
        %v872 = vunpack.c.l.b16 %v714
        %v873 = vunpack.c.h.b16 %v714
        %v874 = vunpack.c.l.b16 %v715
        %v875 = vunpack.c.h.b16 %v715
        %v876 = vunpack.c.l.b16 %v716
        %v877 = vunpack.c.h.b16 %v716
        %v878 = vunpack.c.l.b16 %v717
        %v879 = vunpack.c.h.b16 %v717
        %v880 = vunpack.c.l.b16 %v718
        %v881 = vunpack.c.h.b16 %v718
        %v882 = vunpack.c.l.b16 %v719
        %v883 = vunpack.c.h.b16 %v719
        %v884 = vunpack.c.l.b16 %v720
        %v885 = vunpack.c.h.b16 %v720
        %v886 = vunpack.c.l.b16 %v721
        %v887 = vunpack.c.h.b16 %v721
        %v888 = vunpack.c.l.b16 %v722
        %v889 = vunpack.c.h.b16 %v722
        %v890 = vunpack.c.l.b16 %v723
        %v891 = vunpack.c.h.b16 %v723
        %v892 = vunpack.c.l.b16 %v724
        %v893 = vunpack.c.h.b16 %v724
        %v894 = vunpack.c.l.b16 %v725
        %v895 = vunpack.c.h.b16 %v725
        %v896 = vunpack.c.l.b16 %v726
        %v897 = vunpack.c.h.b16 %v726
        %v898 = vunpack.c.l.b16 %v727
        %v899 = vunpack.c.h.b16 %v727
        %v900 = vunpack.c.l.b16 %v728
        %v901 = vunpack.c.h.b16 %v728
        %v902 = vunpack.c.l.b16 %v729
        %v903 = vunpack.c.h.b16 %v729
        %v904 = vunpack.c.l.b16 %v730
        %v905 = vunpack.c.h.b16 %v730
        %v906 = vunpack.c.l.b16 %v731
        %v907 = vunpack.c.h.b16 %v731
        %v908 = vunpack.c.l.b16 %v732
        %v909 = vunpack.c.h.b16 %v732
        %v910 = vunpack.c.l.b16 %v733
        %v911 = vunpack.c.h.b16 %v733
        %v912 = vunpack.c.l.b16 %v734
        %v913 = vunpack.c.h.b16 %v734
        %v914 = vunpack.c.l.b16 %v735
        %v915 = vunpack.c.h.b16 %v735
        %v916 = vunpack.c.l.b16 %v736
        %v917 = vunpack.c.h.b16 %v736
        %v918 = vunpack.c.l.b16 %v737
        %v919 = vunpack.c.h.b16 %v737
        %v920 = vunpack.c.l.b16 %v738
        %v921 = vunpack.c.h.b16 %v738
        %v922 = vunpack.c.l.b16 %v739
        %v923 = vunpack.c.h.b16 %v739
        %v924 = vunpack.c.l.b16 %v740
        %v925 = vunpack.c.h.b16 %v740
        %v926 = vunpack.c.l.b16 %v741
        %v927 = vunpack.c.h.b16 %v741
        %v928 = vunpack.c.l.b16 %v742
        %v929 = vunpack.c.h.b16 %v742
        %v930 = vpack.c.b16 %v870, %v866
        %v931 = vpack.c.b16 %v871, %v867
        %v932 = vpack.c.b16 %v872, %v868
        %v933 = vpack.c.b16 %v873, %v869
        %v934 = vpack.c.b16 %v878, %v874
        %v935 = vpack.c.b16 %v879, %v875
        %v936 = vpack.c.b16 %v880, %v876
        %v937 = vpack.c.b16 %v881, %v877
        %v938 = vpack.c.b16 %v886, %v882
        %v939 = vpack.c.b16 %v887, %v883
        %v940 = vpack.c.b16 %v888, %v884
        %v941 = vpack.c.b16 %v889, %v885
        %v942 = vpack.c.b16 %v894, %v890
        %v943 = vpack.c.b16 %v895, %v891
        %v944 = vpack.c.b16 %v896, %v892
        %v945 = vpack.c.b16 %v897, %v893
        %v946 = vpack.c.b16 %v902, %v898
        %v947 = vpack.c.b16 %v903, %v899
        %v948 = vpack.c.b16 %v904, %v900
        %v949 = vpack.c.b16 %v905, %v901
        %v950 = vpack.c.b16 %v910, %v906
        %v951 = vpack.c.b16 %v911, %v907
        %v952 = vpack.c.b16 %v912, %v908
        %v953 = vpack.c.b16 %v913, %v909
        %v954 = vpack.c.b16 %v918, %v914
        %v955 = vpack.c.b16 %v919, %v915
        %v956 = vpack.c.b16 %v920, %v916
        %v957 = vpack.c.b16 %v921, %v917
        %v958 = vpack.c.b16 %v926, %v922
        %v959 = vpack.c.b16 %v927, %v923
        %v960 = vpack.c.b16 %v928, %v924
        %v961 = vpack.c.b16 %v929, %v925
        %994 = vmatprep.subr.bf16.mxu0 %v931
        %995 = vmatpush1.bf16.msra.mxu0 %v930
        %996 = vmatprep.subr.bf16.mxu0 %v935
        %997 = vmatpush1.bf16.msra.mxu0 %v934
        %998 = vmatprep.subr.bf16.mxu0 %v939
        %999 = vmatpush1.bf16.msra.mxu0 %v938
        %1000 = vmatprep.subr.bf16.mxu0 %v943
        %1001 = vmatpush1.bf16.msra.mxu0 %v942
        %1002 = vmatprep.subr.bf16.mxu0 %v947
        %1003 = vmatpush1.bf16.msra.mxu0 %v946
        %1004 = vmatprep.subr.bf16.mxu0 %v951
        %1005 = vmatpush1.bf16.msra.mxu0 %v950
        %1006 = vmatprep.subr.bf16.mxu0 %v955
        %1007 = vmatpush1.bf16.msra.mxu0 %v954
        %1008 = vmatprep.subr.bf16.mxu0 %v959
        %1009 = vmatpush1.bf16.msra.mxu0 %v958
        %1010 = vmatprep.subr.bf16.mxu0 0
        %1011 = vmatpush1.bf16.msra.mxu0 0
        %1012 = vmatprep.subr.bf16.mxu0 0
        %1013 = vmatpush1.bf16.msra.mxu0 0
        %1014 = vmatprep.subr.bf16.mxu0 0
        %1015 = vmatpush1.bf16.msra.mxu0 0
        %1016 = vmatprep.subr.bf16.mxu0 0
        %1017 = vmatpush1.bf16.msra.mxu0 0
        %1018 = vmatprep.subr.bf16.mxu0 0
        %1019 = vmatpush1.bf16.msra.mxu0 0
        %1020 = vmatprep.subr.bf16.mxu0 0
        %1021 = vmatpush1.bf16.msra.mxu0 0
        %1022 = vmatprep.subr.bf16.mxu0 0
        %1023 = vmatpush1.bf16.msra.mxu0 0
        %1024 = vmatprep.subr.bf16.mxu0 0
        %1025 = vmatpush1.bf16.msra.mxu0 0
        %1026 = vmatprep.mubr.bf16.mxu0 0
        %1027 = vmatmul.mubr.bf16.gmra.mrb[0].mxu0 %v833
        %v1028 = vpop.f32.mrb[0].mxu0
        %v1029 = vadd.f32 0.0, %v1028
        %v1030 = vpop.f32.mrb[0].mxu0
        %v1031 = vadd.f32 0.0, %v1030
        %v1032 = vpop.f32.mrb[0].mxu0
        %v1033 = vpop.f32.mrb[0].mxu0
        %1034 = vdwg.mxu0
        %1035 = vmatprep.subr.bf16.mxu0 %v933
        %1036 = vmatpush1.bf16.msra.mxu0 %v932
        %1037 = vmatprep.subr.bf16.mxu0 %v937
        %1038 = vmatpush1.bf16.msra.mxu0 %v936
        %1039 = vmatprep.subr.bf16.mxu0 %v941
        %1040 = vmatpush1.bf16.msra.mxu0 %v940
        %1041 = vmatprep.subr.bf16.mxu0 %v945
        %1042 = vmatpush1.bf16.msra.mxu0 %v944
        %1043 = vmatprep.subr.bf16.mxu0 %v949
        %1044 = vmatpush1.bf16.msra.mxu0 %v948
        %1045 = vmatprep.subr.bf16.mxu0 %v953
        %1046 = vmatpush1.bf16.msra.mxu0 %v952
        %1047 = vmatprep.subr.bf16.mxu0 %v957
        %1048 = vmatpush1.bf16.msra.mxu0 %v956
        %1049 = vmatprep.subr.bf16.mxu0 %v961
        %1050 = vmatpush1.bf16.msra.mxu0 %v960
        %1051 = vmatprep.subr.bf16.mxu0 0
        %1052 = vmatpush1.bf16.msra.mxu0 0
        %1053 = vmatprep.subr.bf16.mxu0 0
        %1054 = vmatpush1.bf16.msra.mxu0 0
        %1055 = vmatprep.subr.bf16.mxu0 0
        %1056 = vmatpush1.bf16.msra.mxu0 0
        %1057 = vmatprep.subr.bf16.mxu0 0
        %1058 = vmatpush1.bf16.msra.mxu0 0
        %1059 = vmatprep.subr.bf16.mxu0 0
        %1060 = vmatpush1.bf16.msra.mxu0 0
        %1061 = vmatprep.subr.bf16.mxu0 0
        %1062 = vmatpush1.bf16.msra.mxu0 0
        %1063 = vmatprep.subr.bf16.mxu0 0
        %1064 = vmatpush1.bf16.msra.mxu0 0
        %1065 = vmatprep.subr.bf16.mxu0 0
        %1066 = vmatpush1.bf16.msra.mxu0 0
        %1067 = vmatprep.mubr.bf16.mxu0 0
        %1068 = vmatmul.mubr.bf16.gmra.mrb[0].mxu0 %v833
        %v1069 = vpop.f32.mrb[0].mxu0
        %v1070 = vadd.f32 0.0, %v1069
        %v1071 = vpop.f32.mrb[0].mxu0
        %v1072 = vadd.f32 0.0, %v1071
        %v1073 = vpop.f32.mrb[0].mxu0
        %v1074 = vpop.f32.mrb[0].mxu0
        %1075 = vdwg.mxu0
        %v1076 = vadd.f32 %v600, %v1029
        %v1077 = vadd.f32 %v602, %v1031
        %v1078 = vadd.f32 %v673, %v1070
        %v1079 = vadd.f32 %v675, %v1072
        %v1080 = vxor.u32 %v1076, 2147483648
        %v1081 = vxor.u32 %v1077, 2147483648
        %v1082 = vxor.u32 %v1078, 2147483648
        %v1083 = vmul.f32 %v1080, 1.442695
        %v1084 = vpow.pop %v1083
        %v1085 = vmul.f32 %v1081, 1.442695
        %v1086 = vpow.pop %v1085
        %v1087 = vmul.f32 %v1082, 1.442695
        %v1088 = vpow.pop %v1087
        %v1089 = vadd.f32 %v1084, 1.0
        %v1090 = vadd.f32 %v1086, 1.0
        %v1091 = vadd.f32 %v1088, 1.0
        %v1092 = vrcp.pop %v1089
        %v1093 = vmul.f32 1.0, %v1092
        %v1094 = vrcp.pop %v1090
        %v1095 = vmul.f32 1.0, %v1094
        %v1096 = vrcp.pop %v1091
        %v1097 = vmul.f32 1.0, %v1096
        %v1098 = vtanh.pop %v1079
        %v1099 = vmul.f32 %v1095, %v830
        %v1100 = vmul.f32 %v1093, %v1098
        %v1101 = vadd.f32 %v1099, %v1100
        %v1102 = vtanh.pop %v1101
        %v1103 = vmul.f32 %v1097, %v1102
        %v1104 = vpack.c.bf16 %v1103, %v1103
        %v1105 = vpack.c.bf16 %v831, %v831
        %v1138 = vunpack.c.l.b16 %v775
        %v1139 = vunpack.c.h.b16 %v775
        %v1140 = vunpack.c.l.b16 %v776
        %v1141 = vunpack.c.h.b16 %v776
        %v1142 = vunpack.c.l.b16 %v777
        %v1143 = vunpack.c.h.b16 %v777
        %v1144 = vunpack.c.l.b16 %v778
        %v1145 = vunpack.c.h.b16 %v778
        %v1146 = vunpack.c.l.b16 %v779
        %v1147 = vunpack.c.h.b16 %v779
        %v1148 = vunpack.c.l.b16 %v780
        %v1149 = vunpack.c.h.b16 %v780
        %v1150 = vunpack.c.l.b16 %v781
        %v1151 = vunpack.c.h.b16 %v781
        %v1152 = vunpack.c.l.b16 %v782
        %v1153 = vunpack.c.h.b16 %v782
        %v1154 = vunpack.c.l.b16 %v783
        %v1155 = vunpack.c.h.b16 %v783
        %v1156 = vunpack.c.l.b16 %v784
        %v1157 = vunpack.c.h.b16 %v784
        %v1158 = vunpack.c.l.b16 %v785
        %v1159 = vunpack.c.h.b16 %v785
        %v1160 = vunpack.c.l.b16 %v786
        %v1161 = vunpack.c.h.b16 %v786
        %v1162 = vunpack.c.l.b16 %v787
        %v1163 = vunpack.c.h.b16 %v787
        %v1164 = vunpack.c.l.b16 %v788
        %v1165 = vunpack.c.h.b16 %v788
        %v1166 = vunpack.c.l.b16 %v789
        %v1167 = vunpack.c.h.b16 %v789
        %v1168 = vunpack.c.l.b16 %v790
        %v1169 = vunpack.c.h.b16 %v790
        %v1170 = vunpack.c.l.b16 %v791
        %v1171 = vunpack.c.h.b16 %v791
        %v1172 = vunpack.c.l.b16 %v792
        %v1173 = vunpack.c.h.b16 %v792
        %v1174 = vunpack.c.l.b16 %v793
        %v1175 = vunpack.c.h.b16 %v793
        %v1176 = vunpack.c.l.b16 %v794
        %v1177 = vunpack.c.h.b16 %v794
        %v1178 = vunpack.c.l.b16 %v795
        %v1179 = vunpack.c.h.b16 %v795
        %v1180 = vunpack.c.l.b16 %v796
        %v1181 = vunpack.c.h.b16 %v796
        %v1182 = vunpack.c.l.b16 %v797
        %v1183 = vunpack.c.h.b16 %v797
        %v1184 = vunpack.c.l.b16 %v798
        %v1185 = vunpack.c.h.b16 %v798
        %v1186 = vunpack.c.l.b16 %v799
        %v1187 = vunpack.c.h.b16 %v799
        %v1188 = vunpack.c.l.b16 %v800
        %v1189 = vunpack.c.h.b16 %v800
        %v1190 = vunpack.c.l.b16 %v801
        %v1191 = vunpack.c.h.b16 %v801
        %v1192 = vunpack.c.l.b16 %v802
        %v1193 = vunpack.c.h.b16 %v802
        %v1194 = vunpack.c.l.b16 %v803
        %v1195 = vunpack.c.h.b16 %v803
        %v1196 = vunpack.c.l.b16 %v804
        %v1197 = vunpack.c.h.b16 %v804
        %v1198 = vunpack.c.l.b16 %v805
        %v1199 = vunpack.c.h.b16 %v805
        %v1200 = vunpack.c.l.b16 %v806
        %v1201 = vunpack.c.h.b16 %v806
        %v1202 = vpack.c.b16 %v1142, %v1138
        %v1203 = vpack.c.b16 %v1143, %v1139
        %v1204 = vpack.c.b16 %v1144, %v1140
        %v1205 = vpack.c.b16 %v1145, %v1141
        %v1206 = vpack.c.b16 %v1150, %v1146
        %v1207 = vpack.c.b16 %v1151, %v1147
        %v1208 = vpack.c.b16 %v1152, %v1148
        %v1209 = vpack.c.b16 %v1153, %v1149
        %v1210 = vpack.c.b16 %v1158, %v1154
        %v1211 = vpack.c.b16 %v1159, %v1155
        %v1212 = vpack.c.b16 %v1160, %v1156
        %v1213 = vpack.c.b16 %v1161, %v1157
        %v1214 = vpack.c.b16 %v1166, %v1162
        %v1215 = vpack.c.b16 %v1167, %v1163
        %v1216 = vpack.c.b16 %v1168, %v1164
        %v1217 = vpack.c.b16 %v1169, %v1165
        %v1218 = vpack.c.b16 %v1174, %v1170
        %v1219 = vpack.c.b16 %v1175, %v1171
        %v1220 = vpack.c.b16 %v1176, %v1172
        %v1221 = vpack.c.b16 %v1177, %v1173
        %v1222 = vpack.c.b16 %v1182, %v1178
        %v1223 = vpack.c.b16 %v1183, %v1179
        %v1224 = vpack.c.b16 %v1184, %v1180
        %v1225 = vpack.c.b16 %v1185, %v1181
        %v1226 = vpack.c.b16 %v1190, %v1186
        %v1227 = vpack.c.b16 %v1191, %v1187
        %v1228 = vpack.c.b16 %v1192, %v1188
        %v1229 = vpack.c.b16 %v1193, %v1189
        %v1230 = vpack.c.b16 %v1198, %v1194
        %v1231 = vpack.c.b16 %v1199, %v1195
        %v1232 = vpack.c.b16 %v1200, %v1196
        %v1233 = vpack.c.b16 %v1201, %v1197
        %1266 = vmatprep.subr.bf16.mxu0 %v1203
        %1267 = vmatpush1.bf16.msra.mxu0 %v1202
        %1268 = vmatprep.subr.bf16.mxu0 %v1207
        %1269 = vmatpush1.bf16.msra.mxu0 %v1206
        %1270 = vmatprep.subr.bf16.mxu0 %v1211
        %1271 = vmatpush1.bf16.msra.mxu0 %v1210
        %1272 = vmatprep.subr.bf16.mxu0 %v1215
        %1273 = vmatpush1.bf16.msra.mxu0 %v1214
        %1274 = vmatprep.subr.bf16.mxu0 %v1219
        %1275 = vmatpush1.bf16.msra.mxu0 %v1218
        %1276 = vmatprep.subr.bf16.mxu0 %v1223
        %1277 = vmatpush1.bf16.msra.mxu0 %v1222
        %1278 = vmatprep.subr.bf16.mxu0 %v1227
        %1279 = vmatpush1.bf16.msra.mxu0 %v1226
        %1280 = vmatprep.subr.bf16.mxu0 %v1231
        %1281 = vmatpush1.bf16.msra.mxu0 %v1230
        %1282 = vmatprep.subr.bf16.mxu0 0
        %1283 = vmatpush1.bf16.msra.mxu0 0
        %1284 = vmatprep.subr.bf16.mxu0 0
        %1285 = vmatpush1.bf16.msra.mxu0 0
        %1286 = vmatprep.subr.bf16.mxu0 0
        %1287 = vmatpush1.bf16.msra.mxu0 0
        %1288 = vmatprep.subr.bf16.mxu0 0
        %1289 = vmatpush1.bf16.msra.mxu0 0
        %1290 = vmatprep.subr.bf16.mxu0 0
        %1291 = vmatpush1.bf16.msra.mxu0 0
        %1292 = vmatprep.subr.bf16.mxu0 0
        %1293 = vmatpush1.bf16.msra.mxu0 0
        %1294 = vmatprep.subr.bf16.mxu0 0
        %1295 = vmatpush1.bf16.msra.mxu0 0
        %1296 = vmatprep.subr.bf16.mxu0 0
        %1297 = vmatpush1.bf16.msra.mxu0 0
        %1298 = vmatprep.mubr.bf16.mxu0 0
        %1299 = vmatmul.mubr.bf16.gmra.mrb[0].mxu0 %v1105
        %v1300 = vpop.f32.mrb[0].mxu0
        %v1301 = vadd.f32 0.0, %v1300
        %v1302 = vpop.f32.mrb[0].mxu0
        %v1303 = vadd.f32 0.0, %v1302
        %v1304 = vpop.f32.mrb[0].mxu0
        %v1305 = vpop.f32.mrb[0].mxu0
        %1306 = vdwg.mxu0
        %1307 = vmatprep.subr.bf16.mxu0 %v1205
        %1308 = vmatpush1.bf16.msra.mxu0 %v1204
        %1309 = vmatprep.subr.bf16.mxu0 %v1209
        %1310 = vmatpush1.bf16.msra.mxu0 %v1208
        %1311 = vmatprep.subr.bf16.mxu0 %v1213
        %1312 = vmatpush1.bf16.msra.mxu0 %v1212
        %1313 = vmatprep.subr.bf16.mxu0 %v1217
        %1314 = vmatpush1.bf16.msra.mxu0 %v1216
        %1315 = vmatprep.subr.bf16.mxu0 %v1221
        %1316 = vmatpush1.bf16.msra.mxu0 %v1220
        %1317 = vmatprep.subr.bf16.mxu0 %v1225
        %1318 = vmatpush1.bf16.msra.mxu0 %v1224
        %1319 = vmatprep.subr.bf16.mxu0 %v1229
        %1320 = vmatpush1.bf16.msra.mxu0 %v1228
        %1321 = vmatprep.subr.bf16.mxu0 %v1233
        %1322 = vmatpush1.bf16.msra.mxu0 %v1232
        %1323 = vmatprep.subr.bf16.mxu0 0
        %1324 = vmatpush1.bf16.msra.mxu0 0
        %1325 = vmatprep.subr.bf16.mxu0 0
        %1326 = vmatpush1.bf16.msra.mxu0 0
        %1327 = vmatprep.subr.bf16.mxu0 0
        %1328 = vmatpush1.bf16.msra.mxu0 0
        %1329 = vmatprep.subr.bf16.mxu0 0
        %1330 = vmatpush1.bf16.msra.mxu0 0
        %1331 = vmatprep.subr.bf16.mxu0 0
        %1332 = vmatpush1.bf16.msra.mxu0 0
        %1333 = vmatprep.subr.bf16.mxu0 0
        %1334 = vmatpush1.bf16.msra.mxu0 0
        %1335 = vmatprep.subr.bf16.mxu0 0
        %1336 = vmatpush1.bf16.msra.mxu0 0
        %1337 = vmatprep.subr.bf16.mxu0 0
        %1338 = vmatpush1.bf16.msra.mxu0 0
        %1339 = vmatprep.mubr.bf16.mxu0 0
        %1340 = vmatmul.mubr.bf16.gmra.mrb[0].mxu0 %v1105
        %v1341 = vpop.f32.mrb[0].mxu0
        %v1342 = vadd.f32 0.0, %v1341
        %v1343 = vpop.f32.mrb[0].mxu0
        %v1344 = vadd.f32 0.0, %v1343
        %v1345 = vpop.f32.mrb[0].mxu0
        %v1346 = vpop.f32.mrb[0].mxu0
        %1347 = vdwg.mxu0
        %v1380 = vunpack.c.l.b16 %v743
        %v1381 = vunpack.c.h.b16 %v743
        %v1382 = vunpack.c.l.b16 %v744
        %v1383 = vunpack.c.h.b16 %v744
        %v1384 = vunpack.c.l.b16 %v745
        %v1385 = vunpack.c.h.b16 %v745
        %v1386 = vunpack.c.l.b16 %v746
        %v1387 = vunpack.c.h.b16 %v746
        %v1388 = vunpack.c.l.b16 %v747
        %v1389 = vunpack.c.h.b16 %v747
        %v1390 = vunpack.c.l.b16 %v748
        %v1391 = vunpack.c.h.b16 %v748
        %v1392 = vunpack.c.l.b16 %v749
        %v1393 = vunpack.c.h.b16 %v749
        %v1394 = vunpack.c.l.b16 %v750
        %v1395 = vunpack.c.h.b16 %v750
        %v1396 = vunpack.c.l.b16 %v751
        %v1397 = vunpack.c.h.b16 %v751
        %v1398 = vunpack.c.l.b16 %v752
        %v1399 = vunpack.c.h.b16 %v752
        %v1400 = vunpack.c.l.b16 %v753
        %v1401 = vunpack.c.h.b16 %v753
        %v1402 = vunpack.c.l.b16 %v754
        %v1403 = vunpack.c.h.b16 %v754
        %v1404 = vunpack.c.l.b16 %v755
        %v1405 = vunpack.c.h.b16 %v755
        %v1406 = vunpack.c.l.b16 %v756
        %v1407 = vunpack.c.h.b16 %v756
        %v1408 = vunpack.c.l.b16 %v757
        %v1409 = vunpack.c.h.b16 %v757
        %v1410 = vunpack.c.l.b16 %v758
        %v1411 = vunpack.c.h.b16 %v758
        %v1412 = vunpack.c.l.b16 %v759
        %v1413 = vunpack.c.h.b16 %v759
        %v1414 = vunpack.c.l.b16 %v760
        %v1415 = vunpack.c.h.b16 %v760
        %v1416 = vunpack.c.l.b16 %v761
        %v1417 = vunpack.c.h.b16 %v761
        %v1418 = vunpack.c.l.b16 %v762
        %v1419 = vunpack.c.h.b16 %v762
        %v1420 = vunpack.c.l.b16 %v763
        %v1421 = vunpack.c.h.b16 %v763
        %v1422 = vunpack.c.l.b16 %v764
        %v1423 = vunpack.c.h.b16 %v764
        %v1424 = vunpack.c.l.b16 %v765
        %v1425 = vunpack.c.h.b16 %v765
        %v1426 = vunpack.c.l.b16 %v766
        %v1427 = vunpack.c.h.b16 %v766
        %v1428 = vunpack.c.l.b16 %v767
        %v1429 = vunpack.c.h.b16 %v767
        %v1430 = vunpack.c.l.b16 %v768
        %v1431 = vunpack.c.h.b16 %v768
        %v1432 = vunpack.c.l.b16 %v769
        %v1433 = vunpack.c.h.b16 %v769
        %v1434 = vunpack.c.l.b16 %v770
        %v1435 = vunpack.c.h.b16 %v770
        %v1436 = vunpack.c.l.b16 %v771
        %v1437 = vunpack.c.h.b16 %v771
        %v1438 = vunpack.c.l.b16 %v772
        %v1439 = vunpack.c.h.b16 %v772
        %v1440 = vunpack.c.l.b16 %v773
        %v1441 = vunpack.c.h.b16 %v773
        %v1442 = vunpack.c.l.b16 %v774
        %v1443 = vunpack.c.h.b16 %v774
        %v1444 = vpack.c.b16 %v1384, %v1380
        %v1445 = vpack.c.b16 %v1385, %v1381
        %v1446 = vpack.c.b16 %v1386, %v1382
        %v1447 = vpack.c.b16 %v1387, %v1383
        %v1448 = vpack.c.b16 %v1392, %v1388
        %v1449 = vpack.c.b16 %v1393, %v1389
        %v1450 = vpack.c.b16 %v1394, %v1390
        %v1451 = vpack.c.b16 %v1395, %v1391
        %v1452 = vpack.c.b16 %v1400, %v1396
        %v1453 = vpack.c.b16 %v1401, %v1397
        %v1454 = vpack.c.b16 %v1402, %v1398
        %v1455 = vpack.c.b16 %v1403, %v1399
        %v1456 = vpack.c.b16 %v1408, %v1404
        %v1457 = vpack.c.b16 %v1409, %v1405
        %v1458 = vpack.c.b16 %v1410, %v1406
        %v1459 = vpack.c.b16 %v1411, %v1407
        %v1460 = vpack.c.b16 %v1416, %v1412
        %v1461 = vpack.c.b16 %v1417, %v1413
        %v1462 = vpack.c.b16 %v1418, %v1414
        %v1463 = vpack.c.b16 %v1419, %v1415
        %v1464 = vpack.c.b16 %v1424, %v1420
        %v1465 = vpack.c.b16 %v1425, %v1421
        %v1466 = vpack.c.b16 %v1426, %v1422
        %v1467 = vpack.c.b16 %v1427, %v1423
        %v1468 = vpack.c.b16 %v1432, %v1428
        %v1469 = vpack.c.b16 %v1433, %v1429
        %v1470 = vpack.c.b16 %v1434, %v1430
        %v1471 = vpack.c.b16 %v1435, %v1431
        %v1472 = vpack.c.b16 %v1440, %v1436
        %v1473 = vpack.c.b16 %v1441, %v1437
        %v1474 = vpack.c.b16 %v1442, %v1438
        %v1475 = vpack.c.b16 %v1443, %v1439
        %1508 = vmatprep.subr.bf16.mxu0 %v1445
        %1509 = vmatpush1.bf16.msra.mxu0 %v1444
        %1510 = vmatprep.subr.bf16.mxu0 %v1449
        %1511 = vmatpush1.bf16.msra.mxu0 %v1448
        %1512 = vmatprep.subr.bf16.mxu0 %v1453
        %1513 = vmatpush1.bf16.msra.mxu0 %v1452
        %1514 = vmatprep.subr.bf16.mxu0 %v1457
        %1515 = vmatpush1.bf16.msra.mxu0 %v1456
        %1516 = vmatprep.subr.bf16.mxu0 %v1461
        %1517 = vmatpush1.bf16.msra.mxu0 %v1460
        %1518 = vmatprep.subr.bf16.mxu0 %v1465
        %1519 = vmatpush1.bf16.msra.mxu0 %v1464
        %1520 = vmatprep.subr.bf16.mxu0 %v1469
        %1521 = vmatpush1.bf16.msra.mxu0 %v1468
        %1522 = vmatprep.subr.bf16.mxu0 %v1473
        %1523 = vmatpush1.bf16.msra.mxu0 %v1472
        %1524 = vmatprep.subr.bf16.mxu0 0
        %1525 = vmatpush1.bf16.msra.mxu0 0
        %1526 = vmatprep.subr.bf16.mxu0 0
        %1527 = vmatpush1.bf16.msra.mxu0 0
        %1528 = vmatprep.subr.bf16.mxu0 0
        %1529 = vmatpush1.bf16.msra.mxu0 0
        %1530 = vmatprep.subr.bf16.mxu0 0
        %1531 = vmatpush1.bf16.msra.mxu0 0
        %1532 = vmatprep.subr.bf16.mxu0 0
        %1533 = vmatpush1.bf16.msra.mxu0 0
        %1534 = vmatprep.subr.bf16.mxu0 0
        %1535 = vmatpush1.bf16.msra.mxu0 0
        %1536 = vmatprep.subr.bf16.mxu0 0
        %1537 = vmatpush1.bf16.msra.mxu0 0
        %1538 = vmatprep.subr.bf16.mxu0 0
        %1539 = vmatpush1.bf16.msra.mxu0 0
        %1540 = vmatprep.mubr.bf16.mxu0 0
        %1541 = vmatmul.mubr.bf16.gmra.mrb[0].mxu0 %v1104
        %v1542 = vpop.f32.mrb[0].mxu0
        %v1543 = vadd.f32 %v1301, %v1542
        %v1544 = vpop.f32.mrb[0].mxu0
        %v1545 = vadd.f32 %v1303, %v1544
        %v1546 = vpop.f32.mrb[0].mxu0
        %v1547 = vpop.f32.mrb[0].mxu0
        %1548 = vdwg.mxu0
        %1549 = vmatprep.subr.bf16.mxu0 %v1447
        %1550 = vmatpush1.bf16.msra.mxu0 %v1446
        %1551 = vmatprep.subr.bf16.mxu0 %v1451
        %1552 = vmatpush1.bf16.msra.mxu0 %v1450
        %1553 = vmatprep.subr.bf16.mxu0 %v1455
        %1554 = vmatpush1.bf16.msra.mxu0 %v1454
        %1555 = vmatprep.subr.bf16.mxu0 %v1459
        %1556 = vmatpush1.bf16.msra.mxu0 %v1458
        %1557 = vmatprep.subr.bf16.mxu0 %v1463
        %1558 = vmatpush1.bf16.msra.mxu0 %v1462
        %1559 = vmatprep.subr.bf16.mxu0 %v1467
        %1560 = vmatpush1.bf16.msra.mxu0 %v1466
        %1561 = vmatprep.subr.bf16.mxu0 %v1471
        %1562 = vmatpush1.bf16.msra.mxu0 %v1470
        %1563 = vmatprep.subr.bf16.mxu0 %v1475
        %1564 = vmatpush1.bf16.msra.mxu0 %v1474
        %1565 = vmatprep.subr.bf16.mxu0 0
        %1566 = vmatpush1.bf16.msra.mxu0 0
        %1567 = vmatprep.subr.bf16.mxu0 0
        %1568 = vmatpush1.bf16.msra.mxu0 0
        %1569 = vmatprep.subr.bf16.mxu0 0
        %1570 = vmatpush1.bf16.msra.mxu0 0
        %1571 = vmatprep.subr.bf16.mxu0 0
        %1572 = vmatpush1.bf16.msra.mxu0 0
        %1573 = vmatprep.subr.bf16.mxu0 0
        %1574 = vmatpush1.bf16.msra.mxu0 0
        %1575 = vmatprep.subr.bf16.mxu0 0
        %1576 = vmatpush1.bf16.msra.mxu0 0
        %1577 = vmatprep.subr.bf16.mxu0 0
        %1578 = vmatpush1.bf16.msra.mxu0 0
        %1579 = vmatprep.subr.bf16.mxu0 0
        %1580 = vmatpush1.bf16.msra.mxu0 0
        %1581 = vmatprep.mubr.bf16.mxu0 0
        %1582 = vmatmul.mubr.bf16.gmra.mrb[0].mxu0 %v1104
        %v1583 = vpop.f32.mrb[0].mxu0
        %v1584 = vadd.f32 %v1342, %v1583
        %v1585 = vpop.f32.mrb[0].mxu0
        %v1586 = vadd.f32 %v1344, %v1585
        %v1587 = vpop.f32.mrb[0].mxu0
        %v1588 = vpop.f32.mrb[0].mxu0
        %1589 = vdwg.mxu0
        %v1590 = vadd.f32 %v1543, %v812
        %v1591 = vadd.f32 %v1545, %v816
        %v1592 = vadd.f32 %v1584, %v820
        %v1593 = vadd.f32 %v1586, %v824
        %v1594 = vxor.u32 %v1590, 2147483648
        %v1595 = vxor.u32 %v1591, 2147483648
        %v1596 = vxor.u32 %v1592, 2147483648
        %v1597 = vmul.f32 %v1594, 1.442695
        %v1598 = vpow.pop %v1597
        %v1599 = vmul.f32 %v1595, 1.442695
        %v1600 = vpow.pop %v1599
        %v1601 = vmul.f32 %v1596, 1.442695
        %v1602 = vpow.pop %v1601
        %v1603 = vadd.f32 %v1598, 1.0
        %v1604 = vadd.f32 %v1600, 1.0
        %v1605 = vadd.f32 %v1602, 1.0
        %v1606 = vrcp.pop %v1603
        %v1607 = vmul.f32 1.0, %v1606
        %v1608 = vrcp.pop %v1604
        %v1609 = vmul.f32 1.0, %v1608
        %v1610 = vrcp.pop %v1605
        %v1611 = vmul.f32 1.0, %v1610
        %v1612 = vtanh.pop %v1593
        %v1613 = vmul.f32 %v1609, %v832
        %v1614 = vmul.f32 %v1607, %v1612
        %v1615 = vadd.f32 %v1613, %v1614
        %v1616 = vtanh.pop %v1615
        %v1617 = vmul.f32 %v1611, %v1616
        %1618 = vmatprep.subr.bf16.mxu0 %v931
        %1619 = vmatpush1.bf16.msra.mxu0 %v930
        %1620 = vmatprep.subr.bf16.mxu0 %v935
        %1621 = vmatpush1.bf16.msra.mxu0 %v934
        %1622 = vmatprep.subr.bf16.mxu0 %v939
        %1623 = vmatpush1.bf16.msra.mxu0 %v938
        %1624 = vmatprep.subr.bf16.mxu0 %v943
        %1625 = vmatpush1.bf16.msra.mxu0 %v942
        %1626 = vmatprep.subr.bf16.mxu0 %v947
        %1627 = vmatpush1.bf16.msra.mxu0 %v946
        %1628 = vmatprep.subr.bf16.mxu0 %v951
        %1629 = vmatpush1.bf16.msra.mxu0 %v950
        %1630 = vmatprep.subr.bf16.mxu0 %v955
        %1631 = vmatpush1.bf16.msra.mxu0 %v954
        %1632 = vmatprep.subr.bf16.mxu0 %v959
        %1633 = vmatpush1.bf16.msra.mxu0 %v958
        %1634 = vmatprep.subr.bf16.mxu0 0
        %1635 = vmatpush1.bf16.msra.mxu0 0
        %1636 = vmatprep.subr.bf16.mxu0 0
        %1637 = vmatpush1.bf16.msra.mxu0 0
        %1638 = vmatprep.subr.bf16.mxu0 0
        %1639 = vmatpush1.bf16.msra.mxu0 0
        %1640 = vmatprep.subr.bf16.mxu0 0
        %1641 = vmatpush1.bf16.msra.mxu0 0
        %1642 = vmatprep.subr.bf16.mxu0 0
        %1643 = vmatpush1.bf16.msra.mxu0 0
        %1644 = vmatprep.subr.bf16.mxu0 0
        %1645 = vmatpush1.bf16.msra.mxu0 0
        %1646 = vmatprep.subr.bf16.mxu0 0
        %1647 = vmatpush1.bf16.msra.mxu0 0
        %1648 = vmatprep.subr.bf16.mxu0 0
        %1649 = vmatpush1.bf16.msra.mxu0 0
        %1650 = vmatprep.mubr.bf16.mxu0 0
        %1651 = vmatmul.mubr.bf16.gmra.mrb[0].mxu0 %v1104
        %v1652 = vpop.f32.mrb[0].mxu0
        %v1653 = vadd.f32 0.0, %v1652
        %v1654 = vpop.f32.mrb[0].mxu0
        %v1655 = vadd.f32 0.0, %v1654
        %v1656 = vpop.f32.mrb[0].mxu0
        %v1657 = vpop.f32.mrb[0].mxu0
        %1658 = vdwg.mxu0
        %1659 = vmatprep.subr.bf16.mxu0 %v933
        %1660 = vmatpush1.bf16.msra.mxu0 %v932
        %1661 = vmatprep.subr.bf16.mxu0 %v937
        %1662 = vmatpush1.bf16.msra.mxu0 %v936
        %1663 = vmatprep.subr.bf16.mxu0 %v941
        %1664 = vmatpush1.bf16.msra.mxu0 %v940
        %1665 = vmatprep.subr.bf16.mxu0 %v945
        %1666 = vmatpush1.bf16.msra.mxu0 %v944
        %1667 = vmatprep.subr.bf16.mxu0 %v949
        %1668 = vmatpush1.bf16.msra.mxu0 %v948
        %1669 = vmatprep.subr.bf16.mxu0 %v953
        %1670 = vmatpush1.bf16.msra.mxu0 %v952
        %1671 = vmatprep.subr.bf16.mxu0 %v957
        %1672 = vmatpush1.bf16.msra.mxu0 %v956
        %1673 = vmatprep.subr.bf16.mxu0 %v961
        %1674 = vmatpush1.bf16.msra.mxu0 %v960
        %1675 = vmatprep.subr.bf16.mxu0 0
        %1676 = vmatpush1.bf16.msra.mxu0 0
        %1677 = vmatprep.subr.bf16.mxu0 0
        %1678 = vmatpush1.bf16.msra.mxu0 0
        %1679 = vmatprep.subr.bf16.mxu0 0
        %1680 = vmatpush1.bf16.msra.mxu0 0
        %1681 = vmatprep.subr.bf16.mxu0 0
        %1682 = vmatpush1.bf16.msra.mxu0 0
        %1683 = vmatprep.subr.bf16.mxu0 0
        %1684 = vmatpush1.bf16.msra.mxu0 0
        %1685 = vmatprep.subr.bf16.mxu0 0
        %1686 = vmatpush1.bf16.msra.mxu0 0
        %1687 = vmatprep.subr.bf16.mxu0 0
        %1688 = vmatpush1.bf16.msra.mxu0 0
        %1689 = vmatprep.subr.bf16.mxu0 0
        %1690 = vmatpush1.bf16.msra.mxu0 0
        %1691 = vmatprep.mubr.bf16.mxu0 0
        %1692 = vmatmul.mubr.bf16.gmra.mrb[0].mxu0 %v1104
        %v1693 = vpop.f32.mrb[0].mxu0
        %v1694 = vadd.f32 0.0, %v1693
        %v1695 = vpop.f32.mrb[0].mxu0
        %v1696 = vadd.f32 0.0, %v1695
        %v1697 = vpop.f32.mrb[0].mxu0
        %v1698 = vpop.f32.mrb[0].mxu0
        %1699 = vdwg.mxu0
        %v1700 = vadd.f32 %v604, %v1653
        %v1701 = vadd.f32 %v606, %v1655
        %v1702 = vadd.f32 %v677, %v1694
        %v1703 = vadd.f32 %v679, %v1696
        %v1704 = vxor.u32 %v1700, 2147483648
        %v1705 = vxor.u32 %v1701, 2147483648
        %v1706 = vxor.u32 %v1702, 2147483648
        %v1707 = vmul.f32 %v1704, 1.442695
        %v1708 = vpow.pop %v1707
        %v1709 = vmul.f32 %v1705, 1.442695
        %v1710 = vpow.pop %v1709
        %v1711 = vmul.f32 %v1706, 1.442695
        %v1712 = vpow.pop %v1711
        %v1713 = vadd.f32 %v1708, 1.0
        %v1714 = vadd.f32 %v1710, 1.0
        %v1715 = vadd.f32 %v1712, 1.0
        %v1716 = vrcp.pop %v1713
        %v1717 = vmul.f32 1.0, %v1716
        %v1718 = vrcp.pop %v1714
        %v1719 = vmul.f32 1.0, %v1718
        %v1720 = vrcp.pop %v1715
        %v1721 = vmul.f32 1.0, %v1720
        %v1722 = vtanh.pop %v1703
        %v1723 = vmul.f32 %v1719, %v1101
        %v1724 = vmul.f32 %v1717, %v1722
        %v1725 = vadd.f32 %v1723, %v1724
        %v1726 = vtanh.pop %v1725
        %v1727 = vmul.f32 %v1721, %v1726
        %v1728 = vpack.c.bf16 %v1727, %v1727
        %v1729 = vpack.c.bf16 %v1617, %v1617
        %1730 = vmatprep.subr.bf16.mxu0 %v1203
        %1731 = vmatpush1.bf16.msra.mxu0 %v1202
        %1732 = vmatprep.subr.bf16.mxu0 %v1207
        %1733 = vmatpush1.bf16.msra.mxu0 %v1206
        %1734 = vmatprep.subr.bf16.mxu0 %v1211
        %1735 = vmatpush1.bf16.msra.mxu0 %v1210
        %1736 = vmatprep.subr.bf16.mxu0 %v1215
        %1737 = vmatpush1.bf16.msra.mxu0 %v1214
        %1738 = vmatprep.subr.bf16.mxu0 %v1219
        %1739 = vmatpush1.bf16.msra.mxu0 %v1218
        %1740 = vmatprep.subr.bf16.mxu0 %v1223
        %1741 = vmatpush1.bf16.msra.mxu0 %v1222
        %1742 = vmatprep.subr.bf16.mxu0 %v1227
        %1743 = vmatpush1.bf16.msra.mxu0 %v1226
        %1744 = vmatprep.subr.bf16.mxu0 %v1231
        %1745 = vmatpush1.bf16.msra.mxu0 %v1230
        %1746 = vmatprep.subr.bf16.mxu0 0
        %1747 = vmatpush1.bf16.msra.mxu0 0
        %1748 = vmatprep.subr.bf16.mxu0 0
        %1749 = vmatpush1.bf16.msra.mxu0 0
        %1750 = vmatprep.subr.bf16.mxu0 0
        %1751 = vmatpush1.bf16.msra.mxu0 0
        %1752 = vmatprep.subr.bf16.mxu0 0
        %1753 = vmatpush1.bf16.msra.mxu0 0
        %1754 = vmatprep.subr.bf16.mxu0 0
        %1755 = vmatpush1.bf16.msra.mxu0 0
        %1756 = vmatprep.subr.bf16.mxu0 0
        %1757 = vmatpush1.bf16.msra.mxu0 0
        %1758 = vmatprep.subr.bf16.mxu0 0
        %1759 = vmatpush1.bf16.msra.mxu0 0
        %1760 = vmatprep.subr.bf16.mxu0 0
        %1761 = vmatpush1.bf16.msra.mxu0 0
        %1762 = vmatprep.mubr.bf16.mxu0 0
        %1763 = vmatmul.mubr.bf16.gmra.mrb[0].mxu0 %v1729
        %v1764 = vpop.f32.mrb[0].mxu0
        %v1765 = vadd.f32 0.0, %v1764
        %v1766 = vpop.f32.mrb[0].mxu0
        %v1767 = vadd.f32 0.0, %v1766
        %v1768 = vpop.f32.mrb[0].mxu0
        %v1769 = vpop.f32.mrb[0].mxu0
        %1770 = vdwg.mxu0
        %1771 = vmatprep.subr.bf16.mxu0 %v1205
        %1772 = vmatpush1.bf16.msra.mxu0 %v1204
        %1773 = vmatprep.subr.bf16.mxu0 %v1209
        %1774 = vmatpush1.bf16.msra.mxu0 %v1208
        %1775 = vmatprep.subr.bf16.mxu0 %v1213
        %1776 = vmatpush1.bf16.msra.mxu0 %v1212
        %1777 = vmatprep.subr.bf16.mxu0 %v1217
        %1778 = vmatpush1.bf16.msra.mxu0 %v1216
        %1779 = vmatprep.subr.bf16.mxu0 %v1221
        %1780 = vmatpush1.bf16.msra.mxu0 %v1220
        %1781 = vmatprep.subr.bf16.mxu0 %v1225
        %1782 = vmatpush1.bf16.msra.mxu0 %v1224
        %1783 = vmatprep.subr.bf16.mxu0 %v1229
        %1784 = vmatpush1.bf16.msra.mxu0 %v1228
        %1785 = vmatprep.subr.bf16.mxu0 %v1233
        %1786 = vmatpush1.bf16.msra.mxu0 %v1232
        %1787 = vmatprep.subr.bf16.mxu0 0
        %1788 = vmatpush1.bf16.msra.mxu0 0
        %1789 = vmatprep.subr.bf16.mxu0 0
        %1790 = vmatpush1.bf16.msra.mxu0 0
        %1791 = vmatprep.subr.bf16.mxu0 0
        %1792 = vmatpush1.bf16.msra.mxu0 0
        %1793 = vmatprep.subr.bf16.mxu0 0
        %1794 = vmatpush1.bf16.msra.mxu0 0
        %1795 = vmatprep.subr.bf16.mxu0 0
        %1796 = vmatpush1.bf16.msra.mxu0 0
        %1797 = vmatprep.subr.bf16.mxu0 0
        %1798 = vmatpush1.bf16.msra.mxu0 0
        %1799 = vmatprep.subr.bf16.mxu0 0
        %1800 = vmatpush1.bf16.msra.mxu0 0
        %1801 = vmatprep.subr.bf16.mxu0 0
        %1802 = vmatpush1.bf16.msra.mxu0 0
        %1803 = vmatprep.mubr.bf16.mxu0 0
        %1804 = vmatmul.mubr.bf16.gmra.mrb[0].mxu0 %v1729
        %v1805 = vpop.f32.mrb[0].mxu0
        %v1806 = vadd.f32 0.0, %v1805
        %v1807 = vpop.f32.mrb[0].mxu0
        %v1808 = vadd.f32 0.0, %v1807
        %v1809 = vpop.f32.mrb[0].mxu0
        %v1810 = vpop.f32.mrb[0].mxu0
        %1811 = vdwg.mxu0
        %1812 = vmatprep.subr.bf16.mxu0 %v1445
        %1813 = vmatpush1.bf16.msra.mxu0 %v1444
        %1814 = vmatprep.subr.bf16.mxu0 %v1449
        %1815 = vmatpush1.bf16.msra.mxu0 %v1448
        %1816 = vmatprep.subr.bf16.mxu0 %v1453
        %1817 = vmatpush1.bf16.msra.mxu0 %v1452
        %1818 = vmatprep.subr.bf16.mxu0 %v1457
        %1819 = vmatpush1.bf16.msra.mxu0 %v1456
        %1820 = vmatprep.subr.bf16.mxu0 %v1461
        %1821 = vmatpush1.bf16.msra.mxu0 %v1460
        %1822 = vmatprep.subr.bf16.mxu0 %v1465
        %1823 = vmatpush1.bf16.msra.mxu0 %v1464
        %1824 = vmatprep.subr.bf16.mxu0 %v1469
        %1825 = vmatpush1.bf16.msra.mxu0 %v1468
        %1826 = vmatprep.subr.bf16.mxu0 %v1473
        %1827 = vmatpush1.bf16.msra.mxu0 %v1472
        %1828 = vmatprep.subr.bf16.mxu0 0
        %1829 = vmatpush1.bf16.msra.mxu0 0
        %1830 = vmatprep.subr.bf16.mxu0 0
        %1831 = vmatpush1.bf16.msra.mxu0 0
        %1832 = vmatprep.subr.bf16.mxu0 0
        %1833 = vmatpush1.bf16.msra.mxu0 0
        %1834 = vmatprep.subr.bf16.mxu0 0
        %1835 = vmatpush1.bf16.msra.mxu0 0
        %1836 = vmatprep.subr.bf16.mxu0 0
        %1837 = vmatpush1.bf16.msra.mxu0 0
        %1838 = vmatprep.subr.bf16.mxu0 0
        %1839 = vmatpush1.bf16.msra.mxu0 0
        %1840 = vmatprep.subr.bf16.mxu0 0
        %1841 = vmatpush1.bf16.msra.mxu0 0
        %1842 = vmatprep.subr.bf16.mxu0 0
        %1843 = vmatpush1.bf16.msra.mxu0 0
        %1844 = vmatprep.mubr.bf16.mxu0 0
        %1845 = vmatmul.mubr.bf16.gmra.mrb[0].mxu0 %v1728
        %v1846 = vpop.f32.mrb[0].mxu0
        %v1847 = vadd.f32 %v1765, %v1846
        %v1848 = vpop.f32.mrb[0].mxu0
        %v1849 = vadd.f32 %v1767, %v1848
        %v1850 = vpop.f32.mrb[0].mxu0
        %v1851 = vpop.f32.mrb[0].mxu0
        %1852 = vdwg.mxu0
        %1853 = vmatprep.subr.bf16.mxu0 %v1447
        %1854 = vmatpush1.bf16.msra.mxu0 %v1446
        %1855 = vmatprep.subr.bf16.mxu0 %v1451
        %1856 = vmatpush1.bf16.msra.mxu0 %v1450
        %1857 = vmatprep.subr.bf16.mxu0 %v1455
        %1858 = vmatpush1.bf16.msra.mxu0 %v1454
        %1859 = vmatprep.subr.bf16.mxu0 %v1459
        %1860 = vmatpush1.bf16.msra.mxu0 %v1458
        %1861 = vmatprep.subr.bf16.mxu0 %v1463
        %1862 = vmatpush1.bf16.msra.mxu0 %v1462
        %1863 = vmatprep.subr.bf16.mxu0 %v1467
        %1864 = vmatpush1.bf16.msra.mxu0 %v1466
        %1865 = vmatprep.subr.bf16.mxu0 %v1471
        %1866 = vmatpush1.bf16.msra.mxu0 %v1470
        %1867 = vmatprep.subr.bf16.mxu0 %v1475
        %1868 = vmatpush1.bf16.msra.mxu0 %v1474
        %1869 = vmatprep.subr.bf16.mxu0 0
        %1870 = vmatpush1.bf16.msra.mxu0 0
        %1871 = vmatprep.subr.bf16.mxu0 0
        %1872 = vmatpush1.bf16.msra.mxu0 0
        %1873 = vmatprep.subr.bf16.mxu0 0
        %1874 = vmatpush1.bf16.msra.mxu0 0
        %1875 = vmatprep.subr.bf16.mxu0 0
        %1876 = vmatpush1.bf16.msra.mxu0 0
        %1877 = vmatprep.subr.bf16.mxu0 0
        %1878 = vmatpush1.bf16.msra.mxu0 0
        %1879 = vmatprep.subr.bf16.mxu0 0
        %1880 = vmatpush1.bf16.msra.mxu0 0
        %1881 = vmatprep.subr.bf16.mxu0 0
        %1882 = vmatpush1.bf16.msra.mxu0 0
        %1883 = vmatprep.subr.bf16.mxu0 0
        %1884 = vmatpush1.bf16.msra.mxu0 0
        %1885 = vmatprep.mubr.bf16.mxu0 0
        %1886 = vmatmul.mubr.bf16.gmra.mrb[0].mxu0 %v1728
        %v1887 = vpop.f32.mrb[0].mxu0
        %v1888 = vadd.f32 %v1806, %v1887
        %v1889 = vpop.f32.mrb[0].mxu0
        %v1890 = vadd.f32 %v1808, %v1889
        %v1891 = vpop.f32.mrb[0].mxu0
        %v1892 = vpop.f32.mrb[0].mxu0
        %1893 = vdwg.mxu0
        %v1894 = vadd.f32 %v1847, %v812
        %v1895 = vadd.f32 %v1849, %v816
        %v1896 = vadd.f32 %v1888, %v820
        %v1897 = vadd.f32 %v1890, %v824
        %v1898 = vxor.u32 %v1894, 2147483648
        %v1899 = vxor.u32 %v1895, 2147483648
        %v1900 = vxor.u32 %v1896, 2147483648
        %v1901 = vmul.f32 %v1898, 1.442695
        %v1902 = vpow.pop %v1901
        %v1903 = vmul.f32 %v1899, 1.442695
        %v1904 = vpow.pop %v1903
        %v1905 = vmul.f32 %v1900, 1.442695
        %v1906 = vpow.pop %v1905
        %v1907 = vadd.f32 %v1902, 1.0
        %v1908 = vadd.f32 %v1904, 1.0
        %v1909 = vadd.f32 %v1906, 1.0
        %v1910 = vrcp.pop %v1907
        %v1911 = vmul.f32 1.0, %v1910
        %v1912 = vrcp.pop %v1908
        %v1913 = vmul.f32 1.0, %v1912
        %v1914 = vrcp.pop %v1909
        %v1915 = vmul.f32 1.0, %v1914
        %v1916 = vtanh.pop %v1897
        %v1917 = vmul.f32 %v1913, %v1615
        %v1918 = vmul.f32 %v1911, %v1916
        %v1919 = vadd.f32 %v1917, %v1918
        %v1920 = vtanh.pop %v1919
        %v1921 = vmul.f32 %v1915, %v1920
        %1922 = vmatprep.subr.bf16.mxu0 %v931
        %1923 = vmatpush1.bf16.msra.mxu0 %v930
        %1924 = vmatprep.subr.bf16.mxu0 %v935
        %1925 = vmatpush1.bf16.msra.mxu0 %v934
        %1926 = vmatprep.subr.bf16.mxu0 %v939
        %1927 = vmatpush1.bf16.msra.mxu0 %v938
        %1928 = vmatprep.subr.bf16.mxu0 %v943
        %1929 = vmatpush1.bf16.msra.mxu0 %v942
        %1930 = vmatprep.subr.bf16.mxu0 %v947
        %1931 = vmatpush1.bf16.msra.mxu0 %v946
        %1932 = vmatprep.subr.bf16.mxu0 %v951
        %1933 = vmatpush1.bf16.msra.mxu0 %v950
        %1934 = vmatprep.subr.bf16.mxu0 %v955
        %1935 = vmatpush1.bf16.msra.mxu0 %v954
        %1936 = vmatprep.subr.bf16.mxu0 %v959
        %1937 = vmatpush1.bf16.msra.mxu0 %v958
        %1938 = vmatprep.subr.bf16.mxu0 0
        %1939 = vmatpush1.bf16.msra.mxu0 0
        %1940 = vmatprep.subr.bf16.mxu0 0
        %1941 = vmatpush1.bf16.msra.mxu0 0
        %1942 = vmatprep.subr.bf16.mxu0 0
        %1943 = vmatpush1.bf16.msra.mxu0 0
        %1944 = vmatprep.subr.bf16.mxu0 0
        %1945 = vmatpush1.bf16.msra.mxu0 0
        %1946 = vmatprep.subr.bf16.mxu0 0
        %1947 = vmatpush1.bf16.msra.mxu0 0
        %1948 = vmatprep.subr.bf16.mxu0 0
        %1949 = vmatpush1.bf16.msra.mxu0 0
        %1950 = vmatprep.subr.bf16.mxu0 0
        %1951 = vmatpush1.bf16.msra.mxu0 0
        %1952 = vmatprep.subr.bf16.mxu0 0
        %1953 = vmatpush1.bf16.msra.mxu0 0
        %1954 = vmatprep.mubr.bf16.mxu0 0
        %1955 = vmatmul.mubr.bf16.gmra.mrb[0].mxu0 %v1728
        %v1956 = vpop.f32.mrb[0].mxu0
        %v1957 = vadd.f32 0.0, %v1956
        %v1958 = vpop.f32.mrb[0].mxu0
        %v1959 = vadd.f32 0.0, %v1958
        %v1960 = vpop.f32.mrb[0].mxu0
        %v1961 = vpop.f32.mrb[0].mxu0
        %1962 = vdwg.mxu0
        %1963 = vmatprep.subr.bf16.mxu0 %v933
        %1964 = vmatpush1.bf16.msra.mxu0 %v932
        %1965 = vmatprep.subr.bf16.mxu0 %v937
        %1966 = vmatpush1.bf16.msra.mxu0 %v936
        %1967 = vmatprep.subr.bf16.mxu0 %v941
        %1968 = vmatpush1.bf16.msra.mxu0 %v940
        %1969 = vmatprep.subr.bf16.mxu0 %v945
        %1970 = vmatpush1.bf16.msra.mxu0 %v944
        %1971 = vmatprep.subr.bf16.mxu0 %v949
        %1972 = vmatpush1.bf16.msra.mxu0 %v948
        %1973 = vmatprep.subr.bf16.mxu0 %v953
        %1974 = vmatpush1.bf16.msra.mxu0 %v952
        %1975 = vmatprep.subr.bf16.mxu0 %v957
        %1976 = vmatpush1.bf16.msra.mxu0 %v956
        %1977 = vmatprep.subr.bf16.mxu0 %v961
        %1978 = vmatpush1.bf16.msra.mxu0 %v960
        %1979 = vmatprep.subr.bf16.mxu0 0
        %1980 = vmatpush1.bf16.msra.mxu0 0
        %1981 = vmatprep.subr.bf16.mxu0 0
        %1982 = vmatpush1.bf16.msra.mxu0 0
        %1983 = vmatprep.subr.bf16.mxu0 0
        %1984 = vmatpush1.bf16.msra.mxu0 0
        %1985 = vmatprep.subr.bf16.mxu0 0
        %1986 = vmatpush1.bf16.msra.mxu0 0
        %1987 = vmatprep.subr.bf16.mxu0 0
        %1988 = vmatpush1.bf16.msra.mxu0 0
        %1989 = vmatprep.subr.bf16.mxu0 0
        %1990 = vmatpush1.bf16.msra.mxu0 0
        %1991 = vmatprep.subr.bf16.mxu0 0
        %1992 = vmatpush1.bf16.msra.mxu0 0
        %1993 = vmatprep.subr.bf16.mxu0 0
        %1994 = vmatpush1.bf16.msra.mxu0 0
        %1995 = vmatprep.mubr.bf16.mxu0 0
        %1996 = vmatmul.mubr.bf16.gmra.mrb[0].mxu0 %v1728
        %v1997 = vpop.f32.mrb[0].mxu0
        %v1998 = vadd.f32 0.0, %v1997
        %v1999 = vpop.f32.mrb[0].mxu0
        %v2000 = vadd.f32 0.0, %v1999
        %v2001 = vpop.f32.mrb[0].mxu0
        %v2002 = vpop.f32.mrb[0].mxu0
        %2003 = vdwg.mxu0
        %v2004 = vadd.f32 %v610, %v1957
        %v2005 = vadd.f32 %v612, %v1959
        %v2006 = vadd.f32 %v683, %v1998
        %v2007 = vadd.f32 %v685, %v2000
        %v2008 = vxor.u32 %v2004, 2147483648
        %v2009 = vxor.u32 %v2005, 2147483648
        %v2010 = vxor.u32 %v2006, 2147483648
        %v2011 = vmul.f32 %v2008, 1.442695
        %v2012 = vpow.pop %v2011
        %v2013 = vmul.f32 %v2009, 1.442695
        %v2014 = vpow.pop %v2013
        %v2015 = vmul.f32 %v2010, 1.442695
        %v2016 = vpow.pop %v2015
        %v2017 = vadd.f32 %v2012, 1.0
        %v2018 = vadd.f32 %v2014, 1.0
        %v2019 = vadd.f32 %v2016, 1.0
        %v2020 = vrcp.pop %v2017
        %v2021 = vmul.f32 1.0, %v2020
        %v2022 = vrcp.pop %v2018
        %v2023 = vmul.f32 1.0, %v2022
        %v2024 = vrcp.pop %v2019
        %v2025 = vmul.f32 1.0, %v2024
        %v2026 = vtanh.pop %v2007
        %v2027 = vmul.f32 %v2023, %v1725
        %v2028 = vmul.f32 %v2021, %v2026
        %v2029 = vadd.f32 %v2027, %v2028
        %v2030 = vtanh.pop %v2029
        %v2031 = vmul.f32 %v2025, %v2030
        %v2032 = vpack.c.bf16 %v2031, %v2031
        %v2033 = vpack.c.bf16 %v1921, %v1921
        %2034 = vmatprep.subr.bf16.mxu0 %v1203
        %2035 = vmatpush1.bf16.msra.mxu0 %v1202
        %2036 = vmatprep.subr.bf16.mxu0 %v1207
        %2037 = vmatpush1.bf16.msra.mxu0 %v1206
        %2038 = vmatprep.subr.bf16.mxu0 %v1211
        %2039 = vmatpush1.bf16.msra.mxu0 %v1210
        %2040 = vmatprep.subr.bf16.mxu0 %v1215
        %2041 = vmatpush1.bf16.msra.mxu0 %v1214
        %2042 = vmatprep.subr.bf16.mxu0 %v1219
        %2043 = vmatpush1.bf16.msra.mxu0 %v1218
        %2044 = vmatprep.subr.bf16.mxu0 %v1223
        %2045 = vmatpush1.bf16.msra.mxu0 %v1222
        %2046 = vmatprep.subr.bf16.mxu0 %v1227
        %2047 = vmatpush1.bf16.msra.mxu0 %v1226
        %2048 = vmatprep.subr.bf16.mxu0 %v1231
        %2049 = vmatpush1.bf16.msra.mxu0 %v1230
        %2050 = vmatprep.subr.bf16.mxu0 0
        %2051 = vmatpush1.bf16.msra.mxu0 0
        %2052 = vmatprep.subr.bf16.mxu0 0
        %2053 = vmatpush1.bf16.msra.mxu0 0
        %2054 = vmatprep.subr.bf16.mxu0 0
        %2055 = vmatpush1.bf16.msra.mxu0 0
        %2056 = vmatprep.subr.bf16.mxu0 0
        %2057 = vmatpush1.bf16.msra.mxu0 0
        %2058 = vmatprep.subr.bf16.mxu0 0
        %2059 = vmatpush1.bf16.msra.mxu0 0
        %2060 = vmatprep.subr.bf16.mxu0 0
        %2061 = vmatpush1.bf16.msra.mxu0 0
        %2062 = vmatprep.subr.bf16.mxu0 0
        %2063 = vmatpush1.bf16.msra.mxu0 0
        %2064 = vmatprep.subr.bf16.mxu0 0
        %2065 = vmatpush1.bf16.msra.mxu0 0
        %2066 = vmatprep.mubr.bf16.mxu0 0
        %2067 = vmatmul.mubr.bf16.gmra.mrb[0].mxu0 %v2033
        %v2068 = vpop.f32.mrb[0].mxu0
        %v2069 = vadd.f32 0.0, %v2068
        %v2070 = vpop.f32.mrb[0].mxu0
        %v2071 = vadd.f32 0.0, %v2070
        %v2072 = vpop.f32.mrb[0].mxu0
        %v2073 = vpop.f32.mrb[0].mxu0
        %2074 = vdwg.mxu0
        %2075 = vmatprep.subr.bf16.mxu0 %v1205
        %2076 = vmatpush1.bf16.msra.mxu0 %v1204
        %2077 = vmatprep.subr.bf16.mxu0 %v1209
        %2078 = vmatpush1.bf16.msra.mxu0 %v1208
        %2079 = vmatprep.subr.bf16.mxu0 %v1213
        %2080 = vmatpush1.bf16.msra.mxu0 %v1212
        %2081 = vmatprep.subr.bf16.mxu0 %v1217
        %2082 = vmatpush1.bf16.msra.mxu0 %v1216
        %2083 = vmatprep.subr.bf16.mxu0 %v1221
        %2084 = vmatpush1.bf16.msra.mxu0 %v1220
        %2085 = vmatprep.subr.bf16.mxu0 %v1225
        %2086 = vmatpush1.bf16.msra.mxu0 %v1224
        %2087 = vmatprep.subr.bf16.mxu0 %v1229
        %2088 = vmatpush1.bf16.msra.mxu0 %v1228
        %2089 = vmatprep.subr.bf16.mxu0 %v1233
        %2090 = vmatpush1.bf16.msra.mxu0 %v1232
        %2091 = vmatprep.subr.bf16.mxu0 0
        %2092 = vmatpush1.bf16.msra.mxu0 0
        %2093 = vmatprep.subr.bf16.mxu0 0
        %2094 = vmatpush1.bf16.msra.mxu0 0
        %2095 = vmatprep.subr.bf16.mxu0 0
        %2096 = vmatpush1.bf16.msra.mxu0 0
        %2097 = vmatprep.subr.bf16.mxu0 0
        %2098 = vmatpush1.bf16.msra.mxu0 0
        %2099 = vmatprep.subr.bf16.mxu0 0
        %2100 = vmatpush1.bf16.msra.mxu0 0
        %2101 = vmatprep.subr.bf16.mxu0 0
        %2102 = vmatpush1.bf16.msra.mxu0 0
        %2103 = vmatprep.subr.bf16.mxu0 0
        %2104 = vmatpush1.bf16.msra.mxu0 0
        %2105 = vmatprep.subr.bf16.mxu0 0
        %2106 = vmatpush1.bf16.msra.mxu0 0
        %2107 = vmatprep.mubr.bf16.mxu0 0
        %2108 = vmatmul.mubr.bf16.gmra.mrb[0].mxu0 %v2033
        %v2109 = vpop.f32.mrb[0].mxu0
        %v2110 = vadd.f32 0.0, %v2109
        %v2111 = vpop.f32.mrb[0].mxu0
        %v2112 = vadd.f32 0.0, %v2111
        %v2113 = vpop.f32.mrb[0].mxu0
        %v2114 = vpop.f32.mrb[0].mxu0
        %2115 = vdwg.mxu0
        %2116 = vmatprep.subr.bf16.mxu0 %v1445
        %2117 = vmatpush1.bf16.msra.mxu0 %v1444
        %2118 = vmatprep.subr.bf16.mxu0 %v1449
        %2119 = vmatpush1.bf16.msra.mxu0 %v1448
        %2120 = vmatprep.subr.bf16.mxu0 %v1453
        %2121 = vmatpush1.bf16.msra.mxu0 %v1452
        %2122 = vmatprep.subr.bf16.mxu0 %v1457
        %2123 = vmatpush1.bf16.msra.mxu0 %v1456
        %2124 = vmatprep.subr.bf16.mxu0 %v1461
        %2125 = vmatpush1.bf16.msra.mxu0 %v1460
        %2126 = vmatprep.subr.bf16.mxu0 %v1465
        %2127 = vmatpush1.bf16.msra.mxu0 %v1464
        %2128 = vmatprep.subr.bf16.mxu0 %v1469
        %2129 = vmatpush1.bf16.msra.mxu0 %v1468
        %2130 = vmatprep.subr.bf16.mxu0 %v1473
        %2131 = vmatpush1.bf16.msra.mxu0 %v1472
        %2132 = vmatprep.subr.bf16.mxu0 0
        %2133 = vmatpush1.bf16.msra.mxu0 0
        %2134 = vmatprep.subr.bf16.mxu0 0
        %2135 = vmatpush1.bf16.msra.mxu0 0
        %2136 = vmatprep.subr.bf16.mxu0 0
        %2137 = vmatpush1.bf16.msra.mxu0 0
        %2138 = vmatprep.subr.bf16.mxu0 0
        %2139 = vmatpush1.bf16.msra.mxu0 0
        %2140 = vmatprep.subr.bf16.mxu0 0
        %2141 = vmatpush1.bf16.msra.mxu0 0
        %2142 = vmatprep.subr.bf16.mxu0 0
        %2143 = vmatpush1.bf16.msra.mxu0 0
        %2144 = vmatprep.subr.bf16.mxu0 0
        %2145 = vmatpush1.bf16.msra.mxu0 0
        %2146 = vmatprep.subr.bf16.mxu0 0
        %2147 = vmatpush1.bf16.msra.mxu0 0
        %2148 = vmatprep.mubr.bf16.mxu0 0
        %2149 = vmatmul.mubr.bf16.gmra.mrb[0].mxu0 %v2032
        %v2150 = vpop.f32.mrb[0].mxu0
        %v2151 = vadd.f32 %v2069, %v2150
        %v2152 = vpop.f32.mrb[0].mxu0
        %v2153 = vadd.f32 %v2071, %v2152
        %v2154 = vpop.f32.mrb[0].mxu0
        %v2155 = vpop.f32.mrb[0].mxu0
        %2156 = vdwg.mxu0
        %2157 = vmatprep.subr.bf16.mxu0 %v1447
        %2158 = vmatpush1.bf16.msra.mxu0 %v1446
        %2159 = vmatprep.subr.bf16.mxu0 %v1451
        %2160 = vmatpush1.bf16.msra.mxu0 %v1450
        %2161 = vmatprep.subr.bf16.mxu0 %v1455
        %2162 = vmatpush1.bf16.msra.mxu0 %v1454
        %2163 = vmatprep.subr.bf16.mxu0 %v1459
        %2164 = vmatpush1.bf16.msra.mxu0 %v1458
        %2165 = vmatprep.subr.bf16.mxu0 %v1463
        %2166 = vmatpush1.bf16.msra.mxu0 %v1462
        %2167 = vmatprep.subr.bf16.mxu0 %v1467
        %2168 = vmatpush1.bf16.msra.mxu0 %v1466
        %2169 = vmatprep.subr.bf16.mxu0 %v1471
        %2170 = vmatpush1.bf16.msra.mxu0 %v1470
        %2171 = vmatprep.subr.bf16.mxu0 %v1475
        %2172 = vmatpush1.bf16.msra.mxu0 %v1474
        %2173 = vmatprep.subr.bf16.mxu0 0
        %2174 = vmatpush1.bf16.msra.mxu0 0
        %2175 = vmatprep.subr.bf16.mxu0 0
        %2176 = vmatpush1.bf16.msra.mxu0 0
        %2177 = vmatprep.subr.bf16.mxu0 0
        %2178 = vmatpush1.bf16.msra.mxu0 0
        %2179 = vmatprep.subr.bf16.mxu0 0
        %2180 = vmatpush1.bf16.msra.mxu0 0
        %2181 = vmatprep.subr.bf16.mxu0 0
        %2182 = vmatpush1.bf16.msra.mxu0 0
        %2183 = vmatprep.subr.bf16.mxu0 0
        %2184 = vmatpush1.bf16.msra.mxu0 0
        %2185 = vmatprep.subr.bf16.mxu0 0
        %2186 = vmatpush1.bf16.msra.mxu0 0
        %2187 = vmatprep.subr.bf16.mxu0 0
        %2188 = vmatpush1.bf16.msra.mxu0 0
        %2189 = vmatprep.mubr.bf16.mxu0 0
        %2190 = vmatmul.mubr.bf16.gmra.mrb[0].mxu0 %v2032
        %v2191 = vpop.f32.mrb[0].mxu0
        %v2192 = vadd.f32 %v2110, %v2191
        %v2193 = vpop.f32.mrb[0].mxu0
        %v2194 = vadd.f32 %v2112, %v2193
        %v2195 = vpop.f32.mrb[0].mxu0
        %v2196 = vpop.f32.mrb[0].mxu0
        %2197 = vdwg.mxu0
        %v2198 = vadd.f32 %v2151, %v812
        %v2199 = vadd.f32 %v2153, %v816
        %v2200 = vadd.f32 %v2192, %v820
        %v2201 = vadd.f32 %v2194, %v824
        %v2202 = vxor.u32 %v2198, 2147483648
        %v2203 = vxor.u32 %v2199, 2147483648
        %v2204 = vxor.u32 %v2200, 2147483648
        %v2205 = vmul.f32 %v2202, 1.442695
        %v2206 = vpow.pop %v2205
        %v2207 = vmul.f32 %v2203, 1.442695
        %v2208 = vpow.pop %v2207
        %v2209 = vmul.f32 %v2204, 1.442695
        %v2210 = vpow.pop %v2209
        %v2211 = vadd.f32 %v2206, 1.0
        %v2212 = vadd.f32 %v2208, 1.0
        %v2213 = vadd.f32 %v2210, 1.0
        %v2214 = vrcp.pop %v2211
        %v2215 = vmul.f32 1.0, %v2214
        %v2216 = vrcp.pop %v2212
        %v2217 = vmul.f32 1.0, %v2216
        %v2218 = vrcp.pop %v2213
        %v2219 = vmul.f32 1.0, %v2218
        %v2220 = vtanh.pop %v2201
        %v2221 = vmul.f32 %v2217, %v1919
        %v2222 = vmul.f32 %v2215, %v2220
        %v2223 = vadd.f32 %v2221, %v2222
        %v2224 = vtanh.pop %v2223
        %v2225 = vmul.f32 %v2219, %v2224
        %2226 = vmatprep.subr.bf16.mxu0 %v931
        %2227 = vmatpush1.bf16.msra.mxu0 %v930
        %2228 = vmatprep.subr.bf16.mxu0 %v935
        %2229 = vmatpush1.bf16.msra.mxu0 %v934
        %2230 = vmatprep.subr.bf16.mxu0 %v939
        %2231 = vmatpush1.bf16.msra.mxu0 %v938
        %2232 = vmatprep.subr.bf16.mxu0 %v943
        %2233 = vmatpush1.bf16.msra.mxu0 %v942
        %2234 = vmatprep.subr.bf16.mxu0 %v947
        %2235 = vmatpush1.bf16.msra.mxu0 %v946
        %2236 = vmatprep.subr.bf16.mxu0 %v951
        %2237 = vmatpush1.bf16.msra.mxu0 %v950
        %2238 = vmatprep.subr.bf16.mxu0 %v955
        %2239 = vmatpush1.bf16.msra.mxu0 %v954
        %2240 = vmatprep.subr.bf16.mxu0 %v959
        %2241 = vmatpush1.bf16.msra.mxu0 %v958
        %2242 = vmatprep.subr.bf16.mxu0 0
        %2243 = vmatpush1.bf16.msra.mxu0 0
        %2244 = vmatprep.subr.bf16.mxu0 0
        %2245 = vmatpush1.bf16.msra.mxu0 0
        %2246 = vmatprep.subr.bf16.mxu0 0
        %2247 = vmatpush1.bf16.msra.mxu0 0
        %2248 = vmatprep.subr.bf16.mxu0 0
        %2249 = vmatpush1.bf16.msra.mxu0 0
        %2250 = vmatprep.subr.bf16.mxu0 0
        %2251 = vmatpush1.bf16.msra.mxu0 0
        %2252 = vmatprep.subr.bf16.mxu0 0
        %2253 = vmatpush1.bf16.msra.mxu0 0
        %2254 = vmatprep.subr.bf16.mxu0 0
        %2255 = vmatpush1.bf16.msra.mxu0 0
        %2256 = vmatprep.subr.bf16.mxu0 0
        %2257 = vmatpush1.bf16.msra.mxu0 0
        %2258 = vmatprep.mubr.bf16.mxu0 0
        %2259 = vmatmul.mubr.bf16.gmra.mrb[0].mxu0 %v2032
        %v2260 = vpop.f32.mrb[0].mxu0
        %v2261 = vadd.f32 0.0, %v2260
        %v2262 = vpop.f32.mrb[0].mxu0
        %v2263 = vadd.f32 0.0, %v2262
        %v2264 = vpop.f32.mrb[0].mxu0
        %v2265 = vpop.f32.mrb[0].mxu0
        %2266 = vdwg.mxu0
        %2267 = vmatprep.subr.bf16.mxu0 %v933
        %2268 = vmatpush1.bf16.msra.mxu0 %v932
        %2269 = vmatprep.subr.bf16.mxu0 %v937
        %2270 = vmatpush1.bf16.msra.mxu0 %v936
        %2271 = vmatprep.subr.bf16.mxu0 %v941
        %2272 = vmatpush1.bf16.msra.mxu0 %v940
        %2273 = vmatprep.subr.bf16.mxu0 %v945
        %2274 = vmatpush1.bf16.msra.mxu0 %v944
        %2275 = vmatprep.subr.bf16.mxu0 %v949
        %2276 = vmatpush1.bf16.msra.mxu0 %v948
        %2277 = vmatprep.subr.bf16.mxu0 %v953
        %2278 = vmatpush1.bf16.msra.mxu0 %v952
        %2279 = vmatprep.subr.bf16.mxu0 %v957
        %2280 = vmatpush1.bf16.msra.mxu0 %v956
        %2281 = vmatprep.subr.bf16.mxu0 %v961
        %2282 = vmatpush1.bf16.msra.mxu0 %v960
        %2283 = vmatprep.subr.bf16.mxu0 0
        %2284 = vmatpush1.bf16.msra.mxu0 0
        %2285 = vmatprep.subr.bf16.mxu0 0
        %2286 = vmatpush1.bf16.msra.mxu0 0
        %2287 = vmatprep.subr.bf16.mxu0 0
        %2288 = vmatpush1.bf16.msra.mxu0 0
        %2289 = vmatprep.subr.bf16.mxu0 0
        %2290 = vmatpush1.bf16.msra.mxu0 0
        %2291 = vmatprep.subr.bf16.mxu0 0
        %2292 = vmatpush1.bf16.msra.mxu0 0
        %2293 = vmatprep.subr.bf16.mxu0 0
        %2294 = vmatpush1.bf16.msra.mxu0 0
        %2295 = vmatprep.subr.bf16.mxu0 0
        %2296 = vmatpush1.bf16.msra.mxu0 0
        %2297 = vmatprep.subr.bf16.mxu0 0
        %2298 = vmatpush1.bf16.msra.mxu0 0
        %2299 = vmatprep.mubr.bf16.mxu0 0
        %2300 = vmatmul.mubr.bf16.gmra.mrb[0].mxu0 %v2032
        %v2301 = vpop.f32.mrb[0].mxu0
        %v2302 = vadd.f32 0.0, %v2301
        %v2303 = vpop.f32.mrb[0].mxu0
        %v2304 = vadd.f32 0.0, %v2303
        %v2305 = vpop.f32.mrb[0].mxu0
        %v2306 = vpop.f32.mrb[0].mxu0
        %2307 = vdwg.mxu0
        %v2308 = vadd.f32 %v614, %v2261
        %v2309 = vadd.f32 %v616, %v2263
        %v2310 = vadd.f32 %v687, %v2302
        %v2311 = vadd.f32 %v689, %v2304
        %v2312 = vxor.u32 %v2308, 2147483648
        %v2313 = vxor.u32 %v2309, 2147483648
        %v2314 = vxor.u32 %v2310, 2147483648
        %v2315 = vmul.f32 %v2312, 1.442695
        %v2316 = vpow.pop %v2315
        %v2317 = vmul.f32 %v2313, 1.442695
        %v2318 = vpow.pop %v2317
        %v2319 = vmul.f32 %v2314, 1.442695
        %v2320 = vpow.pop %v2319
        %v2321 = vadd.f32 %v2316, 1.0
        %v2322 = vadd.f32 %v2318, 1.0
        %v2323 = vadd.f32 %v2320, 1.0
        %v2324 = vrcp.pop %v2321
        %v2325 = vmul.f32 1.0, %v2324
        %v2326 = vrcp.pop %v2322
        %v2327 = vmul.f32 1.0, %v2326
        %v2328 = vrcp.pop %v2323
        %v2329 = vmul.f32 1.0, %v2328
        %v2330 = vtanh.pop %v2311
        %v2331 = vmul.f32 %v2327, %v2029
        %v2332 = vmul.f32 %v2325, %v2330
        %v2333 = vadd.f32 %v2331, %v2332
        %v2334 = vtanh.pop %v2333
        %v2335 = vmul.f32 %v2329, %v2334
        %v2336 = vpack.c.bf16 %v2335, %v2335
        %v2337 = vpack.c.bf16 %v2225, %v2225
        %2338 = vmatprep.subr.bf16.mxu0 %v1203
        %2339 = vmatpush1.bf16.msra.mxu0 %v1202
        %2340 = vmatprep.subr.bf16.mxu0 %v1207
        %2341 = vmatpush1.bf16.msra.mxu0 %v1206
        %2342 = vmatprep.subr.bf16.mxu0 %v1211
        %2343 = vmatpush1.bf16.msra.mxu0 %v1210
        %2344 = vmatprep.subr.bf16.mxu0 %v1215
        %2345 = vmatpush1.bf16.msra.mxu0 %v1214
        %2346 = vmatprep.subr.bf16.mxu0 %v1219
        %2347 = vmatpush1.bf16.msra.mxu0 %v1218
        %2348 = vmatprep.subr.bf16.mxu0 %v1223
        %2349 = vmatpush1.bf16.msra.mxu0 %v1222
        %2350 = vmatprep.subr.bf16.mxu0 %v1227
        %2351 = vmatpush1.bf16.msra.mxu0 %v1226
        %2352 = vmatprep.subr.bf16.mxu0 %v1231
        %2353 = vmatpush1.bf16.msra.mxu0 %v1230
        %2354 = vmatprep.subr.bf16.mxu0 0
        %2355 = vmatpush1.bf16.msra.mxu0 0
        %2356 = vmatprep.subr.bf16.mxu0 0
        %2357 = vmatpush1.bf16.msra.mxu0 0
        %2358 = vmatprep.subr.bf16.mxu0 0
        %2359 = vmatpush1.bf16.msra.mxu0 0
        %2360 = vmatprep.subr.bf16.mxu0 0
        %2361 = vmatpush1.bf16.msra.mxu0 0
        %2362 = vmatprep.subr.bf16.mxu0 0
        %2363 = vmatpush1.bf16.msra.mxu0 0
        %2364 = vmatprep.subr.bf16.mxu0 0
        %2365 = vmatpush1.bf16.msra.mxu0 0
        %2366 = vmatprep.subr.bf16.mxu0 0
        %2367 = vmatpush1.bf16.msra.mxu0 0
        %2368 = vmatprep.subr.bf16.mxu0 0
        %2369 = vmatpush1.bf16.msra.mxu0 0
        %2370 = vmatprep.mubr.bf16.mxu0 0
        %2371 = vmatmul.mubr.bf16.gmra.mrb[0].mxu0 %v2337
        %v2372 = vpop.f32.mrb[0].mxu0
        %v2373 = vadd.f32 0.0, %v2372
        %v2374 = vpop.f32.mrb[0].mxu0
        %v2375 = vadd.f32 0.0, %v2374
        %v2376 = vpop.f32.mrb[0].mxu0
        %v2377 = vpop.f32.mrb[0].mxu0
        %2378 = vdwg.mxu0
        %2379 = vmatprep.subr.bf16.mxu0 %v1205
        %2380 = vmatpush1.bf16.msra.mxu0 %v1204
        %2381 = vmatprep.subr.bf16.mxu0 %v1209
        %2382 = vmatpush1.bf16.msra.mxu0 %v1208
        %2383 = vmatprep.subr.bf16.mxu0 %v1213
        %2384 = vmatpush1.bf16.msra.mxu0 %v1212
        %2385 = vmatprep.subr.bf16.mxu0 %v1217
        %2386 = vmatpush1.bf16.msra.mxu0 %v1216
        %2387 = vmatprep.subr.bf16.mxu0 %v1221
        %2388 = vmatpush1.bf16.msra.mxu0 %v1220
        %2389 = vmatprep.subr.bf16.mxu0 %v1225
        %2390 = vmatpush1.bf16.msra.mxu0 %v1224
        %2391 = vmatprep.subr.bf16.mxu0 %v1229
        %2392 = vmatpush1.bf16.msra.mxu0 %v1228
        %2393 = vmatprep.subr.bf16.mxu0 %v1233
        %2394 = vmatpush1.bf16.msra.mxu0 %v1232
        %2395 = vmatprep.subr.bf16.mxu0 0
        %2396 = vmatpush1.bf16.msra.mxu0 0
        %2397 = vmatprep.subr.bf16.mxu0 0
        %2398 = vmatpush1.bf16.msra.mxu0 0
        %2399 = vmatprep.subr.bf16.mxu0 0
        %2400 = vmatpush1.bf16.msra.mxu0 0
        %2401 = vmatprep.subr.bf16.mxu0 0
        %2402 = vmatpush1.bf16.msra.mxu0 0
        %2403 = vmatprep.subr.bf16.mxu0 0
        %2404 = vmatpush1.bf16.msra.mxu0 0
        %2405 = vmatprep.subr.bf16.mxu0 0
        %2406 = vmatpush1.bf16.msra.mxu0 0
        %2407 = vmatprep.subr.bf16.mxu0 0
        %2408 = vmatpush1.bf16.msra.mxu0 0
        %2409 = vmatprep.subr.bf16.mxu0 0
        %2410 = vmatpush1.bf16.msra.mxu0 0
        %2411 = vmatprep.mubr.bf16.mxu0 0
        %2412 = vmatmul.mubr.bf16.gmra.mrb[0].mxu0 %v2337
        %v2413 = vpop.f32.mrb[0].mxu0
        %v2414 = vadd.f32 0.0, %v2413
        %v2415 = vpop.f32.mrb[0].mxu0
        %v2416 = vadd.f32 0.0, %v2415
        %v2417 = vpop.f32.mrb[0].mxu0
        %v2418 = vpop.f32.mrb[0].mxu0
        %2419 = vdwg.mxu0
        %2420 = vmatprep.subr.bf16.mxu0 %v1445
        %2421 = vmatpush1.bf16.msra.mxu0 %v1444
        %2422 = vmatprep.subr.bf16.mxu0 %v1449
        %2423 = vmatpush1.bf16.msra.mxu0 %v1448
        %2424 = vmatprep.subr.bf16.mxu0 %v1453
        %2425 = vmatpush1.bf16.msra.mxu0 %v1452
        %2426 = vmatprep.subr.bf16.mxu0 %v1457
        %2427 = vmatpush1.bf16.msra.mxu0 %v1456
        %2428 = vmatprep.subr.bf16.mxu0 %v1461
        %2429 = vmatpush1.bf16.msra.mxu0 %v1460
        %2430 = vmatprep.subr.bf16.mxu0 %v1465
        %2431 = vmatpush1.bf16.msra.mxu0 %v1464
        %2432 = vmatprep.subr.bf16.mxu0 %v1469
        %2433 = vmatpush1.bf16.msra.mxu0 %v1468
        %2434 = vmatprep.subr.bf16.mxu0 %v1473
        %2435 = vmatpush1.bf16.msra.mxu0 %v1472
        %2436 = vmatprep.subr.bf16.mxu0 0
        %2437 = vmatpush1.bf16.msra.mxu0 0
        %2438 = vmatprep.subr.bf16.mxu0 0
        %2439 = vmatpush1.bf16.msra.mxu0 0
        %2440 = vmatprep.subr.bf16.mxu0 0
        %2441 = vmatpush1.bf16.msra.mxu0 0
        %2442 = vmatprep.subr.bf16.mxu0 0
        %2443 = vmatpush1.bf16.msra.mxu0 0
        %2444 = vmatprep.subr.bf16.mxu0 0
        %2445 = vmatpush1.bf16.msra.mxu0 0
        %2446 = vmatprep.subr.bf16.mxu0 0
        %2447 = vmatpush1.bf16.msra.mxu0 0
        %2448 = vmatprep.subr.bf16.mxu0 0
        %2449 = vmatpush1.bf16.msra.mxu0 0
        %2450 = vmatprep.subr.bf16.mxu0 0
        %2451 = vmatpush1.bf16.msra.mxu0 0
        %2452 = vmatprep.mubr.bf16.mxu0 0
        %2453 = vmatmul.mubr.bf16.gmra.mrb[0].mxu0 %v2336
        %v2454 = vpop.f32.mrb[0].mxu0
        %v2455 = vadd.f32 %v2373, %v2454
        %v2456 = vpop.f32.mrb[0].mxu0
        %v2457 = vadd.f32 %v2375, %v2456
        %v2458 = vpop.f32.mrb[0].mxu0
        %v2459 = vpop.f32.mrb[0].mxu0
        %2460 = vdwg.mxu0
        %2461 = vmatprep.subr.bf16.mxu0 %v1447
        %2462 = vmatpush1.bf16.msra.mxu0 %v1446
        %2463 = vmatprep.subr.bf16.mxu0 %v1451
        %2464 = vmatpush1.bf16.msra.mxu0 %v1450
        %2465 = vmatprep.subr.bf16.mxu0 %v1455
        %2466 = vmatpush1.bf16.msra.mxu0 %v1454
        %2467 = vmatprep.subr.bf16.mxu0 %v1459
        %2468 = vmatpush1.bf16.msra.mxu0 %v1458
        %2469 = vmatprep.subr.bf16.mxu0 %v1463
        %2470 = vmatpush1.bf16.msra.mxu0 %v1462
        %2471 = vmatprep.subr.bf16.mxu0 %v1467
        %2472 = vmatpush1.bf16.msra.mxu0 %v1466
        %2473 = vmatprep.subr.bf16.mxu0 %v1471
        %2474 = vmatpush1.bf16.msra.mxu0 %v1470
        %2475 = vmatprep.subr.bf16.mxu0 %v1475
        %2476 = vmatpush1.bf16.msra.mxu0 %v1474
        %2477 = vmatprep.subr.bf16.mxu0 0
        %2478 = vmatpush1.bf16.msra.mxu0 0
        %2479 = vmatprep.subr.bf16.mxu0 0
        %2480 = vmatpush1.bf16.msra.mxu0 0
        %2481 = vmatprep.subr.bf16.mxu0 0
        %2482 = vmatpush1.bf16.msra.mxu0 0
        %2483 = vmatprep.subr.bf16.mxu0 0
        %2484 = vmatpush1.bf16.msra.mxu0 0
        %2485 = vmatprep.subr.bf16.mxu0 0
        %2486 = vmatpush1.bf16.msra.mxu0 0
        %2487 = vmatprep.subr.bf16.mxu0 0
        %2488 = vmatpush1.bf16.msra.mxu0 0
        %2489 = vmatprep.subr.bf16.mxu0 0
        %2490 = vmatpush1.bf16.msra.mxu0 0
        %2491 = vmatprep.subr.bf16.mxu0 0
        %2492 = vmatpush1.bf16.msra.mxu0 0
        %2493 = vmatprep.mubr.bf16.mxu0 0
        %2494 = vmatmul.mubr.bf16.gmra.mrb[0].mxu0 %v2336
        %v2495 = vpop.f32.mrb[0].mxu0
        %v2496 = vadd.f32 %v2414, %v2495
        %v2497 = vpop.f32.mrb[0].mxu0
        %v2498 = vadd.f32 %v2416, %v2497
        %v2499 = vpop.f32.mrb[0].mxu0
        %v2500 = vpop.f32.mrb[0].mxu0
        %2501 = vdwg.mxu0
        %v2502 = vadd.f32 %v2455, %v812
        %v2503 = vadd.f32 %v2457, %v816
        %v2504 = vadd.f32 %v2496, %v820
        %v2505 = vadd.f32 %v2498, %v824
        %v2506 = vxor.u32 %v2502, 2147483648
        %v2507 = vxor.u32 %v2503, 2147483648
        %v2508 = vxor.u32 %v2504, 2147483648
        %v2509 = vmul.f32 %v2506, 1.442695
        %v2510 = vpow.pop %v2509
        %v2511 = vmul.f32 %v2507, 1.442695
        %v2512 = vpow.pop %v2511
        %v2513 = vmul.f32 %v2508, 1.442695
        %v2514 = vpow.pop %v2513
        %v2515 = vadd.f32 %v2510, 1.0
        %v2516 = vadd.f32 %v2512, 1.0
        %v2517 = vadd.f32 %v2514, 1.0
        %v2518 = vrcp.pop %v2515
        %v2519 = vmul.f32 1.0, %v2518
        %v2520 = vrcp.pop %v2516
        %v2521 = vmul.f32 1.0, %v2520
        %v2522 = vrcp.pop %v2517
        %v2523 = vmul.f32 1.0, %v2522
        %v2524 = vtanh.pop %v2505
        %v2525 = vmul.f32 %v2521, %v2223
        %v2526 = vmul.f32 %v2519, %v2524
        %v2527 = vadd.f32 %v2525, %v2526
        %v2528 = vtanh.pop %v2527
        %v2529 = vmul.f32 %v2523, %v2528
        %2530 = vmatprep.subr.bf16.mxu0 %v931
        %2531 = vmatpush1.bf16.msra.mxu0 %v930
        %2532 = vmatprep.subr.bf16.mxu0 %v935
        %2533 = vmatpush1.bf16.msra.mxu0 %v934
        %2534 = vmatprep.subr.bf16.mxu0 %v939
        %2535 = vmatpush1.bf16.msra.mxu0 %v938
        %2536 = vmatprep.subr.bf16.mxu0 %v943
        %2537 = vmatpush1.bf16.msra.mxu0 %v942
        %2538 = vmatprep.subr.bf16.mxu0 %v947
        %2539 = vmatpush1.bf16.msra.mxu0 %v946
        %2540 = vmatprep.subr.bf16.mxu0 %v951
        %2541 = vmatpush1.bf16.msra.mxu0 %v950
        %2542 = vmatprep.subr.bf16.mxu0 %v955
        %2543 = vmatpush1.bf16.msra.mxu0 %v954
        %2544 = vmatprep.subr.bf16.mxu0 %v959
        %2545 = vmatpush1.bf16.msra.mxu0 %v958
        %2546 = vmatprep.subr.bf16.mxu0 0
        %2547 = vmatpush1.bf16.msra.mxu0 0
        %2548 = vmatprep.subr.bf16.mxu0 0
        %2549 = vmatpush1.bf16.msra.mxu0 0
        %2550 = vmatprep.subr.bf16.mxu0 0
        %2551 = vmatpush1.bf16.msra.mxu0 0
        %2552 = vmatprep.subr.bf16.mxu0 0
        %2553 = vmatpush1.bf16.msra.mxu0 0
        %2554 = vmatprep.subr.bf16.mxu0 0
        %2555 = vmatpush1.bf16.msra.mxu0 0
        %2556 = vmatprep.subr.bf16.mxu0 0
        %2557 = vmatpush1.bf16.msra.mxu0 0
        %2558 = vmatprep.subr.bf16.mxu0 0
        %2559 = vmatpush1.bf16.msra.mxu0 0
        %2560 = vmatprep.subr.bf16.mxu0 0
        %2561 = vmatpush1.bf16.msra.mxu0 0
        %2562 = vmatprep.mubr.bf16.mxu0 0
        %2563 = vmatmul.mubr.bf16.gmra.mrb[0].mxu0 %v2336
        %v2564 = vpop.f32.mrb[0].mxu0
        %v2565 = vadd.f32 0.0, %v2564
        %v2566 = vpop.f32.mrb[0].mxu0
        %v2567 = vadd.f32 0.0, %v2566
        %v2568 = vpop.f32.mrb[0].mxu0
        %v2569 = vpop.f32.mrb[0].mxu0
        %2570 = vdwg.mxu0
        %2571 = vmatprep.subr.bf16.mxu0 %v933
        %2572 = vmatpush1.bf16.msra.mxu0 %v932
        %2573 = vmatprep.subr.bf16.mxu0 %v937
        %2574 = vmatpush1.bf16.msra.mxu0 %v936
        %2575 = vmatprep.subr.bf16.mxu0 %v941
        %2576 = vmatpush1.bf16.msra.mxu0 %v940
        %2577 = vmatprep.subr.bf16.mxu0 %v945
        %2578 = vmatpush1.bf16.msra.mxu0 %v944
        %2579 = vmatprep.subr.bf16.mxu0 %v949
        %2580 = vmatpush1.bf16.msra.mxu0 %v948
        %2581 = vmatprep.subr.bf16.mxu0 %v953
        %2582 = vmatpush1.bf16.msra.mxu0 %v952
        %2583 = vmatprep.subr.bf16.mxu0 %v957
        %2584 = vmatpush1.bf16.msra.mxu0 %v956
        %2585 = vmatprep.subr.bf16.mxu0 %v961
        %2586 = vmatpush1.bf16.msra.mxu0 %v960
        %2587 = vmatprep.subr.bf16.mxu0 0
        %2588 = vmatpush1.bf16.msra.mxu0 0
        %2589 = vmatprep.subr.bf16.mxu0 0
        %2590 = vmatpush1.bf16.msra.mxu0 0
        %2591 = vmatprep.subr.bf16.mxu0 0
        %2592 = vmatpush1.bf16.msra.mxu0 0
        %2593 = vmatprep.subr.bf16.mxu0 0
        %2594 = vmatpush1.bf16.msra.mxu0 0
        %2595 = vmatprep.subr.bf16.mxu0 0
        %2596 = vmatpush1.bf16.msra.mxu0 0
        %2597 = vmatprep.subr.bf16.mxu0 0
        %2598 = vmatpush1.bf16.msra.mxu0 0
        %2599 = vmatprep.subr.bf16.mxu0 0
        %2600 = vmatpush1.bf16.msra.mxu0 0
        %2601 = vmatprep.subr.bf16.mxu0 0
        %2602 = vmatpush1.bf16.msra.mxu0 0
        %2603 = vmatprep.mubr.bf16.mxu0 0
        %2604 = vmatmul.mubr.bf16.gmra.mrb[0].mxu0 %v2336
        %v2605 = vpop.f32.mrb[0].mxu0
        %v2606 = vadd.f32 0.0, %v2605
        %v2607 = vpop.f32.mrb[0].mxu0
        %v2608 = vadd.f32 0.0, %v2607
        %v2609 = vpop.f32.mrb[0].mxu0
        %v2610 = vpop.f32.mrb[0].mxu0
        %2611 = vdwg.mxu0
        %v2612 = vadd.f32 %v620, %v2565
        %v2613 = vadd.f32 %v622, %v2567
        %v2614 = vadd.f32 %v693, %v2606
        %v2615 = vadd.f32 %v695, %v2608
        %v2616 = vxor.u32 %v2612, 2147483648
        %v2617 = vxor.u32 %v2613, 2147483648
        %v2618 = vxor.u32 %v2614, 2147483648
        %v2619 = vmul.f32 %v2616, 1.442695
        %v2620 = vpow.pop %v2619
        %v2621 = vmul.f32 %v2617, 1.442695
        %v2622 = vpow.pop %v2621
        %v2623 = vmul.f32 %v2618, 1.442695
        %v2624 = vpow.pop %v2623
        %v2625 = vadd.f32 %v2620, 1.0
        %v2626 = vadd.f32 %v2622, 1.0
        %v2627 = vadd.f32 %v2624, 1.0
        %v2628 = vrcp.pop %v2625
        %v2629 = vmul.f32 1.0, %v2628
        %v2630 = vrcp.pop %v2626
        %v2631 = vmul.f32 1.0, %v2630
        %v2632 = vrcp.pop %v2627
        %v2633 = vmul.f32 1.0, %v2632
        %v2634 = vtanh.pop %v2615
        %v2635 = vmul.f32 %v2631, %v2333
        %v2636 = vmul.f32 %v2629, %v2634
        %v2637 = vadd.f32 %v2635, %v2636
        %v2638 = vtanh.pop %v2637
        %v2639 = vmul.f32 %v2633, %v2638
        %v2640 = vpack.c.bf16 %v2639, %v2639
        %v2641 = vpack.c.bf16 %v2529, %v2529
        %2642 = vmatprep.subr.bf16.mxu0 %v1203
        %2643 = vmatpush1.bf16.msra.mxu0 %v1202
        %2644 = vmatprep.subr.bf16.mxu0 %v1207
        %2645 = vmatpush1.bf16.msra.mxu0 %v1206
        %2646 = vmatprep.subr.bf16.mxu0 %v1211
        %2647 = vmatpush1.bf16.msra.mxu0 %v1210
        %2648 = vmatprep.subr.bf16.mxu0 %v1215
        %2649 = vmatpush1.bf16.msra.mxu0 %v1214
        %2650 = vmatprep.subr.bf16.mxu0 %v1219
        %2651 = vmatpush1.bf16.msra.mxu0 %v1218
        %2652 = vmatprep.subr.bf16.mxu0 %v1223
        %2653 = vmatpush1.bf16.msra.mxu0 %v1222
        %2654 = vmatprep.subr.bf16.mxu0 %v1227
        %2655 = vmatpush1.bf16.msra.mxu0 %v1226
        %2656 = vmatprep.subr.bf16.mxu0 %v1231
        %2657 = vmatpush1.bf16.msra.mxu0 %v1230
        %2658 = vmatprep.subr.bf16.mxu0 0
        %2659 = vmatpush1.bf16.msra.mxu0 0
        %2660 = vmatprep.subr.bf16.mxu0 0
        %2661 = vmatpush1.bf16.msra.mxu0 0
        %2662 = vmatprep.subr.bf16.mxu0 0
        %2663 = vmatpush1.bf16.msra.mxu0 0
        %2664 = vmatprep.subr.bf16.mxu0 0
        %2665 = vmatpush1.bf16.msra.mxu0 0
        %2666 = vmatprep.subr.bf16.mxu0 0
        %2667 = vmatpush1.bf16.msra.mxu0 0
        %2668 = vmatprep.subr.bf16.mxu0 0
        %2669 = vmatpush1.bf16.msra.mxu0 0
        %2670 = vmatprep.subr.bf16.mxu0 0
        %2671 = vmatpush1.bf16.msra.mxu0 0
        %2672 = vmatprep.subr.bf16.mxu0 0
        %2673 = vmatpush1.bf16.msra.mxu0 0
        %2674 = vmatprep.mubr.bf16.mxu0 0
        %2675 = vmatmul.mubr.bf16.gmra.mrb[0].mxu0 %v2641
        %v2676 = vpop.f32.mrb[0].mxu0
        %v2677 = vadd.f32 0.0, %v2676
        %v2678 = vpop.f32.mrb[0].mxu0
        %v2679 = vadd.f32 0.0, %v2678
        %v2680 = vpop.f32.mrb[0].mxu0
        %v2681 = vpop.f32.mrb[0].mxu0
        %2682 = vdwg.mxu0
        %2683 = vmatprep.subr.bf16.mxu0 %v1205
        %2684 = vmatpush1.bf16.msra.mxu0 %v1204
        %2685 = vmatprep.subr.bf16.mxu0 %v1209
        %2686 = vmatpush1.bf16.msra.mxu0 %v1208
        %2687 = vmatprep.subr.bf16.mxu0 %v1213
        %2688 = vmatpush1.bf16.msra.mxu0 %v1212
        %2689 = vmatprep.subr.bf16.mxu0 %v1217
        %2690 = vmatpush1.bf16.msra.mxu0 %v1216
        %2691 = vmatprep.subr.bf16.mxu0 %v1221
        %2692 = vmatpush1.bf16.msra.mxu0 %v1220
        %2693 = vmatprep.subr.bf16.mxu0 %v1225
        %2694 = vmatpush1.bf16.msra.mxu0 %v1224
        %2695 = vmatprep.subr.bf16.mxu0 %v1229
        %2696 = vmatpush1.bf16.msra.mxu0 %v1228
        %2697 = vmatprep.subr.bf16.mxu0 %v1233
        %2698 = vmatpush1.bf16.msra.mxu0 %v1232
        %2699 = vmatprep.subr.bf16.mxu0 0
        %2700 = vmatpush1.bf16.msra.mxu0 0
        %2701 = vmatprep.subr.bf16.mxu0 0
        %2702 = vmatpush1.bf16.msra.mxu0 0
        %2703 = vmatprep.subr.bf16.mxu0 0
        %2704 = vmatpush1.bf16.msra.mxu0 0
        %2705 = vmatprep.subr.bf16.mxu0 0
        %2706 = vmatpush1.bf16.msra.mxu0 0
        %2707 = vmatprep.subr.bf16.mxu0 0
        %2708 = vmatpush1.bf16.msra.mxu0 0
        %2709 = vmatprep.subr.bf16.mxu0 0
        %2710 = vmatpush1.bf16.msra.mxu0 0
        %2711 = vmatprep.subr.bf16.mxu0 0
        %2712 = vmatpush1.bf16.msra.mxu0 0
        %2713 = vmatprep.subr.bf16.mxu0 0
        %2714 = vmatpush1.bf16.msra.mxu0 0
        %2715 = vmatprep.mubr.bf16.mxu0 0
        %2716 = vmatmul.mubr.bf16.gmra.mrb[0].mxu0 %v2641
        %v2717 = vpop.f32.mrb[0].mxu0
        %v2718 = vadd.f32 0.0, %v2717
        %v2719 = vpop.f32.mrb[0].mxu0
        %v2720 = vadd.f32 0.0, %v2719
        %v2721 = vpop.f32.mrb[0].mxu0
        %v2722 = vpop.f32.mrb[0].mxu0
        %2723 = vdwg.mxu0
        %2724 = vmatprep.subr.bf16.mxu0 %v1445
        %2725 = vmatpush1.bf16.msra.mxu0 %v1444
        %2726 = vmatprep.subr.bf16.mxu0 %v1449
        %2727 = vmatpush1.bf16.msra.mxu0 %v1448
        %2728 = vmatprep.subr.bf16.mxu0 %v1453
        %2729 = vmatpush1.bf16.msra.mxu0 %v1452
        %2730 = vmatprep.subr.bf16.mxu0 %v1457
        %2731 = vmatpush1.bf16.msra.mxu0 %v1456
        %2732 = vmatprep.subr.bf16.mxu0 %v1461
        %2733 = vmatpush1.bf16.msra.mxu0 %v1460
        %2734 = vmatprep.subr.bf16.mxu0 %v1465
        %2735 = vmatpush1.bf16.msra.mxu0 %v1464
        %2736 = vmatprep.subr.bf16.mxu0 %v1469
        %2737 = vmatpush1.bf16.msra.mxu0 %v1468
        %2738 = vmatprep.subr.bf16.mxu0 %v1473
        %2739 = vmatpush1.bf16.msra.mxu0 %v1472
        %2740 = vmatprep.subr.bf16.mxu0 0
        %2741 = vmatpush1.bf16.msra.mxu0 0
        %2742 = vmatprep.subr.bf16.mxu0 0
        %2743 = vmatpush1.bf16.msra.mxu0 0
        %2744 = vmatprep.subr.bf16.mxu0 0
        %2745 = vmatpush1.bf16.msra.mxu0 0
        %2746 = vmatprep.subr.bf16.mxu0 0
        %2747 = vmatpush1.bf16.msra.mxu0 0
        %2748 = vmatprep.subr.bf16.mxu0 0
        %2749 = vmatpush1.bf16.msra.mxu0 0
        %2750 = vmatprep.subr.bf16.mxu0 0
        %2751 = vmatpush1.bf16.msra.mxu0 0
        %2752 = vmatprep.subr.bf16.mxu0 0
        %2753 = vmatpush1.bf16.msra.mxu0 0
        %2754 = vmatprep.subr.bf16.mxu0 0
        %2755 = vmatpush1.bf16.msra.mxu0 0
        %2756 = vmatprep.mubr.bf16.mxu0 0
        %2757 = vmatmul.mubr.bf16.gmra.mrb[0].mxu0 %v2640
        %v2758 = vpop.f32.mrb[0].mxu0
        %v2759 = vadd.f32 %v2677, %v2758
        %v2760 = vpop.f32.mrb[0].mxu0
        %v2761 = vadd.f32 %v2679, %v2760
        %v2762 = vpop.f32.mrb[0].mxu0
        %v2763 = vpop.f32.mrb[0].mxu0
        %2764 = vdwg.mxu0
        %2765 = vmatprep.subr.bf16.mxu0 %v1447
        %2766 = vmatpush1.bf16.msra.mxu0 %v1446
        %2767 = vmatprep.subr.bf16.mxu0 %v1451
        %2768 = vmatpush1.bf16.msra.mxu0 %v1450
        %2769 = vmatprep.subr.bf16.mxu0 %v1455
        %2770 = vmatpush1.bf16.msra.mxu0 %v1454
        %2771 = vmatprep.subr.bf16.mxu0 %v1459
        %2772 = vmatpush1.bf16.msra.mxu0 %v1458
        %2773 = vmatprep.subr.bf16.mxu0 %v1463
        %2774 = vmatpush1.bf16.msra.mxu0 %v1462
        %2775 = vmatprep.subr.bf16.mxu0 %v1467
        %2776 = vmatpush1.bf16.msra.mxu0 %v1466
        %2777 = vmatprep.subr.bf16.mxu0 %v1471
        %2778 = vmatpush1.bf16.msra.mxu0 %v1470
        %2779 = vmatprep.subr.bf16.mxu0 %v1475
        %2780 = vmatpush1.bf16.msra.mxu0 %v1474
        %2781 = vmatprep.subr.bf16.mxu0 0
        %2782 = vmatpush1.bf16.msra.mxu0 0
        %2783 = vmatprep.subr.bf16.mxu0 0
        %2784 = vmatpush1.bf16.msra.mxu0 0
        %2785 = vmatprep.subr.bf16.mxu0 0
        %2786 = vmatpush1.bf16.msra.mxu0 0
        %2787 = vmatprep.subr.bf16.mxu0 0
        %2788 = vmatpush1.bf16.msra.mxu0 0
        %2789 = vmatprep.subr.bf16.mxu0 0
        %2790 = vmatpush1.bf16.msra.mxu0 0
        %2791 = vmatprep.subr.bf16.mxu0 0
        %2792 = vmatpush1.bf16.msra.mxu0 0
        %2793 = vmatprep.subr.bf16.mxu0 0
        %2794 = vmatpush1.bf16.msra.mxu0 0
        %2795 = vmatprep.subr.bf16.mxu0 0
        %2796 = vmatpush1.bf16.msra.mxu0 0
        %2797 = vmatprep.mubr.bf16.mxu0 0
        %2798 = vmatmul.mubr.bf16.gmra.mrb[0].mxu0 %v2640
        %v2799 = vpop.f32.mrb[0].mxu0
        %v2800 = vadd.f32 %v2718, %v2799
        %v2801 = vpop.f32.mrb[0].mxu0
        %v2802 = vadd.f32 %v2720, %v2801
        %v2803 = vpop.f32.mrb[0].mxu0
        %v2804 = vpop.f32.mrb[0].mxu0
        %2805 = vdwg.mxu0
        %v2806 = vadd.f32 %v2759, %v812
        %v2807 = vadd.f32 %v2761, %v816
        %v2808 = vadd.f32 %v2800, %v820
        %v2809 = vadd.f32 %v2802, %v824
        %v2810 = vxor.u32 %v2806, 2147483648
        %v2811 = vxor.u32 %v2807, 2147483648
        %v2812 = vxor.u32 %v2808, 2147483648
        %v2813 = vmul.f32 %v2810, 1.442695
        %v2814 = vpow.pop %v2813
        %v2815 = vmul.f32 %v2811, 1.442695
        %v2816 = vpow.pop %v2815
        %v2817 = vmul.f32 %v2812, 1.442695
        %v2818 = vpow.pop %v2817
        %v2819 = vadd.f32 %v2814, 1.0
        %v2820 = vadd.f32 %v2816, 1.0
        %v2821 = vadd.f32 %v2818, 1.0
        %v2822 = vrcp.pop %v2819
        %v2823 = vmul.f32 1.0, %v2822
        %v2824 = vrcp.pop %v2820
        %v2825 = vmul.f32 1.0, %v2824
        %v2826 = vrcp.pop %v2821
        %v2827 = vmul.f32 1.0, %v2826
        %v2828 = vtanh.pop %v2809
        %v2829 = vmul.f32 %v2825, %v2527
        %v2830 = vmul.f32 %v2823, %v2828
        %v2831 = vadd.f32 %v2829, %v2830
        %v2832 = vtanh.pop %v2831
        %v2833 = vmul.f32 %v2827, %v2832
        %2834 = vmatprep.subr.bf16.mxu0 %v931
        %2835 = vmatpush1.bf16.msra.mxu0 %v930
        %2836 = vmatprep.subr.bf16.mxu0 %v935
        %2837 = vmatpush1.bf16.msra.mxu0 %v934
        %2838 = vmatprep.subr.bf16.mxu0 %v939
        %2839 = vmatpush1.bf16.msra.mxu0 %v938
        %2840 = vmatprep.subr.bf16.mxu0 %v943
        %2841 = vmatpush1.bf16.msra.mxu0 %v942
        %2842 = vmatprep.subr.bf16.mxu0 %v947
        %2843 = vmatpush1.bf16.msra.mxu0 %v946
        %2844 = vmatprep.subr.bf16.mxu0 %v951
        %2845 = vmatpush1.bf16.msra.mxu0 %v950
        %2846 = vmatprep.subr.bf16.mxu0 %v955
        %2847 = vmatpush1.bf16.msra.mxu0 %v954
        %2848 = vmatprep.subr.bf16.mxu0 %v959
        %2849 = vmatpush1.bf16.msra.mxu0 %v958
        %2850 = vmatprep.subr.bf16.mxu0 0
        %2851 = vmatpush1.bf16.msra.mxu0 0
        %2852 = vmatprep.subr.bf16.mxu0 0
        %2853 = vmatpush1.bf16.msra.mxu0 0
        %2854 = vmatprep.subr.bf16.mxu0 0
        %2855 = vmatpush1.bf16.msra.mxu0 0
        %2856 = vmatprep.subr.bf16.mxu0 0
        %2857 = vmatpush1.bf16.msra.mxu0 0
        %2858 = vmatprep.subr.bf16.mxu0 0
        %2859 = vmatpush1.bf16.msra.mxu0 0
        %2860 = vmatprep.subr.bf16.mxu0 0
        %2861 = vmatpush1.bf16.msra.mxu0 0
        %2862 = vmatprep.subr.bf16.mxu0 0
        %2863 = vmatpush1.bf16.msra.mxu0 0
        %2864 = vmatprep.subr.bf16.mxu0 0
        %2865 = vmatpush1.bf16.msra.mxu0 0
        %2866 = vmatprep.mubr.bf16.mxu0 0
        %2867 = vmatmul.mubr.bf16.gmra.mrb[0].mxu0 %v2640
        %v2868 = vpop.f32.mrb[0].mxu0
        %v2869 = vadd.f32 0.0, %v2868
        %v2870 = vpop.f32.mrb[0].mxu0
        %v2871 = vadd.f32 0.0, %v2870
        %v2872 = vpop.f32.mrb[0].mxu0
        %v2873 = vpop.f32.mrb[0].mxu0
        %2874 = vdwg.mxu0
        %2875 = vmatprep.subr.bf16.mxu0 %v933
        %2876 = vmatpush1.bf16.msra.mxu0 %v932
        %2877 = vmatprep.subr.bf16.mxu0 %v937
        %2878 = vmatpush1.bf16.msra.mxu0 %v936
        %2879 = vmatprep.subr.bf16.mxu0 %v941
        %2880 = vmatpush1.bf16.msra.mxu0 %v940
        %2881 = vmatprep.subr.bf16.mxu0 %v945
        %2882 = vmatpush1.bf16.msra.mxu0 %v944
        %2883 = vmatprep.subr.bf16.mxu0 %v949
        %2884 = vmatpush1.bf16.msra.mxu0 %v948
        %2885 = vmatprep.subr.bf16.mxu0 %v953
        %2886 = vmatpush1.bf16.msra.mxu0 %v952
        %2887 = vmatprep.subr.bf16.mxu0 %v957
        %2888 = vmatpush1.bf16.msra.mxu0 %v956
        %2889 = vmatprep.subr.bf16.mxu0 %v961
        %2890 = vmatpush1.bf16.msra.mxu0 %v960
        %2891 = vmatprep.subr.bf16.mxu0 0
        %2892 = vmatpush1.bf16.msra.mxu0 0
        %2893 = vmatprep.subr.bf16.mxu0 0
        %2894 = vmatpush1.bf16.msra.mxu0 0
        %2895 = vmatprep.subr.bf16.mxu0 0
        %2896 = vmatpush1.bf16.msra.mxu0 0
        %2897 = vmatprep.subr.bf16.mxu0 0
        %2898 = vmatpush1.bf16.msra.mxu0 0
        %2899 = vmatprep.subr.bf16.mxu0 0
        %2900 = vmatpush1.bf16.msra.mxu0 0
        %2901 = vmatprep.subr.bf16.mxu0 0
        %2902 = vmatpush1.bf16.msra.mxu0 0
        %2903 = vmatprep.subr.bf16.mxu0 0
        %2904 = vmatpush1.bf16.msra.mxu0 0
        %2905 = vmatprep.subr.bf16.mxu0 0
        %2906 = vmatpush1.bf16.msra.mxu0 0
        %2907 = vmatprep.mubr.bf16.mxu0 0
        %2908 = vmatmul.mubr.bf16.gmra.mrb[0].mxu0 %v2640
        %v2909 = vpop.f32.mrb[0].mxu0
        %v2910 = vadd.f32 0.0, %v2909
        %v2911 = vpop.f32.mrb[0].mxu0
        %v2912 = vadd.f32 0.0, %v2911
        %v2913 = vpop.f32.mrb[0].mxu0
        %v2914 = vpop.f32.mrb[0].mxu0
        %2915 = vdwg.mxu0
        %v2916 = vadd.f32 %v624, %v2869
        %v2917 = vadd.f32 %v626, %v2871
        %v2918 = vadd.f32 %v697, %v2910
        %v2919 = vadd.f32 %v699, %v2912
        %v2920 = vxor.u32 %v2916, 2147483648
        %v2921 = vxor.u32 %v2917, 2147483648
        %v2922 = vxor.u32 %v2918, 2147483648
        %v2923 = vmul.f32 %v2920, 1.442695
        %v2924 = vpow.pop %v2923
        %v2925 = vmul.f32 %v2921, 1.442695
        %v2926 = vpow.pop %v2925
        %v2927 = vmul.f32 %v2922, 1.442695
        %v2928 = vpow.pop %v2927
        %v2929 = vadd.f32 %v2924, 1.0
        %v2930 = vadd.f32 %v2926, 1.0
        %v2931 = vadd.f32 %v2928, 1.0
        %v2932 = vrcp.pop %v2929
        %v2933 = vmul.f32 1.0, %v2932
        %v2934 = vrcp.pop %v2930
        %v2935 = vmul.f32 1.0, %v2934
        %v2936 = vrcp.pop %v2931
        %v2937 = vmul.f32 1.0, %v2936
        %v2938 = vtanh.pop %v2919
        %v2939 = vmul.f32 %v2935, %v2637
        %v2940 = vmul.f32 %v2933, %v2938
        %v2941 = vadd.f32 %v2939, %v2940
        %v2942 = vtanh.pop %v2941
        %v2943 = vmul.f32 %v2937, %v2942
        %v2944 = vpack.c.bf16 %v2943, %v2943
        %v2945 = vpack.c.bf16 %v2833, %v2833
        %2946 = vmatprep.subr.bf16.mxu0 %v1203
        %2947 = vmatpush1.bf16.msra.mxu0 %v1202
        %2948 = vmatprep.subr.bf16.mxu0 %v1207
        %2949 = vmatpush1.bf16.msra.mxu0 %v1206
        %2950 = vmatprep.subr.bf16.mxu0 %v1211
        %2951 = vmatpush1.bf16.msra.mxu0 %v1210
        %2952 = vmatprep.subr.bf16.mxu0 %v1215
        %2953 = vmatpush1.bf16.msra.mxu0 %v1214
        %2954 = vmatprep.subr.bf16.mxu0 %v1219
        %2955 = vmatpush1.bf16.msra.mxu0 %v1218
        %2956 = vmatprep.subr.bf16.mxu0 %v1223
        %2957 = vmatpush1.bf16.msra.mxu0 %v1222
        %2958 = vmatprep.subr.bf16.mxu0 %v1227
        %2959 = vmatpush1.bf16.msra.mxu0 %v1226
        %2960 = vmatprep.subr.bf16.mxu0 %v1231
        %2961 = vmatpush1.bf16.msra.mxu0 %v1230
        %2962 = vmatprep.subr.bf16.mxu0 0
        %2963 = vmatpush1.bf16.msra.mxu0 0
        %2964 = vmatprep.subr.bf16.mxu0 0
        %2965 = vmatpush1.bf16.msra.mxu0 0
        %2966 = vmatprep.subr.bf16.mxu0 0
        %2967 = vmatpush1.bf16.msra.mxu0 0
        %2968 = vmatprep.subr.bf16.mxu0 0
        %2969 = vmatpush1.bf16.msra.mxu0 0
        %2970 = vmatprep.subr.bf16.mxu0 0
        %2971 = vmatpush1.bf16.msra.mxu0 0
        %2972 = vmatprep.subr.bf16.mxu0 0
        %2973 = vmatpush1.bf16.msra.mxu0 0
        %2974 = vmatprep.subr.bf16.mxu0 0
        %2975 = vmatpush1.bf16.msra.mxu0 0
        %2976 = vmatprep.subr.bf16.mxu0 0
        %2977 = vmatpush1.bf16.msra.mxu0 0
        %2978 = vmatprep.mubr.bf16.mxu0 0
        %2979 = vmatmul.mubr.bf16.gmra.mrb[0].mxu0 %v2945
        %v2980 = vpop.f32.mrb[0].mxu0
        %v2981 = vadd.f32 0.0, %v2980
        %v2982 = vpop.f32.mrb[0].mxu0
        %v2983 = vadd.f32 0.0, %v2982
        %v2984 = vpop.f32.mrb[0].mxu0
        %v2985 = vpop.f32.mrb[0].mxu0
        %2986 = vdwg.mxu0
        %2987 = vmatprep.subr.bf16.mxu0 %v1205
        %2988 = vmatpush1.bf16.msra.mxu0 %v1204
        %2989 = vmatprep.subr.bf16.mxu0 %v1209
        %2990 = vmatpush1.bf16.msra.mxu0 %v1208
        %2991 = vmatprep.subr.bf16.mxu0 %v1213
        %2992 = vmatpush1.bf16.msra.mxu0 %v1212
        %2993 = vmatprep.subr.bf16.mxu0 %v1217
        %2994 = vmatpush1.bf16.msra.mxu0 %v1216
        %2995 = vmatprep.subr.bf16.mxu0 %v1221
        %2996 = vmatpush1.bf16.msra.mxu0 %v1220
        %2997 = vmatprep.subr.bf16.mxu0 %v1225
        %2998 = vmatpush1.bf16.msra.mxu0 %v1224
        %2999 = vmatprep.subr.bf16.mxu0 %v1229
        %3000 = vmatpush1.bf16.msra.mxu0 %v1228
        %3001 = vmatprep.subr.bf16.mxu0 %v1233
        %3002 = vmatpush1.bf16.msra.mxu0 %v1232
        %3003 = vmatprep.subr.bf16.mxu0 0
        %3004 = vmatpush1.bf16.msra.mxu0 0
        %3005 = vmatprep.subr.bf16.mxu0 0
        %3006 = vmatpush1.bf16.msra.mxu0 0
        %3007 = vmatprep.subr.bf16.mxu0 0
        %3008 = vmatpush1.bf16.msra.mxu0 0
        %3009 = vmatprep.subr.bf16.mxu0 0
        %3010 = vmatpush1.bf16.msra.mxu0 0
        %3011 = vmatprep.subr.bf16.mxu0 0
        %3012 = vmatpush1.bf16.msra.mxu0 0
        %3013 = vmatprep.subr.bf16.mxu0 0
        %3014 = vmatpush1.bf16.msra.mxu0 0
        %3015 = vmatprep.subr.bf16.mxu0 0
        %3016 = vmatpush1.bf16.msra.mxu0 0
        %3017 = vmatprep.subr.bf16.mxu0 0
        %3018 = vmatpush1.bf16.msra.mxu0 0
        %3019 = vmatprep.mubr.bf16.mxu0 0
        %3020 = vmatmul.mubr.bf16.gmra.mrb[0].mxu0 %v2945
        %v3021 = vpop.f32.mrb[0].mxu0
        %v3022 = vadd.f32 0.0, %v3021
        %v3023 = vpop.f32.mrb[0].mxu0
        %v3024 = vadd.f32 0.0, %v3023
        %v3025 = vpop.f32.mrb[0].mxu0
        %v3026 = vpop.f32.mrb[0].mxu0
        %3027 = vdwg.mxu0
        %3028 = vmatprep.subr.bf16.mxu0 %v1445
        %3029 = vmatpush1.bf16.msra.mxu0 %v1444
        %3030 = vmatprep.subr.bf16.mxu0 %v1449
        %3031 = vmatpush1.bf16.msra.mxu0 %v1448
        %3032 = vmatprep.subr.bf16.mxu0 %v1453
        %3033 = vmatpush1.bf16.msra.mxu0 %v1452
        %3034 = vmatprep.subr.bf16.mxu0 %v1457
        %3035 = vmatpush1.bf16.msra.mxu0 %v1456
        %3036 = vmatprep.subr.bf16.mxu0 %v1461
        %3037 = vmatpush1.bf16.msra.mxu0 %v1460
        %3038 = vmatprep.subr.bf16.mxu0 %v1465
        %3039 = vmatpush1.bf16.msra.mxu0 %v1464
        %3040 = vmatprep.subr.bf16.mxu0 %v1469
        %3041 = vmatpush1.bf16.msra.mxu0 %v1468
        %3042 = vmatprep.subr.bf16.mxu0 %v1473
        %3043 = vmatpush1.bf16.msra.mxu0 %v1472
        %3044 = vmatprep.subr.bf16.mxu0 0
        %3045 = vmatpush1.bf16.msra.mxu0 0
        %3046 = vmatprep.subr.bf16.mxu0 0
        %3047 = vmatpush1.bf16.msra.mxu0 0
        %3048 = vmatprep.subr.bf16.mxu0 0
        %3049 = vmatpush1.bf16.msra.mxu0 0
        %3050 = vmatprep.subr.bf16.mxu0 0
        %3051 = vmatpush1.bf16.msra.mxu0 0
        %3052 = vmatprep.subr.bf16.mxu0 0
        %3053 = vmatpush1.bf16.msra.mxu0 0
        %3054 = vmatprep.subr.bf16.mxu0 0
        %3055 = vmatpush1.bf16.msra.mxu0 0
        %3056 = vmatprep.subr.bf16.mxu0 0
        %3057 = vmatpush1.bf16.msra.mxu0 0
        %3058 = vmatprep.subr.bf16.mxu0 0
        %3059 = vmatpush1.bf16.msra.mxu0 0
        %3060 = vmatprep.mubr.bf16.mxu0 0
        %3061 = vmatmul.mubr.bf16.gmra.mrb[0].mxu0 %v2944
        %v3062 = vpop.f32.mrb[0].mxu0
        %v3063 = vadd.f32 %v2981, %v3062
        %v3064 = vpop.f32.mrb[0].mxu0
        %v3065 = vadd.f32 %v2983, %v3064
        %v3066 = vpop.f32.mrb[0].mxu0
        %v3067 = vpop.f32.mrb[0].mxu0
        %3068 = vdwg.mxu0
        %3069 = vmatprep.subr.bf16.mxu0 %v1447
        %3070 = vmatpush1.bf16.msra.mxu0 %v1446
        %3071 = vmatprep.subr.bf16.mxu0 %v1451
        %3072 = vmatpush1.bf16.msra.mxu0 %v1450
        %3073 = vmatprep.subr.bf16.mxu0 %v1455
        %3074 = vmatpush1.bf16.msra.mxu0 %v1454
        %3075 = vmatprep.subr.bf16.mxu0 %v1459
        %3076 = vmatpush1.bf16.msra.mxu0 %v1458
        %3077 = vmatprep.subr.bf16.mxu0 %v1463
        %3078 = vmatpush1.bf16.msra.mxu0 %v1462
        %3079 = vmatprep.subr.bf16.mxu0 %v1467
        %3080 = vmatpush1.bf16.msra.mxu0 %v1466
        %3081 = vmatprep.subr.bf16.mxu0 %v1471
        %3082 = vmatpush1.bf16.msra.mxu0 %v1470
        %3083 = vmatprep.subr.bf16.mxu0 %v1475
        %3084 = vmatpush1.bf16.msra.mxu0 %v1474
        %3085 = vmatprep.subr.bf16.mxu0 0
        %3086 = vmatpush1.bf16.msra.mxu0 0
        %3087 = vmatprep.subr.bf16.mxu0 0
        %3088 = vmatpush1.bf16.msra.mxu0 0
        %3089 = vmatprep.subr.bf16.mxu0 0
        %3090 = vmatpush1.bf16.msra.mxu0 0
        %3091 = vmatprep.subr.bf16.mxu0 0
        %3092 = vmatpush1.bf16.msra.mxu0 0
        %3093 = vmatprep.subr.bf16.mxu0 0
        %3094 = vmatpush1.bf16.msra.mxu0 0
        %3095 = vmatprep.subr.bf16.mxu0 0
        %3096 = vmatpush1.bf16.msra.mxu0 0
        %3097 = vmatprep.subr.bf16.mxu0 0
        %3098 = vmatpush1.bf16.msra.mxu0 0
        %3099 = vmatprep.subr.bf16.mxu0 0
        %3100 = vmatpush1.bf16.msra.mxu0 0
        %3101 = vmatprep.mubr.bf16.mxu0 0
        %3102 = vmatmul.mubr.bf16.gmra.mrb[0].mxu0 %v2944
        %v3103 = vpop.f32.mrb[0].mxu0
        %v3104 = vadd.f32 %v3022, %v3103
        %v3105 = vpop.f32.mrb[0].mxu0
        %v3106 = vadd.f32 %v3024, %v3105
        %v3107 = vpop.f32.mrb[0].mxu0
        %v3108 = vpop.f32.mrb[0].mxu0
        %3109 = vdwg.mxu0
        %v3110 = vadd.f32 %v3063, %v812
        %v3111 = vadd.f32 %v3065, %v816
        %v3112 = vadd.f32 %v3104, %v820
        %v3113 = vadd.f32 %v3106, %v824
        %v3114 = vxor.u32 %v3110, 2147483648
        %v3115 = vxor.u32 %v3111, 2147483648
        %v3116 = vxor.u32 %v3112, 2147483648
        %v3117 = vmul.f32 %v3114, 1.442695
        %v3118 = vpow.pop %v3117
        %v3119 = vmul.f32 %v3115, 1.442695
        %v3120 = vpow.pop %v3119
        %v3121 = vmul.f32 %v3116, 1.442695
        %v3122 = vpow.pop %v3121
        %v3123 = vadd.f32 %v3118, 1.0
        %v3124 = vadd.f32 %v3120, 1.0
        %v3125 = vadd.f32 %v3122, 1.0
        %v3126 = vrcp.pop %v3123
        %v3127 = vmul.f32 1.0, %v3126
        %v3128 = vrcp.pop %v3124
        %v3129 = vmul.f32 1.0, %v3128
        %v3130 = vrcp.pop %v3125
        %v3131 = vmul.f32 1.0, %v3130
        %v3132 = vtanh.pop %v3113
        %v3133 = vmul.f32 %v3129, %v2831
        %v3134 = vmul.f32 %v3127, %v3132
        %v3135 = vadd.f32 %v3133, %v3134
        %v3136 = vtanh.pop %v3135
        %v3137 = vmul.f32 %v3131, %v3136
        %3138 = vmatprep.subr.bf16.mxu0 %v931
        %3139 = vmatpush1.bf16.msra.mxu0 %v930
        %3140 = vmatprep.subr.bf16.mxu0 %v935
        %3141 = vmatpush1.bf16.msra.mxu0 %v934
        %3142 = vmatprep.subr.bf16.mxu0 %v939
        %3143 = vmatpush1.bf16.msra.mxu0 %v938
        %3144 = vmatprep.subr.bf16.mxu0 %v943
        %3145 = vmatpush1.bf16.msra.mxu0 %v942
        %3146 = vmatprep.subr.bf16.mxu0 %v947
        %3147 = vmatpush1.bf16.msra.mxu0 %v946
        %3148 = vmatprep.subr.bf16.mxu0 %v951
        %3149 = vmatpush1.bf16.msra.mxu0 %v950
        %3150 = vmatprep.subr.bf16.mxu0 %v955
        %3151 = vmatpush1.bf16.msra.mxu0 %v954
        %3152 = vmatprep.subr.bf16.mxu0 %v959
        %3153 = vmatpush1.bf16.msra.mxu0 %v958
        %3154 = vmatprep.subr.bf16.mxu0 0
        %3155 = vmatpush1.bf16.msra.mxu0 0
        %3156 = vmatprep.subr.bf16.mxu0 0
        %3157 = vmatpush1.bf16.msra.mxu0 0
        %3158 = vmatprep.subr.bf16.mxu0 0
        %3159 = vmatpush1.bf16.msra.mxu0 0
        %3160 = vmatprep.subr.bf16.mxu0 0
        %3161 = vmatpush1.bf16.msra.mxu0 0
        %3162 = vmatprep.subr.bf16.mxu0 0
        %3163 = vmatpush1.bf16.msra.mxu0 0
        %3164 = vmatprep.subr.bf16.mxu0 0
        %3165 = vmatpush1.bf16.msra.mxu0 0
        %3166 = vmatprep.subr.bf16.mxu0 0
        %3167 = vmatpush1.bf16.msra.mxu0 0
        %3168 = vmatprep.subr.bf16.mxu0 0
        %3169 = vmatpush1.bf16.msra.mxu0 0
        %3170 = vmatprep.mubr.bf16.mxu0 0
        %3171 = vmatmul.mubr.bf16.gmra.mrb[0].mxu0 %v2944
        %v3172 = vpop.f32.mrb[0].mxu0
        %v3173 = vadd.f32 0.0, %v3172
        %v3174 = vpop.f32.mrb[0].mxu0
        %v3175 = vadd.f32 0.0, %v3174
        %v3176 = vpop.f32.mrb[0].mxu0
        %v3177 = vpop.f32.mrb[0].mxu0
        %3178 = vdwg.mxu0
        %3179 = vmatprep.subr.bf16.mxu0 %v933
        %3180 = vmatpush1.bf16.msra.mxu0 %v932
        %3181 = vmatprep.subr.bf16.mxu0 %v937
        %3182 = vmatpush1.bf16.msra.mxu0 %v936
        %3183 = vmatprep.subr.bf16.mxu0 %v941
        %3184 = vmatpush1.bf16.msra.mxu0 %v940
        %3185 = vmatprep.subr.bf16.mxu0 %v945
        %3186 = vmatpush1.bf16.msra.mxu0 %v944
        %3187 = vmatprep.subr.bf16.mxu0 %v949
        %3188 = vmatpush1.bf16.msra.mxu0 %v948
        %3189 = vmatprep.subr.bf16.mxu0 %v953
        %3190 = vmatpush1.bf16.msra.mxu0 %v952
        %3191 = vmatprep.subr.bf16.mxu0 %v957
        %3192 = vmatpush1.bf16.msra.mxu0 %v956
        %3193 = vmatprep.subr.bf16.mxu0 %v961
        %3194 = vmatpush1.bf16.msra.mxu0 %v960
        %3195 = vmatprep.subr.bf16.mxu0 0
        %3196 = vmatpush1.bf16.msra.mxu0 0
        %3197 = vmatprep.subr.bf16.mxu0 0
        %3198 = vmatpush1.bf16.msra.mxu0 0
        %3199 = vmatprep.subr.bf16.mxu0 0
        %3200 = vmatpush1.bf16.msra.mxu0 0
        %3201 = vmatprep.subr.bf16.mxu0 0
        %3202 = vmatpush1.bf16.msra.mxu0 0
        %3203 = vmatprep.subr.bf16.mxu0 0
        %3204 = vmatpush1.bf16.msra.mxu0 0
        %3205 = vmatprep.subr.bf16.mxu0 0
        %3206 = vmatpush1.bf16.msra.mxu0 0
        %3207 = vmatprep.subr.bf16.mxu0 0
        %3208 = vmatpush1.bf16.msra.mxu0 0
        %3209 = vmatprep.subr.bf16.mxu0 0
        %3210 = vmatpush1.bf16.msra.mxu0 0
        %3211 = vmatprep.mubr.bf16.mxu0 0
        %3212 = vmatmul.mubr.bf16.gmra.mrb[0].mxu0 %v2944
        %v3213 = vpop.f32.mrb[0].mxu0
        %v3214 = vadd.f32 0.0, %v3213
        %v3215 = vpop.f32.mrb[0].mxu0
        %v3216 = vadd.f32 0.0, %v3215
        %v3217 = vpop.f32.mrb[0].mxu0
        %v3218 = vpop.f32.mrb[0].mxu0
        %3219 = vdwg.mxu0
        %v3220 = vadd.f32 %v630, %v3173
        %v3221 = vadd.f32 %v632, %v3175
        %v3222 = vadd.f32 %v703, %v3214
        %v3223 = vadd.f32 %v705, %v3216
        %v3224 = vxor.u32 %v3220, 2147483648
        %v3225 = vxor.u32 %v3221, 2147483648
        %v3226 = vxor.u32 %v3222, 2147483648
        %v3227 = vmul.f32 %v3224, 1.442695
        %v3228 = vpow.pop %v3227
        %v3229 = vmul.f32 %v3225, 1.442695
        %v3230 = vpow.pop %v3229
        %v3231 = vmul.f32 %v3226, 1.442695
        %v3232 = vpow.pop %v3231
        %v3233 = vadd.f32 %v3228, 1.0
        %v3234 = vadd.f32 %v3230, 1.0
        %v3235 = vadd.f32 %v3232, 1.0
        %v3236 = vrcp.pop %v3233
        %v3237 = vmul.f32 1.0, %v3236
        %v3238 = vrcp.pop %v3234
        %v3239 = vmul.f32 1.0, %v3238
        %v3240 = vrcp.pop %v3235
        %v3241 = vmul.f32 1.0, %v3240
        %v3242 = vtanh.pop %v3223
        %v3243 = vmul.f32 %v3239, %v2941
        %v3244 = vmul.f32 %v3237, %v3242
        %v3245 = vadd.f32 %v3243, %v3244
        %v3246 = vtanh.pop %v3245
        %v3247 = vmul.f32 %v3241, %v3246
        %v3248 = vpack.c.bf16 %v3247, %v3247
        %v3249 = vpack.c.bf16 %v3137, %v3137
        %3250 = vmatprep.subr.bf16.mxu0 %v1203
        %3251 = vmatpush1.bf16.msra.mxu0 %v1202
        %3252 = vmatprep.subr.bf16.mxu0 %v1207
        %3253 = vmatpush1.bf16.msra.mxu0 %v1206
        %3254 = vmatprep.subr.bf16.mxu0 %v1211
        %3255 = vmatpush1.bf16.msra.mxu0 %v1210
        %3256 = vmatprep.subr.bf16.mxu0 %v1215
        %3257 = vmatpush1.bf16.msra.mxu0 %v1214
        %3258 = vmatprep.subr.bf16.mxu0 %v1219
        %3259 = vmatpush1.bf16.msra.mxu0 %v1218
        %3260 = vmatprep.subr.bf16.mxu0 %v1223
        %3261 = vmatpush1.bf16.msra.mxu0 %v1222
        %3262 = vmatprep.subr.bf16.mxu0 %v1227
        %3263 = vmatpush1.bf16.msra.mxu0 %v1226
        %3264 = vmatprep.subr.bf16.mxu0 %v1231
        %3265 = vmatpush1.bf16.msra.mxu0 %v1230
        %3266 = vmatprep.subr.bf16.mxu0 0
        %3267 = vmatpush1.bf16.msra.mxu0 0
        %3268 = vmatprep.subr.bf16.mxu0 0
        %3269 = vmatpush1.bf16.msra.mxu0 0
        %3270 = vmatprep.subr.bf16.mxu0 0
        %3271 = vmatpush1.bf16.msra.mxu0 0
        %3272 = vmatprep.subr.bf16.mxu0 0
        %3273 = vmatpush1.bf16.msra.mxu0 0
        %3274 = vmatprep.subr.bf16.mxu0 0
        %3275 = vmatpush1.bf16.msra.mxu0 0
        %3276 = vmatprep.subr.bf16.mxu0 0
        %3277 = vmatpush1.bf16.msra.mxu0 0
        %3278 = vmatprep.subr.bf16.mxu0 0
        %3279 = vmatpush1.bf16.msra.mxu0 0
        %3280 = vmatprep.subr.bf16.mxu0 0
        %3281 = vmatpush1.bf16.msra.mxu0 0
        %3282 = vmatprep.mubr.bf16.mxu0 0
        %3283 = vmatmul.mubr.bf16.gmra.mrb[0].mxu0 %v3249
        %v3284 = vpop.f32.mrb[0].mxu0
        %v3285 = vadd.f32 0.0, %v3284
        %v3286 = vpop.f32.mrb[0].mxu0
        %v3287 = vadd.f32 0.0, %v3286
        %v3288 = vpop.f32.mrb[0].mxu0
        %v3289 = vpop.f32.mrb[0].mxu0
        %3290 = vdwg.mxu0
        %3291 = vmatprep.subr.bf16.mxu0 %v1205
        %3292 = vmatpush1.bf16.msra.mxu0 %v1204
        %3293 = vmatprep.subr.bf16.mxu0 %v1209
        %3294 = vmatpush1.bf16.msra.mxu0 %v1208
        %3295 = vmatprep.subr.bf16.mxu0 %v1213
        %3296 = vmatpush1.bf16.msra.mxu0 %v1212
        %3297 = vmatprep.subr.bf16.mxu0 %v1217
        %3298 = vmatpush1.bf16.msra.mxu0 %v1216
        %3299 = vmatprep.subr.bf16.mxu0 %v1221
        %3300 = vmatpush1.bf16.msra.mxu0 %v1220
        %3301 = vmatprep.subr.bf16.mxu0 %v1225
        %3302 = vmatpush1.bf16.msra.mxu0 %v1224
        %3303 = vmatprep.subr.bf16.mxu0 %v1229
        %3304 = vmatpush1.bf16.msra.mxu0 %v1228
        %3305 = vmatprep.subr.bf16.mxu0 %v1233
        %3306 = vmatpush1.bf16.msra.mxu0 %v1232
        %3307 = vmatprep.subr.bf16.mxu0 0
        %3308 = vmatpush1.bf16.msra.mxu0 0
        %3309 = vmatprep.subr.bf16.mxu0 0
        %3310 = vmatpush1.bf16.msra.mxu0 0
        %3311 = vmatprep.subr.bf16.mxu0 0
        %3312 = vmatpush1.bf16.msra.mxu0 0
        %3313 = vmatprep.subr.bf16.mxu0 0
        %3314 = vmatpush1.bf16.msra.mxu0 0
        %3315 = vmatprep.subr.bf16.mxu0 0
        %3316 = vmatpush1.bf16.msra.mxu0 0
        %3317 = vmatprep.subr.bf16.mxu0 0
        %3318 = vmatpush1.bf16.msra.mxu0 0
        %3319 = vmatprep.subr.bf16.mxu0 0
        %3320 = vmatpush1.bf16.msra.mxu0 0
        %3321 = vmatprep.subr.bf16.mxu0 0
        %3322 = vmatpush1.bf16.msra.mxu0 0
        %3323 = vmatprep.mubr.bf16.mxu0 0
        %3324 = vmatmul.mubr.bf16.gmra.mrb[0].mxu0 %v3249
        %v3325 = vpop.f32.mrb[0].mxu0
        %v3326 = vadd.f32 0.0, %v3325
        %v3327 = vpop.f32.mrb[0].mxu0
        %v3328 = vadd.f32 0.0, %v3327
        %v3329 = vpop.f32.mrb[0].mxu0
        %v3330 = vpop.f32.mrb[0].mxu0
        %3331 = vdwg.mxu0
        %3332 = vmatprep.subr.bf16.mxu0 %v1445
        %3333 = vmatpush1.bf16.msra.mxu0 %v1444
        %3334 = vmatprep.subr.bf16.mxu0 %v1449
        %3335 = vmatpush1.bf16.msra.mxu0 %v1448
        %3336 = vmatprep.subr.bf16.mxu0 %v1453
        %3337 = vmatpush1.bf16.msra.mxu0 %v1452
        %3338 = vmatprep.subr.bf16.mxu0 %v1457
        %3339 = vmatpush1.bf16.msra.mxu0 %v1456
        %3340 = vmatprep.subr.bf16.mxu0 %v1461
        %3341 = vmatpush1.bf16.msra.mxu0 %v1460
        %3342 = vmatprep.subr.bf16.mxu0 %v1465
        %3343 = vmatpush1.bf16.msra.mxu0 %v1464
        %3344 = vmatprep.subr.bf16.mxu0 %v1469
        %3345 = vmatpush1.bf16.msra.mxu0 %v1468
        %3346 = vmatprep.subr.bf16.mxu0 %v1473
        %3347 = vmatpush1.bf16.msra.mxu0 %v1472
        %3348 = vmatprep.subr.bf16.mxu0 0
        %3349 = vmatpush1.bf16.msra.mxu0 0
        %3350 = vmatprep.subr.bf16.mxu0 0
        %3351 = vmatpush1.bf16.msra.mxu0 0
        %3352 = vmatprep.subr.bf16.mxu0 0
        %3353 = vmatpush1.bf16.msra.mxu0 0
        %3354 = vmatprep.subr.bf16.mxu0 0
        %3355 = vmatpush1.bf16.msra.mxu0 0
        %3356 = vmatprep.subr.bf16.mxu0 0
        %3357 = vmatpush1.bf16.msra.mxu0 0
        %3358 = vmatprep.subr.bf16.mxu0 0
        %3359 = vmatpush1.bf16.msra.mxu0 0
        %3360 = vmatprep.subr.bf16.mxu0 0
        %3361 = vmatpush1.bf16.msra.mxu0 0
        %3362 = vmatprep.subr.bf16.mxu0 0
        %3363 = vmatpush1.bf16.msra.mxu0 0
        %3364 = vmatprep.mubr.bf16.mxu0 0
        %3365 = vmatmul.mubr.bf16.gmra.mrb[0].mxu0 %v3248
        %v3366 = vpop.f32.mrb[0].mxu0
        %v3367 = vadd.f32 %v3285, %v3366
        %v3368 = vpop.f32.mrb[0].mxu0
        %v3369 = vadd.f32 %v3287, %v3368
        %v3370 = vpop.f32.mrb[0].mxu0
        %v3371 = vpop.f32.mrb[0].mxu0
        %3372 = vdwg.mxu0
        %3373 = vmatprep.subr.bf16.mxu0 %v1447
        %3374 = vmatpush1.bf16.msra.mxu0 %v1446
        %3375 = vmatprep.subr.bf16.mxu0 %v1451
        %3376 = vmatpush1.bf16.msra.mxu0 %v1450
        %3377 = vmatprep.subr.bf16.mxu0 %v1455
        %3378 = vmatpush1.bf16.msra.mxu0 %v1454
        %3379 = vmatprep.subr.bf16.mxu0 %v1459
        %3380 = vmatpush1.bf16.msra.mxu0 %v1458
        %3381 = vmatprep.subr.bf16.mxu0 %v1463
        %3382 = vmatpush1.bf16.msra.mxu0 %v1462
        %3383 = vmatprep.subr.bf16.mxu0 %v1467
        %3384 = vmatpush1.bf16.msra.mxu0 %v1466
        %3385 = vmatprep.subr.bf16.mxu0 %v1471
        %3386 = vmatpush1.bf16.msra.mxu0 %v1470
        %3387 = vmatprep.subr.bf16.mxu0 %v1475
        %3388 = vmatpush1.bf16.msra.mxu0 %v1474
        %3389 = vmatprep.subr.bf16.mxu0 0
        %3390 = vmatpush1.bf16.msra.mxu0 0
        %3391 = vmatprep.subr.bf16.mxu0 0
        %3392 = vmatpush1.bf16.msra.mxu0 0
        %3393 = vmatprep.subr.bf16.mxu0 0
        %3394 = vmatpush1.bf16.msra.mxu0 0
        %3395 = vmatprep.subr.bf16.mxu0 0
        %3396 = vmatpush1.bf16.msra.mxu0 0
        %3397 = vmatprep.subr.bf16.mxu0 0
        %3398 = vmatpush1.bf16.msra.mxu0 0
        %3399 = vmatprep.subr.bf16.mxu0 0
        %3400 = vmatpush1.bf16.msra.mxu0 0
        %3401 = vmatprep.subr.bf16.mxu0 0
        %3402 = vmatpush1.bf16.msra.mxu0 0
        %3403 = vmatprep.subr.bf16.mxu0 0
        %3404 = vmatpush1.bf16.msra.mxu0 0
        %3405 = vmatprep.mubr.bf16.mxu0 0
        %3406 = vmatmul.mubr.bf16.gmra.mrb[0].mxu0 %v3248
        %v3407 = vpop.f32.mrb[0].mxu0
        %v3408 = vadd.f32 %v3326, %v3407
        %v3409 = vpop.f32.mrb[0].mxu0
        %v3410 = vadd.f32 %v3328, %v3409
        %v3411 = vpop.f32.mrb[0].mxu0
        %v3412 = vpop.f32.mrb[0].mxu0
        %3413 = vdwg.mxu0
        %v3414 = vadd.f32 %v3367, %v812
        %v3415 = vadd.f32 %v3369, %v816
        %v3416 = vadd.f32 %v3408, %v820
        %v3417 = vadd.f32 %v3410, %v824
        %v3418 = vxor.u32 %v3414, 2147483648
        %v3419 = vxor.u32 %v3415, 2147483648
        %v3420 = vxor.u32 %v3416, 2147483648
        %v3421 = vmul.f32 %v3418, 1.442695
        %v3422 = vpow.pop %v3421
        %v3423 = vmul.f32 %v3419, 1.442695
        %v3424 = vpow.pop %v3423
        %v3425 = vmul.f32 %v3420, 1.442695
        %v3426 = vpow.pop %v3425
        %v3427 = vadd.f32 %v3422, 1.0
        %v3428 = vadd.f32 %v3424, 1.0
        %v3429 = vadd.f32 %v3426, 1.0
        %v3430 = vrcp.pop %v3427
        %v3431 = vmul.f32 1.0, %v3430
        %v3432 = vrcp.pop %v3428
        %v3433 = vmul.f32 1.0, %v3432
        %v3434 = vrcp.pop %v3429
        %v3435 = vmul.f32 1.0, %v3434
        %v3436 = vtanh.pop %v3417
        %v3437 = vmul.f32 %v3433, %v3135
        %v3438 = vmul.f32 %v3431, %v3436
        %v3439 = vadd.f32 %v3437, %v3438
        %v3440 = vtanh.pop %v3439
        %v3441 = vmul.f32 %v3435, %v3440
        %3442 = vmatprep.subr.bf16.mxu0 %v931
        %3443 = vmatpush1.bf16.msra.mxu0 %v930
        %3444 = vmatprep.subr.bf16.mxu0 %v935
        %3445 = vmatpush1.bf16.msra.mxu0 %v934
        %3446 = vmatprep.subr.bf16.mxu0 %v939
        %3447 = vmatpush1.bf16.msra.mxu0 %v938
        %3448 = vmatprep.subr.bf16.mxu0 %v943
        %3449 = vmatpush1.bf16.msra.mxu0 %v942
        %3450 = vmatprep.subr.bf16.mxu0 %v947
        %3451 = vmatpush1.bf16.msra.mxu0 %v946
        %3452 = vmatprep.subr.bf16.mxu0 %v951
        %3453 = vmatpush1.bf16.msra.mxu0 %v950
        %3454 = vmatprep.subr.bf16.mxu0 %v955
        %3455 = vmatpush1.bf16.msra.mxu0 %v954
        %3456 = vmatprep.subr.bf16.mxu0 %v959
        %3457 = vmatpush1.bf16.msra.mxu0 %v958
        %3458 = vmatprep.subr.bf16.mxu0 0
        %3459 = vmatpush1.bf16.msra.mxu0 0
        %3460 = vmatprep.subr.bf16.mxu0 0
        %3461 = vmatpush1.bf16.msra.mxu0 0
        %3462 = vmatprep.subr.bf16.mxu0 0
        %3463 = vmatpush1.bf16.msra.mxu0 0
        %3464 = vmatprep.subr.bf16.mxu0 0
        %3465 = vmatpush1.bf16.msra.mxu0 0
        %3466 = vmatprep.subr.bf16.mxu0 0
        %3467 = vmatpush1.bf16.msra.mxu0 0
        %3468 = vmatprep.subr.bf16.mxu0 0
        %3469 = vmatpush1.bf16.msra.mxu0 0
        %3470 = vmatprep.subr.bf16.mxu0 0
        %3471 = vmatpush1.bf16.msra.mxu0 0
        %3472 = vmatprep.subr.bf16.mxu0 0
        %3473 = vmatpush1.bf16.msra.mxu0 0
        %3474 = vmatprep.mubr.bf16.mxu0 0
        %3475 = vmatmul.mubr.bf16.gmra.mrb[0].mxu0 %v3248
        %v3476 = vpop.f32.mrb[0].mxu0
        %v3477 = vadd.f32 0.0, %v3476
        %v3478 = vpop.f32.mrb[0].mxu0
        %v3479 = vadd.f32 0.0, %v3478
        %v3480 = vpop.f32.mrb[0].mxu0
        %v3481 = vpop.f32.mrb[0].mxu0
        %3482 = vdwg.mxu0
        %3483 = vmatprep.subr.bf16.mxu0 %v933
        %3484 = vmatpush1.bf16.msra.mxu0 %v932
        %3485 = vmatprep.subr.bf16.mxu0 %v937
        %3486 = vmatpush1.bf16.msra.mxu0 %v936
        %3487 = vmatprep.subr.bf16.mxu0 %v941
        %3488 = vmatpush1.bf16.msra.mxu0 %v940
        %3489 = vmatprep.subr.bf16.mxu0 %v945
        %3490 = vmatpush1.bf16.msra.mxu0 %v944
        %3491 = vmatprep.subr.bf16.mxu0 %v949
        %3492 = vmatpush1.bf16.msra.mxu0 %v948
        %3493 = vmatprep.subr.bf16.mxu0 %v953
        %3494 = vmatpush1.bf16.msra.mxu0 %v952
        %3495 = vmatprep.subr.bf16.mxu0 %v957
        %3496 = vmatpush1.bf16.msra.mxu0 %v956
        %3497 = vmatprep.subr.bf16.mxu0 %v961
        %3498 = vmatpush1.bf16.msra.mxu0 %v960
        %3499 = vmatprep.subr.bf16.mxu0 0
        %3500 = vmatpush1.bf16.msra.mxu0 0
        %3501 = vmatprep.subr.bf16.mxu0 0
        %3502 = vmatpush1.bf16.msra.mxu0 0
        %3503 = vmatprep.subr.bf16.mxu0 0
        %3504 = vmatpush1.bf16.msra.mxu0 0
        %3505 = vmatprep.subr.bf16.mxu0 0
        %3506 = vmatpush1.bf16.msra.mxu0 0
        %3507 = vmatprep.subr.bf16.mxu0 0
        %3508 = vmatpush1.bf16.msra.mxu0 0
        %3509 = vmatprep.subr.bf16.mxu0 0
        %3510 = vmatpush1.bf16.msra.mxu0 0
        %3511 = vmatprep.subr.bf16.mxu0 0
        %3512 = vmatpush1.bf16.msra.mxu0 0
        %3513 = vmatprep.subr.bf16.mxu0 0
        %3514 = vmatpush1.bf16.msra.mxu0 0
        %3515 = vmatprep.mubr.bf16.mxu0 0
        %3516 = vmatmul.mubr.bf16.gmra.mrb[0].mxu0 %v3248
        %v3517 = vpop.f32.mrb[0].mxu0
        %v3518 = vadd.f32 0.0, %v3517
        %v3519 = vpop.f32.mrb[0].mxu0
        %v3520 = vadd.f32 0.0, %v3519
        %v3521 = vpop.f32.mrb[0].mxu0
        %v3522 = vpop.f32.mrb[0].mxu0
        %3523 = vdwg.mxu0
        %v3524 = vadd.f32 %v634, %v3477
        %v3525 = vadd.f32 %v636, %v3479
        %v3526 = vadd.f32 %v707, %v3518
        %v3527 = vadd.f32 %v709, %v3520
        %v3528 = vxor.u32 %v3524, 2147483648
        %v3529 = vxor.u32 %v3525, 2147483648
        %v3530 = vxor.u32 %v3526, 2147483648
        %v3531 = vmul.f32 %v3528, 1.442695
        %v3532 = vpow.pop %v3531
        %v3533 = vmul.f32 %v3529, 1.442695
        %v3534 = vpow.pop %v3533
        %v3535 = vmul.f32 %v3530, 1.442695
        %v3536 = vpow.pop %v3535
        %v3537 = vadd.f32 %v3532, 1.0
        %v3538 = vadd.f32 %v3534, 1.0
        %v3539 = vadd.f32 %v3536, 1.0
        %v3540 = vrcp.pop %v3537
        %v3541 = vmul.f32 1.0, %v3540
        %v3542 = vrcp.pop %v3538
        %v3543 = vmul.f32 1.0, %v3542
        %v3544 = vrcp.pop %v3539
        %v3545 = vmul.f32 1.0, %v3544
        %v3546 = vtanh.pop %v3527
        %v3547 = vmul.f32 %v3543, %v3245
        %v3548 = vmul.f32 %v3541, %v3546
        %v3549 = vadd.f32 %v3547, %v3548
        %v3550 = vtanh.pop %v3549
        %v3551 = vmul.f32 %v3545, %v3550
        %v3552 = vpack.c.bf16 %v3551, %v3551
        %v3553 = vpack.c.bf16 %v3441, %v3441
        %3554 = vmatprep.subr.bf16.mxu0 %v1203
        %3555 = vmatpush1.bf16.msra.mxu0 %v1202
        %3556 = vmatprep.subr.bf16.mxu0 %v1207
        %3557 = vmatpush1.bf16.msra.mxu0 %v1206
        %3558 = vmatprep.subr.bf16.mxu0 %v1211
        %3559 = vmatpush1.bf16.msra.mxu0 %v1210
        %3560 = vmatprep.subr.bf16.mxu0 %v1215
        %3561 = vmatpush1.bf16.msra.mxu0 %v1214
        %3562 = vmatprep.subr.bf16.mxu0 %v1219
        %3563 = vmatpush1.bf16.msra.mxu0 %v1218
        %3564 = vmatprep.subr.bf16.mxu0 %v1223
        %3565 = vmatpush1.bf16.msra.mxu0 %v1222
        %3566 = vmatprep.subr.bf16.mxu0 %v1227
        %3567 = vmatpush1.bf16.msra.mxu0 %v1226
        %3568 = vmatprep.subr.bf16.mxu0 %v1231
        %3569 = vmatpush1.bf16.msra.mxu0 %v1230
        %3570 = vmatprep.subr.bf16.mxu0 0
        %3571 = vmatpush1.bf16.msra.mxu0 0
        %3572 = vmatprep.subr.bf16.mxu0 0
        %3573 = vmatpush1.bf16.msra.mxu0 0
        %3574 = vmatprep.subr.bf16.mxu0 0
        %3575 = vmatpush1.bf16.msra.mxu0 0
        %3576 = vmatprep.subr.bf16.mxu0 0
        %3577 = vmatpush1.bf16.msra.mxu0 0
        %3578 = vmatprep.subr.bf16.mxu0 0
        %3579 = vmatpush1.bf16.msra.mxu0 0
        %3580 = vmatprep.subr.bf16.mxu0 0
        %3581 = vmatpush1.bf16.msra.mxu0 0
        %3582 = vmatprep.subr.bf16.mxu0 0
        %3583 = vmatpush1.bf16.msra.mxu0 0
        %3584 = vmatprep.subr.bf16.mxu0 0
        %3585 = vmatpush1.bf16.msra.mxu0 0
        %3586 = vmatprep.mubr.bf16.mxu0 0
        %3587 = vmatmul.mubr.bf16.gmra.mrb[0].mxu0 %v3553
        %v3588 = vpop.f32.mrb[0].mxu0
        %v3589 = vadd.f32 0.0, %v3588
        %v3590 = vpop.f32.mrb[0].mxu0
        %v3591 = vadd.f32 0.0, %v3590
        %v3592 = vpop.f32.mrb[0].mxu0
        %v3593 = vpop.f32.mrb[0].mxu0
        %3594 = vdwg.mxu0
        %3595 = vmatprep.subr.bf16.mxu0 %v1205
        %3596 = vmatpush1.bf16.msra.mxu0 %v1204
        %3597 = vmatprep.subr.bf16.mxu0 %v1209
        %3598 = vmatpush1.bf16.msra.mxu0 %v1208
        %3599 = vmatprep.subr.bf16.mxu0 %v1213
        %3600 = vmatpush1.bf16.msra.mxu0 %v1212
        %3601 = vmatprep.subr.bf16.mxu0 %v1217
        %3602 = vmatpush1.bf16.msra.mxu0 %v1216
        %3603 = vmatprep.subr.bf16.mxu0 %v1221
        %3604 = vmatpush1.bf16.msra.mxu0 %v1220
        %3605 = vmatprep.subr.bf16.mxu0 %v1225
        %3606 = vmatpush1.bf16.msra.mxu0 %v1224
        %3607 = vmatprep.subr.bf16.mxu0 %v1229
        %3608 = vmatpush1.bf16.msra.mxu0 %v1228
        %3609 = vmatprep.subr.bf16.mxu0 %v1233
        %3610 = vmatpush1.bf16.msra.mxu0 %v1232
        %3611 = vmatprep.subr.bf16.mxu0 0
        %3612 = vmatpush1.bf16.msra.mxu0 0
        %3613 = vmatprep.subr.bf16.mxu0 0
        %3614 = vmatpush1.bf16.msra.mxu0 0
        %3615 = vmatprep.subr.bf16.mxu0 0
        %3616 = vmatpush1.bf16.msra.mxu0 0
        %3617 = vmatprep.subr.bf16.mxu0 0
        %3618 = vmatpush1.bf16.msra.mxu0 0
        %3619 = vmatprep.subr.bf16.mxu0 0
        %3620 = vmatpush1.bf16.msra.mxu0 0
        %3621 = vmatprep.subr.bf16.mxu0 0
        %3622 = vmatpush1.bf16.msra.mxu0 0
        %3623 = vmatprep.subr.bf16.mxu0 0
        %3624 = vmatpush1.bf16.msra.mxu0 0
        %3625 = vmatprep.subr.bf16.mxu0 0
        %3626 = vmatpush1.bf16.msra.mxu0 0
        %3627 = vmatprep.mubr.bf16.mxu0 0
        %3628 = vmatmul.mubr.bf16.gmra.mrb[0].mxu0 %v3553
        %v3629 = vpop.f32.mrb[0].mxu0
        %v3630 = vadd.f32 0.0, %v3629
        %v3631 = vpop.f32.mrb[0].mxu0
        %v3632 = vadd.f32 0.0, %v3631
        %v3633 = vpop.f32.mrb[0].mxu0
        %v3634 = vpop.f32.mrb[0].mxu0
        %3635 = vdwg.mxu0
        %3636 = vmatprep.subr.bf16.mxu0 %v1445
        %3637 = vmatpush1.bf16.msra.mxu0 %v1444
        %3638 = vmatprep.subr.bf16.mxu0 %v1449
        %3639 = vmatpush1.bf16.msra.mxu0 %v1448
        %3640 = vmatprep.subr.bf16.mxu0 %v1453
        %3641 = vmatpush1.bf16.msra.mxu0 %v1452
        %3642 = vmatprep.subr.bf16.mxu0 %v1457
        %3643 = vmatpush1.bf16.msra.mxu0 %v1456
        %3644 = vmatprep.subr.bf16.mxu0 %v1461
        %3645 = vmatpush1.bf16.msra.mxu0 %v1460
        %3646 = vmatprep.subr.bf16.mxu0 %v1465
        %3647 = vmatpush1.bf16.msra.mxu0 %v1464
        %3648 = vmatprep.subr.bf16.mxu0 %v1469
        %3649 = vmatpush1.bf16.msra.mxu0 %v1468
        %3650 = vmatprep.subr.bf16.mxu0 %v1473
        %3651 = vmatpush1.bf16.msra.mxu0 %v1472
        %3652 = vmatprep.subr.bf16.mxu0 0
        %3653 = vmatpush1.bf16.msra.mxu0 0
        %3654 = vmatprep.subr.bf16.mxu0 0
        %3655 = vmatpush1.bf16.msra.mxu0 0
        %3656 = vmatprep.subr.bf16.mxu0 0
        %3657 = vmatpush1.bf16.msra.mxu0 0
        %3658 = vmatprep.subr.bf16.mxu0 0
        %3659 = vmatpush1.bf16.msra.mxu0 0
        %3660 = vmatprep.subr.bf16.mxu0 0
        %3661 = vmatpush1.bf16.msra.mxu0 0
        %3662 = vmatprep.subr.bf16.mxu0 0
        %3663 = vmatpush1.bf16.msra.mxu0 0
        %3664 = vmatprep.subr.bf16.mxu0 0
        %3665 = vmatpush1.bf16.msra.mxu0 0
        %3666 = vmatprep.subr.bf16.mxu0 0
        %3667 = vmatpush1.bf16.msra.mxu0 0
        %3668 = vmatprep.mubr.bf16.mxu0 0
        %3669 = vmatmul.mubr.bf16.gmra.mrb[0].mxu0 %v3552
        %v3670 = vpop.f32.mrb[0].mxu0
        %v3671 = vadd.f32 %v3589, %v3670
        %v3672 = vpop.f32.mrb[0].mxu0
        %v3673 = vadd.f32 %v3591, %v3672
        %v3674 = vpop.f32.mrb[0].mxu0
        %v3675 = vpop.f32.mrb[0].mxu0
        %3676 = vdwg.mxu0
        %3677 = vmatprep.subr.bf16.mxu0 %v1447
        %3678 = vmatpush1.bf16.msra.mxu0 %v1446
        %3679 = vmatprep.subr.bf16.mxu0 %v1451
        %3680 = vmatpush1.bf16.msra.mxu0 %v1450
        %3681 = vmatprep.subr.bf16.mxu0 %v1455
        %3682 = vmatpush1.bf16.msra.mxu0 %v1454
        %3683 = vmatprep.subr.bf16.mxu0 %v1459
        %3684 = vmatpush1.bf16.msra.mxu0 %v1458
        %3685 = vmatprep.subr.bf16.mxu0 %v1463
        %3686 = vmatpush1.bf16.msra.mxu0 %v1462
        %3687 = vmatprep.subr.bf16.mxu0 %v1467
        %3688 = vmatpush1.bf16.msra.mxu0 %v1466
        %3689 = vmatprep.subr.bf16.mxu0 %v1471
        %3690 = vmatpush1.bf16.msra.mxu0 %v1470
        %3691 = vmatprep.subr.bf16.mxu0 %v1475
        %3692 = vmatpush1.bf16.msra.mxu0 %v1474
        %3693 = vmatprep.subr.bf16.mxu0 0
        %3694 = vmatpush1.bf16.msra.mxu0 0
        %3695 = vmatprep.subr.bf16.mxu0 0
        %3696 = vmatpush1.bf16.msra.mxu0 0
        %3697 = vmatprep.subr.bf16.mxu0 0
        %3698 = vmatpush1.bf16.msra.mxu0 0
        %3699 = vmatprep.subr.bf16.mxu0 0
        %3700 = vmatpush1.bf16.msra.mxu0 0
        %3701 = vmatprep.subr.bf16.mxu0 0
        %3702 = vmatpush1.bf16.msra.mxu0 0
        %3703 = vmatprep.subr.bf16.mxu0 0
        %3704 = vmatpush1.bf16.msra.mxu0 0
        %3705 = vmatprep.subr.bf16.mxu0 0
        %3706 = vmatpush1.bf16.msra.mxu0 0
        %3707 = vmatprep.subr.bf16.mxu0 0
        %3708 = vmatpush1.bf16.msra.mxu0 0
        %3709 = vmatprep.mubr.bf16.mxu0 0
        %3710 = vmatmul.mubr.bf16.gmra.mrb[0].mxu0 %v3552
        %v3711 = vpop.f32.mrb[0].mxu0
        %v3712 = vadd.f32 %v3630, %v3711
        %v3713 = vpop.f32.mrb[0].mxu0
        %v3714 = vadd.f32 %v3632, %v3713
        %v3715 = vpop.f32.mrb[0].mxu0
        %v3716 = vpop.f32.mrb[0].mxu0
        %3717 = vdwg.mxu0
        %v3718 = vadd.f32 %v3671, %v812
        %v3719 = vadd.f32 %v3673, %v816
        %v3720 = vadd.f32 %v3712, %v820
        %v3721 = vadd.f32 %v3714, %v824
        %v3722 = vxor.u32 %v3718, 2147483648
        %v3723 = vxor.u32 %v3719, 2147483648
        %v3724 = vxor.u32 %v3720, 2147483648
        %v3725 = vmul.f32 %v3722, 1.442695
        %v3726 = vpow.pop %v3725
        %v3727 = vmul.f32 %v3723, 1.442695
        %v3728 = vpow.pop %v3727
        %v3729 = vmul.f32 %v3724, 1.442695
        %v3730 = vpow.pop %v3729
        %v3731 = vadd.f32 %v3726, 1.0
        %v3732 = vadd.f32 %v3728, 1.0
        %v3733 = vadd.f32 %v3730, 1.0
        %v3734 = vrcp.pop %v3731
        %v3735 = vmul.f32 1.0, %v3734
        %v3736 = vrcp.pop %v3732
        %v3737 = vmul.f32 1.0, %v3736
        %v3738 = vrcp.pop %v3733
        %v3739 = vmul.f32 1.0, %v3738
        %v3740 = vtanh.pop %v3721
        %v3741 = vmul.f32 %v3737, %v3439
        %v3742 = vmul.f32 %v3735, %v3740
        %v3743 = vadd.f32 %v3741, %v3742
        %v3744 = vtanh.pop %v3743
        %v3745 = vmul.f32 %v3739, %v3744
        %3746 = vst [vmem:[#allocation2] sm:$0xff] %v3551
        %3747 = vst [vmem:[#allocation3] sm:$0xff] %v3549
        %3748 = vst [vmem:[#allocation4] sm:$0xff] %v3745
        %3749 = vst [vmem:[#allocation5] sm:$0xff] %v3743
        %p3750 = scmp.eq.s32.totalorder %s20, 1
        // Predicated region
        $region65: #{culinary_lm_forward.2} parent=47 // pred_check
          %p3751 = pneg %p3750
        $region66: #{culinary_lm_forward.2} parent=47 // pred_check_branch
          %3753 = sbr.rel (%p3751) target = $region68
        $region67: #{culinary_lm_forward.2} parent=47 // pred_region
          %3754 = vst [vmem:[%s7] sm:$0xff] %v3745
        $region68: #{culinary_lm_forward.2} parent=47 // pred_fallthru
          _
        // Predicated region
        $region69: #{culinary_lm_forward.2} parent=47 // pred_check
          %p3755 = pneg %p185
        $region70: #{culinary_lm_forward.2} parent=47 // pred_check_branch
          %3757 = sbr.rel (%p3755) target = $region72
        $region71: #{culinary_lm_forward.2} parent=47 // pred_region
          _
        $region72: #{culinary_lm_forward.2} parent=47 // pred_fallthru
          _
        // Predicated region
        $region73: #{culinary_lm_forward.2} parent=47 // pred_check
          %p3758 = pneg %p185
        $region74: #{culinary_lm_forward.2} parent=47 // pred_check_branch
          %3760 = sbr.rel (%p3758) target = $region76
        $region75: #{culinary_lm_forward.2} parent=47 // pred_region
          _
        $region76: #{culinary_lm_forward.2} parent=47 // pred_fallthru
          _
      $region48: #{culinary_lm_forward.2} parent=5 // pred_fallthru
        _
      %p3761 = scmp.le.s32.totalorder 2, %s15
      // Predicated region
      $region77: #{culinary_lm_forward.2} parent=5 // pred_check
        %p3762 = pneg %p3761
      $region78: #{culinary_lm_forward.2} parent=5 // pred_check_branch
        %3764 = sbr.rel (%p3762) target = $region80
      $region79: #{culinary_lm_forward.2} parent=5 // pred_region
        %s3765 = ssub.s32 %s15, 2
      $region80: #{culinary_lm_forward.2} parent=5 // pred_fallthru
        _
    $region6: #{culinary_lm_forward.2} parent=1 // loop_footer
      %s19 = sadd.s32 1, %s15
    $region7: #{culinary_lm_forward.2} parent=1 // loop_footer_branch
      %14 = sbr.rel target = $region3
    $region8: #{culinary_lm_forward.2} parent=1 // loop_exit
      _
    %3766 = vsyncpa [#allocation7], 1
    %s3767 = scalar_lea.sflag [#allocation7], 1
    %3768 = vsyncpa %s3767, 1
    %3769 = vsyncpa [#allocation9], 1

</llo_original>
